<compile_context>
chip_gen: v5e
topology: v5e:2x2
jax: 0.10.0
libtpu: 0.0.40
codegen_flags: <defaults>
</compile_context>

<pallas_src>
import math

import jax
import jax.numpy as jnp
from jax.experimental import pallas as pl
from jax.experimental.pallas import tpu as pltpu  # noqa: F401  (TPU backend)

# ---------------- small synthetic config ----------------
B = 2            # batch
S = 8            # sequence length (power of two: enables shift/and index math)
V = 32           # vocab size
H = 32           # hidden size
NH = 4           # attention heads
DH = H // NH     # head dim
I = 64           # intermediate (FFN) size
N_LAYERS = 2     # encoder / decoder layers
CODEBOOK = 512   # codebook_size (module default)
NUM_Q = 8        # num_quantizers (module default)
VQ_WEIGHT = 0.1
LN_EPS = 1e-12
NEG = -1e9
ATT_SCALE = 1.0 / math.sqrt(DH)

assert S & (S - 1) == 0, "sequence length must be a power of two"
T = B * S                      # flattened token count
LOG2_S = S.bit_length() - 1

MXU_DTYPE = jnp.bfloat16       # MXU-native input dtype; accumulation stays float32


# ---------------- in-kernel helpers (traced inside the fused kernel) ----------------
def _mxu(x):
    return x.astype(MXU_DTYPE)


def _layernorm(x, g, b):
    mu = jnp.mean(x, axis=-1, keepdims=True)
    var = jnp.mean((x - mu) ** 2, axis=-1, keepdims=True)
    return (x - mu) * jax.lax.rsqrt(var + LN_EPS) * g + b


def _erf(x):
    # Abramowitz & Stegun 7.1.26 (|err| <= 1.5e-7): Mosaic has no erf primitive,
    # so exact-GELU's erf is evaluated with exp/abs/where only.
    ax = jnp.abs(x)
    t = 1.0 / (1.0 + 0.3275911 * ax)
    poly = ((((1.061405429 * t - 1.453152027) * t + 1.421413741) * t
             - 0.284496736) * t + 0.254829592) * t
    y = 1.0 - poly * jnp.exp(-ax * ax)
    return jnp.where(x >= 0.0, y, -y)


def _gelu(x):  # HF "gelu" == exact erf GELU
    return 0.5 * x * (1.0 + _erf(x * (1.0 / math.sqrt(2.0))))


def _self_attention(x, bias, qkv_w, qkv_b, o_w, o_b, ln_g, ln_b):
    """x: (T, H) f32; bias: (T, T) f32 (batch isolation / padding / causal baked in).
    Fused QKV projection; per-head output projections summed (no concat)."""
    qkv = jnp.dot(_mxu(x), qkv_w, preferred_element_type=jnp.float32) + qkv_b   # (T, 3H)
    out = jnp.zeros((x.shape[0], H), jnp.float32)
    for h in range(NH):                                                          # static unroll
        q = qkv[:, h * DH:(h + 1) * DH]
        k = qkv[:, H + h * DH:H + (h + 1) * DH]
        v = qkv[:, 2 * H + h * DH:2 * H + (h + 1) * DH]
        s = jax.lax.dot_general(_mxu(q), _mxu(k), (((1,), (1,)), ((), ())),
                                preferred_element_type=jnp.float32) * ATT_SCALE + bias
        s = s - jnp.max(s, axis=-1, keepdims=True)
        e = jnp.exp(s)
        p = e * pl.reciprocal(jnp.sum(e, axis=-1, keepdims=True), approx=True)   # EUP recip
        ctx = jnp.dot(_mxu(p), _mxu(v), preferred_element_type=jnp.float32)      # (T, DH)
        out = out + jnp.dot(_mxu(ctx), o_w[h * DH:(h + 1) * DH, :],
                            preferred_element_type=jnp.float32)                  # sum of per-head o-proj
    return _layernorm(x + out + o_b, ln_g, ln_b)


def _ffn(x, f1_w, f1_b, f2_w, f2_b, ln_g, ln_b):
    h = jnp.dot(_mxu(x), f1_w, preferred_element_type=jnp.float32) + f1_b
    h = _gelu(h)
    h = jnp.dot(_mxu(h), f2_w, preferred_element_type=jnp.float32) + f2_b
    return _layernorm(x + h, ln_g, ln_b)


# ---------------- the single fused kernel ----------------
def _vq_fused_kernel(
    ids_ref, lab_ref, am_ref,
    # encoder
    ew_ref, ep_ref, eg_ref, eb_ref,
    eqkvw_ref, eqkvb_ref, eaow_ref, eaob_ref, eln1g_ref, eln1b_ref,
    ef1w_ref, ef1b_ref, ef2w_ref, ef2b_ref, eln2g_ref, eln2b_ref,
    poolw_ref, poolb_ref,
    # residual VQ
    cb_ref, cbt_ref, cbsq_ref,
    # decoder
    dw_ref, dp_ref, dg_ref, db_ref,
    dqkvw_ref, dqkvb_ref, daow_ref, daob_ref, dln1g_ref, dln1b_ref,
    dcvw_ref, dcvb_ref, dcow_ref, dcob_ref, dlncg_ref, dlncb_ref,
    df1w_ref, df1b_ref, df2w_ref, df2b_ref, dln2g_ref, dln2b_ref,
    lmw_ref, lmb_ref,
    # outputs
    logits_ref, idx_ref, loss_ref,
):
    # ---- shared index / mask material (tiny (T,T)/(T,V) tiles, built once) ----
    ids = ids_ref[...]                                                 # (T, 1) i32
    lane_v = jax.lax.broadcasted_iota(jnp.int32, (T, V), 1)
    onehot_ids = (lane_v == ids).astype(jnp.float32)                   # (T, V) one-hot gather matrix

    rows = jax.lax.broadcasted_iota(jnp.int32, (T, T), 0)
    cols = jax.lax.broadcasted_iota(jnp.int32, (T, T), 1)
    same_batch = jnp.right_shift(rows, LOG2_S) == jnp.right_shift(cols, LOG2_S)
    causal = jnp.bitwise_and(cols, S - 1) <= jnp.bitwise_and(rows, S - 1)
    key_ok = am_ref[...] >= 0.5                                        # (1, T) key-padding mask
    enc_bias = jnp.where(same_batch & key_ok, 0.0, NEG)                # (T, T)
    dec_bias = jnp.where(same_batch & key_ok & causal, 0.0, NEG)       # (T, T)

    # ---- encoder: in-kernel embedding gather + layers + [CLS] pooling ----
    x = jnp.dot(onehot_ids, ew_ref[...], preferred_element_type=jnp.float32)     # word emb (f32)
    x = x + jnp.concatenate([ep_ref[...]] * B, axis=0)                            # + position emb
    x = _layernorm(x, eg_ref[...], eb_ref[...])
    for l in range(N_LAYERS):                                                     # static unroll
        x = _self_attention(x, enc_bias, eqkvw_ref[l], eqkvb_ref[l],
                            eaow_ref[l], eaob_ref[l], eln1g_ref[l], eln1b_ref[l])
        x = _ffn(x, ef1w_ref[l], ef1b_ref[l], ef2w_ref[l], ef2b_ref[l],
                 eln2g_ref[l], eln2b_ref[l])
    cls = jnp.concatenate([x[b * S:b * S + 1, :] for b in range(B)], axis=0)      # (B, H) [CLS] rows
    pooled = (jnp.dot(_mxu(cls), poolw_ref[...],
                      preferred_element_type=jnp.float32) + poolb_ref[...])       # (B, H)

    # ---- residual VQ (f32 distance path; batched over B rows) ----
    residual = pooled
    quant_total = jnp.zeros_like(residual)
    qlane = jax.lax.broadcasted_iota(jnp.int32, (B, NUM_Q), 1)
    idx_acc = jnp.zeros((B, NUM_Q), jnp.int32)
    commit_acc = jnp.zeros((B, NUM_Q), jnp.float32)
    lane_c = jax.lax.broadcasted_iota(jnp.int32, (B, CODEBOOK), 1)
    for qi in range(NUM_Q):                                                       # static unroll
        cross = jnp.dot(residual, cbt_ref[qi],
                        preferred_element_type=jnp.float32)                       # (B, C) lane-dense
        # argmin_c ||r - c||^2 == argmin_c (|c|^2 - 2 r.c): the per-row |r|^2 is
        # dropped (constant per row) to avoid the worst cancellation term.
        score = cbsq_ref[qi] - 2.0 * cross                                        # (B, C)
        smin = jnp.min(score, axis=-1, keepdims=True)
        idx = jnp.min(jnp.where(score == smin, lane_c, CODEBOOK),
                      axis=-1, keepdims=True)                                     # (B, 1) first-min tiebreak
        onehot = (lane_c == idx).astype(jnp.float32)                              # (B, C)
        quant = jnp.dot(onehot, cb_ref[qi],
                        preferred_element_type=jnp.float32)                       # (B, H) codebook lookup
        d = quant - residual
        commit = jnp.mean(d * d, axis=-1, keepdims=True)                          # (B, 1) per-row MSE
        idx_acc = jnp.where(qlane == qi, idx, idx_acc)                            # vreg accumulate,
        commit_acc = jnp.where(qlane == qi, commit, commit_acc)                   # single store after loop
        quant_total = quant_total + quant
        residual = residual - quant
    idx_ref[...] = idx_acc
    # TODO(synk): forward-only — no straight-through estimator / stop_gradient in the RVQ path.

    # ---- decoder: embeddings + layers (causal self-attn + 1-token cross-attn) ----
    y = jnp.dot(onehot_ids, dw_ref[...], preferred_element_type=jnp.float32)
    y = y + jnp.concatenate([dp_ref[...]] * B, axis=0)
    y = _layernorm(y, dg_ref[...], db_ref[...])
    for l in range(N_LAYERS):                                                     # static unroll
        y = _self_attention(y, dec_bias, dqkvw_ref[l], dqkvb_ref[l],
                            daow_ref[l], daob_ref[l], dln1g_ref[l], dln1b_ref[l])
        # Cross-attention over a single un-masked encoder token: softmax over one
        # key is identically 1 for every head, so the attended context equals the
        # value projection of that token (query/key cross projections cancel out).
        cv = (jnp.dot(_mxu(quant_total), dcvw_ref[l],
                      preferred_element_type=jnp.float32) + dcvb_ref[l])          # (B, H)
        co = (jnp.dot(_mxu(cv), dcow_ref[l],
                      preferred_element_type=jnp.float32) + dcob_ref[l])          # (B, H)
        co_full = jnp.concatenate(
            [jnp.broadcast_to(co[b:b + 1, :], (S, H)) for b in range(B)], axis=0)  # (T, H)
        y = _layernorm(y + co_full, dlncg_ref[l], dlncb_ref[l])
        y = _ffn(y, df1w_ref[l], df1b_ref[l], df2w_ref[l], df2b_ref[l],
                 dln2g_ref[l], dln2b_ref[l])

    # ---- LM head + shifted cross entropy + total loss (all in-kernel) ----
    logits = (jnp.dot(_mxu(y), lmw_ref[...],
                      preferred_element_type=jnp.float32) + lmb_ref[...])          # (T, V)
    logits_ref[...] = logits
    zmax = jnp.max(logits, axis=-1, keepdims=True)
    lse = jnp.log(jnp.sum(jnp.exp(logits - zmax), axis=-1, keepdims=True)) + zmax
    lab = lab_ref[...]                                                             # (T, 1)
    lab_next = jnp.concatenate([lab[1:, :], lab[:1, :]], axis=0)                   # next-token labels
    tgt = jnp.sum(jnp.where(lane_v == lab_next, logits, 0.0), axis=-1, keepdims=True)
    rows_t = jax.lax.broadcasted_iota(jnp.int32, (T, 1), 0)
    valid = (jnp.bitwise_and(rows_t, S - 1) != (S - 1)).astype(jnp.float32)        # last pos of each seq dropped
    ce_sum = jnp.sum((lse - tgt) * valid, axis=0, keepdims=True)                   # (1, 1)
    commit_sum = jnp.sum(jnp.sum(commit_acc, axis=1, keepdims=True),
                         axis=0, keepdims=True)                                    # (1, 1)
    loss_ref[...] = (ce_sum * (1.0 / (B * (S - 1)))
                     + commit_sum * (VQ_WEIGHT / (B * NUM_Q)))
    # TODO(synk): torch CrossEntropyLoss ignore_index=-100 not handled (unused with these labels).


# ---------------- pallas_call wrapper (single launch, no grid) ----------------
def vq_fused_pallas(pk, ids_col, labels_col, am_row):
    # No grid / BlockSpecs: every operand is tiny (total ~1.2 MiB) and is placed
    # whole in VMEM; single kernel invocation, single-buffered.
    return pl.pallas_call(
        _vq_fused_kernel,
        out_shape=(
            jax.ShapeDtypeStruct((T, V), jnp.float32),       # logits (flattened tokens)
            jax.ShapeDtypeStruct((B, NUM_Q), jnp.int32),     # RVQ indices
            jax.ShapeDtypeStruct((1, 1), jnp.float32),       # total loss
        ),
    )(ids_col, labels_col, am_row,
      pk["enc_word"], pk["enc_pos"], pk["enc_emb_g"], pk["enc_emb_b"],
      pk["enc_qkv_w"], pk["enc_qkv_b"], pk["enc_ao_w"], pk["enc_ao_b"],
      pk["enc_ln1_g"], pk["enc_ln1_b"],
      pk["enc_f1_w"], pk["enc_f1_b"], pk["enc_f2_w"], pk["enc_f2_b"],
      pk["enc_ln2_g"], pk["enc_ln2_b"],
      pk["pool_w"], pk["pool_b"],
      pk["codebooks"], pk["codebooks_t"], pk["cb_sq"],
      pk["dec_word"], pk["dec_pos"], pk["dec_emb_g"], pk["dec_emb_b"],
      pk["dec_qkv_w"], pk["dec_qkv_b"], pk["dec_ao_w"], pk["dec_ao_b"],
      pk["dec_ln1_g"], pk["dec_ln1_b"],
      pk["dec_cv_w"], pk["dec_cv_b"], pk["dec_co_w"], pk["dec_co_b"],
      pk["dec_lnc_g"], pk["dec_lnc_b"],
      pk["dec_f1_w"], pk["dec_f1_b"], pk["dec_f2_w"], pk["dec_f2_b"],
      pk["dec_ln2_g"], pk["dec_ln2_b"],
      pk["lm_w"], pk["lm_b"])


# ---------------- parameter init (deterministic, synthetic, torch-like layout) ----------------
def _dense(key, din, dout, scale=0.02):
    return {
        "w": jax.random.normal(key, (din, dout), jnp.float32) * scale,
        "b": jnp.zeros((dout,), jnp.float32),
    }


def _layer(key, cross):
    ks = jax.random.split(key, 10)
    p = {
        "q": _dense(ks[0], H, H), "k": _dense(ks[1], H, H),
        "v": _dense(ks[2], H, H), "o": _dense(ks[3], H, H),
        "ln1_g": jnp.ones((H,), jnp.float32), "ln1_b": jnp.zeros((H,), jnp.float32),
        "ffn1": _dense(ks[4], H, I), "ffn2": _dense(ks[5], I, H),
        "ln_out_g": jnp.ones((H,), jnp.float32), "ln_out_b": jnp.zeros((H,), jnp.float32),
    }
    if cross:
        # cq/ck exist in the torch module but cancel out of the forward pass when the
        # encoder sequence length is 1 (softmax over a single key == 1); kept for fidelity.
        p.update({
            "cq": _dense(ks[6], H, H), "ck": _dense(ks[7], H, H),
            "cv": _dense(ks[8], H, H), "co": _dense(ks[9], H, H),
            "ln_cross_g": jnp.ones((H,), jnp.float32),
            "ln_cross_b": jnp.zeros((H,), jnp.float32),
        })
    return p


def _emb(key):
    k1, k2 = jax.random.split(key)
    return {
        "word": jax.random.normal(k1, (V, H), jnp.float32) * 0.02,
        "pos": jax.random.normal(k2, (S, H), jnp.float32) * 0.02,
        "ln_g": jnp.ones((H,), jnp.float32),
        "ln_b": jnp.zeros((H,), jnp.float32),
    }


def init_params(key):
    keys = jax.random.split(key, 7)
    dec_emb = _emb(keys[3])
    return {
        "enc_emb": _emb(keys[2]),
        "dec_emb": dec_emb,
        "enc_layers": [_layer(k, cross=False) for k in jax.random.split(keys[0], N_LAYERS)],
        "dec_layers": [_layer(k, cross=True) for k in jax.random.split(keys[1], N_LAYERS)],
        "pooling": _dense(keys[4], H, H),
        # lm_head weight tied to decoder word embeddings (HF default), bias separate
        "lm_head": {"w": dec_emb["word"].T, "b": jnp.zeros((V,), jnp.float32)},
        "codebooks": jax.random.normal(keys[6], (NUM_Q, CODEBOOK, H), jnp.float32) * 0.02,
    }


def pack_params(p):
    """One-time packing: stack per-layer weights, fuse QKV, hoist bias reshapes,
    precompute codebook norms + transposed codebooks, cast MXU operands to bf16
    (elementwise math and the RVQ distance path stay f32)."""
    mm = MXU_DTYPE

    def stack(layers, fn):
        return jnp.stack([fn(l) for l in layers], axis=0)

    def qkv_w(l):
        return jnp.concatenate([l["q"]["w"], l["k"]["w"], l["v"]["w"]], axis=1)

    def qkv_b(l):
        return jnp.concatenate([l["q"]["b"], l["k"]["b"], l["v"]["b"]], axis=0)[None, :]

    def common(layers, prefix):
        return {
            prefix + "qkv_w": stack(layers, qkv_w).astype(mm),
            prefix + "qkv_b": stack(layers, qkv_b),
            prefix + "ao_w": stack(layers, lambda l: l["o"]["w"]).astype(mm),
            prefix + "ao_b": stack(layers, lambda l: l["o"]["b"][None, :]),
            prefix + "ln1_g": stack(layers, lambda l: l["ln1_g"][None, :]),
            prefix + "ln1_b": stack(layers, lambda l: l["ln1_b"][None, :]),
            prefix + "f1_w": stack(layers, lambda l: l["ffn1"]["w"]).astype(mm),
            prefix + "f1_b": stack(layers, lambda l: l["ffn1"]["b"][None, :]),
            prefix + "f2_w": stack(layers, lambda l: l["ffn2"]["w"]).astype(mm),
            prefix + "f2_b": stack(layers, lambda l: l["ffn2"]["b"][None, :]),
            prefix + "ln2_g": stack(layers, lambda l: l["ln_out_g"][None, :]),
            prefix + "ln2_b": stack(layers, lambda l: l["ln_out_b"][None, :]),
        }

    enc, dec = p["enc_layers"], p["dec_layers"]
    pk = {
        "enc_word": p["enc_emb"]["word"], "enc_pos": p["enc_emb"]["pos"],
        "enc_emb_g": p["enc_emb"]["ln_g"][None, :], "enc_emb_b": p["enc_emb"]["ln_b"][None, :],
        "dec_word": p["dec_emb"]["word"], "dec_pos": p["dec_emb"]["pos"],
        "dec_emb_g": p["dec_emb"]["ln_g"][None, :], "dec_emb_b": p["dec_emb"]["ln_b"][None, :],
        "pool_w": p["pooling"]["w"].astype(mm), "pool_b": p["pooling"]["b"][None, :],
        "lm_w": p["lm_head"]["w"].astype(mm), "lm_b": p["lm_head"]["b"][None, :],
        "codebooks": p["codebooks"],                                      # (Q, C, H) f32
        "codebooks_t": jnp.transpose(p["codebooks"], (0, 2, 1)),          # (Q, H, C) f32 lane-dense cross
        "cb_sq": jnp.sum(p["codebooks"] ** 2, axis=-1)[:, None, :],       # (Q, 1, C)
    }
    pk.update(common(enc, "enc_"))
    pk.update(common(dec, "dec_"))
    pk.update({
        "dec_cv_w": stack(dec, lambda l: l["cv"]["w"]).astype(mm),
        "dec_cv_b": stack(dec, lambda l: l["cv"]["b"][None, :]),
        "dec_co_w": stack(dec, lambda l: l["co"]["w"]).astype(mm),
        "dec_co_b": stack(dec, lambda l: l["co"]["b"][None, :]),
        "dec_lnc_g": stack(dec, lambda l: l["ln_cross_g"][None, :]),
        "dec_lnc_b": stack(dec, lambda l: l["ln_cross_b"][None, :]),
    })
    return pk


# ---------------- forward: one fused pallas_call + trivial host reshapes ----------------
def vq_forward(pk, input_ids, attention_mask, labels):
    ids_col = input_ids.reshape(T, 1).astype(jnp.int32)             # (T, 1)
    labels_col = labels.reshape(T, 1).astype(jnp.int32)             # (T, 1)
    am_row = attention_mask.reshape(1, T).astype(jnp.float32)       # (1, T) lane-major key mask
    logits_flat, indices, loss11 = vq_fused_pallas(pk, ids_col, labels_col, am_row)
    return loss11[0, 0], logits_flat.reshape(B, S, V), indices


# ---------------- driver ----------------
if __name__ == "__main__":
    key = jax.random.PRNGKey(0)
    pkey, ikey, lkey = jax.random.split(key, 3)
    params = init_params(pkey)
    packed = pack_params(params)
    input_ids = jax.random.randint(ikey, (B, S), 0, V, dtype=jnp.int32)
    attention_mask = jnp.ones((B, S), jnp.int32)
    labels = jax.random.randint(lkey, (B, S), 0, V, dtype=jnp.int32)

    total_loss, logits, indices = jax.jit(vq_forward)(
        packed, input_ids, attention_mask, labels)
    jax.block_until_ready((total_loss, logits, indices))
    assert logits.shape == (B, S, V)
    assert indices.shape == (B, NUM_Q)
    assert jnp.isfinite(total_loss)
    print("KERNEL_OK")
</pallas_src>

<mosaic_0001>
module attributes {stable_mosaic.version = 11 : i64} {
  func.func @_vq_fused_kernel(%arg0: memref<16x1xi32, #tpu.memory_space<vmem>>, %arg1: memref<16x1xi32, #tpu.memory_space<vmem>>, %arg2: memref<1x16xf32, #tpu.memory_space<vmem>>, %arg3: memref<32x32xf32, #tpu.memory_space<vmem>>, %arg4: memref<8x32xf32, #tpu.memory_space<vmem>>, %arg5: memref<1x32xf32, #tpu.memory_space<vmem>>, %arg6: memref<1x32xf32, #tpu.memory_space<vmem>>, %arg7: memref<2x32x96xbf16, #tpu.memory_space<vmem>>, %arg8: memref<2x1x96xf32, #tpu.memory_space<vmem>>, %arg9: memref<2x32x32xbf16, #tpu.memory_space<vmem>>, %arg10: memref<2x1x32xf32, #tpu.memory_space<vmem>>, %arg11: memref<2x1x32xf32, #tpu.memory_space<vmem>>, %arg12: memref<2x1x32xf32, #tpu.memory_space<vmem>>, %arg13: memref<2x32x64xbf16, #tpu.memory_space<vmem>>, %arg14: memref<2x1x64xf32, #tpu.memory_space<vmem>>, %arg15: memref<2x64x32xbf16, #tpu.memory_space<vmem>>, %arg16: memref<2x1x32xf32, #tpu.memory_space<vmem>>, %arg17: memref<2x1x32xf32, #tpu.memory_space<vmem>>, %arg18: memref<2x1x32xf32, #tpu.memory_space<vmem>>, %arg19: memref<32x32xbf16, #tpu.memory_space<vmem>>, %arg20: memref<1x32xf32, #tpu.memory_space<vmem>>, %arg21: memref<8x512x32xf32, #tpu.memory_space<vmem>>, %arg22: memref<8x32x512xf32, #tpu.memory_space<vmem>>, %arg23: memref<8x1x512xf32, #tpu.memory_space<vmem>>, %arg24: memref<32x32xf32, #tpu.memory_space<vmem>>, %arg25: memref<8x32xf32, #tpu.memory_space<vmem>>, %arg26: memref<1x32xf32, #tpu.memory_space<vmem>>, %arg27: memref<1x32xf32, #tpu.memory_space<vmem>>, %arg28: memref<2x32x96xbf16, #tpu.memory_space<vmem>>, %arg29: memref<2x1x96xf32, #tpu.memory_space<vmem>>, %arg30: memref<2x32x32xbf16, #tpu.memory_space<vmem>>, %arg31: memref<2x1x32xf32, #tpu.memory_space<vmem>>, %arg32: memref<2x1x32xf32, #tpu.memory_space<vmem>>, %arg33: memref<2x1x32xf32, #tpu.memory_space<vmem>>, %arg34: memref<2x32x32xbf16, #tpu.memory_space<vmem>>, %arg35: memref<2x1x32xf32, #tpu.memory_space<vmem>>, %arg36: memref<2x32x32xbf16, #tpu.memory_space<vmem>>, %arg37: memref<2x1x32xf32, #tpu.memory_space<vmem>>, %arg38: memref<2x1x32xf32, #tpu.memory_space<vmem>>, %arg39: memref<2x1x32xf32, #tpu.memory_space<vmem>>, %arg40: memref<2x32x64xbf16, #tpu.memory_space<vmem>>, %arg41: memref<2x1x64xf32, #tpu.memory_space<vmem>>, %arg42: memref<2x64x32xbf16, #tpu.memory_space<vmem>>, %arg43: memref<2x1x32xf32, #tpu.memory_space<vmem>>, %arg44: memref<2x1x32xf32, #tpu.memory_space<vmem>>, %arg45: memref<2x1x32xf32, #tpu.memory_space<vmem>>, %arg46: memref<32x32xbf16, #tpu.memory_space<vmem>>, %arg47: memref<1x32xf32, #tpu.memory_space<vmem>>, %arg48: memref<16x32xf32, #tpu.memory_space<vmem>>, %arg49: memref<2x8xi32, #tpu.memory_space<vmem>>, %arg50: memref<1x1xf32, #tpu.memory_space<vmem>>) attributes {dimension_semantics = [], scalar_prefetch = 0 : i64, scratch_operands = 0 : i64, tpu.core_type = #tpu.core_type<tc>} {
    %c0 = arith.constant 0 : index
    %c0_0 = arith.constant 0 : index
    %0 = vector.load %arg0[%c0, %c0_0] : memref<16x1xi32, #tpu.memory_space<vmem>>, vector<16x1xi32>
    %1 = tpu.iota {dimensions = array<i32: 1>} : vector<16x32xi32>
    %2 = vector.broadcast %0 : vector<16x1xi32> to vector<16x32xi32>
    %3 = arith.cmpi eq, %1, %2 : vector<16x32xi32>
    %4 = arith.extui %3 : vector<16x32xi1> to vector<16x32xi32>
    %5 = arith.sitofp %4 : vector<16x32xi32> to vector<16x32xf32>
    %6 = tpu.iota {dimensions = array<i32: 0>} : vector<16x16xi32>
    %7 = tpu.iota {dimensions = array<i32: 1>} : vector<16x16xi32>
    %c3_i32 = arith.constant 3 : i32
    %8 = vector.broadcast %c3_i32 : i32 to vector<16x16xi32>
    %9 = arith.shrsi %6, %8 : vector<16x16xi32>
    %c3_i32_1 = arith.constant 3 : i32
    %10 = vector.broadcast %c3_i32_1 : i32 to vector<16x16xi32>
    %11 = arith.shrsi %7, %10 : vector<16x16xi32>
    %12 = arith.cmpi eq, %9, %11 : vector<16x16xi32>
    %c7_i32 = arith.constant 7 : i32
    %13 = vector.broadcast %c7_i32 : i32 to vector<16x16xi32>
    %14 = arith.andi %7, %13 : vector<16x16xi32>
    %c7_i32_2 = arith.constant 7 : i32
    %15 = vector.broadcast %c7_i32_2 : i32 to vector<16x16xi32>
    %16 = arith.andi %6, %15 : vector<16x16xi32>
    %17 = arith.cmpi sle, %14, %16 : vector<16x16xi32>
    %c0_3 = arith.constant 0 : index
    %c0_4 = arith.constant 0 : index
    %18 = vector.load %arg2[%c0_3, %c0_4] : memref<1x16xf32, #tpu.memory_space<vmem>>, vector<1x16xf32>
    %cst = arith.constant 5.000000e-01 : f32
    %19 = vector.broadcast %cst : f32 to vector<1x16xf32>
    %20 = arith.cmpf oge, %18, %19 : vector<1x16xf32>
    %21 = vector.broadcast %20 : vector<1x16xi1> to vector<16x16xi1>
    %22 = arith.andi %12, %21 : vector<16x16xi1>
    %cst_5 = arith.constant 0.000000e+00 : f32
    %cst_6 = arith.constant -1.000000e+09 : f32
    %23 = vector.broadcast %cst_5 : f32 to vector<16x16xf32>
    %24 = vector.broadcast %cst_6 : f32 to vector<16x16xf32>
    %25 = arith.select %22, %23, %24 : vector<16x16xi1>, vector<16x16xf32>
    %26 = vector.broadcast %20 : vector<1x16xi1> to vector<16x16xi1>
    %27 = arith.andi %12, %26 : vector<16x16xi1>
    %28 = arith.andi %27, %17 : vector<16x16xi1>
    %cst_7 = arith.constant 0.000000e+00 : f32
    %cst_8 = arith.constant -1.000000e+09 : f32
    %29 = vector.broadcast %cst_7 : f32 to vector<16x16xf32>
    %30 = vector.broadcast %cst_8 : f32 to vector<16x16xf32>
    %31 = arith.select %28, %29, %30 : vector<16x16xi1>, vector<16x16xf32>
    %c0_9 = arith.constant 0 : index
    %c0_10 = arith.constant 0 : index
    %32 = vector.load %arg3[%c0_9, %c0_10] : memref<32x32xf32, #tpu.memory_space<vmem>>, vector<32x32xf32>
    %cst_11 = arith.constant dense<0.000000e+00> : vector<16x32xf32>
    %33 = tpu.matmul %5, %32, %cst_11 {dimension_numbers = #tpu.dot_dimension_numbers<[1], [0], [0], [1], [0, 0, 1, 1], [], []>} : vector<16x32xf32>, vector<32x32xf32>, vector<16x32xf32> -> vector<16x32xf32>
    %c0_12 = arith.constant 0 : index
    %c0_13 = arith.constant 0 : index
    %34 = vector.load %arg4[%c0_12, %c0_13] : memref<8x32xf32, #tpu.memory_space<vmem>>, vector<8x32xf32>
    %35 = tpu.concatenate %34, %34 in 0 : vector<8x32xf32>, vector<8x32xf32> -> vector<16x32xf32>
    %36 = arith.addf %33, %35 : vector<16x32xf32>
    %c0_14 = arith.constant 0 : index
    %c0_15 = arith.constant 0 : index
    %37 = vector.load %arg5[%c0_14, %c0_15] : memref<1x32xf32, #tpu.memory_space<vmem>>, vector<1x32xf32>
    %c0_16 = arith.constant 0 : index
    %c0_17 = arith.constant 0 : index
    %38 = vector.load %arg6[%c0_16, %c0_17] : memref<1x32xf32, #tpu.memory_space<vmem>>, vector<1x32xf32>
    %cst_18 = arith.constant dense<0.000000e+00> : vector<16xf32>
    %39 = vector.multi_reduction <add>, %36, %cst_18 [1] : vector<16x32xf32> to vector<16xf32>
    %40 = vector.shape_cast %39 : vector<16xf32> to vector<16x1xf32>
    %cst_19 = arith.constant 3.200000e+01 : f32
    %41 = vector.broadcast %cst_19 : f32 to vector<16x1xf32>
    %42 = arith.divf %40, %41 : vector<16x1xf32>
    %43 = vector.broadcast %42 : vector<16x1xf32> to vector<16x32xf32>
    %44 = arith.subf %36, %43 : vector<16x32xf32>
    %45 = arith.mulf %44, %44 : vector<16x32xf32>
    %cst_20 = arith.constant dense<0.000000e+00> : vector<16xf32>
    %46 = vector.multi_reduction <add>, %45, %cst_20 [1] : vector<16x32xf32> to vector<16xf32>
    %47 = vector.shape_cast %46 : vector<16xf32> to vector<16x1xf32>
    %cst_21 = arith.constant 3.200000e+01 : f32
    %48 = vector.broadcast %cst_21 : f32 to vector<16x1xf32>
    %49 = arith.divf %47, %48 : vector<16x1xf32>
    %50 = vector.broadcast %42 : vector<16x1xf32> to vector<16x32xf32>
    %51 = arith.subf %36, %50 : vector<16x32xf32>
    %cst_22 = arith.constant 9.99999996E-13 : f32
    %52 = vector.broadcast %cst_22 : f32 to vector<16x1xf32>
    %53 = arith.addf %49, %52 : vector<16x1xf32>
    %54 = math.rsqrt %53 : vector<16x1xf32>
    %55 = vector.broadcast %54 : vector<16x1xf32> to vector<16x32xf32>
    %56 = arith.mulf %51, %55 : vector<16x32xf32>
    %57 = vector.broadcast %37 : vector<1x32xf32> to vector<16x32xf32>
    %58 = arith.mulf %56, %57 : vector<16x32xf32>
    %59 = vector.broadcast %38 : vector<1x32xf32> to vector<16x32xf32>
    %60 = arith.addf %58, %59 : vector<16x32xf32>
    %c0_23 = arith.constant 0 : index
    %c0_24 = arith.constant 0 : index
    %c0_25 = arith.constant 0 : index
    %61 = vector.load %arg7[%c0_23, %c0_24, %c0_25] : memref<2x32x96xbf16, #tpu.memory_space<vmem>>, vector<1x32x96xbf16>
    %62 = vector.shape_cast %61 : vector<1x32x96xbf16> to vector<32x96xbf16>
    %c0_26 = arith.constant 0 : index
    %c0_27 = arith.constant 0 : index
    %c0_28 = arith.constant 0 : index
    %63 = vector.load %arg8[%c0_26, %c0_27, %c0_28] : memref<2x1x96xf32, #tpu.memory_space<vmem>>, vector<1x1x96xf32>
    %64 = vector.shape_cast %63 : vector<1x1x96xf32> to vector<1x96xf32>
    %c0_29 = arith.constant 0 : index
    %c0_30 = arith.constant 0 : index
    %c0_31 = arith.constant 0 : index
    %65 = vector.load %arg9[%c0_29, %c0_30, %c0_31] : memref<2x32x32xbf16, #tpu.memory_space<vmem>>, vector<1x32x32xbf16>
    %66 = vector.shape_cast %65 : vector<1x32x32xbf16> to vector<32x32xbf16>
    %c0_32 = arith.constant 0 : index
    %c0_33 = arith.constant 0 : index
    %c0_34 = arith.constant 0 : index
    %67 = vector.load %arg10[%c0_32, %c0_33, %c0_34] : memref<2x1x32xf32, #tpu.memory_space<vmem>>, vector<1x1x32xf32>
    %68 = vector.shape_cast %67 : vector<1x1x32xf32> to vector<1x32xf32>
    %c0_35 = arith.constant 0 : index
    %c0_36 = arith.constant 0 : index
    %c0_37 = arith.constant 0 : index
    %69 = vector.load %arg11[%c0_35, %c0_36, %c0_37] : memref<2x1x32xf32, #tpu.memory_space<vmem>>, vector<1x1x32xf32>
    %70 = vector.shape_cast %69 : vector<1x1x32xf32> to vector<1x32xf32>
    %c0_38 = arith.constant 0 : index
    %c0_39 = arith.constant 0 : index
    %c0_40 = arith.constant 0 : index
    %71 = vector.load %arg12[%c0_38, %c0_39, %c0_40] : memref<2x1x32xf32, #tpu.memory_space<vmem>>, vector<1x1x32xf32>
    %72 = vector.shape_cast %71 : vector<1x1x32xf32> to vector<1x32xf32>
    %73 = arith.truncf %60 : vector<16x32xf32> to vector<16x32xbf16>
    %cst_41 = arith.constant dense<0.000000e+00> : vector<16x96xf32>
    %74 = tpu.matmul %73, %62, %cst_41 {dimension_numbers = #tpu.dot_dimension_numbers<[1], [0], [0], [1], [0, 0, 1, 1], [], []>} : vector<16x32xbf16>, vector<32x96xbf16>, vector<16x96xf32> -> vector<16x96xf32>
    %75 = vector.broadcast %64 : vector<1x96xf32> to vector<16x96xf32>
    %76 = arith.addf %74, %75 : vector<16x96xf32>
    %cst_42 = arith.constant 0.000000e+00 : f32
    %77 = vector.broadcast %cst_42 : f32 to vector<16x32xf32>
    %78 = vector.extract_strided_slice %76 {offsets = [0, 0], sizes = [16, 8], strides = [1, 1]} : vector<16x96xf32> to vector<16x8xf32>
    %79 = vector.extract_strided_slice %76 {offsets = [0, 32], sizes = [16, 8], strides = [1, 1]} : vector<16x96xf32> to vector<16x8xf32>
    %80 = vector.extract_strided_slice %76 {offsets = [0, 64], sizes = [16, 8], strides = [1, 1]} : vector<16x96xf32> to vector<16x8xf32>
    %81 = arith.truncf %78 : vector<16x8xf32> to vector<16x8xbf16>
    %82 = arith.truncf %79 : vector<16x8xf32> to vector<16x8xbf16>
    %cst_43 = arith.constant dense<0.000000e+00> : vector<16x16xf32>
    %83 = tpu.matmul %81, %82, %cst_43 {dimension_numbers = #tpu.dot_dimension_numbers<[1], [1], [0], [0], [0, 0, 1, 0], [], []>} : vector<16x8xbf16>, vector<16x8xbf16>, vector<16x16xf32> -> vector<16x16xf32>
    %cst_44 = arith.constant 0.353553385 : f32
    %84 = vector.broadcast %cst_44 : f32 to vector<16x16xf32>
    %85 = arith.mulf %83, %84 : vector<16x16xf32>
    %86 = arith.addf %85, %25 : vector<16x16xf32>
    %cst_45 = arith.constant dense<0xFF800000> : vector<16xf32>
    %87 = vector.multi_reduction <maximumf>, %86, %cst_45 [1] : vector<16x16xf32> to vector<16xf32>
    %88 = vector.shape_cast %87 : vector<16xf32> to vector<16x1xf32>
    %89 = vector.broadcast %88 : vector<16x1xf32> to vector<16x16xf32>
    %90 = arith.subf %86, %89 : vector<16x16xf32>
    %91 = math.exp %90 : vector<16x16xf32>
    %cst_46 = arith.constant dense<0.000000e+00> : vector<16xf32>
    %92 = vector.multi_reduction <add>, %91, %cst_46 [1] : vector<16x16xf32> to vector<16xf32>
    %93 = vector.shape_cast %92 : vector<16xf32> to vector<16x1xf32>
    %94 = tpu.reciprocal %93 {approx = true} : vector<16x1xf32> -> vector<16x1xf32>
    %95 = vector.broadcast %94 : vector<16x1xf32> to vector<16x16xf32>
    %96 = arith.mulf %91, %95 : vector<16x16xf32>
    %97 = arith.truncf %96 : vector<16x16xf32> to vector<16x16xbf16>
    %98 = arith.truncf %80 : vector<16x8xf32> to vector<16x8xbf16>
    %cst_47 = arith.constant dense<0.000000e+00> : vector<16x8xf32>
    %99 = tpu.matmul %97, %98, %cst_47 {dimension_numbers = #tpu.dot_dimension_numbers<[1], [0], [0], [1], [0, 0, 1, 1], [], []>} : vector<16x16xbf16>, vector<16x8xbf16>, vector<16x8xf32> -> vector<16x8xf32>
    %100 = arith.truncf %99 : vector<16x8xf32> to vector<16x8xbf16>
    %101 = vector.extract_strided_slice %66 {offsets = [0, 0], sizes = [8, 32], strides = [1, 1]} : vector<32x32xbf16> to vector<8x32xbf16>
    %cst_48 = arith.constant dense<0.000000e+00> : vector<16x32xf32>
    %102 = tpu.matmul %100, %101, %cst_48 {dimension_numbers = #tpu.dot_dimension_numbers<[1], [0], [0], [1], [0, 0, 1, 1], [], []>} : vector<16x8xbf16>, vector<8x32xbf16>, vector<16x32xf32> -> vector<16x32xf32>
    %103 = arith.addf %77, %102 : vector<16x32xf32>
    %104 = vector.extract_strided_slice %76 {offsets = [0, 8], sizes = [16, 8], strides = [1, 1]} : vector<16x96xf32> to vector<16x8xf32>
    %105 = vector.extract_strided_slice %76 {offsets = [0, 40], sizes = [16, 8], strides = [1, 1]} : vector<16x96xf32> to vector<16x8xf32>
    %106 = vector.extract_strided_slice %76 {offsets = [0, 72], sizes = [16, 8], strides = [1, 1]} : vector<16x96xf32> to vector<16x8xf32>
    %107 = arith.truncf %104 : vector<16x8xf32> to vector<16x8xbf16>
    %108 = arith.truncf %105 : vector<16x8xf32> to vector<16x8xbf16>
    %cst_49 = arith.constant dense<0.000000e+00> : vector<16x16xf32>
    %109 = tpu.matmul %107, %108, %cst_49 {dimension_numbers = #tpu.dot_dimension_numbers<[1], [1], [0], [0], [0, 0, 1, 0], [], []>} : vector<16x8xbf16>, vector<16x8xbf16>, vector<16x16xf32> -> vector<16x16xf32>
    %cst_50 = arith.constant 0.353553385 : f32
    %110 = vector.broadcast %cst_50 : f32 to vector<16x16xf32>
    %111 = arith.mulf %109, %110 : vector<16x16xf32>
    %112 = arith.addf %111, %25 : vector<16x16xf32>
    %cst_51 = arith.constant dense<0xFF800000> : vector<16xf32>
    %113 = vector.multi_reduction <maximumf>, %112, %cst_51 [1] : vector<16x16xf32> to vector<16xf32>
    %114 = vector.shape_cast %113 : vector<16xf32> to vector<16x1xf32>
    %115 = vector.broadcast %114 : vector<16x1xf32> to vector<16x16xf32>
    %116 = arith.subf %112, %115 : vector<16x16xf32>
    %117 = math.exp %116 : vector<16x16xf32>
    %cst_52 = arith.constant dense<0.000000e+00> : vector<16xf32>
    %118 = vector.multi_reduction <add>, %117, %cst_52 [1] : vector<16x16xf32> to vector<16xf32>
    %119 = vector.shape_cast %118 : vector<16xf32> to vector<16x1xf32>
    %120 = tpu.reciprocal %119 {approx = true} : vector<16x1xf32> -> vector<16x1xf32>
    %121 = vector.broadcast %120 : vector<16x1xf32> to vector<16x16xf32>
    %122 = arith.mulf %117, %121 : vector<16x16xf32>
    %123 = arith.truncf %122 : vector<16x16xf32> to vector<16x16xbf16>
    %124 = arith.truncf %106 : vector<16x8xf32> to vector<16x8xbf16>
    %cst_53 = arith.constant dense<0.000000e+00> : vector<16x8xf32>
    %125 = tpu.matmul %123, %124, %cst_53 {dimension_numbers = #tpu.dot_dimension_numbers<[1], [0], [0], [1], [0, 0, 1, 1], [], []>} : vector<16x16xbf16>, vector<16x8xbf16>, vector<16x8xf32> -> vector<16x8xf32>
    %126 = arith.truncf %125 : vector<16x8xf32> to vector<16x8xbf16>
    %127 = vector.extract_strided_slice %66 {offsets = [8, 0], sizes = [8, 32], strides = [1, 1]} : vector<32x32xbf16> to vector<8x32xbf16>
    %cst_54 = arith.constant dense<0.000000e+00> : vector<16x32xf32>
    %128 = tpu.matmul %126, %127, %cst_54 {dimension_numbers = #tpu.dot_dimension_numbers<[1], [0], [0], [1], [0, 0, 1, 1], [], []>} : vector<16x8xbf16>, vector<8x32xbf16>, vector<16x32xf32> -> vector<16x32xf32>
    %129 = arith.addf %103, %128 : vector<16x32xf32>
    %130 = vector.extract_strided_slice %76 {offsets = [0, 16], sizes = [16, 8], strides = [1, 1]} : vector<16x96xf32> to vector<16x8xf32>
    %131 = vector.extract_strided_slice %76 {offsets = [0, 48], sizes = [16, 8], strides = [1, 1]} : vector<16x96xf32> to vector<16x8xf32>
    %132 = vector.extract_strided_slice %76 {offsets = [0, 80], sizes = [16, 8], strides = [1, 1]} : vector<16x96xf32> to vector<16x8xf32>
    %133 = arith.truncf %130 : vector<16x8xf32> to vector<16x8xbf16>
    %134 = arith.truncf %131 : vector<16x8xf32> to vector<16x8xbf16>
    %cst_55 = arith.constant dense<0.000000e+00> : vector<16x16xf32>
    %135 = tpu.matmul %133, %134, %cst_55 {dimension_numbers = #tpu.dot_dimension_numbers<[1], [1], [0], [0], [0, 0, 1, 0], [], []>} : vector<16x8xbf16>, vector<16x8xbf16>, vector<16x16xf32> -> vector<16x16xf32>
    %cst_56 = arith.constant 0.353553385 : f32
    %136 = vector.broadcast %cst_56 : f32 to vector<16x16xf32>
    %137 = arith.mulf %135, %136 : vector<16x16xf32>
    %138 = arith.addf %137, %25 : vector<16x16xf32>
    %cst_57 = arith.constant dense<0xFF800000> : vector<16xf32>
    %139 = vector.multi_reduction <maximumf>, %138, %cst_57 [1] : vector<16x16xf32> to vector<16xf32>
    %140 = vector.shape_cast %139 : vector<16xf32> to vector<16x1xf32>
    %141 = vector.broadcast %140 : vector<16x1xf32> to vector<16x16xf32>
    %142 = arith.subf %138, %141 : vector<16x16xf32>
    %143 = math.exp %142 : vector<16x16xf32>
    %cst_58 = arith.constant dense<0.000000e+00> : vector<16xf32>
    %144 = vector.multi_reduction <add>, %143, %cst_58 [1] : vector<16x16xf32> to vector<16xf32>
    %145 = vector.shape_cast %144 : vector<16xf32> to vector<16x1xf32>
    %146 = tpu.reciprocal %145 {approx = true} : vector<16x1xf32> -> vector<16x1xf32>
    %147 = vector.broadcast %146 : vector<16x1xf32> to vector<16x16xf32>
    %148 = arith.mulf %143, %147 : vector<16x16xf32>
    %149 = arith.truncf %148 : vector<16x16xf32> to vector<16x16xbf16>
    %150 = arith.truncf %132 : vector<16x8xf32> to vector<16x8xbf16>
    %cst_59 = arith.constant dense<0.000000e+00> : vector<16x8xf32>
    %151 = tpu.matmul %149, %150, %cst_59 {dimension_numbers = #tpu.dot_dimension_numbers<[1], [0], [0], [1], [0, 0, 1, 1], [], []>} : vector<16x16xbf16>, vector<16x8xbf16>, vector<16x8xf32> -> vector<16x8xf32>
    %152 = arith.truncf %151 : vector<16x8xf32> to vector<16x8xbf16>
    %153 = vector.extract_strided_slice %66 {offsets = [16, 0], sizes = [8, 32], strides = [1, 1]} : vector<32x32xbf16> to vector<8x32xbf16>
    %cst_60 = arith.constant dense<0.000000e+00> : vector<16x32xf32>
    %154 = tpu.matmul %152, %153, %cst_60 {dimension_numbers = #tpu.dot_dimension_numbers<[1], [0], [0], [1], [0, 0, 1, 1], [], []>} : vector<16x8xbf16>, vector<8x32xbf16>, vector<16x32xf32> -> vector<16x32xf32>
    %155 = arith.addf %129, %154 : vector<16x32xf32>
    %156 = vector.extract_strided_slice %76 {offsets = [0, 24], sizes = [16, 8], strides = [1, 1]} : vector<16x96xf32> to vector<16x8xf32>
    %157 = vector.extract_strided_slice %76 {offsets = [0, 56], sizes = [16, 8], strides = [1, 1]} : vector<16x96xf32> to vector<16x8xf32>
    %158 = vector.extract_strided_slice %76 {offsets = [0, 88], sizes = [16, 8], strides = [1, 1]} : vector<16x96xf32> to vector<16x8xf32>
    %159 = arith.truncf %156 : vector<16x8xf32> to vector<16x8xbf16>
    %160 = arith.truncf %157 : vector<16x8xf32> to vector<16x8xbf16>
    %cst_61 = arith.constant dense<0.000000e+00> : vector<16x16xf32>
    %161 = tpu.matmul %159, %160, %cst_61 {dimension_numbers = #tpu.dot_dimension_numbers<[1], [1], [0], [0], [0, 0, 1, 0], [], []>} : vector<16x8xbf16>, vector<16x8xbf16>, vector<16x16xf32> -> vector<16x16xf32>
    %cst_62 = arith.constant 0.353553385 : f32
    %162 = vector.broadcast %cst_62 : f32 to vector<16x16xf32>
    %163 = arith.mulf %161, %162 : vector<16x16xf32>
    %164 = arith.addf %163, %25 : vector<16x16xf32>
    %cst_63 = arith.constant dense<0xFF800000> : vector<16xf32>
    %165 = vector.multi_reduction <maximumf>, %164, %cst_63 [1] : vector<16x16xf32> to vector<16xf32>
    %166 = vector.shape_cast %165 : vector<16xf32> to vector<16x1xf32>
    %167 = vector.broadcast %166 : vector<16x1xf32> to vector<16x16xf32>
    %168 = arith.subf %164, %167 : vector<16x16xf32>
    %169 = math.exp %168 : vector<16x16xf32>
    %cst_64 = arith.constant dense<0.000000e+00> : vector<16xf32>
    %170 = vector.multi_reduction <add>, %169, %cst_64 [1] : vector<16x16xf32> to vector<16xf32>
    %171 = vector.shape_cast %170 : vector<16xf32> to vector<16x1xf32>
    %172 = tpu.reciprocal %171 {approx = true} : vector<16x1xf32> -> vector<16x1xf32>
    %173 = vector.broadcast %172 : vector<16x1xf32> to vector<16x16xf32>
    %174 = arith.mulf %169, %173 : vector<16x16xf32>
    %175 = arith.truncf %174 : vector<16x16xf32> to vector<16x16xbf16>
    %176 = arith.truncf %158 : vector<16x8xf32> to vector<16x8xbf16>
    %cst_65 = arith.constant dense<0.000000e+00> : vector<16x8xf32>
    %177 = tpu.matmul %175, %176, %cst_65 {dimension_numbers = #tpu.dot_dimension_numbers<[1], [0], [0], [1], [0, 0, 1, 1], [], []>} : vector<16x16xbf16>, vector<16x8xbf16>, vector<16x8xf32> -> vector<16x8xf32>
    %178 = arith.truncf %177 : vector<16x8xf32> to vector<16x8xbf16>
    %179 = vector.extract_strided_slice %66 {offsets = [24, 0], sizes = [8, 32], strides = [1, 1]} : vector<32x32xbf16> to vector<8x32xbf16>
    %cst_66 = arith.constant dense<0.000000e+00> : vector<16x32xf32>
    %180 = tpu.matmul %178, %179, %cst_66 {dimension_numbers = #tpu.dot_dimension_numbers<[1], [0], [0], [1], [0, 0, 1, 1], [], []>} : vector<16x8xbf16>, vector<8x32xbf16>, vector<16x32xf32> -> vector<16x32xf32>
    %181 = arith.addf %155, %180 : vector<16x32xf32>
    %182 = arith.addf %60, %181 : vector<16x32xf32>
    %183 = vector.broadcast %68 : vector<1x32xf32> to vector<16x32xf32>
    %184 = arith.addf %182, %183 : vector<16x32xf32>
    %cst_67 = arith.constant dense<0.000000e+00> : vector<16xf32>
    %185 = vector.multi_reduction <add>, %184, %cst_67 [1] : vector<16x32xf32> to vector<16xf32>
    %186 = vector.shape_cast %185 : vector<16xf32> to vector<16x1xf32>
    %cst_68 = arith.constant 3.200000e+01 : f32
    %187 = vector.broadcast %cst_68 : f32 to vector<16x1xf32>
    %188 = arith.divf %186, %187 : vector<16x1xf32>
    %189 = vector.broadcast %188 : vector<16x1xf32> to vector<16x32xf32>
    %190 = arith.subf %184, %189 : vector<16x32xf32>
    %191 = arith.mulf %190, %190 : vector<16x32xf32>
    %cst_69 = arith.constant dense<0.000000e+00> : vector<16xf32>
    %192 = vector.multi_reduction <add>, %191, %cst_69 [1] : vector<16x32xf32> to vector<16xf32>
    %193 = vector.shape_cast %192 : vector<16xf32> to vector<16x1xf32>
    %cst_70 = arith.constant 3.200000e+01 : f32
    %194 = vector.broadcast %cst_70 : f32 to vector<16x1xf32>
    %195 = arith.divf %193, %194 : vector<16x1xf32>
    %196 = vector.broadcast %188 : vector<16x1xf32> to vector<16x32xf32>
    %197 = arith.subf %184, %196 : vector<16x32xf32>
    %cst_71 = arith.constant 9.99999996E-13 : f32
    %198 = vector.broadcast %cst_71 : f32 to vector<16x1xf32>
    %199 = arith.addf %195, %198 : vector<16x1xf32>
    %200 = math.rsqrt %199 : vector<16x1xf32>
    %201 = vector.broadcast %200 : vector<16x1xf32> to vector<16x32xf32>
    %202 = arith.mulf %197, %201 : vector<16x32xf32>
    %203 = vector.broadcast %70 : vector<1x32xf32> to vector<16x32xf32>
    %204 = arith.mulf %202, %203 : vector<16x32xf32>
    %205 = vector.broadcast %72 : vector<1x32xf32> to vector<16x32xf32>
    %206 = arith.addf %204, %205 : vector<16x32xf32>
    %c0_72 = arith.constant 0 : index
    %c0_73 = arith.constant 0 : index
    %c0_74 = arith.constant 0 : index
    %207 = vector.load %arg13[%c0_72, %c0_73, %c0_74] : memref<2x32x64xbf16, #tpu.memory_space<vmem>>, vector<1x32x64xbf16>
    %208 = vector.shape_cast %207 : vector<1x32x64xbf16> to vector<32x64xbf16>
    %c0_75 = arith.constant 0 : index
    %c0_76 = arith.constant 0 : index
    %c0_77 = arith.constant 0 : index
    %209 = vector.load %arg14[%c0_75, %c0_76, %c0_77] : memref<2x1x64xf32, #tpu.memory_space<vmem>>, vector<1x1x64xf32>
    %210 = vector.shape_cast %209 : vector<1x1x64xf32> to vector<1x64xf32>
    %c0_78 = arith.constant 0 : index
    %c0_79 = arith.constant 0 : index
    %c0_80 = arith.constant 0 : index
    %211 = vector.load %arg15[%c0_78, %c0_79, %c0_80] : memref<2x64x32xbf16, #tpu.memory_space<vmem>>, vector<1x64x32xbf16>
    %212 = vector.shape_cast %211 : vector<1x64x32xbf16> to vector<64x32xbf16>
    %c0_81 = arith.constant 0 : index
    %c0_82 = arith.constant 0 : index
    %c0_83 = arith.constant 0 : index
    %213 = vector.load %arg16[%c0_81, %c0_82, %c0_83] : memref<2x1x32xf32, #tpu.memory_space<vmem>>, vector<1x1x32xf32>
    %214 = vector.shape_cast %213 : vector<1x1x32xf32> to vector<1x32xf32>
    %c0_84 = arith.constant 0 : index
    %c0_85 = arith.constant 0 : index
    %c0_86 = arith.constant 0 : index
    %215 = vector.load %arg17[%c0_84, %c0_85, %c0_86] : memref<2x1x32xf32, #tpu.memory_space<vmem>>, vector<1x1x32xf32>
    %216 = vector.shape_cast %215 : vector<1x1x32xf32> to vector<1x32xf32>
    %c0_87 = arith.constant 0 : index
    %c0_88 = arith.constant 0 : index
    %c0_89 = arith.constant 0 : index
    %217 = vector.load %arg18[%c0_87, %c0_88, %c0_89] : memref<2x1x32xf32, #tpu.memory_space<vmem>>, vector<1x1x32xf32>
    %218 = vector.shape_cast %217 : vector<1x1x32xf32> to vector<1x32xf32>
    %219 = arith.truncf %206 : vector<16x32xf32> to vector<16x32xbf16>
    %cst_90 = arith.constant dense<0.000000e+00> : vector<16x64xf32>
    %220 = tpu.matmul %219, %208, %cst_90 {dimension_numbers = #tpu.dot_dimension_numbers<[1], [0], [0], [1], [0, 0, 1, 1], [], []>} : vector<16x32xbf16>, vector<32x64xbf16>, vector<16x64xf32> -> vector<16x64xf32>
    %221 = vector.broadcast %210 : vector<1x64xf32> to vector<16x64xf32>
    %222 = arith.addf %220, %221 : vector<16x64xf32>
    %cst_91 = arith.constant 5.000000e-01 : f32
    %223 = vector.broadcast %cst_91 : f32 to vector<16x64xf32>
    %224 = arith.mulf %223, %222 : vector<16x64xf32>
    %cst_92 = arith.constant 0.707106769 : f32
    %225 = vector.broadcast %cst_92 : f32 to vector<16x64xf32>
    %226 = arith.mulf %222, %225 : vector<16x64xf32>
    %227 = math.absf %226 : vector<16x64xf32>
    %cst_93 = arith.constant 0.327591091 : f32
    %228 = vector.broadcast %cst_93 : f32 to vector<16x64xf32>
    %229 = arith.mulf %228, %227 : vector<16x64xf32>
    %cst_94 = arith.constant 1.000000e+00 : f32
    %230 = vector.broadcast %cst_94 : f32 to vector<16x64xf32>
    %231 = arith.addf %230, %229 : vector<16x64xf32>
    %cst_95 = arith.constant 1.000000e+00 : f32
    %232 = vector.broadcast %cst_95 : f32 to vector<16x64xf32>
    %233 = arith.divf %232, %231 : vector<16x64xf32>
    %cst_96 = arith.constant 1.06140542 : f32
    %234 = vector.broadcast %cst_96 : f32 to vector<16x64xf32>
    %235 = arith.mulf %234, %233 : vector<16x64xf32>
    %cst_97 = arith.constant 1.45315206 : f32
    %236 = vector.broadcast %cst_97 : f32 to vector<16x64xf32>
    %237 = arith.subf %235, %236 : vector<16x64xf32>
    %238 = arith.mulf %237, %233 : vector<16x64xf32>
    %cst_98 = arith.constant 1.42141378 : f32
    %239 = vector.broadcast %cst_98 : f32 to vector<16x64xf32>
    %240 = arith.addf %238, %239 : vector<16x64xf32>
    %241 = arith.mulf %240, %233 : vector<16x64xf32>
    %cst_99 = arith.constant 0.284496725 : f32
    %242 = vector.broadcast %cst_99 : f32 to vector<16x64xf32>
    %243 = arith.subf %241, %242 : vector<16x64xf32>
    %244 = arith.mulf %243, %233 : vector<16x64xf32>
    %cst_100 = arith.constant 0.254829586 : f32
    %245 = vector.broadcast %cst_100 : f32 to vector<16x64xf32>
    %246 = arith.addf %244, %245 : vector<16x64xf32>
    %247 = arith.mulf %246, %233 : vector<16x64xf32>
    %cst_101 = arith.constant 0.000000e+00 : f32
    %248 = vector.broadcast %cst_101 : f32 to vector<16x64xf32>
    %249 = arith.subf %248, %227 : vector<16x64xf32>
    %250 = arith.mulf %249, %227 : vector<16x64xf32>
    %251 = math.exp %250 : vector<16x64xf32>
    %252 = arith.mulf %247, %251 : vector<16x64xf32>
    %cst_102 = arith.constant 1.000000e+00 : f32
    %253 = vector.broadcast %cst_102 : f32 to vector<16x64xf32>
    %254 = arith.subf %253, %252 : vector<16x64xf32>
    %cst_103 = arith.constant 0.000000e+00 : f32
    %255 = vector.broadcast %cst_103 : f32 to vector<16x64xf32>
    %256 = arith.cmpf oge, %226, %255 : vector<16x64xf32>
    %cst_104 = arith.constant 0.000000e+00 : f32
    %257 = vector.broadcast %cst_104 : f32 to vector<16x64xf32>
    %258 = arith.subf %257, %254 : vector<16x64xf32>
    %259 = arith.select %256, %254, %258 : vector<16x64xi1>, vector<16x64xf32>
    %cst_105 = arith.constant 1.000000e+00 : f32
    %260 = vector.broadcast %cst_105 : f32 to vector<16x64xf32>
    %261 = arith.addf %260, %259 : vector<16x64xf32>
    %262 = arith.mulf %224, %261 : vector<16x64xf32>
    %263 = arith.truncf %262 : vector<16x64xf32> to vector<16x64xbf16>
    %cst_106 = arith.constant dense<0.000000e+00> : vector<16x32xf32>
    %264 = tpu.matmul %263, %212, %cst_106 {dimension_numbers = #tpu.dot_dimension_numbers<[1], [0], [0], [1], [0, 0, 1, 1], [], []>} : vector<16x64xbf16>, vector<64x32xbf16>, vector<16x32xf32> -> vector<16x32xf32>
    %265 = vector.broadcast %214 : vector<1x32xf32> to vector<16x32xf32>
    %266 = arith.addf %264, %265 : vector<16x32xf32>
    %267 = arith.addf %206, %266 : vector<16x32xf32>
    %cst_107 = arith.constant dense<0.000000e+00> : vector<16xf32>
    %268 = vector.multi_reduction <add>, %267, %cst_107 [1] : vector<16x32xf32> to vector<16xf32>
    %269 = vector.shape_cast %268 : vector<16xf32> to vector<16x1xf32>
    %cst_108 = arith.constant 3.200000e+01 : f32
    %270 = vector.broadcast %cst_108 : f32 to vector<16x1xf32>
    %271 = arith.divf %269, %270 : vector<16x1xf32>
    %272 = vector.broadcast %271 : vector<16x1xf32> to vector<16x32xf32>
    %273 = arith.subf %267, %272 : vector<16x32xf32>
    %274 = arith.mulf %273, %273 : vector<16x32xf32>
    %cst_109 = arith.constant dense<0.000000e+00> : vector<16xf32>
    %275 = vector.multi_reduction <add>, %274, %cst_109 [1] : vector<16x32xf32> to vector<16xf32>
    %276 = vector.shape_cast %275 : vector<16xf32> to vector<16x1xf32>
    %cst_110 = arith.constant 3.200000e+01 : f32
    %277 = vector.broadcast %cst_110 : f32 to vector<16x1xf32>
    %278 = arith.divf %276, %277 : vector<16x1xf32>
    %279 = vector.broadcast %271 : vector<16x1xf32> to vector<16x32xf32>
    %280 = arith.subf %267, %279 : vector<16x32xf32>
    %cst_111 = arith.constant 9.99999996E-13 : f32
    %281 = vector.broadcast %cst_111 : f32 to vector<16x1xf32>
    %282 = arith.addf %278, %281 : vector<16x1xf32>
    %283 = math.rsqrt %282 : vector<16x1xf32>
    %284 = vector.broadcast %283 : vector<16x1xf32> to vector<16x32xf32>
    %285 = arith.mulf %280, %284 : vector<16x32xf32>
    %286 = vector.broadcast %216 : vector<1x32xf32> to vector<16x32xf32>
    %287 = arith.mulf %285, %286 : vector<16x32xf32>
    %288 = vector.broadcast %218 : vector<1x32xf32> to vector<16x32xf32>
    %289 = arith.addf %287, %288 : vector<16x32xf32>
    %c1 = arith.constant 1 : index
    %c0_112 = arith.constant 0 : index
    %c0_113 = arith.constant 0 : index
    %290 = vector.load %arg7[%c1, %c0_112, %c0_113] : memref<2x32x96xbf16, #tpu.memory_space<vmem>>, vector<1x32x96xbf16>
    %291 = vector.shape_cast %290 : vector<1x32x96xbf16> to vector<32x96xbf16>
    %c1_114 = arith.constant 1 : index
    %c0_115 = arith.constant 0 : index
    %c0_116 = arith.constant 0 : index
    %292 = vector.load %arg8[%c1_114, %c0_115, %c0_116] : memref<2x1x96xf32, #tpu.memory_space<vmem>>, vector<1x1x96xf32>
    %293 = vector.shape_cast %292 : vector<1x1x96xf32> to vector<1x96xf32>
    %c1_117 = arith.constant 1 : index
    %c0_118 = arith.constant 0 : index
    %c0_119 = arith.constant 0 : index
    %294 = vector.load %arg9[%c1_117, %c0_118, %c0_119] : memref<2x32x32xbf16, #tpu.memory_space<vmem>>, vector<1x32x32xbf16>
    %295 = vector.shape_cast %294 : vector<1x32x32xbf16> to vector<32x32xbf16>
    %c1_120 = arith.constant 1 : index
    %c0_121 = arith.constant 0 : index
    %c0_122 = arith.constant 0 : index
    %296 = vector.load %arg10[%c1_120, %c0_121, %c0_122] : memref<2x1x32xf32, #tpu.memory_space<vmem>>, vector<1x1x32xf32>
    %297 = vector.shape_cast %296 : vector<1x1x32xf32> to vector<1x32xf32>
    %c1_123 = arith.constant 1 : index
    %c0_124 = arith.constant 0 : index
    %c0_125 = arith.constant 0 : index
    %298 = vector.load %arg11[%c1_123, %c0_124, %c0_125] : memref<2x1x32xf32, #tpu.memory_space<vmem>>, vector<1x1x32xf32>
    %299 = vector.shape_cast %298 : vector<1x1x32xf32> to vector<1x32xf32>
    %c1_126 = arith.constant 1 : index
    %c0_127 = arith.constant 0 : index
    %c0_128 = arith.constant 0 : index
    %300 = vector.load %arg12[%c1_126, %c0_127, %c0_128] : memref<2x1x32xf32, #tpu.memory_space<vmem>>, vector<1x1x32xf32>
    %301 = vector.shape_cast %300 : vector<1x1x32xf32> to vector<1x32xf32>
    %302 = arith.truncf %289 : vector<16x32xf32> to vector<16x32xbf16>
    %cst_129 = arith.constant dense<0.000000e+00> : vector<16x96xf32>
    %303 = tpu.matmul %302, %291, %cst_129 {dimension_numbers = #tpu.dot_dimension_numbers<[1], [0], [0], [1], [0, 0, 1, 1], [], []>} : vector<16x32xbf16>, vector<32x96xbf16>, vector<16x96xf32> -> vector<16x96xf32>
    %304 = vector.broadcast %293 : vector<1x96xf32> to vector<16x96xf32>
    %305 = arith.addf %303, %304 : vector<16x96xf32>
    %cst_130 = arith.constant 0.000000e+00 : f32
    %306 = vector.broadcast %cst_130 : f32 to vector<16x32xf32>
    %307 = vector.extract_strided_slice %305 {offsets = [0, 0], sizes = [16, 8], strides = [1, 1]} : vector<16x96xf32> to vector<16x8xf32>
    %308 = vector.extract_strided_slice %305 {offsets = [0, 32], sizes = [16, 8], strides = [1, 1]} : vector<16x96xf32> to vector<16x8xf32>
    %309 = vector.extract_strided_slice %305 {offsets = [0, 64], sizes = [16, 8], strides = [1, 1]} : vector<16x96xf32> to vector<16x8xf32>
    %310 = arith.truncf %307 : vector<16x8xf32> to vector<16x8xbf16>
    %311 = arith.truncf %308 : vector<16x8xf32> to vector<16x8xbf16>
    %cst_131 = arith.constant dense<0.000000e+00> : vector<16x16xf32>
    %312 = tpu.matmul %310, %311, %cst_131 {dimension_numbers = #tpu.dot_dimension_numbers<[1], [1], [0], [0], [0, 0, 1, 0], [], []>} : vector<16x8xbf16>, vector<16x8xbf16>, vector<16x16xf32> -> vector<16x16xf32>
    %cst_132 = arith.constant 0.353553385 : f32
    %313 = vector.broadcast %cst_132 : f32 to vector<16x16xf32>
    %314 = arith.mulf %312, %313 : vector<16x16xf32>
    %315 = arith.addf %314, %25 : vector<16x16xf32>
    %cst_133 = arith.constant dense<0xFF800000> : vector<16xf32>
    %316 = vector.multi_reduction <maximumf>, %315, %cst_133 [1] : vector<16x16xf32> to vector<16xf32>
    %317 = vector.shape_cast %316 : vector<16xf32> to vector<16x1xf32>
    %318 = vector.broadcast %317 : vector<16x1xf32> to vector<16x16xf32>
    %319 = arith.subf %315, %318 : vector<16x16xf32>
    %320 = math.exp %319 : vector<16x16xf32>
    %cst_134 = arith.constant dense<0.000000e+00> : vector<16xf32>
    %321 = vector.multi_reduction <add>, %320, %cst_134 [1] : vector<16x16xf32> to vector<16xf32>
    %322 = vector.shape_cast %321 : vector<16xf32> to vector<16x1xf32>
    %323 = tpu.reciprocal %322 {approx = true} : vector<16x1xf32> -> vector<16x1xf32>
    %324 = vector.broadcast %323 : vector<16x1xf32> to vector<16x16xf32>
    %325 = arith.mulf %320, %324 : vector<16x16xf32>
    %326 = arith.truncf %325 : vector<16x16xf32> to vector<16x16xbf16>
    %327 = arith.truncf %309 : vector<16x8xf32> to vector<16x8xbf16>
    %cst_135 = arith.constant dense<0.000000e+00> : vector<16x8xf32>
    %328 = tpu.matmul %326, %327, %cst_135 {dimension_numbers = #tpu.dot_dimension_numbers<[1], [0], [0], [1], [0, 0, 1, 1], [], []>} : vector<16x16xbf16>, vector<16x8xbf16>, vector<16x8xf32> -> vector<16x8xf32>
    %329 = arith.truncf %328 : vector<16x8xf32> to vector<16x8xbf16>
    %330 = vector.extract_strided_slice %295 {offsets = [0, 0], sizes = [8, 32], strides = [1, 1]} : vector<32x32xbf16> to vector<8x32xbf16>
    %cst_136 = arith.constant dense<0.000000e+00> : vector<16x32xf32>
    %331 = tpu.matmul %329, %330, %cst_136 {dimension_numbers = #tpu.dot_dimension_numbers<[1], [0], [0], [1], [0, 0, 1, 1], [], []>} : vector<16x8xbf16>, vector<8x32xbf16>, vector<16x32xf32> -> vector<16x32xf32>
    %332 = arith.addf %306, %331 : vector<16x32xf32>
    %333 = vector.extract_strided_slice %305 {offsets = [0, 8], sizes = [16, 8], strides = [1, 1]} : vector<16x96xf32> to vector<16x8xf32>
    %334 = vector.extract_strided_slice %305 {offsets = [0, 40], sizes = [16, 8], strides = [1, 1]} : vector<16x96xf32> to vector<16x8xf32>
    %335 = vector.extract_strided_slice %305 {offsets = [0, 72], sizes = [16, 8], strides = [1, 1]} : vector<16x96xf32> to vector<16x8xf32>
    %336 = arith.truncf %333 : vector<16x8xf32> to vector<16x8xbf16>
    %337 = arith.truncf %334 : vector<16x8xf32> to vector<16x8xbf16>
    %cst_137 = arith.constant dense<0.000000e+00> : vector<16x16xf32>
    %338 = tpu.matmul %336, %337, %cst_137 {dimension_numbers = #tpu.dot_dimension_numbers<[1], [1], [0], [0], [0, 0, 1, 0], [], []>} : vector<16x8xbf16>, vector<16x8xbf16>, vector<16x16xf32> -> vector<16x16xf32>
    %cst_138 = arith.constant 0.353553385 : f32
    %339 = vector.broadcast %cst_138 : f32 to vector<16x16xf32>
    %340 = arith.mulf %338, %339 : vector<16x16xf32>
    %341 = arith.addf %340, %25 : vector<16x16xf32>
    %cst_139 = arith.constant dense<0xFF800000> : vector<16xf32>
    %342 = vector.multi_reduction <maximumf>, %341, %cst_139 [1] : vector<16x16xf32> to vector<16xf32>
    %343 = vector.shape_cast %342 : vector<16xf32> to vector<16x1xf32>
    %344 = vector.broadcast %343 : vector<16x1xf32> to vector<16x16xf32>
    %345 = arith.subf %341, %344 : vector<16x16xf32>
    %346 = math.exp %345 : vector<16x16xf32>
    %cst_140 = arith.constant dense<0.000000e+00> : vector<16xf32>
    %347 = vector.multi_reduction <add>, %346, %cst_140 [1] : vector<16x16xf32> to vector<16xf32>
    %348 = vector.shape_cast %347 : vector<16xf32> to vector<16x1xf32>
    %349 = tpu.reciprocal %348 {approx = true} : vector<16x1xf32> -> vector<16x1xf32>
    %350 = vector.broadcast %349 : vector<16x1xf32> to vector<16x16xf32>
    %351 = arith.mulf %346, %350 : vector<16x16xf32>
    %352 = arith.truncf %351 : vector<16x16xf32> to vector<16x16xbf16>
    %353 = arith.truncf %335 : vector<16x8xf32> to vector<16x8xbf16>
    %cst_141 = arith.constant dense<0.000000e+00> : vector<16x8xf32>
    %354 = tpu.matmul %352, %353, %cst_141 {dimension_numbers = #tpu.dot_dimension_numbers<[1], [0], [0], [1], [0, 0, 1, 1], [], []>} : vector<16x16xbf16>, vector<16x8xbf16>, vector<16x8xf32> -> vector<16x8xf32>
    %355 = arith.truncf %354 : vector<16x8xf32> to vector<16x8xbf16>
    %356 = vector.extract_strided_slice %295 {offsets = [8, 0], sizes = [8, 32], strides = [1, 1]} : vector<32x32xbf16> to vector<8x32xbf16>
    %cst_142 = arith.constant dense<0.000000e+00> : vector<16x32xf32>
    %357 = tpu.matmul %355, %356, %cst_142 {dimension_numbers = #tpu.dot_dimension_numbers<[1], [0], [0], [1], [0, 0, 1, 1], [], []>} : vector<16x8xbf16>, vector<8x32xbf16>, vector<16x32xf32> -> vector<16x32xf32>
    %358 = arith.addf %332, %357 : vector<16x32xf32>
    %359 = vector.extract_strided_slice %305 {offsets = [0, 16], sizes = [16, 8], strides = [1, 1]} : vector<16x96xf32> to vector<16x8xf32>
    %360 = vector.extract_strided_slice %305 {offsets = [0, 48], sizes = [16, 8], strides = [1, 1]} : vector<16x96xf32> to vector<16x8xf32>
    %361 = vector.extract_strided_slice %305 {offsets = [0, 80], sizes = [16, 8], strides = [1, 1]} : vector<16x96xf32> to vector<16x8xf32>
    %362 = arith.truncf %359 : vector<16x8xf32> to vector<16x8xbf16>
    %363 = arith.truncf %360 : vector<16x8xf32> to vector<16x8xbf16>
    %cst_143 = arith.constant dense<0.000000e+00> : vector<16x16xf32>
    %364 = tpu.matmul %362, %363, %cst_143 {dimension_numbers = #tpu.dot_dimension_numbers<[1], [1], [0], [0], [0, 0, 1, 0], [], []>} : vector<16x8xbf16>, vector<16x8xbf16>, vector<16x16xf32> -> vector<16x16xf32>
    %cst_144 = arith.constant 0.353553385 : f32
    %365 = vector.broadcast %cst_144 : f32 to vector<16x16xf32>
    %366 = arith.mulf %364, %365 : vector<16x16xf32>
    %367 = arith.addf %366, %25 : vector<16x16xf32>
    %cst_145 = arith.constant dense<0xFF800000> : vector<16xf32>
    %368 = vector.multi_reduction <maximumf>, %367, %cst_145 [1] : vector<16x16xf32> to vector<16xf32>
    %369 = vector.shape_cast %368 : vector<16xf32> to vector<16x1xf32>
    %370 = vector.broadcast %369 : vector<16x1xf32> to vector<16x16xf32>
    %371 = arith.subf %367, %370 : vector<16x16xf32>
    %372 = math.exp %371 : vector<16x16xf32>
    %cst_146 = arith.constant dense<0.000000e+00> : vector<16xf32>
    %373 = vector.multi_reduction <add>, %372, %cst_146 [1] : vector<16x16xf32> to vector<16xf32>
    %374 = vector.shape_cast %373 : vector<16xf32> to vector<16x1xf32>
    %375 = tpu.reciprocal %374 {approx = true} : vector<16x1xf32> -> vector<16x1xf32>
    %376 = vector.broadcast %375 : vector<16x1xf32> to vector<16x16xf32>
    %377 = arith.mulf %372, %376 : vector<16x16xf32>
    %378 = arith.truncf %377 : vector<16x16xf32> to vector<16x16xbf16>
    %379 = arith.truncf %361 : vector<16x8xf32> to vector<16x8xbf16>
    %cst_147 = arith.constant dense<0.000000e+00> : vector<16x8xf32>
    %380 = tpu.matmul %378, %379, %cst_147 {dimension_numbers = #tpu.dot_dimension_numbers<[1], [0], [0], [1], [0, 0, 1, 1], [], []>} : vector<16x16xbf16>, vector<16x8xbf16>, vector<16x8xf32> -> vector<16x8xf32>
    %381 = arith.truncf %380 : vector<16x8xf32> to vector<16x8xbf16>
    %382 = vector.extract_strided_slice %295 {offsets = [16, 0], sizes = [8, 32], strides = [1, 1]} : vector<32x32xbf16> to vector<8x32xbf16>
    %cst_148 = arith.constant dense<0.000000e+00> : vector<16x32xf32>
    %383 = tpu.matmul %381, %382, %cst_148 {dimension_numbers = #tpu.dot_dimension_numbers<[1], [0], [0], [1], [0, 0, 1, 1], [], []>} : vector<16x8xbf16>, vector<8x32xbf16>, vector<16x32xf32> -> vector<16x32xf32>
    %384 = arith.addf %358, %383 : vector<16x32xf32>
    %385 = vector.extract_strided_slice %305 {offsets = [0, 24], sizes = [16, 8], strides = [1, 1]} : vector<16x96xf32> to vector<16x8xf32>
    %386 = vector.extract_strided_slice %305 {offsets = [0, 56], sizes = [16, 8], strides = [1, 1]} : vector<16x96xf32> to vector<16x8xf32>
    %387 = vector.extract_strided_slice %305 {offsets = [0, 88], sizes = [16, 8], strides = [1, 1]} : vector<16x96xf32> to vector<16x8xf32>
    %388 = arith.truncf %385 : vector<16x8xf32> to vector<16x8xbf16>
    %389 = arith.truncf %386 : vector<16x8xf32> to vector<16x8xbf16>
    %cst_149 = arith.constant dense<0.000000e+00> : vector<16x16xf32>
    %390 = tpu.matmul %388, %389, %cst_149 {dimension_numbers = #tpu.dot_dimension_numbers<[1], [1], [0], [0], [0, 0, 1, 0], [], []>} : vector<16x8xbf16>, vector<16x8xbf16>, vector<16x16xf32> -> vector<16x16xf32>
    %cst_150 = arith.constant 0.353553385 : f32
    %391 = vector.broadcast %cst_150 : f32 to vector<16x16xf32>
    %392 = arith.mulf %390, %391 : vector<16x16xf32>
    %393 = arith.addf %392, %25 : vector<16x16xf32>
    %cst_151 = arith.constant dense<0xFF800000> : vector<16xf32>
    %394 = vector.multi_reduction <maximumf>, %393, %cst_151 [1] : vector<16x16xf32> to vector<16xf32>
    %395 = vector.shape_cast %394 : vector<16xf32> to vector<16x1xf32>
    %396 = vector.broadcast %395 : vector<16x1xf32> to vector<16x16xf32>
    %397 = arith.subf %393, %396 : vector<16x16xf32>
    %398 = math.exp %397 : vector<16x16xf32>
    %cst_152 = arith.constant dense<0.000000e+00> : vector<16xf32>
    %399 = vector.multi_reduction <add>, %398, %cst_152 [1] : vector<16x16xf32> to vector<16xf32>
    %400 = vector.shape_cast %399 : vector<16xf32> to vector<16x1xf32>
    %401 = tpu.reciprocal %400 {approx = true} : vector<16x1xf32> -> vector<16x1xf32>
    %402 = vector.broadcast %401 : vector<16x1xf32> to vector<16x16xf32>
    %403 = arith.mulf %398, %402 : vector<16x16xf32>
    %404 = arith.truncf %403 : vector<16x16xf32> to vector<16x16xbf16>
    %405 = arith.truncf %387 : vector<16x8xf32> to vector<16x8xbf16>
    %cst_153 = arith.constant dense<0.000000e+00> : vector<16x8xf32>
    %406 = tpu.matmul %404, %405, %cst_153 {dimension_numbers = #tpu.dot_dimension_numbers<[1], [0], [0], [1], [0, 0, 1, 1], [], []>} : vector<16x16xbf16>, vector<16x8xbf16>, vector<16x8xf32> -> vector<16x8xf32>
    %407 = arith.truncf %406 : vector<16x8xf32> to vector<16x8xbf16>
    %408 = vector.extract_strided_slice %295 {offsets = [24, 0], sizes = [8, 32], strides = [1, 1]} : vector<32x32xbf16> to vector<8x32xbf16>
    %cst_154 = arith.constant dense<0.000000e+00> : vector<16x32xf32>
    %409 = tpu.matmul %407, %408, %cst_154 {dimension_numbers = #tpu.dot_dimension_numbers<[1], [0], [0], [1], [0, 0, 1, 1], [], []>} : vector<16x8xbf16>, vector<8x32xbf16>, vector<16x32xf32> -> vector<16x32xf32>
    %410 = arith.addf %384, %409 : vector<16x32xf32>
    %411 = arith.addf %289, %410 : vector<16x32xf32>
    %412 = vector.broadcast %297 : vector<1x32xf32> to vector<16x32xf32>
    %413 = arith.addf %411, %412 : vector<16x32xf32>
    %cst_155 = arith.constant dense<0.000000e+00> : vector<16xf32>
    %414 = vector.multi_reduction <add>, %413, %cst_155 [1] : vector<16x32xf32> to vector<16xf32>
    %415 = vector.shape_cast %414 : vector<16xf32> to vector<16x1xf32>
    %cst_156 = arith.constant 3.200000e+01 : f32
    %416 = vector.broadcast %cst_156 : f32 to vector<16x1xf32>
    %417 = arith.divf %415, %416 : vector<16x1xf32>
    %418 = vector.broadcast %417 : vector<16x1xf32> to vector<16x32xf32>
    %419 = arith.subf %413, %418 : vector<16x32xf32>
    %420 = arith.mulf %419, %419 : vector<16x32xf32>
    %cst_157 = arith.constant dense<0.000000e+00> : vector<16xf32>
    %421 = vector.multi_reduction <add>, %420, %cst_157 [1] : vector<16x32xf32> to vector<16xf32>
    %422 = vector.shape_cast %421 : vector<16xf32> to vector<16x1xf32>
    %cst_158 = arith.constant 3.200000e+01 : f32
    %423 = vector.broadcast %cst_158 : f32 to vector<16x1xf32>
    %424 = arith.divf %422, %423 : vector<16x1xf32>
    %425 = vector.broadcast %417 : vector<16x1xf32> to vector<16x32xf32>
    %426 = arith.subf %413, %425 : vector<16x32xf32>
    %cst_159 = arith.constant 9.99999996E-13 : f32
    %427 = vector.broadcast %cst_159 : f32 to vector<16x1xf32>
    %428 = arith.addf %424, %427 : vector<16x1xf32>
    %429 = math.rsqrt %428 : vector<16x1xf32>
    %430 = vector.broadcast %429 : vector<16x1xf32> to vector<16x32xf32>
    %431 = arith.mulf %426, %430 : vector<16x32xf32>
    %432 = vector.broadcast %299 : vector<1x32xf32> to vector<16x32xf32>
    %433 = arith.mulf %431, %432 : vector<16x32xf32>
    %434 = vector.broadcast %301 : vector<1x32xf32> to vector<16x32xf32>
    %435 = arith.addf %433, %434 : vector<16x32xf32>
    %c1_160 = arith.constant 1 : index
    %c0_161 = arith.constant 0 : index
    %c0_162 = arith.constant 0 : index
    %436 = vector.load %arg13[%c1_160, %c0_161, %c0_162] : memref<2x32x64xbf16, #tpu.memory_space<vmem>>, vector<1x32x64xbf16>
    %437 = vector.shape_cast %436 : vector<1x32x64xbf16> to vector<32x64xbf16>
    %c1_163 = arith.constant 1 : index
    %c0_164 = arith.constant 0 : index
    %c0_165 = arith.constant 0 : index
    %438 = vector.load %arg14[%c1_163, %c0_164, %c0_165] : memref<2x1x64xf32, #tpu.memory_space<vmem>>, vector<1x1x64xf32>
    %439 = vector.shape_cast %438 : vector<1x1x64xf32> to vector<1x64xf32>
    %c1_166 = arith.constant 1 : index
    %c0_167 = arith.constant 0 : index
    %c0_168 = arith.constant 0 : index
    %440 = vector.load %arg15[%c1_166, %c0_167, %c0_168] : memref<2x64x32xbf16, #tpu.memory_space<vmem>>, vector<1x64x32xbf16>
    %441 = vector.shape_cast %440 : vector<1x64x32xbf16> to vector<64x32xbf16>
    %c1_169 = arith.constant 1 : index
    %c0_170 = arith.constant 0 : index
    %c0_171 = arith.constant 0 : index
    %442 = vector.load %arg16[%c1_169, %c0_170, %c0_171] : memref<2x1x32xf32, #tpu.memory_space<vmem>>, vector<1x1x32xf32>
    %443 = vector.shape_cast %442 : vector<1x1x32xf32> to vector<1x32xf32>
    %c1_172 = arith.constant 1 : index
    %c0_173 = arith.constant 0 : index
    %c0_174 = arith.constant 0 : index
    %444 = vector.load %arg17[%c1_172, %c0_173, %c0_174] : memref<2x1x32xf32, #tpu.memory_space<vmem>>, vector<1x1x32xf32>
    %445 = vector.shape_cast %444 : vector<1x1x32xf32> to vector<1x32xf32>
    %c1_175 = arith.constant 1 : index
    %c0_176 = arith.constant 0 : index
    %c0_177 = arith.constant 0 : index
    %446 = vector.load %arg18[%c1_175, %c0_176, %c0_177] : memref<2x1x32xf32, #tpu.memory_space<vmem>>, vector<1x1x32xf32>
    %447 = vector.shape_cast %446 : vector<1x1x32xf32> to vector<1x32xf32>
    %448 = arith.truncf %435 : vector<16x32xf32> to vector<16x32xbf16>
    %cst_178 = arith.constant dense<0.000000e+00> : vector<16x64xf32>
    %449 = tpu.matmul %448, %437, %cst_178 {dimension_numbers = #tpu.dot_dimension_numbers<[1], [0], [0], [1], [0, 0, 1, 1], [], []>} : vector<16x32xbf16>, vector<32x64xbf16>, vector<16x64xf32> -> vector<16x64xf32>
    %450 = vector.broadcast %439 : vector<1x64xf32> to vector<16x64xf32>
    %451 = arith.addf %449, %450 : vector<16x64xf32>
    %cst_179 = arith.constant 5.000000e-01 : f32
    %452 = vector.broadcast %cst_179 : f32 to vector<16x64xf32>
    %453 = arith.mulf %452, %451 : vector<16x64xf32>
    %cst_180 = arith.constant 0.707106769 : f32
    %454 = vector.broadcast %cst_180 : f32 to vector<16x64xf32>
    %455 = arith.mulf %451, %454 : vector<16x64xf32>
    %456 = math.absf %455 : vector<16x64xf32>
    %cst_181 = arith.constant 0.327591091 : f32
    %457 = vector.broadcast %cst_181 : f32 to vector<16x64xf32>
    %458 = arith.mulf %457, %456 : vector<16x64xf32>
    %cst_182 = arith.constant 1.000000e+00 : f32
    %459 = vector.broadcast %cst_182 : f32 to vector<16x64xf32>
    %460 = arith.addf %459, %458 : vector<16x64xf32>
    %cst_183 = arith.constant 1.000000e+00 : f32
    %461 = vector.broadcast %cst_183 : f32 to vector<16x64xf32>
    %462 = arith.divf %461, %460 : vector<16x64xf32>
    %cst_184 = arith.constant 1.06140542 : f32
    %463 = vector.broadcast %cst_184 : f32 to vector<16x64xf32>
    %464 = arith.mulf %463, %462 : vector<16x64xf32>
    %cst_185 = arith.constant 1.45315206 : f32
    %465 = vector.broadcast %cst_185 : f32 to vector<16x64xf32>
    %466 = arith.subf %464, %465 : vector<16x64xf32>
    %467 = arith.mulf %466, %462 : vector<16x64xf32>
    %cst_186 = arith.constant 1.42141378 : f32
    %468 = vector.broadcast %cst_186 : f32 to vector<16x64xf32>
    %469 = arith.addf %467, %468 : vector<16x64xf32>
    %470 = arith.mulf %469, %462 : vector<16x64xf32>
    %cst_187 = arith.constant 0.284496725 : f32
    %471 = vector.broadcast %cst_187 : f32 to vector<16x64xf32>
    %472 = arith.subf %470, %471 : vector<16x64xf32>
    %473 = arith.mulf %472, %462 : vector<16x64xf32>
    %cst_188 = arith.constant 0.254829586 : f32
    %474 = vector.broadcast %cst_188 : f32 to vector<16x64xf32>
    %475 = arith.addf %473, %474 : vector<16x64xf32>
    %476 = arith.mulf %475, %462 : vector<16x64xf32>
    %cst_189 = arith.constant 0.000000e+00 : f32
    %477 = vector.broadcast %cst_189 : f32 to vector<16x64xf32>
    %478 = arith.subf %477, %456 : vector<16x64xf32>
    %479 = arith.mulf %478, %456 : vector<16x64xf32>
    %480 = math.exp %479 : vector<16x64xf32>
    %481 = arith.mulf %476, %480 : vector<16x64xf32>
    %cst_190 = arith.constant 1.000000e+00 : f32
    %482 = vector.broadcast %cst_190 : f32 to vector<16x64xf32>
    %483 = arith.subf %482, %481 : vector<16x64xf32>
    %cst_191 = arith.constant 0.000000e+00 : f32
    %484 = vector.broadcast %cst_191 : f32 to vector<16x64xf32>
    %485 = arith.cmpf oge, %455, %484 : vector<16x64xf32>
    %cst_192 = arith.constant 0.000000e+00 : f32
    %486 = vector.broadcast %cst_192 : f32 to vector<16x64xf32>
    %487 = arith.subf %486, %483 : vector<16x64xf32>
    %488 = arith.select %485, %483, %487 : vector<16x64xi1>, vector<16x64xf32>
    %cst_193 = arith.constant 1.000000e+00 : f32
    %489 = vector.broadcast %cst_193 : f32 to vector<16x64xf32>
    %490 = arith.addf %489, %488 : vector<16x64xf32>
    %491 = arith.mulf %453, %490 : vector<16x64xf32>
    %492 = arith.truncf %491 : vector<16x64xf32> to vector<16x64xbf16>
    %cst_194 = arith.constant dense<0.000000e+00> : vector<16x32xf32>
    %493 = tpu.matmul %492, %441, %cst_194 {dimension_numbers = #tpu.dot_dimension_numbers<[1], [0], [0], [1], [0, 0, 1, 1], [], []>} : vector<16x64xbf16>, vector<64x32xbf16>, vector<16x32xf32> -> vector<16x32xf32>
    %494 = vector.broadcast %443 : vector<1x32xf32> to vector<16x32xf32>
    %495 = arith.addf %493, %494 : vector<16x32xf32>
    %496 = arith.addf %435, %495 : vector<16x32xf32>
    %cst_195 = arith.constant dense<0.000000e+00> : vector<16xf32>
    %497 = vector.multi_reduction <add>, %496, %cst_195 [1] : vector<16x32xf32> to vector<16xf32>
    %498 = vector.shape_cast %497 : vector<16xf32> to vector<16x1xf32>
    %cst_196 = arith.constant 3.200000e+01 : f32
    %499 = vector.broadcast %cst_196 : f32 to vector<16x1xf32>
    %500 = arith.divf %498, %499 : vector<16x1xf32>
    %501 = vector.broadcast %500 : vector<16x1xf32> to vector<16x32xf32>
    %502 = arith.subf %496, %501 : vector<16x32xf32>
    %503 = arith.mulf %502, %502 : vector<16x32xf32>
    %cst_197 = arith.constant dense<0.000000e+00> : vector<16xf32>
    %504 = vector.multi_reduction <add>, %503, %cst_197 [1] : vector<16x32xf32> to vector<16xf32>
    %505 = vector.shape_cast %504 : vector<16xf32> to vector<16x1xf32>
    %cst_198 = arith.constant 3.200000e+01 : f32
    %506 = vector.broadcast %cst_198 : f32 to vector<16x1xf32>
    %507 = arith.divf %505, %506 : vector<16x1xf32>
    %508 = vector.broadcast %500 : vector<16x1xf32> to vector<16x32xf32>
    %509 = arith.subf %496, %508 : vector<16x32xf32>
    %cst_199 = arith.constant 9.99999996E-13 : f32
    %510 = vector.broadcast %cst_199 : f32 to vector<16x1xf32>
    %511 = arith.addf %507, %510 : vector<16x1xf32>
    %512 = math.rsqrt %511 : vector<16x1xf32>
    %513 = vector.broadcast %512 : vector<16x1xf32> to vector<16x32xf32>
    %514 = arith.mulf %509, %513 : vector<16x32xf32>
    %515 = vector.broadcast %445 : vector<1x32xf32> to vector<16x32xf32>
    %516 = arith.mulf %514, %515 : vector<16x32xf32>
    %517 = vector.broadcast %447 : vector<1x32xf32> to vector<16x32xf32>
    %518 = arith.addf %516, %517 : vector<16x32xf32>
    %519 = vector.extract_strided_slice %518 {offsets = [0, 0], sizes = [1, 32], strides = [1, 1]} : vector<16x32xf32> to vector<1x32xf32>
    %520 = vector.extract_strided_slice %518 {offsets = [8, 0], sizes = [1, 32], strides = [1, 1]} : vector<16x32xf32> to vector<1x32xf32>
    %521 = tpu.concatenate %519, %520 in 0 : vector<1x32xf32>, vector<1x32xf32> -> vector<2x32xf32>
    %522 = arith.truncf %521 : vector<2x32xf32> to vector<2x32xbf16>
    %c0_200 = arith.constant 0 : index
    %c0_201 = arith.constant 0 : index
    %523 = vector.load %arg19[%c0_200, %c0_201] : memref<32x32xbf16, #tpu.memory_space<vmem>>, vector<32x32xbf16>
    %cst_202 = arith.constant dense<0.000000e+00> : vector<2x32xf32>
    %524 = tpu.matmul %522, %523, %cst_202 {dimension_numbers = #tpu.dot_dimension_numbers<[1], [0], [0], [1], [0, 0, 1, 1], [], []>} : vector<2x32xbf16>, vector<32x32xbf16>, vector<2x32xf32> -> vector<2x32xf32>
    %c0_203 = arith.constant 0 : index
    %c0_204 = arith.constant 0 : index
    %525 = vector.load %arg20[%c0_203, %c0_204] : memref<1x32xf32, #tpu.memory_space<vmem>>, vector<1x32xf32>
    %526 = vector.broadcast %525 : vector<1x32xf32> to vector<2x32xf32>
    %527 = arith.addf %524, %526 : vector<2x32xf32>
    %cst_205 = arith.constant 0.000000e+00 : f32
    %528 = vector.broadcast %cst_205 : f32 to vector<2x32xf32>
    %529 = tpu.iota {dimensions = array<i32: 1>} : vector<2x8xi32>
    %c0_i32 = arith.constant 0 : i32
    %530 = vector.broadcast %c0_i32 : i32 to vector<2x8xi32>
    %cst_206 = arith.constant 0.000000e+00 : f32
    %531 = vector.broadcast %cst_206 : f32 to vector<2x8xf32>
    %532 = tpu.iota {dimensions = array<i32: 1>} : vector<2x512xi32>
    %c0_207 = arith.constant 0 : index
    %c0_208 = arith.constant 0 : index
    %c0_209 = arith.constant 0 : index
    %533 = vector.load %arg22[%c0_207, %c0_208, %c0_209] : memref<8x32x512xf32, #tpu.memory_space<vmem>>, vector<1x32x512xf32>
    %534 = vector.shape_cast %533 : vector<1x32x512xf32> to vector<32x512xf32>
    %cst_210 = arith.constant dense<0.000000e+00> : vector<2x512xf32>
    %535 = tpu.matmul %527, %534, %cst_210 {dimension_numbers = #tpu.dot_dimension_numbers<[1], [0], [0], [1], [0, 0, 1, 1], [], []>} : vector<2x32xf32>, vector<32x512xf32>, vector<2x512xf32> -> vector<2x512xf32>
    %c0_211 = arith.constant 0 : index
    %c0_212 = arith.constant 0 : index
    %c0_213 = arith.constant 0 : index
    %536 = vector.load %arg23[%c0_211, %c0_212, %c0_213] : memref<8x1x512xf32, #tpu.memory_space<vmem>>, vector<1x1x512xf32>
    %537 = vector.shape_cast %536 : vector<1x1x512xf32> to vector<1x512xf32>
    %cst_214 = arith.constant 2.000000e+00 : f32
    %538 = vector.broadcast %cst_214 : f32 to vector<2x512xf32>
    %539 = arith.mulf %538, %535 : vector<2x512xf32>
    %540 = vector.broadcast %537 : vector<1x512xf32> to vector<2x512xf32>
    %541 = arith.subf %540, %539 : vector<2x512xf32>
    %cst_215 = arith.constant dense<0x7F800000> : vector<2xf32>
    %542 = vector.multi_reduction <minimumf>, %541, %cst_215 [1] : vector<2x512xf32> to vector<2xf32>
    %543 = vector.shape_cast %542 : vector<2xf32> to vector<2x1xf32>
    %544 = vector.broadcast %543 : vector<2x1xf32> to vector<2x512xf32>
    %545 = arith.cmpf oeq, %541, %544 : vector<2x512xf32>
    %c512_i32 = arith.constant 512 : i32
    %546 = vector.broadcast %c512_i32 : i32 to vector<2x512xi32>
    %547 = arith.select %545, %532, %546 : vector<2x512xi1>, vector<2x512xi32>
    %cst_216 = arith.constant dense<2147483647> : vector<2xi32>
    %548 = vector.multi_reduction <minsi>, %547, %cst_216 [1] : vector<2x512xi32> to vector<2xi32>
    %549 = vector.shape_cast %548 : vector<2xi32> to vector<2x1xi32>
    %550 = vector.broadcast %549 : vector<2x1xi32> to vector<2x512xi32>
    %551 = arith.cmpi eq, %532, %550 : vector<2x512xi32>
    %552 = arith.extui %551 : vector<2x512xi1> to vector<2x512xi32>
    %553 = arith.sitofp %552 : vector<2x512xi32> to vector<2x512xf32>
    %c0_217 = arith.constant 0 : index
    %c0_218 = arith.constant 0 : index
    %c0_219 = arith.constant 0 : index
    %554 = vector.load %arg21[%c0_217, %c0_218, %c0_219] : memref<8x512x32xf32, #tpu.memory_space<vmem>>, vector<1x512x32xf32>
    %555 = vector.shape_cast %554 : vector<1x512x32xf32> to vector<512x32xf32>
    %cst_220 = arith.constant dense<0.000000e+00> : vector<2x32xf32>
    %556 = tpu.matmul %553, %555, %cst_220 {dimension_numbers = #tpu.dot_dimension_numbers<[1], [0], [0], [1], [0, 0, 1, 1], [], []>} : vector<2x512xf32>, vector<512x32xf32>, vector<2x32xf32> -> vector<2x32xf32>
    %557 = arith.subf %556, %527 : vector<2x32xf32>
    %558 = arith.mulf %557, %557 : vector<2x32xf32>
    %cst_221 = arith.constant dense<0.000000e+00> : vector<2xf32>
    %559 = vector.multi_reduction <add>, %558, %cst_221 [1] : vector<2x32xf32> to vector<2xf32>
    %560 = vector.shape_cast %559 : vector<2xf32> to vector<2x1xf32>
    %cst_222 = arith.constant 3.200000e+01 : f32
    %561 = vector.broadcast %cst_222 : f32 to vector<2x1xf32>
    %562 = arith.divf %560, %561 : vector<2x1xf32>
    %c0_i32_223 = arith.constant 0 : i32
    %563 = vector.broadcast %c0_i32_223 : i32 to vector<2x8xi32>
    %564 = arith.cmpi eq, %529, %563 : vector<2x8xi32>
    %565 = vector.shape_cast %549 : vector<2x1xi32> to vector<2x1xi32>
    %566 = vector.broadcast %565 : vector<2x1xi32> to vector<2x8xi32>
    %567 = arith.select %564, %566, %530 : vector<2x8xi1>, vector<2x8xi32>
    %c0_i32_224 = arith.constant 0 : i32
    %568 = vector.broadcast %c0_i32_224 : i32 to vector<2x8xi32>
    %569 = arith.cmpi eq, %529, %568 : vector<2x8xi32>
    %570 = vector.shape_cast %562 : vector<2x1xf32> to vector<2x1xf32>
    %571 = vector.broadcast %570 : vector<2x1xf32> to vector<2x8xf32>
    %572 = arith.select %569, %571, %531 : vector<2x8xi1>, vector<2x8xf32>
    %573 = arith.addf %528, %556 : vector<2x32xf32>
    %574 = arith.subf %527, %556 : vector<2x32xf32>
    %c1_225 = arith.constant 1 : index
    %c0_226 = arith.constant 0 : index
    %c0_227 = arith.constant 0 : index
    %575 = vector.load %arg22[%c1_225, %c0_226, %c0_227] : memref<8x32x512xf32, #tpu.memory_space<vmem>>, vector<1x32x512xf32>
    %576 = vector.shape_cast %575 : vector<1x32x512xf32> to vector<32x512xf32>
    %cst_228 = arith.constant dense<0.000000e+00> : vector<2x512xf32>
    %577 = tpu.matmul %574, %576, %cst_228 {dimension_numbers = #tpu.dot_dimension_numbers<[1], [0], [0], [1], [0, 0, 1, 1], [], []>} : vector<2x32xf32>, vector<32x512xf32>, vector<2x512xf32> -> vector<2x512xf32>
    %c1_229 = arith.constant 1 : index
    %c0_230 = arith.constant 0 : index
    %c0_231 = arith.constant 0 : index
    %578 = vector.load %arg23[%c1_229, %c0_230, %c0_231] : memref<8x1x512xf32, #tpu.memory_space<vmem>>, vector<1x1x512xf32>
    %579 = vector.shape_cast %578 : vector<1x1x512xf32> to vector<1x512xf32>
    %cst_232 = arith.constant 2.000000e+00 : f32
    %580 = vector.broadcast %cst_232 : f32 to vector<2x512xf32>
    %581 = arith.mulf %580, %577 : vector<2x512xf32>
    %582 = vector.broadcast %579 : vector<1x512xf32> to vector<2x512xf32>
    %583 = arith.subf %582, %581 : vector<2x512xf32>
    %cst_233 = arith.constant dense<0x7F800000> : vector<2xf32>
    %584 = vector.multi_reduction <minimumf>, %583, %cst_233 [1] : vector<2x512xf32> to vector<2xf32>
    %585 = vector.shape_cast %584 : vector<2xf32> to vector<2x1xf32>
    %586 = vector.broadcast %585 : vector<2x1xf32> to vector<2x512xf32>
    %587 = arith.cmpf oeq, %583, %586 : vector<2x512xf32>
    %c512_i32_234 = arith.constant 512 : i32
    %588 = vector.broadcast %c512_i32_234 : i32 to vector<2x512xi32>
    %589 = arith.select %587, %532, %588 : vector<2x512xi1>, vector<2x512xi32>
    %cst_235 = arith.constant dense<2147483647> : vector<2xi32>
    %590 = vector.multi_reduction <minsi>, %589, %cst_235 [1] : vector<2x512xi32> to vector<2xi32>
    %591 = vector.shape_cast %590 : vector<2xi32> to vector<2x1xi32>
    %592 = vector.broadcast %591 : vector<2x1xi32> to vector<2x512xi32>
    %593 = arith.cmpi eq, %532, %592 : vector<2x512xi32>
    %594 = arith.extui %593 : vector<2x512xi1> to vector<2x512xi32>
    %595 = arith.sitofp %594 : vector<2x512xi32> to vector<2x512xf32>
    %c1_236 = arith.constant 1 : index
    %c0_237 = arith.constant 0 : index
    %c0_238 = arith.constant 0 : index
    %596 = vector.load %arg21[%c1_236, %c0_237, %c0_238] : memref<8x512x32xf32, #tpu.memory_space<vmem>>, vector<1x512x32xf32>
    %597 = vector.shape_cast %596 : vector<1x512x32xf32> to vector<512x32xf32>
    %cst_239 = arith.constant dense<0.000000e+00> : vector<2x32xf32>
    %598 = tpu.matmul %595, %597, %cst_239 {dimension_numbers = #tpu.dot_dimension_numbers<[1], [0], [0], [1], [0, 0, 1, 1], [], []>} : vector<2x512xf32>, vector<512x32xf32>, vector<2x32xf32> -> vector<2x32xf32>
    %599 = arith.subf %598, %574 : vector<2x32xf32>
    %600 = arith.mulf %599, %599 : vector<2x32xf32>
    %cst_240 = arith.constant dense<0.000000e+00> : vector<2xf32>
    %601 = vector.multi_reduction <add>, %600, %cst_240 [1] : vector<2x32xf32> to vector<2xf32>
    %602 = vector.shape_cast %601 : vector<2xf32> to vector<2x1xf32>
    %cst_241 = arith.constant 3.200000e+01 : f32
    %603 = vector.broadcast %cst_241 : f32 to vector<2x1xf32>
    %604 = arith.divf %602, %603 : vector<2x1xf32>
    %c1_i32 = arith.constant 1 : i32
    %605 = vector.broadcast %c1_i32 : i32 to vector<2x8xi32>
    %606 = arith.cmpi eq, %529, %605 : vector<2x8xi32>
    %607 = vector.shape_cast %591 : vector<2x1xi32> to vector<2x1xi32>
    %608 = vector.broadcast %607 : vector<2x1xi32> to vector<2x8xi32>
    %609 = arith.select %606, %608, %567 : vector<2x8xi1>, vector<2x8xi32>
    %c1_i32_242 = arith.constant 1 : i32
    %610 = vector.broadcast %c1_i32_242 : i32 to vector<2x8xi32>
    %611 = arith.cmpi eq, %529, %610 : vector<2x8xi32>
    %612 = vector.shape_cast %604 : vector<2x1xf32> to vector<2x1xf32>
    %613 = vector.broadcast %612 : vector<2x1xf32> to vector<2x8xf32>
    %614 = arith.select %611, %613, %572 : vector<2x8xi1>, vector<2x8xf32>
    %615 = arith.addf %573, %598 : vector<2x32xf32>
    %616 = arith.subf %574, %598 : vector<2x32xf32>
    %c2 = arith.constant 2 : index
    %c0_243 = arith.constant 0 : index
    %c0_244 = arith.constant 0 : index
    %617 = vector.load %arg22[%c2, %c0_243, %c0_244] : memref<8x32x512xf32, #tpu.memory_space<vmem>>, vector<1x32x512xf32>
    %618 = vector.shape_cast %617 : vector<1x32x512xf32> to vector<32x512xf32>
    %cst_245 = arith.constant dense<0.000000e+00> : vector<2x512xf32>
    %619 = tpu.matmul %616, %618, %cst_245 {dimension_numbers = #tpu.dot_dimension_numbers<[1], [0], [0], [1], [0, 0, 1, 1], [], []>} : vector<2x32xf32>, vector<32x512xf32>, vector<2x512xf32> -> vector<2x512xf32>
    %c2_246 = arith.constant 2 : index
    %c0_247 = arith.constant 0 : index
    %c0_248 = arith.constant 0 : index
    %620 = vector.load %arg23[%c2_246, %c0_247, %c0_248] : memref<8x1x512xf32, #tpu.memory_space<vmem>>, vector<1x1x512xf32>
    %621 = vector.shape_cast %620 : vector<1x1x512xf32> to vector<1x512xf32>
    %cst_249 = arith.constant 2.000000e+00 : f32
    %622 = vector.broadcast %cst_249 : f32 to vector<2x512xf32>
    %623 = arith.mulf %622, %619 : vector<2x512xf32>
    %624 = vector.broadcast %621 : vector<1x512xf32> to vector<2x512xf32>
    %625 = arith.subf %624, %623 : vector<2x512xf32>
    %cst_250 = arith.constant dense<0x7F800000> : vector<2xf32>
    %626 = vector.multi_reduction <minimumf>, %625, %cst_250 [1] : vector<2x512xf32> to vector<2xf32>
    %627 = vector.shape_cast %626 : vector<2xf32> to vector<2x1xf32>
    %628 = vector.broadcast %627 : vector<2x1xf32> to vector<2x512xf32>
    %629 = arith.cmpf oeq, %625, %628 : vector<2x512xf32>
    %c512_i32_251 = arith.constant 512 : i32
    %630 = vector.broadcast %c512_i32_251 : i32 to vector<2x512xi32>
    %631 = arith.select %629, %532, %630 : vector<2x512xi1>, vector<2x512xi32>
    %cst_252 = arith.constant dense<2147483647> : vector<2xi32>
    %632 = vector.multi_reduction <minsi>, %631, %cst_252 [1] : vector<2x512xi32> to vector<2xi32>
    %633 = vector.shape_cast %632 : vector<2xi32> to vector<2x1xi32>
    %634 = vector.broadcast %633 : vector<2x1xi32> to vector<2x512xi32>
    %635 = arith.cmpi eq, %532, %634 : vector<2x512xi32>
    %636 = arith.extui %635 : vector<2x512xi1> to vector<2x512xi32>
    %637 = arith.sitofp %636 : vector<2x512xi32> to vector<2x512xf32>
    %c2_253 = arith.constant 2 : index
    %c0_254 = arith.constant 0 : index
    %c0_255 = arith.constant 0 : index
    %638 = vector.load %arg21[%c2_253, %c0_254, %c0_255] : memref<8x512x32xf32, #tpu.memory_space<vmem>>, vector<1x512x32xf32>
    %639 = vector.shape_cast %638 : vector<1x512x32xf32> to vector<512x32xf32>
    %cst_256 = arith.constant dense<0.000000e+00> : vector<2x32xf32>
    %640 = tpu.matmul %637, %639, %cst_256 {dimension_numbers = #tpu.dot_dimension_numbers<[1], [0], [0], [1], [0, 0, 1, 1], [], []>} : vector<2x512xf32>, vector<512x32xf32>, vector<2x32xf32> -> vector<2x32xf32>
    %641 = arith.subf %640, %616 : vector<2x32xf32>
    %642 = arith.mulf %641, %641 : vector<2x32xf32>
    %cst_257 = arith.constant dense<0.000000e+00> : vector<2xf32>
    %643 = vector.multi_reduction <add>, %642, %cst_257 [1] : vector<2x32xf32> to vector<2xf32>
    %644 = vector.shape_cast %643 : vector<2xf32> to vector<2x1xf32>
    %cst_258 = arith.constant 3.200000e+01 : f32
    %645 = vector.broadcast %cst_258 : f32 to vector<2x1xf32>
    %646 = arith.divf %644, %645 : vector<2x1xf32>
    %c2_i32 = arith.constant 2 : i32
    %647 = vector.broadcast %c2_i32 : i32 to vector<2x8xi32>
    %648 = arith.cmpi eq, %529, %647 : vector<2x8xi32>
    %649 = vector.shape_cast %633 : vector<2x1xi32> to vector<2x1xi32>
    %650 = vector.broadcast %649 : vector<2x1xi32> to vector<2x8xi32>
    %651 = arith.select %648, %650, %609 : vector<2x8xi1>, vector<2x8xi32>
    %c2_i32_259 = arith.constant 2 : i32
    %652 = vector.broadcast %c2_i32_259 : i32 to vector<2x8xi32>
    %653 = arith.cmpi eq, %529, %652 : vector<2x8xi32>
    %654 = vector.shape_cast %646 : vector<2x1xf32> to vector<2x1xf32>
    %655 = vector.broadcast %654 : vector<2x1xf32> to vector<2x8xf32>
    %656 = arith.select %653, %655, %614 : vector<2x8xi1>, vector<2x8xf32>
    %657 = arith.addf %615, %640 : vector<2x32xf32>
    %658 = arith.subf %616, %640 : vector<2x32xf32>
    %c3 = arith.constant 3 : index
    %c0_260 = arith.constant 0 : index
    %c0_261 = arith.constant 0 : index
    %659 = vector.load %arg22[%c3, %c0_260, %c0_261] : memref<8x32x512xf32, #tpu.memory_space<vmem>>, vector<1x32x512xf32>
    %660 = vector.shape_cast %659 : vector<1x32x512xf32> to vector<32x512xf32>
    %cst_262 = arith.constant dense<0.000000e+00> : vector<2x512xf32>
    %661 = tpu.matmul %658, %660, %cst_262 {dimension_numbers = #tpu.dot_dimension_numbers<[1], [0], [0], [1], [0, 0, 1, 1], [], []>} : vector<2x32xf32>, vector<32x512xf32>, vector<2x512xf32> -> vector<2x512xf32>
    %c3_263 = arith.constant 3 : index
    %c0_264 = arith.constant 0 : index
    %c0_265 = arith.constant 0 : index
    %662 = vector.load %arg23[%c3_263, %c0_264, %c0_265] : memref<8x1x512xf32, #tpu.memory_space<vmem>>, vector<1x1x512xf32>
    %663 = vector.shape_cast %662 : vector<1x1x512xf32> to vector<1x512xf32>
    %cst_266 = arith.constant 2.000000e+00 : f32
    %664 = vector.broadcast %cst_266 : f32 to vector<2x512xf32>
    %665 = arith.mulf %664, %661 : vector<2x512xf32>
    %666 = vector.broadcast %663 : vector<1x512xf32> to vector<2x512xf32>
    %667 = arith.subf %666, %665 : vector<2x512xf32>
    %cst_267 = arith.constant dense<0x7F800000> : vector<2xf32>
    %668 = vector.multi_reduction <minimumf>, %667, %cst_267 [1] : vector<2x512xf32> to vector<2xf32>
    %669 = vector.shape_cast %668 : vector<2xf32> to vector<2x1xf32>
    %670 = vector.broadcast %669 : vector<2x1xf32> to vector<2x512xf32>
    %671 = arith.cmpf oeq, %667, %670 : vector<2x512xf32>
    %c512_i32_268 = arith.constant 512 : i32
    %672 = vector.broadcast %c512_i32_268 : i32 to vector<2x512xi32>
    %673 = arith.select %671, %532, %672 : vector<2x512xi1>, vector<2x512xi32>
    %cst_269 = arith.constant dense<2147483647> : vector<2xi32>
    %674 = vector.multi_reduction <minsi>, %673, %cst_269 [1] : vector<2x512xi32> to vector<2xi32>
    %675 = vector.shape_cast %674 : vector<2xi32> to vector<2x1xi32>
    %676 = vector.broadcast %675 : vector<2x1xi32> to vector<2x512xi32>
    %677 = arith.cmpi eq, %532, %676 : vector<2x512xi32>
    %678 = arith.extui %677 : vector<2x512xi1> to vector<2x512xi32>
    %679 = arith.sitofp %678 : vector<2x512xi32> to vector<2x512xf32>
    %c3_270 = arith.constant 3 : index
    %c0_271 = arith.constant 0 : index
    %c0_272 = arith.constant 0 : index
    %680 = vector.load %arg21[%c3_270, %c0_271, %c0_272] : memref<8x512x32xf32, #tpu.memory_space<vmem>>, vector<1x512x32xf32>
    %681 = vector.shape_cast %680 : vector<1x512x32xf32> to vector<512x32xf32>
    %cst_273 = arith.constant dense<0.000000e+00> : vector<2x32xf32>
    %682 = tpu.matmul %679, %681, %cst_273 {dimension_numbers = #tpu.dot_dimension_numbers<[1], [0], [0], [1], [0, 0, 1, 1], [], []>} : vector<2x512xf32>, vector<512x32xf32>, vector<2x32xf32> -> vector<2x32xf32>
    %683 = arith.subf %682, %658 : vector<2x32xf32>
    %684 = arith.mulf %683, %683 : vector<2x32xf32>
    %cst_274 = arith.constant dense<0.000000e+00> : vector<2xf32>
    %685 = vector.multi_reduction <add>, %684, %cst_274 [1] : vector<2x32xf32> to vector<2xf32>
    %686 = vector.shape_cast %685 : vector<2xf32> to vector<2x1xf32>
    %cst_275 = arith.constant 3.200000e+01 : f32
    %687 = vector.broadcast %cst_275 : f32 to vector<2x1xf32>
    %688 = arith.divf %686, %687 : vector<2x1xf32>
    %c3_i32_276 = arith.constant 3 : i32
    %689 = vector.broadcast %c3_i32_276 : i32 to vector<2x8xi32>
    %690 = arith.cmpi eq, %529, %689 : vector<2x8xi32>
    %691 = vector.shape_cast %675 : vector<2x1xi32> to vector<2x1xi32>
    %692 = vector.broadcast %691 : vector<2x1xi32> to vector<2x8xi32>
    %693 = arith.select %690, %692, %651 : vector<2x8xi1>, vector<2x8xi32>
    %c3_i32_277 = arith.constant 3 : i32
    %694 = vector.broadcast %c3_i32_277 : i32 to vector<2x8xi32>
    %695 = arith.cmpi eq, %529, %694 : vector<2x8xi32>
    %696 = vector.shape_cast %688 : vector<2x1xf32> to vector<2x1xf32>
    %697 = vector.broadcast %696 : vector<2x1xf32> to vector<2x8xf32>
    %698 = arith.select %695, %697, %656 : vector<2x8xi1>, vector<2x8xf32>
    %699 = arith.addf %657, %682 : vector<2x32xf32>
    %700 = arith.subf %658, %682 : vector<2x32xf32>
    %c4 = arith.constant 4 : index
    %c0_278 = arith.constant 0 : index
    %c0_279 = arith.constant 0 : index
    %701 = vector.load %arg22[%c4, %c0_278, %c0_279] : memref<8x32x512xf32, #tpu.memory_space<vmem>>, vector<1x32x512xf32>
    %702 = vector.shape_cast %701 : vector<1x32x512xf32> to vector<32x512xf32>
    %cst_280 = arith.constant dense<0.000000e+00> : vector<2x512xf32>
    %703 = tpu.matmul %700, %702, %cst_280 {dimension_numbers = #tpu.dot_dimension_numbers<[1], [0], [0], [1], [0, 0, 1, 1], [], []>} : vector<2x32xf32>, vector<32x512xf32>, vector<2x512xf32> -> vector<2x512xf32>
    %c4_281 = arith.constant 4 : index
    %c0_282 = arith.constant 0 : index
    %c0_283 = arith.constant 0 : index
    %704 = vector.load %arg23[%c4_281, %c0_282, %c0_283] : memref<8x1x512xf32, #tpu.memory_space<vmem>>, vector<1x1x512xf32>
    %705 = vector.shape_cast %704 : vector<1x1x512xf32> to vector<1x512xf32>
    %cst_284 = arith.constant 2.000000e+00 : f32
    %706 = vector.broadcast %cst_284 : f32 to vector<2x512xf32>
    %707 = arith.mulf %706, %703 : vector<2x512xf32>
    %708 = vector.broadcast %705 : vector<1x512xf32> to vector<2x512xf32>
    %709 = arith.subf %708, %707 : vector<2x512xf32>
    %cst_285 = arith.constant dense<0x7F800000> : vector<2xf32>
    %710 = vector.multi_reduction <minimumf>, %709, %cst_285 [1] : vector<2x512xf32> to vector<2xf32>
    %711 = vector.shape_cast %710 : vector<2xf32> to vector<2x1xf32>
    %712 = vector.broadcast %711 : vector<2x1xf32> to vector<2x512xf32>
    %713 = arith.cmpf oeq, %709, %712 : vector<2x512xf32>
    %c512_i32_286 = arith.constant 512 : i32
    %714 = vector.broadcast %c512_i32_286 : i32 to vector<2x512xi32>
    %715 = arith.select %713, %532, %714 : vector<2x512xi1>, vector<2x512xi32>
    %cst_287 = arith.constant dense<2147483647> : vector<2xi32>
    %716 = vector.multi_reduction <minsi>, %715, %cst_287 [1] : vector<2x512xi32> to vector<2xi32>
    %717 = vector.shape_cast %716 : vector<2xi32> to vector<2x1xi32>
    %718 = vector.broadcast %717 : vector<2x1xi32> to vector<2x512xi32>
    %719 = arith.cmpi eq, %532, %718 : vector<2x512xi32>
    %720 = arith.extui %719 : vector<2x512xi1> to vector<2x512xi32>
    %721 = arith.sitofp %720 : vector<2x512xi32> to vector<2x512xf32>
    %c4_288 = arith.constant 4 : index
    %c0_289 = arith.constant 0 : index
    %c0_290 = arith.constant 0 : index
    %722 = vector.load %arg21[%c4_288, %c0_289, %c0_290] : memref<8x512x32xf32, #tpu.memory_space<vmem>>, vector<1x512x32xf32>
    %723 = vector.shape_cast %722 : vector<1x512x32xf32> to vector<512x32xf32>
    %cst_291 = arith.constant dense<0.000000e+00> : vector<2x32xf32>
    %724 = tpu.matmul %721, %723, %cst_291 {dimension_numbers = #tpu.dot_dimension_numbers<[1], [0], [0], [1], [0, 0, 1, 1], [], []>} : vector<2x512xf32>, vector<512x32xf32>, vector<2x32xf32> -> vector<2x32xf32>
    %725 = arith.subf %724, %700 : vector<2x32xf32>
    %726 = arith.mulf %725, %725 : vector<2x32xf32>
    %cst_292 = arith.constant dense<0.000000e+00> : vector<2xf32>
    %727 = vector.multi_reduction <add>, %726, %cst_292 [1] : vector<2x32xf32> to vector<2xf32>
    %728 = vector.shape_cast %727 : vector<2xf32> to vector<2x1xf32>
    %cst_293 = arith.constant 3.200000e+01 : f32
    %729 = vector.broadcast %cst_293 : f32 to vector<2x1xf32>
    %730 = arith.divf %728, %729 : vector<2x1xf32>
    %c4_i32 = arith.constant 4 : i32
    %731 = vector.broadcast %c4_i32 : i32 to vector<2x8xi32>
    %732 = arith.cmpi eq, %529, %731 : vector<2x8xi32>
    %733 = vector.shape_cast %717 : vector<2x1xi32> to vector<2x1xi32>
    %734 = vector.broadcast %733 : vector<2x1xi32> to vector<2x8xi32>
    %735 = arith.select %732, %734, %693 : vector<2x8xi1>, vector<2x8xi32>
    %c4_i32_294 = arith.constant 4 : i32
    %736 = vector.broadcast %c4_i32_294 : i32 to vector<2x8xi32>
    %737 = arith.cmpi eq, %529, %736 : vector<2x8xi32>
    %738 = vector.shape_cast %730 : vector<2x1xf32> to vector<2x1xf32>
    %739 = vector.broadcast %738 : vector<2x1xf32> to vector<2x8xf32>
    %740 = arith.select %737, %739, %698 : vector<2x8xi1>, vector<2x8xf32>
    %741 = arith.addf %699, %724 : vector<2x32xf32>
    %742 = arith.subf %700, %724 : vector<2x32xf32>
    %c5 = arith.constant 5 : index
    %c0_295 = arith.constant 0 : index
    %c0_296 = arith.constant 0 : index
    %743 = vector.load %arg22[%c5, %c0_295, %c0_296] : memref<8x32x512xf32, #tpu.memory_space<vmem>>, vector<1x32x512xf32>
    %744 = vector.shape_cast %743 : vector<1x32x512xf32> to vector<32x512xf32>
    %cst_297 = arith.constant dense<0.000000e+00> : vector<2x512xf32>
    %745 = tpu.matmul %742, %744, %cst_297 {dimension_numbers = #tpu.dot_dimension_numbers<[1], [0], [0], [1], [0, 0, 1, 1], [], []>} : vector<2x32xf32>, vector<32x512xf32>, vector<2x512xf32> -> vector<2x512xf32>
    %c5_298 = arith.constant 5 : index
    %c0_299 = arith.constant 0 : index
    %c0_300 = arith.constant 0 : index
    %746 = vector.load %arg23[%c5_298, %c0_299, %c0_300] : memref<8x1x512xf32, #tpu.memory_space<vmem>>, vector<1x1x512xf32>
    %747 = vector.shape_cast %746 : vector<1x1x512xf32> to vector<1x512xf32>
    %cst_301 = arith.constant 2.000000e+00 : f32
    %748 = vector.broadcast %cst_301 : f32 to vector<2x512xf32>
    %749 = arith.mulf %748, %745 : vector<2x512xf32>
    %750 = vector.broadcast %747 : vector<1x512xf32> to vector<2x512xf32>
    %751 = arith.subf %750, %749 : vector<2x512xf32>
    %cst_302 = arith.constant dense<0x7F800000> : vector<2xf32>
    %752 = vector.multi_reduction <minimumf>, %751, %cst_302 [1] : vector<2x512xf32> to vector<2xf32>
    %753 = vector.shape_cast %752 : vector<2xf32> to vector<2x1xf32>
    %754 = vector.broadcast %753 : vector<2x1xf32> to vector<2x512xf32>
    %755 = arith.cmpf oeq, %751, %754 : vector<2x512xf32>
    %c512_i32_303 = arith.constant 512 : i32
    %756 = vector.broadcast %c512_i32_303 : i32 to vector<2x512xi32>
    %757 = arith.select %755, %532, %756 : vector<2x512xi1>, vector<2x512xi32>
    %cst_304 = arith.constant dense<2147483647> : vector<2xi32>
    %758 = vector.multi_reduction <minsi>, %757, %cst_304 [1] : vector<2x512xi32> to vector<2xi32>
    %759 = vector.shape_cast %758 : vector<2xi32> to vector<2x1xi32>
    %760 = vector.broadcast %759 : vector<2x1xi32> to vector<2x512xi32>
    %761 = arith.cmpi eq, %532, %760 : vector<2x512xi32>
    %762 = arith.extui %761 : vector<2x512xi1> to vector<2x512xi32>
    %763 = arith.sitofp %762 : vector<2x512xi32> to vector<2x512xf32>
    %c5_305 = arith.constant 5 : index
    %c0_306 = arith.constant 0 : index
    %c0_307 = arith.constant 0 : index
    %764 = vector.load %arg21[%c5_305, %c0_306, %c0_307] : memref<8x512x32xf32, #tpu.memory_space<vmem>>, vector<1x512x32xf32>
    %765 = vector.shape_cast %764 : vector<1x512x32xf32> to vector<512x32xf32>
    %cst_308 = arith.constant dense<0.000000e+00> : vector<2x32xf32>
    %766 = tpu.matmul %763, %765, %cst_308 {dimension_numbers = #tpu.dot_dimension_numbers<[1], [0], [0], [1], [0, 0, 1, 1], [], []>} : vector<2x512xf32>, vector<512x32xf32>, vector<2x32xf32> -> vector<2x32xf32>
    %767 = arith.subf %766, %742 : vector<2x32xf32>
    %768 = arith.mulf %767, %767 : vector<2x32xf32>
    %cst_309 = arith.constant dense<0.000000e+00> : vector<2xf32>
    %769 = vector.multi_reduction <add>, %768, %cst_309 [1] : vector<2x32xf32> to vector<2xf32>
    %770 = vector.shape_cast %769 : vector<2xf32> to vector<2x1xf32>
    %cst_310 = arith.constant 3.200000e+01 : f32
    %771 = vector.broadcast %cst_310 : f32 to vector<2x1xf32>
    %772 = arith.divf %770, %771 : vector<2x1xf32>
    %c5_i32 = arith.constant 5 : i32
    %773 = vector.broadcast %c5_i32 : i32 to vector<2x8xi32>
    %774 = arith.cmpi eq, %529, %773 : vector<2x8xi32>
    %775 = vector.shape_cast %759 : vector<2x1xi32> to vector<2x1xi32>
    %776 = vector.broadcast %775 : vector<2x1xi32> to vector<2x8xi32>
    %777 = arith.select %774, %776, %735 : vector<2x8xi1>, vector<2x8xi32>
    %c5_i32_311 = arith.constant 5 : i32
    %778 = vector.broadcast %c5_i32_311 : i32 to vector<2x8xi32>
    %779 = arith.cmpi eq, %529, %778 : vector<2x8xi32>
    %780 = vector.shape_cast %772 : vector<2x1xf32> to vector<2x1xf32>
    %781 = vector.broadcast %780 : vector<2x1xf32> to vector<2x8xf32>
    %782 = arith.select %779, %781, %740 : vector<2x8xi1>, vector<2x8xf32>
    %783 = arith.addf %741, %766 : vector<2x32xf32>
    %784 = arith.subf %742, %766 : vector<2x32xf32>
    %c6 = arith.constant 6 : index
    %c0_312 = arith.constant 0 : index
    %c0_313 = arith.constant 0 : index
    %785 = vector.load %arg22[%c6, %c0_312, %c0_313] : memref<8x32x512xf32, #tpu.memory_space<vmem>>, vector<1x32x512xf32>
    %786 = vector.shape_cast %785 : vector<1x32x512xf32> to vector<32x512xf32>
    %cst_314 = arith.constant dense<0.000000e+00> : vector<2x512xf32>
    %787 = tpu.matmul %784, %786, %cst_314 {dimension_numbers = #tpu.dot_dimension_numbers<[1], [0], [0], [1], [0, 0, 1, 1], [], []>} : vector<2x32xf32>, vector<32x512xf32>, vector<2x512xf32> -> vector<2x512xf32>
    %c6_315 = arith.constant 6 : index
    %c0_316 = arith.constant 0 : index
    %c0_317 = arith.constant 0 : index
    %788 = vector.load %arg23[%c6_315, %c0_316, %c0_317] : memref<8x1x512xf32, #tpu.memory_space<vmem>>, vector<1x1x512xf32>
    %789 = vector.shape_cast %788 : vector<1x1x512xf32> to vector<1x512xf32>
    %cst_318 = arith.constant 2.000000e+00 : f32
    %790 = vector.broadcast %cst_318 : f32 to vector<2x512xf32>
    %791 = arith.mulf %790, %787 : vector<2x512xf32>
    %792 = vector.broadcast %789 : vector<1x512xf32> to vector<2x512xf32>
    %793 = arith.subf %792, %791 : vector<2x512xf32>
    %cst_319 = arith.constant dense<0x7F800000> : vector<2xf32>
    %794 = vector.multi_reduction <minimumf>, %793, %cst_319 [1] : vector<2x512xf32> to vector<2xf32>
    %795 = vector.shape_cast %794 : vector<2xf32> to vector<2x1xf32>
    %796 = vector.broadcast %795 : vector<2x1xf32> to vector<2x512xf32>
    %797 = arith.cmpf oeq, %793, %796 : vector<2x512xf32>
    %c512_i32_320 = arith.constant 512 : i32
    %798 = vector.broadcast %c512_i32_320 : i32 to vector<2x512xi32>
    %799 = arith.select %797, %532, %798 : vector<2x512xi1>, vector<2x512xi32>
    %cst_321 = arith.constant dense<2147483647> : vector<2xi32>
    %800 = vector.multi_reduction <minsi>, %799, %cst_321 [1] : vector<2x512xi32> to vector<2xi32>
    %801 = vector.shape_cast %800 : vector<2xi32> to vector<2x1xi32>
    %802 = vector.broadcast %801 : vector<2x1xi32> to vector<2x512xi32>
    %803 = arith.cmpi eq, %532, %802 : vector<2x512xi32>
    %804 = arith.extui %803 : vector<2x512xi1> to vector<2x512xi32>
    %805 = arith.sitofp %804 : vector<2x512xi32> to vector<2x512xf32>
    %c6_322 = arith.constant 6 : index
    %c0_323 = arith.constant 0 : index
    %c0_324 = arith.constant 0 : index
    %806 = vector.load %arg21[%c6_322, %c0_323, %c0_324] : memref<8x512x32xf32, #tpu.memory_space<vmem>>, vector<1x512x32xf32>
    %807 = vector.shape_cast %806 : vector<1x512x32xf32> to vector<512x32xf32>
    %cst_325 = arith.constant dense<0.000000e+00> : vector<2x32xf32>
    %808 = tpu.matmul %805, %807, %cst_325 {dimension_numbers = #tpu.dot_dimension_numbers<[1], [0], [0], [1], [0, 0, 1, 1], [], []>} : vector<2x512xf32>, vector<512x32xf32>, vector<2x32xf32> -> vector<2x32xf32>
    %809 = arith.subf %808, %784 : vector<2x32xf32>
    %810 = arith.mulf %809, %809 : vector<2x32xf32>
    %cst_326 = arith.constant dense<0.000000e+00> : vector<2xf32>
    %811 = vector.multi_reduction <add>, %810, %cst_326 [1] : vector<2x32xf32> to vector<2xf32>
    %812 = vector.shape_cast %811 : vector<2xf32> to vector<2x1xf32>
    %cst_327 = arith.constant 3.200000e+01 : f32
    %813 = vector.broadcast %cst_327 : f32 to vector<2x1xf32>
    %814 = arith.divf %812, %813 : vector<2x1xf32>
    %c6_i32 = arith.constant 6 : i32
    %815 = vector.broadcast %c6_i32 : i32 to vector<2x8xi32>
    %816 = arith.cmpi eq, %529, %815 : vector<2x8xi32>
    %817 = vector.shape_cast %801 : vector<2x1xi32> to vector<2x1xi32>
    %818 = vector.broadcast %817 : vector<2x1xi32> to vector<2x8xi32>
    %819 = arith.select %816, %818, %777 : vector<2x8xi1>, vector<2x8xi32>
    %c6_i32_328 = arith.constant 6 : i32
    %820 = vector.broadcast %c6_i32_328 : i32 to vector<2x8xi32>
    %821 = arith.cmpi eq, %529, %820 : vector<2x8xi32>
    %822 = vector.shape_cast %814 : vector<2x1xf32> to vector<2x1xf32>
    %823 = vector.broadcast %822 : vector<2x1xf32> to vector<2x8xf32>
    %824 = arith.select %821, %823, %782 : vector<2x8xi1>, vector<2x8xf32>
    %825 = arith.addf %783, %808 : vector<2x32xf32>
    %826 = arith.subf %784, %808 : vector<2x32xf32>
    %c7 = arith.constant 7 : index
    %c0_329 = arith.constant 0 : index
    %c0_330 = arith.constant 0 : index
    %827 = vector.load %arg22[%c7, %c0_329, %c0_330] : memref<8x32x512xf32, #tpu.memory_space<vmem>>, vector<1x32x512xf32>
    %828 = vector.shape_cast %827 : vector<1x32x512xf32> to vector<32x512xf32>
    %cst_331 = arith.constant dense<0.000000e+00> : vector<2x512xf32>
    %829 = tpu.matmul %826, %828, %cst_331 {dimension_numbers = #tpu.dot_dimension_numbers<[1], [0], [0], [1], [0, 0, 1, 1], [], []>} : vector<2x32xf32>, vector<32x512xf32>, vector<2x512xf32> -> vector<2x512xf32>
    %c7_332 = arith.constant 7 : index
    %c0_333 = arith.constant 0 : index
    %c0_334 = arith.constant 0 : index
    %830 = vector.load %arg23[%c7_332, %c0_333, %c0_334] : memref<8x1x512xf32, #tpu.memory_space<vmem>>, vector<1x1x512xf32>
    %831 = vector.shape_cast %830 : vector<1x1x512xf32> to vector<1x512xf32>
    %cst_335 = arith.constant 2.000000e+00 : f32
    %832 = vector.broadcast %cst_335 : f32 to vector<2x512xf32>
    %833 = arith.mulf %832, %829 : vector<2x512xf32>
    %834 = vector.broadcast %831 : vector<1x512xf32> to vector<2x512xf32>
    %835 = arith.subf %834, %833 : vector<2x512xf32>
    %cst_336 = arith.constant dense<0x7F800000> : vector<2xf32>
    %836 = vector.multi_reduction <minimumf>, %835, %cst_336 [1] : vector<2x512xf32> to vector<2xf32>
    %837 = vector.shape_cast %836 : vector<2xf32> to vector<2x1xf32>
    %838 = vector.broadcast %837 : vector<2x1xf32> to vector<2x512xf32>
    %839 = arith.cmpf oeq, %835, %838 : vector<2x512xf32>
    %c512_i32_337 = arith.constant 512 : i32
    %840 = vector.broadcast %c512_i32_337 : i32 to vector<2x512xi32>
    %841 = arith.select %839, %532, %840 : vector<2x512xi1>, vector<2x512xi32>
    %cst_338 = arith.constant dense<2147483647> : vector<2xi32>
    %842 = vector.multi_reduction <minsi>, %841, %cst_338 [1] : vector<2x512xi32> to vector<2xi32>
    %843 = vector.shape_cast %842 : vector<2xi32> to vector<2x1xi32>
    %844 = vector.broadcast %843 : vector<2x1xi32> to vector<2x512xi32>
    %845 = arith.cmpi eq, %532, %844 : vector<2x512xi32>
    %846 = arith.extui %845 : vector<2x512xi1> to vector<2x512xi32>
    %847 = arith.sitofp %846 : vector<2x512xi32> to vector<2x512xf32>
    %c7_339 = arith.constant 7 : index
    %c0_340 = arith.constant 0 : index
    %c0_341 = arith.constant 0 : index
    %848 = vector.load %arg21[%c7_339, %c0_340, %c0_341] : memref<8x512x32xf32, #tpu.memory_space<vmem>>, vector<1x512x32xf32>
    %849 = vector.shape_cast %848 : vector<1x512x32xf32> to vector<512x32xf32>
    %cst_342 = arith.constant dense<0.000000e+00> : vector<2x32xf32>
    %850 = tpu.matmul %847, %849, %cst_342 {dimension_numbers = #tpu.dot_dimension_numbers<[1], [0], [0], [1], [0, 0, 1, 1], [], []>} : vector<2x512xf32>, vector<512x32xf32>, vector<2x32xf32> -> vector<2x32xf32>
    %851 = arith.subf %850, %826 : vector<2x32xf32>
    %852 = arith.mulf %851, %851 : vector<2x32xf32>
    %cst_343 = arith.constant dense<0.000000e+00> : vector<2xf32>
    %853 = vector.multi_reduction <add>, %852, %cst_343 [1] : vector<2x32xf32> to vector<2xf32>
    %854 = vector.shape_cast %853 : vector<2xf32> to vector<2x1xf32>
    %cst_344 = arith.constant 3.200000e+01 : f32
    %855 = vector.broadcast %cst_344 : f32 to vector<2x1xf32>
    %856 = arith.divf %854, %855 : vector<2x1xf32>
    %c7_i32_345 = arith.constant 7 : i32
    %857 = vector.broadcast %c7_i32_345 : i32 to vector<2x8xi32>
    %858 = arith.cmpi eq, %529, %857 : vector<2x8xi32>
    %859 = vector.shape_cast %843 : vector<2x1xi32> to vector<2x1xi32>
    %860 = vector.broadcast %859 : vector<2x1xi32> to vector<2x8xi32>
    %861 = arith.select %858, %860, %819 : vector<2x8xi1>, vector<2x8xi32>
    %c7_i32_346 = arith.constant 7 : i32
    %862 = vector.broadcast %c7_i32_346 : i32 to vector<2x8xi32>
    %863 = arith.cmpi eq, %529, %862 : vector<2x8xi32>
    %864 = vector.shape_cast %856 : vector<2x1xf32> to vector<2x1xf32>
    %865 = vector.broadcast %864 : vector<2x1xf32> to vector<2x8xf32>
    %866 = arith.select %863, %865, %824 : vector<2x8xi1>, vector<2x8xf32>
    %867 = arith.addf %825, %850 : vector<2x32xf32>
    %c0_347 = arith.constant 0 : index
    %c0_348 = arith.constant 0 : index
    %868 = vector.load %arg49[%c0_347, %c0_348] : memref<2x8xi32, #tpu.memory_space<vmem>>, vector<2x8xi32>
    tpu.vector_store %arg49[%c0_347, %c0_348], %861 {strides = array<i32>} : memref<2x8xi32, #tpu.memory_space<vmem>>, vector<2x8xi32>,
    %c0_349 = arith.constant 0 : index
    %c0_350 = arith.constant 0 : index
    %869 = vector.load %arg24[%c0_349, %c0_350] : memref<32x32xf32, #tpu.memory_space<vmem>>, vector<32x32xf32>
    %cst_351 = arith.constant dense<0.000000e+00> : vector<16x32xf32>
    %870 = tpu.matmul %5, %869, %cst_351 {dimension_numbers = #tpu.dot_dimension_numbers<[1], [0], [0], [1], [0, 0, 1, 1], [], []>} : vector<16x32xf32>, vector<32x32xf32>, vector<16x32xf32> -> vector<16x32xf32>
    %c0_352 = arith.constant 0 : index
    %c0_353 = arith.constant 0 : index
    %871 = vector.load %arg25[%c0_352, %c0_353] : memref<8x32xf32, #tpu.memory_space<vmem>>, vector<8x32xf32>
    %872 = tpu.concatenate %871, %871 in 0 : vector<8x32xf32>, vector<8x32xf32> -> vector<16x32xf32>
    %873 = arith.addf %870, %872 : vector<16x32xf32>
    %c0_354 = arith.constant 0 : index
    %c0_355 = arith.constant 0 : index
    %874 = vector.load %arg26[%c0_354, %c0_355] : memref<1x32xf32, #tpu.memory_space<vmem>>, vector<1x32xf32>
    %c0_356 = arith.constant 0 : index
    %c0_357 = arith.constant 0 : index
    %875 = vector.load %arg27[%c0_356, %c0_357] : memref<1x32xf32, #tpu.memory_space<vmem>>, vector<1x32xf32>
    %cst_358 = arith.constant dense<0.000000e+00> : vector<16xf32>
    %876 = vector.multi_reduction <add>, %873, %cst_358 [1] : vector<16x32xf32> to vector<16xf32>
    %877 = vector.shape_cast %876 : vector<16xf32> to vector<16x1xf32>
    %cst_359 = arith.constant 3.200000e+01 : f32
    %878 = vector.broadcast %cst_359 : f32 to vector<16x1xf32>
    %879 = arith.divf %877, %878 : vector<16x1xf32>
    %880 = vector.broadcast %879 : vector<16x1xf32> to vector<16x32xf32>
    %881 = arith.subf %873, %880 : vector<16x32xf32>
    %882 = arith.mulf %881, %881 : vector<16x32xf32>
    %cst_360 = arith.constant dense<0.000000e+00> : vector<16xf32>
    %883 = vector.multi_reduction <add>, %882, %cst_360 [1] : vector<16x32xf32> to vector<16xf32>
    %884 = vector.shape_cast %883 : vector<16xf32> to vector<16x1xf32>
    %cst_361 = arith.constant 3.200000e+01 : f32
    %885 = vector.broadcast %cst_361 : f32 to vector<16x1xf32>
    %886 = arith.divf %884, %885 : vector<16x1xf32>
    %887 = vector.broadcast %879 : vector<16x1xf32> to vector<16x32xf32>
    %888 = arith.subf %873, %887 : vector<16x32xf32>
    %cst_362 = arith.constant 9.99999996E-13 : f32
    %889 = vector.broadcast %cst_362 : f32 to vector<16x1xf32>
    %890 = arith.addf %886, %889 : vector<16x1xf32>
    %891 = math.rsqrt %890 : vector<16x1xf32>
    %892 = vector.broadcast %891 : vector<16x1xf32> to vector<16x32xf32>
    %893 = arith.mulf %888, %892 : vector<16x32xf32>
    %894 = vector.broadcast %874 : vector<1x32xf32> to vector<16x32xf32>
    %895 = arith.mulf %893, %894 : vector<16x32xf32>
    %896 = vector.broadcast %875 : vector<1x32xf32> to vector<16x32xf32>
    %897 = arith.addf %895, %896 : vector<16x32xf32>
    %c0_363 = arith.constant 0 : index
    %c0_364 = arith.constant 0 : index
    %c0_365 = arith.constant 0 : index
    %898 = vector.load %arg28[%c0_363, %c0_364, %c0_365] : memref<2x32x96xbf16, #tpu.memory_space<vmem>>, vector<1x32x96xbf16>
    %899 = vector.shape_cast %898 : vector<1x32x96xbf16> to vector<32x96xbf16>
    %c0_366 = arith.constant 0 : index
    %c0_367 = arith.constant 0 : index
    %c0_368 = arith.constant 0 : index
    %900 = vector.load %arg29[%c0_366, %c0_367, %c0_368] : memref<2x1x96xf32, #tpu.memory_space<vmem>>, vector<1x1x96xf32>
    %901 = vector.shape_cast %900 : vector<1x1x96xf32> to vector<1x96xf32>
    %c0_369 = arith.constant 0 : index
    %c0_370 = arith.constant 0 : index
    %c0_371 = arith.constant 0 : index
    %902 = vector.load %arg30[%c0_369, %c0_370, %c0_371] : memref<2x32x32xbf16, #tpu.memory_space<vmem>>, vector<1x32x32xbf16>
    %903 = vector.shape_cast %902 : vector<1x32x32xbf16> to vector<32x32xbf16>
    %c0_372 = arith.constant 0 : index
    %c0_373 = arith.constant 0 : index
    %c0_374 = arith.constant 0 : index
    %904 = vector.load %arg31[%c0_372, %c0_373, %c0_374] : memref<2x1x32xf32, #tpu.memory_space<vmem>>, vector<1x1x32xf32>
    %905 = vector.shape_cast %904 : vector<1x1x32xf32> to vector<1x32xf32>
    %c0_375 = arith.constant 0 : index
    %c0_376 = arith.constant 0 : index
    %c0_377 = arith.constant 0 : index
    %906 = vector.load %arg32[%c0_375, %c0_376, %c0_377] : memref<2x1x32xf32, #tpu.memory_space<vmem>>, vector<1x1x32xf32>
    %907 = vector.shape_cast %906 : vector<1x1x32xf32> to vector<1x32xf32>
    %c0_378 = arith.constant 0 : index
    %c0_379 = arith.constant 0 : index
    %c0_380 = arith.constant 0 : index
    %908 = vector.load %arg33[%c0_378, %c0_379, %c0_380] : memref<2x1x32xf32, #tpu.memory_space<vmem>>, vector<1x1x32xf32>
    %909 = vector.shape_cast %908 : vector<1x1x32xf32> to vector<1x32xf32>
    %910 = arith.truncf %897 : vector<16x32xf32> to vector<16x32xbf16>
    %cst_381 = arith.constant dense<0.000000e+00> : vector<16x96xf32>
    %911 = tpu.matmul %910, %899, %cst_381 {dimension_numbers = #tpu.dot_dimension_numbers<[1], [0], [0], [1], [0, 0, 1, 1], [], []>} : vector<16x32xbf16>, vector<32x96xbf16>, vector<16x96xf32> -> vector<16x96xf32>
    %912 = vector.broadcast %901 : vector<1x96xf32> to vector<16x96xf32>
    %913 = arith.addf %911, %912 : vector<16x96xf32>
    %cst_382 = arith.constant 0.000000e+00 : f32
    %914 = vector.broadcast %cst_382 : f32 to vector<16x32xf32>
    %915 = vector.extract_strided_slice %913 {offsets = [0, 0], sizes = [16, 8], strides = [1, 1]} : vector<16x96xf32> to vector<16x8xf32>
    %916 = vector.extract_strided_slice %913 {offsets = [0, 32], sizes = [16, 8], strides = [1, 1]} : vector<16x96xf32> to vector<16x8xf32>
    %917 = vector.extract_strided_slice %913 {offsets = [0, 64], sizes = [16, 8], strides = [1, 1]} : vector<16x96xf32> to vector<16x8xf32>
    %918 = arith.truncf %915 : vector<16x8xf32> to vector<16x8xbf16>
    %919 = arith.truncf %916 : vector<16x8xf32> to vector<16x8xbf16>
    %cst_383 = arith.constant dense<0.000000e+00> : vector<16x16xf32>
    %920 = tpu.matmul %918, %919, %cst_383 {dimension_numbers = #tpu.dot_dimension_numbers<[1], [1], [0], [0], [0, 0, 1, 0], [], []>} : vector<16x8xbf16>, vector<16x8xbf16>, vector<16x16xf32> -> vector<16x16xf32>
    %cst_384 = arith.constant 0.353553385 : f32
    %921 = vector.broadcast %cst_384 : f32 to vector<16x16xf32>
    %922 = arith.mulf %920, %921 : vector<16x16xf32>
    %923 = arith.addf %922, %31 : vector<16x16xf32>
    %cst_385 = arith.constant dense<0xFF800000> : vector<16xf32>
    %924 = vector.multi_reduction <maximumf>, %923, %cst_385 [1] : vector<16x16xf32> to vector<16xf32>
    %925 = vector.shape_cast %924 : vector<16xf32> to vector<16x1xf32>
    %926 = vector.broadcast %925 : vector<16x1xf32> to vector<16x16xf32>
    %927 = arith.subf %923, %926 : vector<16x16xf32>
    %928 = math.exp %927 : vector<16x16xf32>
    %cst_386 = arith.constant dense<0.000000e+00> : vector<16xf32>
    %929 = vector.multi_reduction <add>, %928, %cst_386 [1] : vector<16x16xf32> to vector<16xf32>
    %930 = vector.shape_cast %929 : vector<16xf32> to vector<16x1xf32>
    %931 = tpu.reciprocal %930 {approx = true} : vector<16x1xf32> -> vector<16x1xf32>
    %932 = vector.broadcast %931 : vector<16x1xf32> to vector<16x16xf32>
    %933 = arith.mulf %928, %932 : vector<16x16xf32>
    %934 = arith.truncf %933 : vector<16x16xf32> to vector<16x16xbf16>
    %935 = arith.truncf %917 : vector<16x8xf32> to vector<16x8xbf16>
    %cst_387 = arith.constant dense<0.000000e+00> : vector<16x8xf32>
    %936 = tpu.matmul %934, %935, %cst_387 {dimension_numbers = #tpu.dot_dimension_numbers<[1], [0], [0], [1], [0, 0, 1, 1], [], []>} : vector<16x16xbf16>, vector<16x8xbf16>, vector<16x8xf32> -> vector<16x8xf32>
    %937 = arith.truncf %936 : vector<16x8xf32> to vector<16x8xbf16>
    %938 = vector.extract_strided_slice %903 {offsets = [0, 0], sizes = [8, 32], strides = [1, 1]} : vector<32x32xbf16> to vector<8x32xbf16>
    %cst_388 = arith.constant dense<0.000000e+00> : vector<16x32xf32>
    %939 = tpu.matmul %937, %938, %cst_388 {dimension_numbers = #tpu.dot_dimension_numbers<[1], [0], [0], [1], [0, 0, 1, 1], [], []>} : vector<16x8xbf16>, vector<8x32xbf16>, vector<16x32xf32> -> vector<16x32xf32>
    %940 = arith.addf %914, %939 : vector<16x32xf32>
    %941 = vector.extract_strided_slice %913 {offsets = [0, 8], sizes = [16, 8], strides = [1, 1]} : vector<16x96xf32> to vector<16x8xf32>
    %942 = vector.extract_strided_slice %913 {offsets = [0, 40], sizes = [16, 8], strides = [1, 1]} : vector<16x96xf32> to vector<16x8xf32>
    %943 = vector.extract_strided_slice %913 {offsets = [0, 72], sizes = [16, 8], strides = [1, 1]} : vector<16x96xf32> to vector<16x8xf32>
    %944 = arith.truncf %941 : vector<16x8xf32> to vector<16x8xbf16>
    %945 = arith.truncf %942 : vector<16x8xf32> to vector<16x8xbf16>
    %cst_389 = arith.constant dense<0.000000e+00> : vector<16x16xf32>
    %946 = tpu.matmul %944, %945, %cst_389 {dimension_numbers = #tpu.dot_dimension_numbers<[1], [1], [0], [0], [0, 0, 1, 0], [], []>} : vector<16x8xbf16>, vector<16x8xbf16>, vector<16x16xf32> -> vector<16x16xf32>
    %cst_390 = arith.constant 0.353553385 : f32
    %947 = vector.broadcast %cst_390 : f32 to vector<16x16xf32>
    %948 = arith.mulf %946, %947 : vector<16x16xf32>
    %949 = arith.addf %948, %31 : vector<16x16xf32>
    %cst_391 = arith.constant dense<0xFF800000> : vector<16xf32>
    %950 = vector.multi_reduction <maximumf>, %949, %cst_391 [1] : vector<16x16xf32> to vector<16xf32>
    %951 = vector.shape_cast %950 : vector<16xf32> to vector<16x1xf32>
    %952 = vector.broadcast %951 : vector<16x1xf32> to vector<16x16xf32>
    %953 = arith.subf %949, %952 : vector<16x16xf32>
    %954 = math.exp %953 : vector<16x16xf32>
    %cst_392 = arith.constant dense<0.000000e+00> : vector<16xf32>
    %955 = vector.multi_reduction <add>, %954, %cst_392 [1] : vector<16x16xf32> to vector<16xf32>
    %956 = vector.shape_cast %955 : vector<16xf32> to vector<16x1xf32>
    %957 = tpu.reciprocal %956 {approx = true} : vector<16x1xf32> -> vector<16x1xf32>
    %958 = vector.broadcast %957 : vector<16x1xf32> to vector<16x16xf32>
    %959 = arith.mulf %954, %958 : vector<16x16xf32>
    %960 = arith.truncf %959 : vector<16x16xf32> to vector<16x16xbf16>
    %961 = arith.truncf %943 : vector<16x8xf32> to vector<16x8xbf16>
    %cst_393 = arith.constant dense<0.000000e+00> : vector<16x8xf32>
    %962 = tpu.matmul %960, %961, %cst_393 {dimension_numbers = #tpu.dot_dimension_numbers<[1], [0], [0], [1], [0, 0, 1, 1], [], []>} : vector<16x16xbf16>, vector<16x8xbf16>, vector<16x8xf32> -> vector<16x8xf32>
    %963 = arith.truncf %962 : vector<16x8xf32> to vector<16x8xbf16>
    %964 = vector.extract_strided_slice %903 {offsets = [8, 0], sizes = [8, 32], strides = [1, 1]} : vector<32x32xbf16> to vector<8x32xbf16>
    %cst_394 = arith.constant dense<0.000000e+00> : vector<16x32xf32>
    %965 = tpu.matmul %963, %964, %cst_394 {dimension_numbers = #tpu.dot_dimension_numbers<[1], [0], [0], [1], [0, 0, 1, 1], [], []>} : vector<16x8xbf16>, vector<8x32xbf16>, vector<16x32xf32> -> vector<16x32xf32>
    %966 = arith.addf %940, %965 : vector<16x32xf32>
    %967 = vector.extract_strided_slice %913 {offsets = [0, 16], sizes = [16, 8], strides = [1, 1]} : vector<16x96xf32> to vector<16x8xf32>
    %968 = vector.extract_strided_slice %913 {offsets = [0, 48], sizes = [16, 8], strides = [1, 1]} : vector<16x96xf32> to vector<16x8xf32>
    %969 = vector.extract_strided_slice %913 {offsets = [0, 80], sizes = [16, 8], strides = [1, 1]} : vector<16x96xf32> to vector<16x8xf32>
    %970 = arith.truncf %967 : vector<16x8xf32> to vector<16x8xbf16>
    %971 = arith.truncf %968 : vector<16x8xf32> to vector<16x8xbf16>
    %cst_395 = arith.constant dense<0.000000e+00> : vector<16x16xf32>
    %972 = tpu.matmul %970, %971, %cst_395 {dimension_numbers = #tpu.dot_dimension_numbers<[1], [1], [0], [0], [0, 0, 1, 0], [], []>} : vector<16x8xbf16>, vector<16x8xbf16>, vector<16x16xf32> -> vector<16x16xf32>
    %cst_396 = arith.constant 0.353553385 : f32
    %973 = vector.broadcast %cst_396 : f32 to vector<16x16xf32>
    %974 = arith.mulf %972, %973 : vector<16x16xf32>
    %975 = arith.addf %974, %31 : vector<16x16xf32>
    %cst_397 = arith.constant dense<0xFF800000> : vector<16xf32>
    %976 = vector.multi_reduction <maximumf>, %975, %cst_397 [1] : vector<16x16xf32> to vector<16xf32>
    %977 = vector.shape_cast %976 : vector<16xf32> to vector<16x1xf32>
    %978 = vector.broadcast %977 : vector<16x1xf32> to vector<16x16xf32>
    %979 = arith.subf %975, %978 : vector<16x16xf32>
    %980 = math.exp %979 : vector<16x16xf32>
    %cst_398 = arith.constant dense<0.000000e+00> : vector<16xf32>
    %981 = vector.multi_reduction <add>, %980, %cst_398 [1] : vector<16x16xf32> to vector<16xf32>
    %982 = vector.shape_cast %981 : vector<16xf32> to vector<16x1xf32>
    %983 = tpu.reciprocal %982 {approx = true} : vector<16x1xf32> -> vector<16x1xf32>
    %984 = vector.broadcast %983 : vector<16x1xf32> to vector<16x16xf32>
    %985 = arith.mulf %980, %984 : vector<16x16xf32>
    %986 = arith.truncf %985 : vector<16x16xf32> to vector<16x16xbf16>
    %987 = arith.truncf %969 : vector<16x8xf32> to vector<16x8xbf16>
    %cst_399 = arith.constant dense<0.000000e+00> : vector<16x8xf32>
    %988 = tpu.matmul %986, %987, %cst_399 {dimension_numbers = #tpu.dot_dimension_numbers<[1], [0], [0], [1], [0, 0, 1, 1], [], []>} : vector<16x16xbf16>, vector<16x8xbf16>, vector<16x8xf32> -> vector<16x8xf32>
    %989 = arith.truncf %988 : vector<16x8xf32> to vector<16x8xbf16>
    %990 = vector.extract_strided_slice %903 {offsets = [16, 0], sizes = [8, 32], strides = [1, 1]} : vector<32x32xbf16> to vector<8x32xbf16>
    %cst_400 = arith.constant dense<0.000000e+00> : vector<16x32xf32>
    %991 = tpu.matmul %989, %990, %cst_400 {dimension_numbers = #tpu.dot_dimension_numbers<[1], [0], [0], [1], [0, 0, 1, 1], [], []>} : vector<16x8xbf16>, vector<8x32xbf16>, vector<16x32xf32> -> vector<16x32xf32>
    %992 = arith.addf %966, %991 : vector<16x32xf32>
    %993 = vector.extract_strided_slice %913 {offsets = [0, 24], sizes = [16, 8], strides = [1, 1]} : vector<16x96xf32> to vector<16x8xf32>
    %994 = vector.extract_strided_slice %913 {offsets = [0, 56], sizes = [16, 8], strides = [1, 1]} : vector<16x96xf32> to vector<16x8xf32>
    %995 = vector.extract_strided_slice %913 {offsets = [0, 88], sizes = [16, 8], strides = [1, 1]} : vector<16x96xf32> to vector<16x8xf32>
    %996 = arith.truncf %993 : vector<16x8xf32> to vector<16x8xbf16>
    %997 = arith.truncf %994 : vector<16x8xf32> to vector<16x8xbf16>
    %cst_401 = arith.constant dense<0.000000e+00> : vector<16x16xf32>
    %998 = tpu.matmul %996, %997, %cst_401 {dimension_numbers = #tpu.dot_dimension_numbers<[1], [1], [0], [0], [0, 0, 1, 0], [], []>} : vector<16x8xbf16>, vector<16x8xbf16>, vector<16x16xf32> -> vector<16x16xf32>
    %cst_402 = arith.constant 0.353553385 : f32
    %999 = vector.broadcast %cst_402 : f32 to vector<16x16xf32>
    %1000 = arith.mulf %998, %999 : vector<16x16xf32>
    %1001 = arith.addf %1000, %31 : vector<16x16xf32>
    %cst_403 = arith.constant dense<0xFF800000> : vector<16xf32>
    %1002 = vector.multi_reduction <maximumf>, %1001, %cst_403 [1] : vector<16x16xf32> to vector<16xf32>
    %1003 = vector.shape_cast %1002 : vector<16xf32> to vector<16x1xf32>
    %1004 = vector.broadcast %1003 : vector<16x1xf32> to vector<16x16xf32>
    %1005 = arith.subf %1001, %1004 : vector<16x16xf32>
    %1006 = math.exp %1005 : vector<16x16xf32>
    %cst_404 = arith.constant dense<0.000000e+00> : vector<16xf32>
    %1007 = vector.multi_reduction <add>, %1006, %cst_404 [1] : vector<16x16xf32> to vector<16xf32>
    %1008 = vector.shape_cast %1007 : vector<16xf32> to vector<16x1xf32>
    %1009 = tpu.reciprocal %1008 {approx = true} : vector<16x1xf32> -> vector<16x1xf32>
    %1010 = vector.broadcast %1009 : vector<16x1xf32> to vector<16x16xf32>
    %1011 = arith.mulf %1006, %1010 : vector<16x16xf32>
    %1012 = arith.truncf %1011 : vector<16x16xf32> to vector<16x16xbf16>
    %1013 = arith.truncf %995 : vector<16x8xf32> to vector<16x8xbf16>
    %cst_405 = arith.constant dense<0.000000e+00> : vector<16x8xf32>
    %1014 = tpu.matmul %1012, %1013, %cst_405 {dimension_numbers = #tpu.dot_dimension_numbers<[1], [0], [0], [1], [0, 0, 1, 1], [], []>} : vector<16x16xbf16>, vector<16x8xbf16>, vector<16x8xf32> -> vector<16x8xf32>
    %1015 = arith.truncf %1014 : vector<16x8xf32> to vector<16x8xbf16>
    %1016 = vector.extract_strided_slice %903 {offsets = [24, 0], sizes = [8, 32], strides = [1, 1]} : vector<32x32xbf16> to vector<8x32xbf16>
    %cst_406 = arith.constant dense<0.000000e+00> : vector<16x32xf32>
    %1017 = tpu.matmul %1015, %1016, %cst_406 {dimension_numbers = #tpu.dot_dimension_numbers<[1], [0], [0], [1], [0, 0, 1, 1], [], []>} : vector<16x8xbf16>, vector<8x32xbf16>, vector<16x32xf32> -> vector<16x32xf32>
    %1018 = arith.addf %992, %1017 : vector<16x32xf32>
    %1019 = arith.addf %897, %1018 : vector<16x32xf32>
    %1020 = vector.broadcast %905 : vector<1x32xf32> to vector<16x32xf32>
    %1021 = arith.addf %1019, %1020 : vector<16x32xf32>
    %cst_407 = arith.constant dense<0.000000e+00> : vector<16xf32>
    %1022 = vector.multi_reduction <add>, %1021, %cst_407 [1] : vector<16x32xf32> to vector<16xf32>
    %1023 = vector.shape_cast %1022 : vector<16xf32> to vector<16x1xf32>
    %cst_408 = arith.constant 3.200000e+01 : f32
    %1024 = vector.broadcast %cst_408 : f32 to vector<16x1xf32>
    %1025 = arith.divf %1023, %1024 : vector<16x1xf32>
    %1026 = vector.broadcast %1025 : vector<16x1xf32> to vector<16x32xf32>
    %1027 = arith.subf %1021, %1026 : vector<16x32xf32>
    %1028 = arith.mulf %1027, %1027 : vector<16x32xf32>
    %cst_409 = arith.constant dense<0.000000e+00> : vector<16xf32>
    %1029 = vector.multi_reduction <add>, %1028, %cst_409 [1] : vector<16x32xf32> to vector<16xf32>
    %1030 = vector.shape_cast %1029 : vector<16xf32> to vector<16x1xf32>
    %cst_410 = arith.constant 3.200000e+01 : f32
    %1031 = vector.broadcast %cst_410 : f32 to vector<16x1xf32>
    %1032 = arith.divf %1030, %1031 : vector<16x1xf32>
    %1033 = vector.broadcast %1025 : vector<16x1xf32> to vector<16x32xf32>
    %1034 = arith.subf %1021, %1033 : vector<16x32xf32>
    %cst_411 = arith.constant 9.99999996E-13 : f32
    %1035 = vector.broadcast %cst_411 : f32 to vector<16x1xf32>
    %1036 = arith.addf %1032, %1035 : vector<16x1xf32>
    %1037 = math.rsqrt %1036 : vector<16x1xf32>
    %1038 = vector.broadcast %1037 : vector<16x1xf32> to vector<16x32xf32>
    %1039 = arith.mulf %1034, %1038 : vector<16x32xf32>
    %1040 = vector.broadcast %907 : vector<1x32xf32> to vector<16x32xf32>
    %1041 = arith.mulf %1039, %1040 : vector<16x32xf32>
    %1042 = vector.broadcast %909 : vector<1x32xf32> to vector<16x32xf32>
    %1043 = arith.addf %1041, %1042 : vector<16x32xf32>
    %1044 = arith.truncf %867 : vector<2x32xf32> to vector<2x32xbf16>
    %c0_412 = arith.constant 0 : index
    %c0_413 = arith.constant 0 : index
    %c0_414 = arith.constant 0 : index
    %1045 = vector.load %arg34[%c0_412, %c0_413, %c0_414] : memref<2x32x32xbf16, #tpu.memory_space<vmem>>, vector<1x32x32xbf16>
    %1046 = vector.shape_cast %1045 : vector<1x32x32xbf16> to vector<32x32xbf16>
    %cst_415 = arith.constant dense<0.000000e+00> : vector<2x32xf32>
    %1047 = tpu.matmul %1044, %1046, %cst_415 {dimension_numbers = #tpu.dot_dimension_numbers<[1], [0], [0], [1], [0, 0, 1, 1], [], []>} : vector<2x32xbf16>, vector<32x32xbf16>, vector<2x32xf32> -> vector<2x32xf32>
    %c0_416 = arith.constant 0 : index
    %c0_417 = arith.constant 0 : index
    %c0_418 = arith.constant 0 : index
    %1048 = vector.load %arg35[%c0_416, %c0_417, %c0_418] : memref<2x1x32xf32, #tpu.memory_space<vmem>>, vector<1x1x32xf32>
    %1049 = vector.shape_cast %1048 : vector<1x1x32xf32> to vector<1x32xf32>
    %1050 = vector.broadcast %1049 : vector<1x32xf32> to vector<2x32xf32>
    %1051 = arith.addf %1047, %1050 : vector<2x32xf32>
    %1052 = arith.truncf %1051 : vector<2x32xf32> to vector<2x32xbf16>
    %c0_419 = arith.constant 0 : index
    %c0_420 = arith.constant 0 : index
    %c0_421 = arith.constant 0 : index
    %1053 = vector.load %arg36[%c0_419, %c0_420, %c0_421] : memref<2x32x32xbf16, #tpu.memory_space<vmem>>, vector<1x32x32xbf16>
    %1054 = vector.shape_cast %1053 : vector<1x32x32xbf16> to vector<32x32xbf16>
    %cst_422 = arith.constant dense<0.000000e+00> : vector<2x32xf32>
    %1055 = tpu.matmul %1052, %1054, %cst_422 {dimension_numbers = #tpu.dot_dimension_numbers<[1], [0], [0], [1], [0, 0, 1, 1], [], []>} : vector<2x32xbf16>, vector<32x32xbf16>, vector<2x32xf32> -> vector<2x32xf32>
    %c0_423 = arith.constant 0 : index
    %c0_424 = arith.constant 0 : index
    %c0_425 = arith.constant 0 : index
    %1056 = vector.load %arg37[%c0_423, %c0_424, %c0_425] : memref<2x1x32xf32, #tpu.memory_space<vmem>>, vector<1x1x32xf32>
    %1057 = vector.shape_cast %1056 : vector<1x1x32xf32> to vector<1x32xf32>
    %1058 = vector.broadcast %1057 : vector<1x32xf32> to vector<2x32xf32>
    %1059 = arith.addf %1055, %1058 : vector<2x32xf32>
    %1060 = vector.extract_strided_slice %1059 {offsets = [0, 0], sizes = [1, 32], strides = [1, 1]} : vector<2x32xf32> to vector<1x32xf32>
    %1061 = vector.shape_cast %1060 : vector<1x32xf32> to vector<1x32xf32>
    %1062 = vector.broadcast %1061 : vector<1x32xf32> to vector<8x32xf32>
    %1063 = vector.extract_strided_slice %1059 {offsets = [1, 0], sizes = [1, 32], strides = [1, 1]} : vector<2x32xf32> to vector<1x32xf32>
    %1064 = vector.shape_cast %1063 : vector<1x32xf32> to vector<1x32xf32>
    %1065 = vector.broadcast %1064 : vector<1x32xf32> to vector<8x32xf32>
    %1066 = tpu.concatenate %1062, %1065 in 0 : vector<8x32xf32>, vector<8x32xf32> -> vector<16x32xf32>
    %1067 = arith.addf %1043, %1066 : vector<16x32xf32>
    %c0_426 = arith.constant 0 : index
    %c0_427 = arith.constant 0 : index
    %c0_428 = arith.constant 0 : index
    %1068 = vector.load %arg38[%c0_426, %c0_427, %c0_428] : memref<2x1x32xf32, #tpu.memory_space<vmem>>, vector<1x1x32xf32>
    %1069 = vector.shape_cast %1068 : vector<1x1x32xf32> to vector<1x32xf32>
    %c0_429 = arith.constant 0 : index
    %c0_430 = arith.constant 0 : index
    %c0_431 = arith.constant 0 : index
    %1070 = vector.load %arg39[%c0_429, %c0_430, %c0_431] : memref<2x1x32xf32, #tpu.memory_space<vmem>>, vector<1x1x32xf32>
    %1071 = vector.shape_cast %1070 : vector<1x1x32xf32> to vector<1x32xf32>
    %cst_432 = arith.constant dense<0.000000e+00> : vector<16xf32>
    %1072 = vector.multi_reduction <add>, %1067, %cst_432 [1] : vector<16x32xf32> to vector<16xf32>
    %1073 = vector.shape_cast %1072 : vector<16xf32> to vector<16x1xf32>
    %cst_433 = arith.constant 3.200000e+01 : f32
    %1074 = vector.broadcast %cst_433 : f32 to vector<16x1xf32>
    %1075 = arith.divf %1073, %1074 : vector<16x1xf32>
    %1076 = vector.broadcast %1075 : vector<16x1xf32> to vector<16x32xf32>
    %1077 = arith.subf %1067, %1076 : vector<16x32xf32>
    %1078 = arith.mulf %1077, %1077 : vector<16x32xf32>
    %cst_434 = arith.constant dense<0.000000e+00> : vector<16xf32>
    %1079 = vector.multi_reduction <add>, %1078, %cst_434 [1] : vector<16x32xf32> to vector<16xf32>
    %1080 = vector.shape_cast %1079 : vector<16xf32> to vector<16x1xf32>
    %cst_435 = arith.constant 3.200000e+01 : f32
    %1081 = vector.broadcast %cst_435 : f32 to vector<16x1xf32>
    %1082 = arith.divf %1080, %1081 : vector<16x1xf32>
    %1083 = vector.broadcast %1075 : vector<16x1xf32> to vector<16x32xf32>
    %1084 = arith.subf %1067, %1083 : vector<16x32xf32>
    %cst_436 = arith.constant 9.99999996E-13 : f32
    %1085 = vector.broadcast %cst_436 : f32 to vector<16x1xf32>
    %1086 = arith.addf %1082, %1085 : vector<16x1xf32>
    %1087 = math.rsqrt %1086 : vector<16x1xf32>
    %1088 = vector.broadcast %1087 : vector<16x1xf32> to vector<16x32xf32>
    %1089 = arith.mulf %1084, %1088 : vector<16x32xf32>
    %1090 = vector.broadcast %1069 : vector<1x32xf32> to vector<16x32xf32>
    %1091 = arith.mulf %1089, %1090 : vector<16x32xf32>
    %1092 = vector.broadcast %1071 : vector<1x32xf32> to vector<16x32xf32>
    %1093 = arith.addf %1091, %1092 : vector<16x32xf32>
    %c0_437 = arith.constant 0 : index
    %c0_438 = arith.constant 0 : index
    %c0_439 = arith.constant 0 : index
    %1094 = vector.load %arg40[%c0_437, %c0_438, %c0_439] : memref<2x32x64xbf16, #tpu.memory_space<vmem>>, vector<1x32x64xbf16>
    %1095 = vector.shape_cast %1094 : vector<1x32x64xbf16> to vector<32x64xbf16>
    %c0_440 = arith.constant 0 : index
    %c0_441 = arith.constant 0 : index
    %c0_442 = arith.constant 0 : index
    %1096 = vector.load %arg41[%c0_440, %c0_441, %c0_442] : memref<2x1x64xf32, #tpu.memory_space<vmem>>, vector<1x1x64xf32>
    %1097 = vector.shape_cast %1096 : vector<1x1x64xf32> to vector<1x64xf32>
    %c0_443 = arith.constant 0 : index
    %c0_444 = arith.constant 0 : index
    %c0_445 = arith.constant 0 : index
    %1098 = vector.load %arg42[%c0_443, %c0_444, %c0_445] : memref<2x64x32xbf16, #tpu.memory_space<vmem>>, vector<1x64x32xbf16>
    %1099 = vector.shape_cast %1098 : vector<1x64x32xbf16> to vector<64x32xbf16>
    %c0_446 = arith.constant 0 : index
    %c0_447 = arith.constant 0 : index
    %c0_448 = arith.constant 0 : index
    %1100 = vector.load %arg43[%c0_446, %c0_447, %c0_448] : memref<2x1x32xf32, #tpu.memory_space<vmem>>, vector<1x1x32xf32>
    %1101 = vector.shape_cast %1100 : vector<1x1x32xf32> to vector<1x32xf32>
    %c0_449 = arith.constant 0 : index
    %c0_450 = arith.constant 0 : index
    %c0_451 = arith.constant 0 : index
    %1102 = vector.load %arg44[%c0_449, %c0_450, %c0_451] : memref<2x1x32xf32, #tpu.memory_space<vmem>>, vector<1x1x32xf32>
    %1103 = vector.shape_cast %1102 : vector<1x1x32xf32> to vector<1x32xf32>
    %c0_452 = arith.constant 0 : index
    %c0_453 = arith.constant 0 : index
    %c0_454 = arith.constant 0 : index
    %1104 = vector.load %arg45[%c0_452, %c0_453, %c0_454] : memref<2x1x32xf32, #tpu.memory_space<vmem>>, vector<1x1x32xf32>
    %1105 = vector.shape_cast %1104 : vector<1x1x32xf32> to vector<1x32xf32>
    %1106 = arith.truncf %1093 : vector<16x32xf32> to vector<16x32xbf16>
    %cst_455 = arith.constant dense<0.000000e+00> : vector<16x64xf32>
    %1107 = tpu.matmul %1106, %1095, %cst_455 {dimension_numbers = #tpu.dot_dimension_numbers<[1], [0], [0], [1], [0, 0, 1, 1], [], []>} : vector<16x32xbf16>, vector<32x64xbf16>, vector<16x64xf32> -> vector<16x64xf32>
    %1108 = vector.broadcast %1097 : vector<1x64xf32> to vector<16x64xf32>
    %1109 = arith.addf %1107, %1108 : vector<16x64xf32>
    %cst_456 = arith.constant 5.000000e-01 : f32
    %1110 = vector.broadcast %cst_456 : f32 to vector<16x64xf32>
    %1111 = arith.mulf %1110, %1109 : vector<16x64xf32>
    %cst_457 = arith.constant 0.707106769 : f32
    %1112 = vector.broadcast %cst_457 : f32 to vector<16x64xf32>
    %1113 = arith.mulf %1109, %1112 : vector<16x64xf32>
    %1114 = math.absf %1113 : vector<16x64xf32>
    %cst_458 = arith.constant 0.327591091 : f32
    %1115 = vector.broadcast %cst_458 : f32 to vector<16x64xf32>
    %1116 = arith.mulf %1115, %1114 : vector<16x64xf32>
    %cst_459 = arith.constant 1.000000e+00 : f32
    %1117 = vector.broadcast %cst_459 : f32 to vector<16x64xf32>
    %1118 = arith.addf %1117, %1116 : vector<16x64xf32>
    %cst_460 = arith.constant 1.000000e+00 : f32
    %1119 = vector.broadcast %cst_460 : f32 to vector<16x64xf32>
    %1120 = arith.divf %1119, %1118 : vector<16x64xf32>
    %cst_461 = arith.constant 1.06140542 : f32
    %1121 = vector.broadcast %cst_461 : f32 to vector<16x64xf32>
    %1122 = arith.mulf %1121, %1120 : vector<16x64xf32>
    %cst_462 = arith.constant 1.45315206 : f32
    %1123 = vector.broadcast %cst_462 : f32 to vector<16x64xf32>
    %1124 = arith.subf %1122, %1123 : vector<16x64xf32>
    %1125 = arith.mulf %1124, %1120 : vector<16x64xf32>
    %cst_463 = arith.constant 1.42141378 : f32
    %1126 = vector.broadcast %cst_463 : f32 to vector<16x64xf32>
    %1127 = arith.addf %1125, %1126 : vector<16x64xf32>
    %1128 = arith.mulf %1127, %1120 : vector<16x64xf32>
    %cst_464 = arith.constant 0.284496725 : f32
    %1129 = vector.broadcast %cst_464 : f32 to vector<16x64xf32>
    %1130 = arith.subf %1128, %1129 : vector<16x64xf32>
    %1131 = arith.mulf %1130, %1120 : vector<16x64xf32>
    %cst_465 = arith.constant 0.254829586 : f32
    %1132 = vector.broadcast %cst_465 : f32 to vector<16x64xf32>
    %1133 = arith.addf %1131, %1132 : vector<16x64xf32>
    %1134 = arith.mulf %1133, %1120 : vector<16x64xf32>
    %cst_466 = arith.constant 0.000000e+00 : f32
    %1135 = vector.broadcast %cst_466 : f32 to vector<16x64xf32>
    %1136 = arith.subf %1135, %1114 : vector<16x64xf32>
    %1137 = arith.mulf %1136, %1114 : vector<16x64xf32>
    %1138 = math.exp %1137 : vector<16x64xf32>
    %1139 = arith.mulf %1134, %1138 : vector<16x64xf32>
    %cst_467 = arith.constant 1.000000e+00 : f32
    %1140 = vector.broadcast %cst_467 : f32 to vector<16x64xf32>
    %1141 = arith.subf %1140, %1139 : vector<16x64xf32>
    %cst_468 = arith.constant 0.000000e+00 : f32
    %1142 = vector.broadcast %cst_468 : f32 to vector<16x64xf32>
    %1143 = arith.cmpf oge, %1113, %1142 : vector<16x64xf32>
    %cst_469 = arith.constant 0.000000e+00 : f32
    %1144 = vector.broadcast %cst_469 : f32 to vector<16x64xf32>
    %1145 = arith.subf %1144, %1141 : vector<16x64xf32>
    %1146 = arith.select %1143, %1141, %1145 : vector<16x64xi1>, vector<16x64xf32>
    %cst_470 = arith.constant 1.000000e+00 : f32
    %1147 = vector.broadcast %cst_470 : f32 to vector<16x64xf32>
    %1148 = arith.addf %1147, %1146 : vector<16x64xf32>
    %1149 = arith.mulf %1111, %1148 : vector<16x64xf32>
    %1150 = arith.truncf %1149 : vector<16x64xf32> to vector<16x64xbf16>
    %cst_471 = arith.constant dense<0.000000e+00> : vector<16x32xf32>
    %1151 = tpu.matmul %1150, %1099, %cst_471 {dimension_numbers = #tpu.dot_dimension_numbers<[1], [0], [0], [1], [0, 0, 1, 1], [], []>} : vector<16x64xbf16>, vector<64x32xbf16>, vector<16x32xf32> -> vector<16x32xf32>
    %1152 = vector.broadcast %1101 : vector<1x32xf32> to vector<16x32xf32>
    %1153 = arith.addf %1151, %1152 : vector<16x32xf32>
    %1154 = arith.addf %1093, %1153 : vector<16x32xf32>
    %cst_472 = arith.constant dense<0.000000e+00> : vector<16xf32>
    %1155 = vector.multi_reduction <add>, %1154, %cst_472 [1] : vector<16x32xf32> to vector<16xf32>
    %1156 = vector.shape_cast %1155 : vector<16xf32> to vector<16x1xf32>
    %cst_473 = arith.constant 3.200000e+01 : f32
    %1157 = vector.broadcast %cst_473 : f32 to vector<16x1xf32>
    %1158 = arith.divf %1156, %1157 : vector<16x1xf32>
    %1159 = vector.broadcast %1158 : vector<16x1xf32> to vector<16x32xf32>
    %1160 = arith.subf %1154, %1159 : vector<16x32xf32>
    %1161 = arith.mulf %1160, %1160 : vector<16x32xf32>
    %cst_474 = arith.constant dense<0.000000e+00> : vector<16xf32>
    %1162 = vector.multi_reduction <add>, %1161, %cst_474 [1] : vector<16x32xf32> to vector<16xf32>
    %1163 = vector.shape_cast %1162 : vector<16xf32> to vector<16x1xf32>
    %cst_475 = arith.constant 3.200000e+01 : f32
    %1164 = vector.broadcast %cst_475 : f32 to vector<16x1xf32>
    %1165 = arith.divf %1163, %1164 : vector<16x1xf32>
    %1166 = vector.broadcast %1158 : vector<16x1xf32> to vector<16x32xf32>
    %1167 = arith.subf %1154, %1166 : vector<16x32xf32>
    %cst_476 = arith.constant 9.99999996E-13 : f32
    %1168 = vector.broadcast %cst_476 : f32 to vector<16x1xf32>
    %1169 = arith.addf %1165, %1168 : vector<16x1xf32>
    %1170 = math.rsqrt %1169 : vector<16x1xf32>
    %1171 = vector.broadcast %1170 : vector<16x1xf32> to vector<16x32xf32>
    %1172 = arith.mulf %1167, %1171 : vector<16x32xf32>
    %1173 = vector.broadcast %1103 : vector<1x32xf32> to vector<16x32xf32>
    %1174 = arith.mulf %1172, %1173 : vector<16x32xf32>
    %1175 = vector.broadcast %1105 : vector<1x32xf32> to vector<16x32xf32>
    %1176 = arith.addf %1174, %1175 : vector<16x32xf32>
    %c1_477 = arith.constant 1 : index
    %c0_478 = arith.constant 0 : index
    %c0_479 = arith.constant 0 : index
    %1177 = vector.load %arg28[%c1_477, %c0_478, %c0_479] : memref<2x32x96xbf16, #tpu.memory_space<vmem>>, vector<1x32x96xbf16>
    %1178 = vector.shape_cast %1177 : vector<1x32x96xbf16> to vector<32x96xbf16>
    %c1_480 = arith.constant 1 : index
    %c0_481 = arith.constant 0 : index
    %c0_482 = arith.constant 0 : index
    %1179 = vector.load %arg29[%c1_480, %c0_481, %c0_482] : memref<2x1x96xf32, #tpu.memory_space<vmem>>, vector<1x1x96xf32>
    %1180 = vector.shape_cast %1179 : vector<1x1x96xf32> to vector<1x96xf32>
    %c1_483 = arith.constant 1 : index
    %c0_484 = arith.constant 0 : index
    %c0_485 = arith.constant 0 : index
    %1181 = vector.load %arg30[%c1_483, %c0_484, %c0_485] : memref<2x32x32xbf16, #tpu.memory_space<vmem>>, vector<1x32x32xbf16>
    %1182 = vector.shape_cast %1181 : vector<1x32x32xbf16> to vector<32x32xbf16>
    %c1_486 = arith.constant 1 : index
    %c0_487 = arith.constant 0 : index
    %c0_488 = arith.constant 0 : index
    %1183 = vector.load %arg31[%c1_486, %c0_487, %c0_488] : memref<2x1x32xf32, #tpu.memory_space<vmem>>, vector<1x1x32xf32>
    %1184 = vector.shape_cast %1183 : vector<1x1x32xf32> to vector<1x32xf32>
    %c1_489 = arith.constant 1 : index
    %c0_490 = arith.constant 0 : index
    %c0_491 = arith.constant 0 : index
    %1185 = vector.load %arg32[%c1_489, %c0_490, %c0_491] : memref<2x1x32xf32, #tpu.memory_space<vmem>>, vector<1x1x32xf32>
    %1186 = vector.shape_cast %1185 : vector<1x1x32xf32> to vector<1x32xf32>
    %c1_492 = arith.constant 1 : index
    %c0_493 = arith.constant 0 : index
    %c0_494 = arith.constant 0 : index
    %1187 = vector.load %arg33[%c1_492, %c0_493, %c0_494] : memref<2x1x32xf32, #tpu.memory_space<vmem>>, vector<1x1x32xf32>
    %1188 = vector.shape_cast %1187 : vector<1x1x32xf32> to vector<1x32xf32>
    %1189 = arith.truncf %1176 : vector<16x32xf32> to vector<16x32xbf16>
    %cst_495 = arith.constant dense<0.000000e+00> : vector<16x96xf32>
    %1190 = tpu.matmul %1189, %1178, %cst_495 {dimension_numbers = #tpu.dot_dimension_numbers<[1], [0], [0], [1], [0, 0, 1, 1], [], []>} : vector<16x32xbf16>, vector<32x96xbf16>, vector<16x96xf32> -> vector<16x96xf32>
    %1191 = vector.broadcast %1180 : vector<1x96xf32> to vector<16x96xf32>
    %1192 = arith.addf %1190, %1191 : vector<16x96xf32>
    %cst_496 = arith.constant 0.000000e+00 : f32
    %1193 = vector.broadcast %cst_496 : f32 to vector<16x32xf32>
    %1194 = vector.extract_strided_slice %1192 {offsets = [0, 0], sizes = [16, 8], strides = [1, 1]} : vector<16x96xf32> to vector<16x8xf32>
    %1195 = vector.extract_strided_slice %1192 {offsets = [0, 32], sizes = [16, 8], strides = [1, 1]} : vector<16x96xf32> to vector<16x8xf32>
    %1196 = vector.extract_strided_slice %1192 {offsets = [0, 64], sizes = [16, 8], strides = [1, 1]} : vector<16x96xf32> to vector<16x8xf32>
    %1197 = arith.truncf %1194 : vector<16x8xf32> to vector<16x8xbf16>
    %1198 = arith.truncf %1195 : vector<16x8xf32> to vector<16x8xbf16>
    %cst_497 = arith.constant dense<0.000000e+00> : vector<16x16xf32>
    %1199 = tpu.matmul %1197, %1198, %cst_497 {dimension_numbers = #tpu.dot_dimension_numbers<[1], [1], [0], [0], [0, 0, 1, 0], [], []>} : vector<16x8xbf16>, vector<16x8xbf16>, vector<16x16xf32> -> vector<16x16xf32>
    %cst_498 = arith.constant 0.353553385 : f32
    %1200 = vector.broadcast %cst_498 : f32 to vector<16x16xf32>
    %1201 = arith.mulf %1199, %1200 : vector<16x16xf32>
    %1202 = arith.addf %1201, %31 : vector<16x16xf32>
    %cst_499 = arith.constant dense<0xFF800000> : vector<16xf32>
    %1203 = vector.multi_reduction <maximumf>, %1202, %cst_499 [1] : vector<16x16xf32> to vector<16xf32>
    %1204 = vector.shape_cast %1203 : vector<16xf32> to vector<16x1xf32>
    %1205 = vector.broadcast %1204 : vector<16x1xf32> to vector<16x16xf32>
    %1206 = arith.subf %1202, %1205 : vector<16x16xf32>
    %1207 = math.exp %1206 : vector<16x16xf32>
    %cst_500 = arith.constant dense<0.000000e+00> : vector<16xf32>
    %1208 = vector.multi_reduction <add>, %1207, %cst_500 [1] : vector<16x16xf32> to vector<16xf32>
    %1209 = vector.shape_cast %1208 : vector<16xf32> to vector<16x1xf32>
    %1210 = tpu.reciprocal %1209 {approx = true} : vector<16x1xf32> -> vector<16x1xf32>
    %1211 = vector.broadcast %1210 : vector<16x1xf32> to vector<16x16xf32>
    %1212 = arith.mulf %1207, %1211 : vector<16x16xf32>
    %1213 = arith.truncf %1212 : vector<16x16xf32> to vector<16x16xbf16>
    %1214 = arith.truncf %1196 : vector<16x8xf32> to vector<16x8xbf16>
    %cst_501 = arith.constant dense<0.000000e+00> : vector<16x8xf32>
    %1215 = tpu.matmul %1213, %1214, %cst_501 {dimension_numbers = #tpu.dot_dimension_numbers<[1], [0], [0], [1], [0, 0, 1, 1], [], []>} : vector<16x16xbf16>, vector<16x8xbf16>, vector<16x8xf32> -> vector<16x8xf32>
    %1216 = arith.truncf %1215 : vector<16x8xf32> to vector<16x8xbf16>
    %1217 = vector.extract_strided_slice %1182 {offsets = [0, 0], sizes = [8, 32], strides = [1, 1]} : vector<32x32xbf16> to vector<8x32xbf16>
    %cst_502 = arith.constant dense<0.000000e+00> : vector<16x32xf32>
    %1218 = tpu.matmul %1216, %1217, %cst_502 {dimension_numbers = #tpu.dot_dimension_numbers<[1], [0], [0], [1], [0, 0, 1, 1], [], []>} : vector<16x8xbf16>, vector<8x32xbf16>, vector<16x32xf32> -> vector<16x32xf32>
    %1219 = arith.addf %1193, %1218 : vector<16x32xf32>
    %1220 = vector.extract_strided_slice %1192 {offsets = [0, 8], sizes = [16, 8], strides = [1, 1]} : vector<16x96xf32> to vector<16x8xf32>
    %1221 = vector.extract_strided_slice %1192 {offsets = [0, 40], sizes = [16, 8], strides = [1, 1]} : vector<16x96xf32> to vector<16x8xf32>
    %1222 = vector.extract_strided_slice %1192 {offsets = [0, 72], sizes = [16, 8], strides = [1, 1]} : vector<16x96xf32> to vector<16x8xf32>
    %1223 = arith.truncf %1220 : vector<16x8xf32> to vector<16x8xbf16>
    %1224 = arith.truncf %1221 : vector<16x8xf32> to vector<16x8xbf16>
    %cst_503 = arith.constant dense<0.000000e+00> : vector<16x16xf32>
    %1225 = tpu.matmul %1223, %1224, %cst_503 {dimension_numbers = #tpu.dot_dimension_numbers<[1], [1], [0], [0], [0, 0, 1, 0], [], []>} : vector<16x8xbf16>, vector<16x8xbf16>, vector<16x16xf32> -> vector<16x16xf32>
    %cst_504 = arith.constant 0.353553385 : f32
    %1226 = vector.broadcast %cst_504 : f32 to vector<16x16xf32>
    %1227 = arith.mulf %1225, %1226 : vector<16x16xf32>
    %1228 = arith.addf %1227, %31 : vector<16x16xf32>
    %cst_505 = arith.constant dense<0xFF800000> : vector<16xf32>
    %1229 = vector.multi_reduction <maximumf>, %1228, %cst_505 [1] : vector<16x16xf32> to vector<16xf32>
    %1230 = vector.shape_cast %1229 : vector<16xf32> to vector<16x1xf32>
    %1231 = vector.broadcast %1230 : vector<16x1xf32> to vector<16x16xf32>
    %1232 = arith.subf %1228, %1231 : vector<16x16xf32>
    %1233 = math.exp %1232 : vector<16x16xf32>
    %cst_506 = arith.constant dense<0.000000e+00> : vector<16xf32>
    %1234 = vector.multi_reduction <add>, %1233, %cst_506 [1] : vector<16x16xf32> to vector<16xf32>
    %1235 = vector.shape_cast %1234 : vector<16xf32> to vector<16x1xf32>
    %1236 = tpu.reciprocal %1235 {approx = true} : vector<16x1xf32> -> vector<16x1xf32>
    %1237 = vector.broadcast %1236 : vector<16x1xf32> to vector<16x16xf32>
    %1238 = arith.mulf %1233, %1237 : vector<16x16xf32>
    %1239 = arith.truncf %1238 : vector<16x16xf32> to vector<16x16xbf16>
    %1240 = arith.truncf %1222 : vector<16x8xf32> to vector<16x8xbf16>
    %cst_507 = arith.constant dense<0.000000e+00> : vector<16x8xf32>
    %1241 = tpu.matmul %1239, %1240, %cst_507 {dimension_numbers = #tpu.dot_dimension_numbers<[1], [0], [0], [1], [0, 0, 1, 1], [], []>} : vector<16x16xbf16>, vector<16x8xbf16>, vector<16x8xf32> -> vector<16x8xf32>
    %1242 = arith.truncf %1241 : vector<16x8xf32> to vector<16x8xbf16>
    %1243 = vector.extract_strided_slice %1182 {offsets = [8, 0], sizes = [8, 32], strides = [1, 1]} : vector<32x32xbf16> to vector<8x32xbf16>
    %cst_508 = arith.constant dense<0.000000e+00> : vector<16x32xf32>
    %1244 = tpu.matmul %1242, %1243, %cst_508 {dimension_numbers = #tpu.dot_dimension_numbers<[1], [0], [0], [1], [0, 0, 1, 1], [], []>} : vector<16x8xbf16>, vector<8x32xbf16>, vector<16x32xf32> -> vector<16x32xf32>
    %1245 = arith.addf %1219, %1244 : vector<16x32xf32>
    %1246 = vector.extract_strided_slice %1192 {offsets = [0, 16], sizes = [16, 8], strides = [1, 1]} : vector<16x96xf32> to vector<16x8xf32>
    %1247 = vector.extract_strided_slice %1192 {offsets = [0, 48], sizes = [16, 8], strides = [1, 1]} : vector<16x96xf32> to vector<16x8xf32>
    %1248 = vector.extract_strided_slice %1192 {offsets = [0, 80], sizes = [16, 8], strides = [1, 1]} : vector<16x96xf32> to vector<16x8xf32>
    %1249 = arith.truncf %1246 : vector<16x8xf32> to vector<16x8xbf16>
    %1250 = arith.truncf %1247 : vector<16x8xf32> to vector<16x8xbf16>
    %cst_509 = arith.constant dense<0.000000e+00> : vector<16x16xf32>
    %1251 = tpu.matmul %1249, %1250, %cst_509 {dimension_numbers = #tpu.dot_dimension_numbers<[1], [1], [0], [0], [0, 0, 1, 0], [], []>} : vector<16x8xbf16>, vector<16x8xbf16>, vector<16x16xf32> -> vector<16x16xf32>
    %cst_510 = arith.constant 0.353553385 : f32
    %1252 = vector.broadcast %cst_510 : f32 to vector<16x16xf32>
    %1253 = arith.mulf %1251, %1252 : vector<16x16xf32>
    %1254 = arith.addf %1253, %31 : vector<16x16xf32>
    %cst_511 = arith.constant dense<0xFF800000> : vector<16xf32>
    %1255 = vector.multi_reduction <maximumf>, %1254, %cst_511 [1] : vector<16x16xf32> to vector<16xf32>
    %1256 = vector.shape_cast %1255 : vector<16xf32> to vector<16x1xf32>
    %1257 = vector.broadcast %1256 : vector<16x1xf32> to vector<16x16xf32>
    %1258 = arith.subf %1254, %1257 : vector<16x16xf32>
    %1259 = math.exp %1258 : vector<16x16xf32>
    %cst_512 = arith.constant dense<0.000000e+00> : vector<16xf32>
    %1260 = vector.multi_reduction <add>, %1259, %cst_512 [1] : vector<16x16xf32> to vector<16xf32>
    %1261 = vector.shape_cast %1260 : vector<16xf32> to vector<16x1xf32>
    %1262 = tpu.reciprocal %1261 {approx = true} : vector<16x1xf32> -> vector<16x1xf32>
    %1263 = vector.broadcast %1262 : vector<16x1xf32> to vector<16x16xf32>
    %1264 = arith.mulf %1259, %1263 : vector<16x16xf32>
    %1265 = arith.truncf %1264 : vector<16x16xf32> to vector<16x16xbf16>
    %1266 = arith.truncf %1248 : vector<16x8xf32> to vector<16x8xbf16>
    %cst_513 = arith.constant dense<0.000000e+00> : vector<16x8xf32>
    %1267 = tpu.matmul %1265, %1266, %cst_513 {dimension_numbers = #tpu.dot_dimension_numbers<[1], [0], [0], [1], [0, 0, 1, 1], [], []>} : vector<16x16xbf16>, vector<16x8xbf16>, vector<16x8xf32> -> vector<16x8xf32>
    %1268 = arith.truncf %1267 : vector<16x8xf32> to vector<16x8xbf16>
    %1269 = vector.extract_strided_slice %1182 {offsets = [16, 0], sizes = [8, 32], strides = [1, 1]} : vector<32x32xbf16> to vector<8x32xbf16>
    %cst_514 = arith.constant dense<0.000000e+00> : vector<16x32xf32>
    %1270 = tpu.matmul %1268, %1269, %cst_514 {dimension_numbers = #tpu.dot_dimension_numbers<[1], [0], [0], [1], [0, 0, 1, 1], [], []>} : vector<16x8xbf16>, vector<8x32xbf16>, vector<16x32xf32> -> vector<16x32xf32>
    %1271 = arith.addf %1245, %1270 : vector<16x32xf32>
    %1272 = vector.extract_strided_slice %1192 {offsets = [0, 24], sizes = [16, 8], strides = [1, 1]} : vector<16x96xf32> to vector<16x8xf32>
    %1273 = vector.extract_strided_slice %1192 {offsets = [0, 56], sizes = [16, 8], strides = [1, 1]} : vector<16x96xf32> to vector<16x8xf32>
    %1274 = vector.extract_strided_slice %1192 {offsets = [0, 88], sizes = [16, 8], strides = [1, 1]} : vector<16x96xf32> to vector<16x8xf32>
    %1275 = arith.truncf %1272 : vector<16x8xf32> to vector<16x8xbf16>
    %1276 = arith.truncf %1273 : vector<16x8xf32> to vector<16x8xbf16>
    %cst_515 = arith.constant dense<0.000000e+00> : vector<16x16xf32>
    %1277 = tpu.matmul %1275, %1276, %cst_515 {dimension_numbers = #tpu.dot_dimension_numbers<[1], [1], [0], [0], [0, 0, 1, 0], [], []>} : vector<16x8xbf16>, vector<16x8xbf16>, vector<16x16xf32> -> vector<16x16xf32>
    %cst_516 = arith.constant 0.353553385 : f32
    %1278 = vector.broadcast %cst_516 : f32 to vector<16x16xf32>
    %1279 = arith.mulf %1277, %1278 : vector<16x16xf32>
    %1280 = arith.addf %1279, %31 : vector<16x16xf32>
    %cst_517 = arith.constant dense<0xFF800000> : vector<16xf32>
    %1281 = vector.multi_reduction <maximumf>, %1280, %cst_517 [1] : vector<16x16xf32> to vector<16xf32>
    %1282 = vector.shape_cast %1281 : vector<16xf32> to vector<16x1xf32>
    %1283 = vector.broadcast %1282 : vector<16x1xf32> to vector<16x16xf32>
    %1284 = arith.subf %1280, %1283 : vector<16x16xf32>
    %1285 = math.exp %1284 : vector<16x16xf32>
    %cst_518 = arith.constant dense<0.000000e+00> : vector<16xf32>
    %1286 = vector.multi_reduction <add>, %1285, %cst_518 [1] : vector<16x16xf32> to vector<16xf32>
    %1287 = vector.shape_cast %1286 : vector<16xf32> to vector<16x1xf32>
    %1288 = tpu.reciprocal %1287 {approx = true} : vector<16x1xf32> -> vector<16x1xf32>
    %1289 = vector.broadcast %1288 : vector<16x1xf32> to vector<16x16xf32>
    %1290 = arith.mulf %1285, %1289 : vector<16x16xf32>
    %1291 = arith.truncf %1290 : vector<16x16xf32> to vector<16x16xbf16>
    %1292 = arith.truncf %1274 : vector<16x8xf32> to vector<16x8xbf16>
    %cst_519 = arith.constant dense<0.000000e+00> : vector<16x8xf32>
    %1293 = tpu.matmul %1291, %1292, %cst_519 {dimension_numbers = #tpu.dot_dimension_numbers<[1], [0], [0], [1], [0, 0, 1, 1], [], []>} : vector<16x16xbf16>, vector<16x8xbf16>, vector<16x8xf32> -> vector<16x8xf32>
    %1294 = arith.truncf %1293 : vector<16x8xf32> to vector<16x8xbf16>
    %1295 = vector.extract_strided_slice %1182 {offsets = [24, 0], sizes = [8, 32], strides = [1, 1]} : vector<32x32xbf16> to vector<8x32xbf16>
    %cst_520 = arith.constant dense<0.000000e+00> : vector<16x32xf32>
    %1296 = tpu.matmul %1294, %1295, %cst_520 {dimension_numbers = #tpu.dot_dimension_numbers<[1], [0], [0], [1], [0, 0, 1, 1], [], []>} : vector<16x8xbf16>, vector<8x32xbf16>, vector<16x32xf32> -> vector<16x32xf32>
    %1297 = arith.addf %1271, %1296 : vector<16x32xf32>
    %1298 = arith.addf %1176, %1297 : vector<16x32xf32>
    %1299 = vector.broadcast %1184 : vector<1x32xf32> to vector<16x32xf32>
    %1300 = arith.addf %1298, %1299 : vector<16x32xf32>
    %cst_521 = arith.constant dense<0.000000e+00> : vector<16xf32>
    %1301 = vector.multi_reduction <add>, %1300, %cst_521 [1] : vector<16x32xf32> to vector<16xf32>
    %1302 = vector.shape_cast %1301 : vector<16xf32> to vector<16x1xf32>
    %cst_522 = arith.constant 3.200000e+01 : f32
    %1303 = vector.broadcast %cst_522 : f32 to vector<16x1xf32>
    %1304 = arith.divf %1302, %1303 : vector<16x1xf32>
    %1305 = vector.broadcast %1304 : vector<16x1xf32> to vector<16x32xf32>
    %1306 = arith.subf %1300, %1305 : vector<16x32xf32>
    %1307 = arith.mulf %1306, %1306 : vector<16x32xf32>
    %cst_523 = arith.constant dense<0.000000e+00> : vector<16xf32>
    %1308 = vector.multi_reduction <add>, %1307, %cst_523 [1] : vector<16x32xf32> to vector<16xf32>
    %1309 = vector.shape_cast %1308 : vector<16xf32> to vector<16x1xf32>
    %cst_524 = arith.constant 3.200000e+01 : f32
    %1310 = vector.broadcast %cst_524 : f32 to vector<16x1xf32>
    %1311 = arith.divf %1309, %1310 : vector<16x1xf32>
    %1312 = vector.broadcast %1304 : vector<16x1xf32> to vector<16x32xf32>
    %1313 = arith.subf %1300, %1312 : vector<16x32xf32>
    %cst_525 = arith.constant 9.99999996E-13 : f32
    %1314 = vector.broadcast %cst_525 : f32 to vector<16x1xf32>
    %1315 = arith.addf %1311, %1314 : vector<16x1xf32>
    %1316 = math.rsqrt %1315 : vector<16x1xf32>
    %1317 = vector.broadcast %1316 : vector<16x1xf32> to vector<16x32xf32>
    %1318 = arith.mulf %1313, %1317 : vector<16x32xf32>
    %1319 = vector.broadcast %1186 : vector<1x32xf32> to vector<16x32xf32>
    %1320 = arith.mulf %1318, %1319 : vector<16x32xf32>
    %1321 = vector.broadcast %1188 : vector<1x32xf32> to vector<16x32xf32>
    %1322 = arith.addf %1320, %1321 : vector<16x32xf32>
    %1323 = arith.truncf %867 : vector<2x32xf32> to vector<2x32xbf16>
    %c1_526 = arith.constant 1 : index
    %c0_527 = arith.constant 0 : index
    %c0_528 = arith.constant 0 : index
    %1324 = vector.load %arg34[%c1_526, %c0_527, %c0_528] : memref<2x32x32xbf16, #tpu.memory_space<vmem>>, vector<1x32x32xbf16>
    %1325 = vector.shape_cast %1324 : vector<1x32x32xbf16> to vector<32x32xbf16>
    %cst_529 = arith.constant dense<0.000000e+00> : vector<2x32xf32>
    %1326 = tpu.matmul %1323, %1325, %cst_529 {dimension_numbers = #tpu.dot_dimension_numbers<[1], [0], [0], [1], [0, 0, 1, 1], [], []>} : vector<2x32xbf16>, vector<32x32xbf16>, vector<2x32xf32> -> vector<2x32xf32>
    %c1_530 = arith.constant 1 : index
    %c0_531 = arith.constant 0 : index
    %c0_532 = arith.constant 0 : index
    %1327 = vector.load %arg35[%c1_530, %c0_531, %c0_532] : memref<2x1x32xf32, #tpu.memory_space<vmem>>, vector<1x1x32xf32>
    %1328 = vector.shape_cast %1327 : vector<1x1x32xf32> to vector<1x32xf32>
    %1329 = vector.broadcast %1328 : vector<1x32xf32> to vector<2x32xf32>
    %1330 = arith.addf %1326, %1329 : vector<2x32xf32>
    %1331 = arith.truncf %1330 : vector<2x32xf32> to vector<2x32xbf16>
    %c1_533 = arith.constant 1 : index
    %c0_534 = arith.constant 0 : index
    %c0_535 = arith.constant 0 : index
    %1332 = vector.load %arg36[%c1_533, %c0_534, %c0_535] : memref<2x32x32xbf16, #tpu.memory_space<vmem>>, vector<1x32x32xbf16>
    %1333 = vector.shape_cast %1332 : vector<1x32x32xbf16> to vector<32x32xbf16>
    %cst_536 = arith.constant dense<0.000000e+00> : vector<2x32xf32>
    %1334 = tpu.matmul %1331, %1333, %cst_536 {dimension_numbers = #tpu.dot_dimension_numbers<[1], [0], [0], [1], [0, 0, 1, 1], [], []>} : vector<2x32xbf16>, vector<32x32xbf16>, vector<2x32xf32> -> vector<2x32xf32>
    %c1_537 = arith.constant 1 : index
    %c0_538 = arith.constant 0 : index
    %c0_539 = arith.constant 0 : index
    %1335 = vector.load %arg37[%c1_537, %c0_538, %c0_539] : memref<2x1x32xf32, #tpu.memory_space<vmem>>, vector<1x1x32xf32>
    %1336 = vector.shape_cast %1335 : vector<1x1x32xf32> to vector<1x32xf32>
    %1337 = vector.broadcast %1336 : vector<1x32xf32> to vector<2x32xf32>
    %1338 = arith.addf %1334, %1337 : vector<2x32xf32>
    %1339 = vector.extract_strided_slice %1338 {offsets = [0, 0], sizes = [1, 32], strides = [1, 1]} : vector<2x32xf32> to vector<1x32xf32>
    %1340 = vector.shape_cast %1339 : vector<1x32xf32> to vector<1x32xf32>
    %1341 = vector.broadcast %1340 : vector<1x32xf32> to vector<8x32xf32>
    %1342 = vector.extract_strided_slice %1338 {offsets = [1, 0], sizes = [1, 32], strides = [1, 1]} : vector<2x32xf32> to vector<1x32xf32>
    %1343 = vector.shape_cast %1342 : vector<1x32xf32> to vector<1x32xf32>
    %1344 = vector.broadcast %1343 : vector<1x32xf32> to vector<8x32xf32>
    %1345 = tpu.concatenate %1341, %1344 in 0 : vector<8x32xf32>, vector<8x32xf32> -> vector<16x32xf32>
    %1346 = arith.addf %1322, %1345 : vector<16x32xf32>
    %c1_540 = arith.constant 1 : index
    %c0_541 = arith.constant 0 : index
    %c0_542 = arith.constant 0 : index
    %1347 = vector.load %arg38[%c1_540, %c0_541, %c0_542] : memref<2x1x32xf32, #tpu.memory_space<vmem>>, vector<1x1x32xf32>
    %1348 = vector.shape_cast %1347 : vector<1x1x32xf32> to vector<1x32xf32>
    %c1_543 = arith.constant 1 : index
    %c0_544 = arith.constant 0 : index
    %c0_545 = arith.constant 0 : index
    %1349 = vector.load %arg39[%c1_543, %c0_544, %c0_545] : memref<2x1x32xf32, #tpu.memory_space<vmem>>, vector<1x1x32xf32>
    %1350 = vector.shape_cast %1349 : vector<1x1x32xf32> to vector<1x32xf32>
    %cst_546 = arith.constant dense<0.000000e+00> : vector<16xf32>
    %1351 = vector.multi_reduction <add>, %1346, %cst_546 [1] : vector<16x32xf32> to vector<16xf32>
    %1352 = vector.shape_cast %1351 : vector<16xf32> to vector<16x1xf32>
    %cst_547 = arith.constant 3.200000e+01 : f32
    %1353 = vector.broadcast %cst_547 : f32 to vector<16x1xf32>
    %1354 = arith.divf %1352, %1353 : vector<16x1xf32>
    %1355 = vector.broadcast %1354 : vector<16x1xf32> to vector<16x32xf32>
    %1356 = arith.subf %1346, %1355 : vector<16x32xf32>
    %1357 = arith.mulf %1356, %1356 : vector<16x32xf32>
    %cst_548 = arith.constant dense<0.000000e+00> : vector<16xf32>
    %1358 = vector.multi_reduction <add>, %1357, %cst_548 [1] : vector<16x32xf32> to vector<16xf32>
    %1359 = vector.shape_cast %1358 : vector<16xf32> to vector<16x1xf32>
    %cst_549 = arith.constant 3.200000e+01 : f32
    %1360 = vector.broadcast %cst_549 : f32 to vector<16x1xf32>
    %1361 = arith.divf %1359, %1360 : vector<16x1xf32>
    %1362 = vector.broadcast %1354 : vector<16x1xf32> to vector<16x32xf32>
    %1363 = arith.subf %1346, %1362 : vector<16x32xf32>
    %cst_550 = arith.constant 9.99999996E-13 : f32
    %1364 = vector.broadcast %cst_550 : f32 to vector<16x1xf32>
    %1365 = arith.addf %1361, %1364 : vector<16x1xf32>
    %1366 = math.rsqrt %1365 : vector<16x1xf32>
    %1367 = vector.broadcast %1366 : vector<16x1xf32> to vector<16x32xf32>
    %1368 = arith.mulf %1363, %1367 : vector<16x32xf32>
    %1369 = vector.broadcast %1348 : vector<1x32xf32> to vector<16x32xf32>
    %1370 = arith.mulf %1368, %1369 : vector<16x32xf32>
    %1371 = vector.broadcast %1350 : vector<1x32xf32> to vector<16x32xf32>
    %1372 = arith.addf %1370, %1371 : vector<16x32xf32>
    %c1_551 = arith.constant 1 : index
    %c0_552 = arith.constant 0 : index
    %c0_553 = arith.constant 0 : index
    %1373 = vector.load %arg40[%c1_551, %c0_552, %c0_553] : memref<2x32x64xbf16, #tpu.memory_space<vmem>>, vector<1x32x64xbf16>
    %1374 = vector.shape_cast %1373 : vector<1x32x64xbf16> to vector<32x64xbf16>
    %c1_554 = arith.constant 1 : index
    %c0_555 = arith.constant 0 : index
    %c0_556 = arith.constant 0 : index
    %1375 = vector.load %arg41[%c1_554, %c0_555, %c0_556] : memref<2x1x64xf32, #tpu.memory_space<vmem>>, vector<1x1x64xf32>
    %1376 = vector.shape_cast %1375 : vector<1x1x64xf32> to vector<1x64xf32>
    %c1_557 = arith.constant 1 : index
    %c0_558 = arith.constant 0 : index
    %c0_559 = arith.constant 0 : index
    %1377 = vector.load %arg42[%c1_557, %c0_558, %c0_559] : memref<2x64x32xbf16, #tpu.memory_space<vmem>>, vector<1x64x32xbf16>
    %1378 = vector.shape_cast %1377 : vector<1x64x32xbf16> to vector<64x32xbf16>
    %c1_560 = arith.constant 1 : index
    %c0_561 = arith.constant 0 : index
    %c0_562 = arith.constant 0 : index
    %1379 = vector.load %arg43[%c1_560, %c0_561, %c0_562] : memref<2x1x32xf32, #tpu.memory_space<vmem>>, vector<1x1x32xf32>
    %1380 = vector.shape_cast %1379 : vector<1x1x32xf32> to vector<1x32xf32>
    %c1_563 = arith.constant 1 : index
    %c0_564 = arith.constant 0 : index
    %c0_565 = arith.constant 0 : index
    %1381 = vector.load %arg44[%c1_563, %c0_564, %c0_565] : memref<2x1x32xf32, #tpu.memory_space<vmem>>, vector<1x1x32xf32>
    %1382 = vector.shape_cast %1381 : vector<1x1x32xf32> to vector<1x32xf32>
    %c1_566 = arith.constant 1 : index
    %c0_567 = arith.constant 0 : index
    %c0_568 = arith.constant 0 : index
    %1383 = vector.load %arg45[%c1_566, %c0_567, %c0_568] : memref<2x1x32xf32, #tpu.memory_space<vmem>>, vector<1x1x32xf32>
    %1384 = vector.shape_cast %1383 : vector<1x1x32xf32> to vector<1x32xf32>
    %1385 = arith.truncf %1372 : vector<16x32xf32> to vector<16x32xbf16>
    %cst_569 = arith.constant dense<0.000000e+00> : vector<16x64xf32>
    %1386 = tpu.matmul %1385, %1374, %cst_569 {dimension_numbers = #tpu.dot_dimension_numbers<[1], [0], [0], [1], [0, 0, 1, 1], [], []>} : vector<16x32xbf16>, vector<32x64xbf16>, vector<16x64xf32> -> vector<16x64xf32>
    %1387 = vector.broadcast %1376 : vector<1x64xf32> to vector<16x64xf32>
    %1388 = arith.addf %1386, %1387 : vector<16x64xf32>
    %cst_570 = arith.constant 5.000000e-01 : f32
    %1389 = vector.broadcast %cst_570 : f32 to vector<16x64xf32>
    %1390 = arith.mulf %1389, %1388 : vector<16x64xf32>
    %cst_571 = arith.constant 0.707106769 : f32
    %1391 = vector.broadcast %cst_571 : f32 to vector<16x64xf32>
    %1392 = arith.mulf %1388, %1391 : vector<16x64xf32>
    %1393 = math.absf %1392 : vector<16x64xf32>
    %cst_572 = arith.constant 0.327591091 : f32
    %1394 = vector.broadcast %cst_572 : f32 to vector<16x64xf32>
    %1395 = arith.mulf %1394, %1393 : vector<16x64xf32>
    %cst_573 = arith.constant 1.000000e+00 : f32
    %1396 = vector.broadcast %cst_573 : f32 to vector<16x64xf32>
    %1397 = arith.addf %1396, %1395 : vector<16x64xf32>
    %cst_574 = arith.constant 1.000000e+00 : f32
    %1398 = vector.broadcast %cst_574 : f32 to vector<16x64xf32>
    %1399 = arith.divf %1398, %1397 : vector<16x64xf32>
    %cst_575 = arith.constant 1.06140542 : f32
    %1400 = vector.broadcast %cst_575 : f32 to vector<16x64xf32>
    %1401 = arith.mulf %1400, %1399 : vector<16x64xf32>
    %cst_576 = arith.constant 1.45315206 : f32
    %1402 = vector.broadcast %cst_576 : f32 to vector<16x64xf32>
    %1403 = arith.subf %1401, %1402 : vector<16x64xf32>
    %1404 = arith.mulf %1403, %1399 : vector<16x64xf32>
    %cst_577 = arith.constant 1.42141378 : f32
    %1405 = vector.broadcast %cst_577 : f32 to vector<16x64xf32>
    %1406 = arith.addf %1404, %1405 : vector<16x64xf32>
    %1407 = arith.mulf %1406, %1399 : vector<16x64xf32>
    %cst_578 = arith.constant 0.284496725 : f32
    %1408 = vector.broadcast %cst_578 : f32 to vector<16x64xf32>
    %1409 = arith.subf %1407, %1408 : vector<16x64xf32>
    %1410 = arith.mulf %1409, %1399 : vector<16x64xf32>
    %cst_579 = arith.constant 0.254829586 : f32
    %1411 = vector.broadcast %cst_579 : f32 to vector<16x64xf32>
    %1412 = arith.addf %1410, %1411 : vector<16x64xf32>
    %1413 = arith.mulf %1412, %1399 : vector<16x64xf32>
    %cst_580 = arith.constant 0.000000e+00 : f32
    %1414 = vector.broadcast %cst_580 : f32 to vector<16x64xf32>
    %1415 = arith.subf %1414, %1393 : vector<16x64xf32>
    %1416 = arith.mulf %1415, %1393 : vector<16x64xf32>
    %1417 = math.exp %1416 : vector<16x64xf32>
    %1418 = arith.mulf %1413, %1417 : vector<16x64xf32>
    %cst_581 = arith.constant 1.000000e+00 : f32
    %1419 = vector.broadcast %cst_581 : f32 to vector<16x64xf32>
    %1420 = arith.subf %1419, %1418 : vector<16x64xf32>
    %cst_582 = arith.constant 0.000000e+00 : f32
    %1421 = vector.broadcast %cst_582 : f32 to vector<16x64xf32>
    %1422 = arith.cmpf oge, %1392, %1421 : vector<16x64xf32>
    %cst_583 = arith.constant 0.000000e+00 : f32
    %1423 = vector.broadcast %cst_583 : f32 to vector<16x64xf32>
    %1424 = arith.subf %1423, %1420 : vector<16x64xf32>
    %1425 = arith.select %1422, %1420, %1424 : vector<16x64xi1>, vector<16x64xf32>
    %cst_584 = arith.constant 1.000000e+00 : f32
    %1426 = vector.broadcast %cst_584 : f32 to vector<16x64xf32>
    %1427 = arith.addf %1426, %1425 : vector<16x64xf32>
    %1428 = arith.mulf %1390, %1427 : vector<16x64xf32>
    %1429 = arith.truncf %1428 : vector<16x64xf32> to vector<16x64xbf16>
    %cst_585 = arith.constant dense<0.000000e+00> : vector<16x32xf32>
    %1430 = tpu.matmul %1429, %1378, %cst_585 {dimension_numbers = #tpu.dot_dimension_numbers<[1], [0], [0], [1], [0, 0, 1, 1], [], []>} : vector<16x64xbf16>, vector<64x32xbf16>, vector<16x32xf32> -> vector<16x32xf32>
    %1431 = vector.broadcast %1380 : vector<1x32xf32> to vector<16x32xf32>
    %1432 = arith.addf %1430, %1431 : vector<16x32xf32>
    %1433 = arith.addf %1372, %1432 : vector<16x32xf32>
    %cst_586 = arith.constant dense<0.000000e+00> : vector<16xf32>
    %1434 = vector.multi_reduction <add>, %1433, %cst_586 [1] : vector<16x32xf32> to vector<16xf32>
    %1435 = vector.shape_cast %1434 : vector<16xf32> to vector<16x1xf32>
    %cst_587 = arith.constant 3.200000e+01 : f32
    %1436 = vector.broadcast %cst_587 : f32 to vector<16x1xf32>
    %1437 = arith.divf %1435, %1436 : vector<16x1xf32>
    %1438 = vector.broadcast %1437 : vector<16x1xf32> to vector<16x32xf32>
    %1439 = arith.subf %1433, %1438 : vector<16x32xf32>
    %1440 = arith.mulf %1439, %1439 : vector<16x32xf32>
    %cst_588 = arith.constant dense<0.000000e+00> : vector<16xf32>
    %1441 = vector.multi_reduction <add>, %1440, %cst_588 [1] : vector<16x32xf32> to vector<16xf32>
    %1442 = vector.shape_cast %1441 : vector<16xf32> to vector<16x1xf32>
    %cst_589 = arith.constant 3.200000e+01 : f32
    %1443 = vector.broadcast %cst_589 : f32 to vector<16x1xf32>
    %1444 = arith.divf %1442, %1443 : vector<16x1xf32>
    %1445 = vector.broadcast %1437 : vector<16x1xf32> to vector<16x32xf32>
    %1446 = arith.subf %1433, %1445 : vector<16x32xf32>
    %cst_590 = arith.constant 9.99999996E-13 : f32
    %1447 = vector.broadcast %cst_590 : f32 to vector<16x1xf32>
    %1448 = arith.addf %1444, %1447 : vector<16x1xf32>
    %1449 = math.rsqrt %1448 : vector<16x1xf32>
    %1450 = vector.broadcast %1449 : vector<16x1xf32> to vector<16x32xf32>
    %1451 = arith.mulf %1446, %1450 : vector<16x32xf32>
    %1452 = vector.broadcast %1382 : vector<1x32xf32> to vector<16x32xf32>
    %1453 = arith.mulf %1451, %1452 : vector<16x32xf32>
    %1454 = vector.broadcast %1384 : vector<1x32xf32> to vector<16x32xf32>
    %1455 = arith.addf %1453, %1454 : vector<16x32xf32>
    %1456 = arith.truncf %1455 : vector<16x32xf32> to vector<16x32xbf16>
    %c0_591 = arith.constant 0 : index
    %c0_592 = arith.constant 0 : index
    %1457 = vector.load %arg46[%c0_591, %c0_592] : memref<32x32xbf16, #tpu.memory_space<vmem>>, vector<32x32xbf16>
    %cst_593 = arith.constant dense<0.000000e+00> : vector<16x32xf32>
    %1458 = tpu.matmul %1456, %1457, %cst_593 {dimension_numbers = #tpu.dot_dimension_numbers<[1], [0], [0], [1], [0, 0, 1, 1], [], []>} : vector<16x32xbf16>, vector<32x32xbf16>, vector<16x32xf32> -> vector<16x32xf32>
    %c0_594 = arith.constant 0 : index
    %c0_595 = arith.constant 0 : index
    %1459 = vector.load %arg47[%c0_594, %c0_595] : memref<1x32xf32, #tpu.memory_space<vmem>>, vector<1x32xf32>
    %1460 = vector.broadcast %1459 : vector<1x32xf32> to vector<16x32xf32>
    %1461 = arith.addf %1458, %1460 : vector<16x32xf32>
    %c0_596 = arith.constant 0 : index
    %c0_597 = arith.constant 0 : index
    %1462 = vector.load %arg48[%c0_596, %c0_597] : memref<16x32xf32, #tpu.memory_space<vmem>>, vector<16x32xf32>
    tpu.vector_store %arg48[%c0_596, %c0_597], %1461 {strides = array<i32>} : memref<16x32xf32, #tpu.memory_space<vmem>>, vector<16x32xf32>,
    %cst_598 = arith.constant dense<0xFF800000> : vector<16xf32>
    %1463 = vector.multi_reduction <maximumf>, %1461, %cst_598 [1] : vector<16x32xf32> to vector<16xf32>
    %1464 = vector.shape_cast %1463 : vector<16xf32> to vector<16x1xf32>
    %1465 = vector.broadcast %1464 : vector<16x1xf32> to vector<16x32xf32>
    %1466 = arith.subf %1461, %1465 : vector<16x32xf32>
    %1467 = math.exp %1466 : vector<16x32xf32>
    %cst_599 = arith.constant dense<0.000000e+00> : vector<16xf32>
    %1468 = vector.multi_reduction <add>, %1467, %cst_599 [1] : vector<16x32xf32> to vector<16xf32>
    %1469 = vector.shape_cast %1468 : vector<16xf32> to vector<16x1xf32>
    %1470 = math.log %1469 : vector<16x1xf32>
    %1471 = arith.addf %1470, %1464 : vector<16x1xf32>
    %c0_600 = arith.constant 0 : index
    %c0_601 = arith.constant 0 : index
    %1472 = vector.load %arg1[%c0_600, %c0_601] : memref<16x1xi32, #tpu.memory_space<vmem>>, vector<16x1xi32>
    %1473 = vector.extract_strided_slice %1472 {offsets = [1, 0], sizes = [15, 1], strides = [1, 1]} : vector<16x1xi32> to vector<15x1xi32>
    %1474 = vector.extract_strided_slice %1472 {offsets = [0, 0], sizes = [1, 1], strides = [1, 1]} : vector<16x1xi32> to vector<1x1xi32>
    %1475 = tpu.concatenate %1473, %1474 in 0 : vector<15x1xi32>, vector<1x1xi32> -> vector<16x1xi32>
    %1476 = vector.broadcast %1475 : vector<16x1xi32> to vector<16x32xi32>
    %1477 = arith.cmpi eq, %1, %1476 : vector<16x32xi32>
    %cst_602 = arith.constant 0.000000e+00 : f32
    %1478 = vector.broadcast %cst_602 : f32 to vector<16x32xf32>
    %1479 = arith.select %1477, %1461, %1478 : vector<16x32xi1>, vector<16x32xf32>
    %cst_603 = arith.constant dense<0.000000e+00> : vector<16xf32>
    %1480 = vector.multi_reduction <add>, %1479, %cst_603 [1] : vector<16x32xf32> to vector<16xf32>
    %1481 = vector.shape_cast %1480 : vector<16xf32> to vector<16x1xf32>
    %1482 = tpu.iota {dimensions = array<i32: 0>} : vector<16x1xi32>
    %c7_i32_604 = arith.constant 7 : i32
    %1483 = vector.broadcast %c7_i32_604 : i32 to vector<16x1xi32>
    %1484 = arith.andi %1482, %1483 : vector<16x1xi32>
    %c7_i32_605 = arith.constant 7 : i32
    %1485 = vector.broadcast %c7_i32_605 : i32 to vector<16x1xi32>
    %1486 = arith.cmpi ne, %1484, %1485 : vector<16x1xi32>
    %1487 = arith.extui %1486 : vector<16x1xi1> to vector<16x1xi32>
    %1488 = arith.sitofp %1487 : vector<16x1xi32> to vector<16x1xf32>
    %1489 = arith.subf %1471, %1481 : vector<16x1xf32>
    %1490 = arith.mulf %1489, %1488 : vector<16x1xf32>
    %cst_606 = arith.constant dense<0.000000e+00> : vector<1xf32>
    %1491 = vector.multi_reduction <add>, %1490, %cst_606 [0] : vector<16x1xf32> to vector<1xf32>
    %1492 = vector.shape_cast %1491 : vector<1xf32> to vector<1x1xf32>
    %cst_607 = arith.constant dense<0.000000e+00> : vector<2xf32>
    %1493 = vector.multi_reduction <add>, %866, %cst_607 [1] : vector<2x8xf32> to vector<2xf32>
    %1494 = vector.shape_cast %1493 : vector<2xf32> to vector<2x1xf32>
    %cst_608 = arith.constant dense<0.000000e+00> : vector<1xf32>
    %1495 = vector.multi_reduction <add>, %1494, %cst_608 [0] : vector<2x1xf32> to vector<1xf32>
    %1496 = vector.shape_cast %1495 : vector<1xf32> to vector<1x1xf32>
    %cst_609 = arith.constant 0.0714285746 : f32
    %1497 = vector.broadcast %cst_609 : f32 to vector<1x1xf32>
    %1498 = arith.mulf %1492, %1497 : vector<1x1xf32>
    %cst_610 = arith.constant 6.250000e-03 : f32
    %1499 = vector.broadcast %cst_610 : f32 to vector<1x1xf32>
    %1500 = arith.mulf %1496, %1499 : vector<1x1xf32>
    %1501 = arith.addf %1498, %1500 : vector<1x1xf32>
    %c0_611 = arith.constant 0 : index
    %c0_612 = arith.constant 0 : index
    %1502 = vector.load %arg50[%c0_611, %c0_612] : memref<1x1xf32, #tpu.memory_space<vmem>>, vector<1x1xf32>
    tpu.vector_store %arg50[%c0_611, %c0_612], %1501 {strides = array<i32>} : memref<1x1xf32, #tpu.memory_space<vmem>>, vector<1x1xf32>,
    return
  }
}

</mosaic_0001>

<llo_original>
// kernel: vq_forward.1
$region0: #{vq_forward.1}
  #allocation0 [shape = 'u32[]', space=smem, size = 0x4, offset = 0x4, fixed_abs, tag = 'smem constant byte address 0x4 - core index']
  #allocation1 [shape = 'u32[72,128]{1,0:T(1,128)}', space=vmem, size = 0x9000, scoped, tag = 'internal scratch']
  %s0 = inlined_call_operand.smem [shape: u32[51], index: -1, kind: input, shape index: {}]
  %s1 = sld [smem:[%s0]]
  %s2 = scalar_lea.smem %s0, 1
  %s3 = sld [smem:[%s2]]
  %s4 = scalar_lea.smem %s0, 2
  %s5 = sld [smem:[%s4]]
  %s6 = scalar_lea.smem %s0, 3
  %s7 = sld [smem:[%s6]]
  %s8 = scalar_lea.smem %s0, 4
  %s9 = sld [smem:[%s8]]
  %s10 = scalar_lea.smem %s0, 5
  %s11 = sld [smem:[%s10]]
  %s12 = scalar_lea.smem %s0, 6
  %s13 = sld [smem:[%s12]]
  %s14 = scalar_lea.smem %s0, 7
  %s15 = sld [smem:[%s14]]
  %s16 = scalar_lea.smem %s0, 8
  %s17 = sld [smem:[%s16]]
  %s18 = scalar_lea.smem %s0, 9
  %s19 = sld [smem:[%s18]]
  %s20 = scalar_lea.smem %s0, 10
  %s21 = sld [smem:[%s20]]
  %s22 = scalar_lea.smem %s0, 11
  %s23 = sld [smem:[%s22]]
  %s24 = scalar_lea.smem %s0, 12
  %s25 = sld [smem:[%s24]]
  %s26 = scalar_lea.smem %s0, 13
  %s27 = sld [smem:[%s26]]
  %s28 = scalar_lea.smem %s0, 14
  %s29 = sld [smem:[%s28]]
  %s30 = scalar_lea.smem %s0, 15
  %s31 = sld [smem:[%s30]]
  %s32 = scalar_lea.smem %s0, 16
  %s33 = sld [smem:[%s32]]
  %s34 = scalar_lea.smem %s0, 17
  %s35 = sld [smem:[%s34]]
  %s36 = scalar_lea.smem %s0, 18
  %s37 = sld [smem:[%s36]]
  %s38 = scalar_lea.smem %s0, 19
  %s39 = sld [smem:[%s38]]
  %s40 = scalar_lea.smem %s0, 20
  %s41 = sld [smem:[%s40]]
  %s42 = scalar_lea.smem %s0, 21
  %s43 = sld [smem:[%s42]]
  %s44 = scalar_lea.smem %s0, 22
  %s45 = sld [smem:[%s44]]
  %s46 = scalar_lea.smem %s0, 23
  %s47 = sld [smem:[%s46]]
  %s48 = scalar_lea.smem %s0, 24
  %s49 = sld [smem:[%s48]]
  %s50 = scalar_lea.smem %s0, 25
  %s51 = sld [smem:[%s50]]
  %s52 = scalar_lea.smem %s0, 26
  %s53 = sld [smem:[%s52]]
  %s54 = scalar_lea.smem %s0, 27
  %s55 = sld [smem:[%s54]]
  %s56 = scalar_lea.smem %s0, 28
  %s57 = sld [smem:[%s56]]
  %s58 = scalar_lea.smem %s0, 29
  %s59 = sld [smem:[%s58]]
  %s60 = scalar_lea.smem %s0, 30
  %s61 = sld [smem:[%s60]]
  %s62 = scalar_lea.smem %s0, 31
  %s63 = sld [smem:[%s62]]
  %s64 = scalar_lea.smem %s0, 32
  %s65 = sld [smem:[%s64]]
  %s66 = scalar_lea.smem %s0, 33
  %s67 = sld [smem:[%s66]]
  %s68 = scalar_lea.smem %s0, 34
  %s69 = sld [smem:[%s68]]
  %s70 = scalar_lea.smem %s0, 35
  %s71 = sld [smem:[%s70]]
  %s72 = scalar_lea.smem %s0, 36
  %s73 = sld [smem:[%s72]]
  %s74 = scalar_lea.smem %s0, 37
  %s75 = sld [smem:[%s74]]
  %s76 = scalar_lea.smem %s0, 38
  %s77 = sld [smem:[%s76]]
  %s78 = scalar_lea.smem %s0, 39
  %s79 = sld [smem:[%s78]]
  %s80 = scalar_lea.smem %s0, 40
  %s81 = sld [smem:[%s80]]
  %s82 = scalar_lea.smem %s0, 41
  %s83 = sld [smem:[%s82]]
  %s84 = scalar_lea.smem %s0, 42
  %s85 = sld [smem:[%s84]]
  %s86 = scalar_lea.smem %s0, 43
  %s87 = sld [smem:[%s86]]
  %s88 = scalar_lea.smem %s0, 44
  %s89 = sld [smem:[%s88]]
  %s90 = scalar_lea.smem %s0, 45
  %s91 = sld [smem:[%s90]]
  %s92 = scalar_lea.smem %s0, 46
  %s93 = sld [smem:[%s92]]
  %s94 = scalar_lea.smem %s0, 47
  %s95 = sld [smem:[%s94]]
  %s96 = scalar_lea.smem %s0, 48
  %s97 = sld [smem:[%s96]]
  %s98 = scalar_lea.smem %s0, 49
  %s99 = sld [smem:[%s98]]
  %s100 = scalar_lea.smem %s0, 50
  %s101 = sld [smem:[%s100]]
  %102 = xla_tuple %s97, %s99, %s101
  %s103 = sld [smem:[#allocation0]]
  $region226: #{vq_forward.1} parent=0
    _
  %s105 = ssub.s32 1, %s103
  %s106 = scalar_select 0, %s105, %s103
  $region1: #{vq_forward.1} parent=0
    #allocation2 [shape = 'u8[512]{0}', space=vmem, size = 0x400, scoped, tag = 'input window, operand 27, single buffered']
    #allocation3 [shape = 's32[1]{0}', space=sflag, size = 0x4, scoped, tag = 'scoped memory for vq_forward.1']
    #allocation4 [shape = 's32[1]{0}', space=sflag, size = 0x4, scoped, tag = 'scoped memory for vq_forward.1']
    #allocation5 [shape = 'u8[512]{0}', space=vmem, size = 0x400, scoped, tag = 'input window, operand 47, single buffered']
    #allocation6 [shape = 's32[1]{0}', space=sflag, size = 0x4, scoped, tag = 'scoped memory for vq_forward.1']
    #allocation7 [shape = 'u8[8192]{0}', space=vmem, size = 0x2000, scoped, tag = 'output window, operand 0, single buffered']
    #allocation8 [shape = 'u8[1024]{0}', space=vmem, size = 0x400, scoped, tag = 'output window, operand 1, single buffered']
    #allocation9 [shape = 's32[1]{0}', space=sflag, size = 0x4, scoped, tag = 'scoped memory for vq_forward.1']
    #allocation10 [shape = 'u8[512]{0}', space=vmem, size = 0x400, scoped, tag = 'output window, operand 2, single buffered']
    %107 = vsyncpa [#allocation3], 0
    %108 = vsyncpa [#allocation6], 0
    %109 = vsyncpa [#allocation4], 0
    %110 = vsyncpa [#allocation9], 0
    // Predicated region
    $region2: #{vq_forward.1} parent=1 // pred_check
      _
    $region3: #{vq_forward.1} parent=1 // pred_check_branch
      %112 = sbr.rel (0) target = $region5
    $region4: #{vq_forward.1} parent=1 // pred_region
      _
    $region5: #{vq_forward.1} parent=1 // pred_fallthru
      _
    // Predicated region
    $region6: #{vq_forward.1} parent=1 // pred_check
      _
    $region7: #{vq_forward.1} parent=1 // pred_check_branch
      %114 = sbr.rel (0) target = $region9
    $region8: #{vq_forward.1} parent=1 // pred_region
      _
    $region9: #{vq_forward.1} parent=1 // pred_fallthru
      _
    // Predicated region
    $region10: #{vq_forward.1} parent=1 // pred_check
      _
    $region11: #{vq_forward.1} parent=1 // pred_check_branch
      %116 = sbr.rel (0) target = $region13
    $region12: #{vq_forward.1} parent=1 // pred_region
      _
    $region13: #{vq_forward.1} parent=1 // pred_fallthru
      _
    // Predicated region
    $region14: #{vq_forward.1} parent=1 // pred_check
      _
    $region15: #{vq_forward.1} parent=1 // pred_check_branch
      %118 = sbr.rel (0) target = $region17
    $region16: #{vq_forward.1} parent=1 // pred_region
      _
    $region17: #{vq_forward.1} parent=1 // pred_fallthru
      _
    // Predicated region
    $region18: #{vq_forward.1} parent=1 // pred_check
      _
    $region19: #{vq_forward.1} parent=1 // pred_check_branch
      %120 = sbr.rel (0) target = $region21
    $region20: #{vq_forward.1} parent=1 // pred_region
      _
    $region21: #{vq_forward.1} parent=1 // pred_fallthru
      _
    // Predicated region
    $region22: #{vq_forward.1} parent=1 // pred_check
      _
    $region23: #{vq_forward.1} parent=1 // pred_check_branch
      %122 = sbr.rel (0) target = $region25
    $region24: #{vq_forward.1} parent=1 // pred_region
      _
    $region25: #{vq_forward.1} parent=1 // pred_fallthru
      _
    // Predicated region
    $region26: #{vq_forward.1} parent=1 // pred_check
      _
    $region27: #{vq_forward.1} parent=1 // pred_check_branch
      %124 = sbr.rel (0) target = $region29
    $region28: #{vq_forward.1} parent=1 // pred_region
      _
    $region29: #{vq_forward.1} parent=1 // pred_fallthru
      _
    // Predicated region
    $region30: #{vq_forward.1} parent=1 // pred_check
      _
    $region31: #{vq_forward.1} parent=1 // pred_check_branch
      %126 = sbr.rel (0) target = $region33
    $region32: #{vq_forward.1} parent=1 // pred_region
      _
    $region33: #{vq_forward.1} parent=1 // pred_fallthru
      _
    // Predicated region
    $region34: #{vq_forward.1} parent=1 // pred_check
      _
    $region35: #{vq_forward.1} parent=1 // pred_check_branch
      %128 = sbr.rel (0) target = $region37
    $region36: #{vq_forward.1} parent=1 // pred_region
      _
    $region37: #{vq_forward.1} parent=1 // pred_fallthru
      _
    // Predicated region
    $region38: #{vq_forward.1} parent=1 // pred_check
      _
    $region39: #{vq_forward.1} parent=1 // pred_check_branch
      %130 = sbr.rel (0) target = $region41
    $region40: #{vq_forward.1} parent=1 // pred_region
      _
    $region41: #{vq_forward.1} parent=1 // pred_fallthru
      _
    // Predicated region
    $region42: #{vq_forward.1} parent=1 // pred_check
      _
    $region43: #{vq_forward.1} parent=1 // pred_check_branch
      %132 = sbr.rel (0) target = $region45
    $region44: #{vq_forward.1} parent=1 // pred_region
      _
    $region45: #{vq_forward.1} parent=1 // pred_fallthru
      _
    // Predicated region
    $region46: #{vq_forward.1} parent=1 // pred_check
      _
    $region47: #{vq_forward.1} parent=1 // pred_check_branch
      %134 = sbr.rel (0) target = $region49
    $region48: #{vq_forward.1} parent=1 // pred_region
      _
    $region49: #{vq_forward.1} parent=1 // pred_fallthru
      _
    // Predicated region
    $region50: #{vq_forward.1} parent=1 // pred_check
      _
    $region51: #{vq_forward.1} parent=1 // pred_check_branch
      %136 = sbr.rel (0) target = $region53
    $region52: #{vq_forward.1} parent=1 // pred_region
      _
    $region53: #{vq_forward.1} parent=1 // pred_fallthru
      _
    // Predicated region
    $region54: #{vq_forward.1} parent=1 // pred_check
      _
    $region55: #{vq_forward.1} parent=1 // pred_check_branch
      %138 = sbr.rel (0) target = $region57
    $region56: #{vq_forward.1} parent=1 // pred_region
      _
    $region57: #{vq_forward.1} parent=1 // pred_fallthru
      _
    // Predicated region
    $region58: #{vq_forward.1} parent=1 // pred_check
      _
    $region59: #{vq_forward.1} parent=1 // pred_check_branch
      %140 = sbr.rel (0) target = $region61
    $region60: #{vq_forward.1} parent=1 // pred_region
      _
    $region61: #{vq_forward.1} parent=1 // pred_fallthru
      _
    // Predicated region
    $region62: #{vq_forward.1} parent=1 // pred_check
      _
    $region63: #{vq_forward.1} parent=1 // pred_check_branch
      %142 = sbr.rel (0) target = $region65
    $region64: #{vq_forward.1} parent=1 // pred_region
      _
    $region65: #{vq_forward.1} parent=1 // pred_fallthru
      _
    // Predicated region
    $region66: #{vq_forward.1} parent=1 // pred_check
      _
    $region67: #{vq_forward.1} parent=1 // pred_check_branch
      %144 = sbr.rel (0) target = $region69
    $region68: #{vq_forward.1} parent=1 // pred_region
      _
    $region69: #{vq_forward.1} parent=1 // pred_fallthru
      _
    // Predicated region
    $region70: #{vq_forward.1} parent=1 // pred_check
      _
    $region71: #{vq_forward.1} parent=1 // pred_check_branch
      %146 = sbr.rel (0) target = $region73
    $region72: #{vq_forward.1} parent=1 // pred_region
      _
    $region73: #{vq_forward.1} parent=1 // pred_fallthru
      _
    // Predicated region
    $region74: #{vq_forward.1} parent=1 // pred_check
      _
    $region75: #{vq_forward.1} parent=1 // pred_check_branch
      %148 = sbr.rel (0) target = $region77
    $region76: #{vq_forward.1} parent=1 // pred_region
      _
    $region77: #{vq_forward.1} parent=1 // pred_fallthru
      _
    // Predicated region
    $region78: #{vq_forward.1} parent=1 // pred_check
      _
    $region79: #{vq_forward.1} parent=1 // pred_check_branch
      %150 = sbr.rel (0) target = $region81
    $region80: #{vq_forward.1} parent=1 // pred_region
      _
    $region81: #{vq_forward.1} parent=1 // pred_fallthru
      _
    // Predicated region
    $region82: #{vq_forward.1} parent=1 // pred_check
      _
    $region83: #{vq_forward.1} parent=1 // pred_check_branch
      %152 = sbr.rel (0) target = $region85
    $region84: #{vq_forward.1} parent=1 // pred_region
      _
    $region85: #{vq_forward.1} parent=1 // pred_fallthru
      _
    // Predicated region
    $region86: #{vq_forward.1} parent=1 // pred_check
      _
    $region87: #{vq_forward.1} parent=1 // pred_check_branch
      %154 = sbr.rel (0) target = $region89
    $region88: #{vq_forward.1} parent=1 // pred_region
      _
    $region89: #{vq_forward.1} parent=1 // pred_fallthru
      _
    // Predicated region
    $region90: #{vq_forward.1} parent=1 // pred_check
      _
    $region91: #{vq_forward.1} parent=1 // pred_check_branch
      %156 = sbr.rel (0) target = $region93
    $region92: #{vq_forward.1} parent=1 // pred_region
      _
    $region93: #{vq_forward.1} parent=1 // pred_fallthru
      _
    // Predicated region
    $region94: #{vq_forward.1} parent=1 // pred_check
      _
    $region95: #{vq_forward.1} parent=1 // pred_check_branch
      %158 = sbr.rel (0) target = $region97
    $region96: #{vq_forward.1} parent=1 // pred_region
      _
    $region97: #{vq_forward.1} parent=1 // pred_fallthru
      _
    // Predicated region
    $region98: #{vq_forward.1} parent=1 // pred_check
      _
    $region99: #{vq_forward.1} parent=1 // pred_check_branch
      %160 = sbr.rel (0) target = $region101
    $region100: #{vq_forward.1} parent=1 // pred_region
      _
    $region101: #{vq_forward.1} parent=1 // pred_fallthru
      _
    // Predicated region
    $region102: #{vq_forward.1} parent=1 // pred_check
      _
    $region103: #{vq_forward.1} parent=1 // pred_check_branch
      %162 = sbr.rel (0) target = $region105
    $region104: #{vq_forward.1} parent=1 // pred_region
      _
    $region105: #{vq_forward.1} parent=1 // pred_fallthru
      _
    // Predicated region
    $region106: #{vq_forward.1} parent=1 // pred_check
      _
    $region107: #{vq_forward.1} parent=1 // pred_check_branch
      %164 = sbr.rel (0) target = $region109
    $region108: #{vq_forward.1} parent=1 // pred_region
      _
    $region109: #{vq_forward.1} parent=1 // pred_fallthru
      _
    // Predicated region
    $region110: #{vq_forward.1} parent=1 // pred_check
      _
    $region111: #{vq_forward.1} parent=1 // pred_check_branch
      %166 = sbr.rel (0) target = $region113
    $region112: #{vq_forward.1} parent=1 // pred_region
      %168 = vsyncadd [#allocation3], 0
      %s170 = sshll.u32 %s55, 4
      %s171 = int_to_ptr.hbm [resolvable:$true] %s170
      %s172 = sshll.u32 [#allocation2], 4
      %s173 = int_to_ptr.vmem [resolvable:$true] %s172
      %175 = dma.hbm_to_vmem [thread:$0]  %s171, 16, %s173, [#allocation3]
    $region113: #{vq_forward.1} parent=1 // pred_fallthru
      _
    // Predicated region
    $region114: #{vq_forward.1} parent=1 // pred_check
      _
    $region115: #{vq_forward.1} parent=1 // pred_check_branch
      %177 = sbr.rel (0) target = $region117
    $region116: #{vq_forward.1} parent=1 // pred_region
      _
    $region117: #{vq_forward.1} parent=1 // pred_fallthru
      _
    // Predicated region
    $region118: #{vq_forward.1} parent=1 // pred_check
      _
    $region119: #{vq_forward.1} parent=1 // pred_check_branch
      %179 = sbr.rel (0) target = $region121
    $region120: #{vq_forward.1} parent=1 // pred_region
      _
    $region121: #{vq_forward.1} parent=1 // pred_fallthru
      _
    // Predicated region
    $region122: #{vq_forward.1} parent=1 // pred_check
      _
    $region123: #{vq_forward.1} parent=1 // pred_check_branch
      %181 = sbr.rel (0) target = $region125
    $region124: #{vq_forward.1} parent=1 // pred_region
      _
    $region125: #{vq_forward.1} parent=1 // pred_fallthru
      _
    // Predicated region
    $region126: #{vq_forward.1} parent=1 // pred_check
      _
    $region127: #{vq_forward.1} parent=1 // pred_check_branch
      %183 = sbr.rel (0) target = $region129
    $region128: #{vq_forward.1} parent=1 // pred_region
      _
    $region129: #{vq_forward.1} parent=1 // pred_fallthru
      _
    // Predicated region
    $region130: #{vq_forward.1} parent=1 // pred_check
      _
    $region131: #{vq_forward.1} parent=1 // pred_check_branch
      %185 = sbr.rel (0) target = $region133
    $region132: #{vq_forward.1} parent=1 // pred_region
      _
    $region133: #{vq_forward.1} parent=1 // pred_fallthru
      _
    // Predicated region
    $region134: #{vq_forward.1} parent=1 // pred_check
      _
    $region135: #{vq_forward.1} parent=1 // pred_check_branch
      %187 = sbr.rel (0) target = $region137
    $region136: #{vq_forward.1} parent=1 // pred_region
      _
    $region137: #{vq_forward.1} parent=1 // pred_fallthru
      _
    // Predicated region
    $region138: #{vq_forward.1} parent=1 // pred_check
      _
    $region139: #{vq_forward.1} parent=1 // pred_check_branch
      %189 = sbr.rel (0) target = $region141
    $region140: #{vq_forward.1} parent=1 // pred_region
      _
    $region141: #{vq_forward.1} parent=1 // pred_fallthru
      _
    // Predicated region
    $region142: #{vq_forward.1} parent=1 // pred_check
      _
    $region143: #{vq_forward.1} parent=1 // pred_check_branch
      %191 = sbr.rel (0) target = $region145
    $region144: #{vq_forward.1} parent=1 // pred_region
      _
    $region145: #{vq_forward.1} parent=1 // pred_fallthru
      _
    // Predicated region
    $region146: #{vq_forward.1} parent=1 // pred_check
      _
    $region147: #{vq_forward.1} parent=1 // pred_check_branch
      %193 = sbr.rel (0) target = $region149
    $region148: #{vq_forward.1} parent=1 // pred_region
      _
    $region149: #{vq_forward.1} parent=1 // pred_fallthru
      _
    // Predicated region
    $region150: #{vq_forward.1} parent=1 // pred_check
      _
    $region151: #{vq_forward.1} parent=1 // pred_check_branch
      %195 = sbr.rel (0) target = $region153
    $region152: #{vq_forward.1} parent=1 // pred_region
      _
    $region153: #{vq_forward.1} parent=1 // pred_fallthru
      _
    // Predicated region
    $region154: #{vq_forward.1} parent=1 // pred_check
      _
    $region155: #{vq_forward.1} parent=1 // pred_check_branch
      %197 = sbr.rel (0) target = $region157
    $region156: #{vq_forward.1} parent=1 // pred_region
      _
    $region157: #{vq_forward.1} parent=1 // pred_fallthru
      _
    // Predicated region
    $region158: #{vq_forward.1} parent=1 // pred_check
      _
    $region159: #{vq_forward.1} parent=1 // pred_check_branch
      %199 = sbr.rel (0) target = $region161
    $region160: #{vq_forward.1} parent=1 // pred_region
      _
    $region161: #{vq_forward.1} parent=1 // pred_fallthru
      _
    // Predicated region
    $region162: #{vq_forward.1} parent=1 // pred_check
      _
    $region163: #{vq_forward.1} parent=1 // pred_check_branch
      %201 = sbr.rel (0) target = $region165
    $region164: #{vq_forward.1} parent=1 // pred_region
      _
    $region165: #{vq_forward.1} parent=1 // pred_fallthru
      _
    // Predicated region
    $region166: #{vq_forward.1} parent=1 // pred_check
      _
    $region167: #{vq_forward.1} parent=1 // pred_check_branch
      %203 = sbr.rel (0) target = $region169
    $region168: #{vq_forward.1} parent=1 // pred_region
      _
    $region169: #{vq_forward.1} parent=1 // pred_fallthru
      _
    // Predicated region
    $region170: #{vq_forward.1} parent=1 // pred_check
      _
    $region171: #{vq_forward.1} parent=1 // pred_check_branch
      %205 = sbr.rel (0) target = $region173
    $region172: #{vq_forward.1} parent=1 // pred_region
      _
    $region173: #{vq_forward.1} parent=1 // pred_fallthru
      _
    // Predicated region
    $region174: #{vq_forward.1} parent=1 // pred_check
      _
    $region175: #{vq_forward.1} parent=1 // pred_check_branch
      %207 = sbr.rel (0) target = $region177
    $region176: #{vq_forward.1} parent=1 // pred_region
      _
    $region177: #{vq_forward.1} parent=1 // pred_fallthru
      _
    // Predicated region
    $region178: #{vq_forward.1} parent=1 // pred_check
      _
    $region179: #{vq_forward.1} parent=1 // pred_check_branch
      %209 = sbr.rel (0) target = $region181
    $region180: #{vq_forward.1} parent=1 // pred_region
      _
    $region181: #{vq_forward.1} parent=1 // pred_fallthru
      _
    // Predicated region
    $region182: #{vq_forward.1} parent=1 // pred_check
      _
    $region183: #{vq_forward.1} parent=1 // pred_check_branch
      %211 = sbr.rel (0) target = $region185
    $region184: #{vq_forward.1} parent=1 // pred_region
      _
    $region185: #{vq_forward.1} parent=1 // pred_fallthru
      _
    // Predicated region
    $region186: #{vq_forward.1} parent=1 // pred_check
      _
    $region187: #{vq_forward.1} parent=1 // pred_check_branch
      %213 = sbr.rel (0) target = $region189
    $region188: #{vq_forward.1} parent=1 // pred_region
      _
    $region189: #{vq_forward.1} parent=1 // pred_fallthru
      _
    // Predicated region
    $region190: #{vq_forward.1} parent=1 // pred_check
      _
    $region191: #{vq_forward.1} parent=1 // pred_check_branch
      %215 = sbr.rel (0) target = $region193
    $region192: #{vq_forward.1} parent=1 // pred_region
      %217 = vsyncadd [#allocation6], 0
      %s219 = sshll.u32 %s95, 4
      %s220 = int_to_ptr.hbm [resolvable:$true] %s219
      %s221 = sshll.u32 [#allocation5], 4
      %s222 = int_to_ptr.vmem [resolvable:$true] %s221
      %224 = dma.hbm_to_vmem [thread:$0]  %s220, 16, %s222, [#allocation6]
    $region193: #{vq_forward.1} parent=1 // pred_fallthru
      _
    // Predicated region
    $region194: #{vq_forward.1} parent=1 // pred_check
      _
    $region195: #{vq_forward.1} parent=1 // pred_check_branch
      %226 = sbr.rel (0) target = $region197
    $region196: #{vq_forward.1} parent=1 // pred_region
      %228 = dma.done [#allocation3], 16
    $region197: #{vq_forward.1} parent=1 // pred_fallthru
      _
    // Predicated region
    $region198: #{vq_forward.1} parent=1 // pred_check
      _
    $region199: #{vq_forward.1} parent=1 // pred_check_branch
      %230 = sbr.rel (0) target = $region201
    $region200: #{vq_forward.1} parent=1 // pred_region
      %232 = dma.done [#allocation6], 16
    $region201: #{vq_forward.1} parent=1 // pred_fallthru
      _
    %v234 = vld [vmem:[%s1] sm:$0xff]
    %v235 = vld [vmem:[%s1 + $0x8] sm:$0xff]
    %v236 = vlaneseq
    %v237 = vand.u32 %v236, 127
    %238 = vset.pattern.permute.xlu0 0
    %239 = vperm.xlu0 %238, %v234
    %v240 = vpop.permute.xlu0 %239
    %241 = vset.pattern.permute.xlu0 0
    %242 = vperm.xlu0 %241, %v235
    %v243 = vpop.permute.xlu0 %242
    %vm244 = vcmp.eq.s32.totalorder %v237, %v240
    %vm245 = vcmp.eq.s32.totalorder %v237, %v243
    %v246 = vsel %vm244, 1, 0
    %v247 = vsel %vm245, 1, 0
    %v248 = vcvt.s32.f32 %v246
    %v249 = vcvt.s32.f32 %v247
    %v250 = vlaneseq
    %v251 = vshrl.u32 %v250, 7
    %v252 = vadd.s32 %v251, 8
    %v253 = vshra.s32 %v251, 3
    %v254 = vshra.s32 %v252, 3
    %v255 = vshra.s32 %v237, 3
    %vm256 = vcmp.eq.s32.totalorder %v253, %v255
    %vm257 = vcmp.eq.s32.totalorder %v254, %v255
    %v258 = vand.u32 %v237, 7
    %v259 = vand.u32 %v251, 7
    %v260 = vand.u32 %v252, 7
    %vm261 = vcmp.le.s32.totalorder %v258, %v259
    %vm262 = vcmp.le.s32.totalorder %v258, %v260
    %v263 = vld [vmem:[%s5] sm:$0x1]
    %vm264 = vcmp.ge.f32.partialorder %v263, 0.5
    %v265 = vsel %vm264, 1, 0
    %v266 = vperm.slane %v265, 0
    %vm267 = vcmp.eq.s32.totalorder %v266, 1
    %vm268 = vmand %vm256, %vm267
    %vm269 = vmand %vm257, %vm267
    %v270 = vsel %vm268, 0.0, -1e+09
    %v271 = vsel %vm269, 0.0, -1e+09
    %vm272 = vmand %vm268, %vm261
    %vm273 = vmand %vm269, %vm262
    %v274 = vsel %vm272, 0.0, -1e+09
    %v275 = vsel %vm273, 0.0, -1e+09
    %v276 = vld [vmem:[%s7] sm:$0xff]
    %v277 = vld [vmem:[%s7 + $0x8] sm:$0xff]
    %v278 = vld [vmem:[%s7 + $0x10] sm:$0xff]
    %v279 = vld [vmem:[%s7 + $0x18] sm:$0xff]
    %v280 = vld [vmem:[%s9] sm:$0xff]
    %vm281 = vcmask 261120
    %v283 = vsel %vm281, %v248, 0
    %v286 = vsel %vm281, %v249, 0
    %288 = vmatpush.msra.mxu0 0.0
    %289 = vmatpush.msra.mxu0 0.0
    %290 = vmatpush.msra.mxu0 0.0
    %291 = vmatpush.msra.mxu0 0.0
    %292 = vmatpush.msra.mxu0 0.0
    %293 = vmatpush.msra.mxu0 0.0
    %294 = vmatpush.msra.mxu0 0.0
    %295 = vmatpush.msra.mxu0 0.0
    %296 = vmatpush.msra.mxu0 0.0
    %297 = vmatpush.msra.mxu0 0.0
    %298 = vmatpush.msra.mxu0 0.0
    %299 = vmatpush.msra.mxu0 0.0
    %300 = vmatpush.msra.mxu0 %v279
    %301 = vmatpush.msra.mxu0 %v278
    %302 = vmatpush.msra.mxu0 %v277
    %303 = vmatpush.msra.mxu0 %v276
    %304 = vmatmul.f32.gmra.mxu0 %v283
    %v305 = vpop.f32.mrf.mxu0
    %v306 = vadd.f32 %v280, %v305
    %307 = vmatmul.f32.gmra.mxu0 %v286
    %v308 = vpop.f32.mrf.mxu0
    %v309 = vadd.f32 %v280, %v308
    %310 = vdwg.mxu0
    %v311 = vld [vmem:[%s11] sm:$0x1]
    %v312 = vld [vmem:[%s13] sm:$0x1]
    %v313 = vsel %vm281, %v306, 0.0
    %314 = vadd.xlane.f32.xlu0 %v313
    %v315 = vpop.xlane.xlu0 %314
    %v316 = vsel %vm281, %v309, 0.0
    %317 = vadd.xlane.f32.xlu0 %v316
    %v318 = vpop.xlane.xlu0 %317
    %v319 = vrcp.pop 32.0
    %v320 = vmul.f32 32.0, %v319
    %v321 = vsub.f32 1.0, %v320
    %v322 = vmul.f32 %v319, %v321
    %v323 = vadd.f32 %v319, %v322
    %vm324 = vweird.f32 %v319
    %v325 = vsel %vm324, %v319, %v323
    %v326 = vmul.f32 %v315, %v325
    %v327 = vmul.f32 %v318, %v325
    %v328 = vsub.f32 %v306, %v326
    %v329 = vsub.f32 %v309, %v327
    %v330 = vmul.f32 %v328, %v328
    %v331 = vmul.f32 %v329, %v329
    %v332 = vsel %vm281, %v330, 0.0
    %333 = vadd.xlane.f32.xlu0 %v332
    %v334 = vpop.xlane.xlu0 %333
    %v335 = vsel %vm281, %v331, 0.0
    %336 = vadd.xlane.f32.xlu0 %v335
    %v337 = vpop.xlane.xlu0 %336
    %v338 = vmul.f32 %v334, %v325
    %v339 = vmul.f32 %v337, %v325
    %v340 = vadd.f32 %v338, 1e-12
    %v341 = vadd.f32 %v339, 1e-12
    %v342 = vrsqrt.pop %v340
    %v343 = vmul.f32 %v342, %v340
    %v344 = vmul.f32 %v343, %v342
    %v345 = vmul.f32 0.5, %v344
    %v346 = vsub.f32 1.5, %v345
    %v347 = vmul.f32 %v342, %v346
    %vm348 = vweird.f32 %v340
    %vm349 = vweird.f32 %v342
    %vm350 = vmor %vm348, %vm349
    %v351 = vsel %vm350, %v342, %v347
    %v352 = vrsqrt.pop %v341
    %v353 = vmul.f32 %v352, %v341
    %v354 = vmul.f32 %v353, %v352
    %v355 = vmul.f32 0.5, %v354
    %v356 = vsub.f32 1.5, %v355
    %v357 = vmul.f32 %v352, %v356
    %vm358 = vweird.f32 %v341
    %vm359 = vweird.f32 %v352
    %vm360 = vmor %vm358, %vm359
    %v361 = vsel %vm360, %v352, %v357
    %v362 = vmul.f32 %v328, %v351
    %v363 = vmul.f32 %v329, %v361
    %v365 = vperm.slane %v311, 0
    %v367 = vmul.f32 %v362, %v365
    %v368 = vmul.f32 %v363, %v365
    %v370 = vperm.slane %v312, 0
    %v372 = vadd.f32 %v367, %v370
    %v373 = vadd.f32 %v368, %v370
    %v374 = vld [vmem:[%s15] sm:$0xf]
    %v375 = vld [vmem:[%s15 + $0x4] sm:$0xf]
    %v376 = vld [vmem:[%s15 + $0x8] sm:$0xf]
    %v377 = vld [vmem:[%s15 + $0xc] sm:$0xf]
    %v378 = vld [vmem:[%s17] sm:$0x1]
    %v379 = vld [vmem:[%s19] sm:$0xf]
    %v380 = vld [vmem:[%s19 + $0x4] sm:$0xf]
    %v381 = vld [vmem:[%s19 + $0x8] sm:$0xf]
    %v382 = vld [vmem:[%s19 + $0xc] sm:$0xf]
    %v383 = vld [vmem:[%s21] sm:$0x1]
    %v384 = vld [vmem:[%s23] sm:$0x1]
    %v385 = vld [vmem:[%s25] sm:$0x1]
    %v386 = vpack.c.bf16 %v373, %v372
    %v388 = vperm.slane %v378, 0
    %v394 = vunpack.c.l.b16 %v374
    %v395 = vunpack.c.l.b16 %v375
    %v396 = vunpack.c.l.b16 %v376
    %v397 = vunpack.c.l.b16 %v377
    %v398 = vpack.c.b16 %v395, %v394
    %v399 = vpack.c.b16 %v397, %v396
    %v403 = vsel %vm281, %v386, 0
    %405 = vmatpush.bf16.msra.mxu0 0
    %406 = vmatpush.bf16.msra.mxu0 0
    %407 = vmatpush.bf16.msra.mxu0 0
    %408 = vmatpush.bf16.msra.mxu0 0
    %409 = vmatpush.bf16.msra.mxu0 0
    %410 = vmatpush.bf16.msra.mxu0 0
    %411 = vmatpush.bf16.msra.mxu0 %v399
    %412 = vmatpush.bf16.msra.mxu0 %v398
    %413 = vmatmul.bf16.gmra.mxu0 %v403
    %v414 = vpop.f32.mrf.mxu0
    %v415 = vadd.f32 %v388, %v414
    %v416 = vpop.f32.mrf.mxu0
    %v417 = vadd.f32 %v388, %v416
    %418 = vdwg.mxu0
    %v419 = vpack.c.bf16 %v417, %v415
    %421 = vrot.lane.b32.xlu0 %v419, 96
    %v422 = vpop.permute.xlu0 %421
    %vm423 = vcmask 64512
    %v425 = vsel %vm423, %v419, 0
    %v428 = vsel %vm423, %v422, 0
    %430 = vmatpush.bf16.xpose.msra.mxu0 0
    %431 = vmatpush.bf16.xpose.msra.mxu0 0
    %432 = vmatpush.bf16.xpose.msra.mxu0 0
    %433 = vmatpush.bf16.xpose.msra.mxu0 0
    %434 = vmatpush.bf16.xpose.msra.mxu0 0
    %435 = vmatpush.bf16.xpose.msra.mxu0 0
    %436 = vmatpush.bf16.xpose.msra.mxu0 0
    %437 = vmatpush.bf16.xpose.msra.mxu0 %v428
    %438 = vmatmul.bf16.gmra.mxu0 %v425
    %v439 = vpop.f32.mrf.mxu0
    %v440 = vadd.f32 0.0, %v439
    %v441 = vpop.f32.mrf.mxu0
    %v442 = vadd.f32 0.0, %v441
    %443 = vdwg.mxu0
    %v444 = vmul.f32 %v440, 0.35355338
    %v445 = vmul.f32 %v442, 0.35355338
    %v446 = vadd.f32 %v444, %v270
    %v447 = vadd.f32 %v445, %v271
    %vm448 = vcmask 130048
    %v449 = vsel %vm448, %v446, -inf
    %450 = vmax.xlane.f32.xlu0 %v449
    %v451 = vpop.xlane.xlu0 %450
    %v452 = vsel %vm448, %v447, -inf
    %453 = vmax.xlane.f32.xlu0 %v452
    %v454 = vpop.xlane.xlu0 %453
    %v455 = vsub.f32 %v446, %v451
    %v456 = vsub.f32 %v447, %v454
    %v457 = vmul.f32 %v455, 1.442695
    %v458 = vpow.pop %v457
    %v459 = vmul.f32 %v456, 1.442695
    %v460 = vpow.pop %v459
    %v461 = vsel %vm448, %v458, 0.0
    %462 = vadd.xlane.f32.xlu0 %v461
    %v463 = vpop.xlane.xlu0 %462
    %v464 = vsel %vm448, %v460, 0.0
    %465 = vadd.xlane.f32.xlu0 %v464
    %v466 = vpop.xlane.xlu0 %465
    %v467 = vrcp.pop %v463
    %v468 = vrcp.pop %v466
    %v469 = vmul.f32 %v458, %v467
    %v470 = vmul.f32 %v460, %v468
    %v471 = vpack.c.bf16 %v470, %v469
    %472 = vrot.lane.b32.xlu0 %v419, 64
    %v473 = vpop.permute.xlu0 %472
    %v476 = vsel %vm448, %v471, 0
    %478 = vmatpush.bf16.msra.mxu0 0
    %479 = vmatpush.bf16.msra.mxu0 0
    %480 = vmatpush.bf16.msra.mxu0 0
    %481 = vmatpush.bf16.msra.mxu0 0
    %482 = vmatpush.bf16.msra.mxu0 0
    %483 = vmatpush.bf16.msra.mxu0 0
    %484 = vmatpush.bf16.msra.mxu0 0
    %485 = vmatpush.bf16.msra.mxu0 %v473
    %486 = vmatmul.bf16.gmra.mxu0 %v476
    %v487 = vpop.f32.mrf.mxu0
    %v488 = vadd.f32 0.0, %v487
    %v489 = vpop.f32.mrf.mxu0
    %v490 = vadd.f32 0.0, %v489
    %491 = vdwg.mxu0
    %v492 = vpack.c.bf16 %v490, %v488
    %493 = vrot.lane.b32.xlu0 %v419, 120
    %v494 = vpop.permute.xlu0 %493
    %495 = vrot.lane.b32.xlu0 %v419, 88
    %v496 = vpop.permute.xlu0 %495
    %v498 = vsel %vm423, %v494, 0
    %v501 = vsel %vm423, %v496, 0
    %503 = vmatpush.bf16.xpose.msra.mxu0 0
    %504 = vmatpush.bf16.xpose.msra.mxu0 0
    %505 = vmatpush.bf16.xpose.msra.mxu0 0
    %506 = vmatpush.bf16.xpose.msra.mxu0 0
    %507 = vmatpush.bf16.xpose.msra.mxu0 0
    %508 = vmatpush.bf16.xpose.msra.mxu0 0
    %509 = vmatpush.bf16.xpose.msra.mxu0 0
    %510 = vmatpush.bf16.xpose.msra.mxu0 %v501
    %511 = vmatmul.bf16.gmra.mxu0 %v498
    %v512 = vpop.f32.mrf.mxu0
    %v513 = vadd.f32 0.0, %v512
    %v514 = vpop.f32.mrf.mxu0
    %v515 = vadd.f32 0.0, %v514
    %516 = vdwg.mxu0
    %v517 = vmul.f32 %v513, 0.35355338
    %v518 = vmul.f32 %v515, 0.35355338
    %v519 = vadd.f32 %v517, %v270
    %v520 = vadd.f32 %v518, %v271
    %v521 = vsel %vm448, %v519, -inf
    %522 = vmax.xlane.f32.xlu0 %v521
    %v523 = vpop.xlane.xlu0 %522
    %v524 = vsel %vm448, %v520, -inf
    %525 = vmax.xlane.f32.xlu0 %v524
    %v526 = vpop.xlane.xlu0 %525
    %v527 = vsub.f32 %v519, %v523
    %v528 = vsub.f32 %v520, %v526
    %v529 = vmul.f32 %v527, 1.442695
    %v530 = vpow.pop %v529
    %v531 = vmul.f32 %v528, 1.442695
    %v532 = vpow.pop %v531
    %v533 = vsel %vm448, %v530, 0.0
    %534 = vadd.xlane.f32.xlu0 %v533
    %v535 = vpop.xlane.xlu0 %534
    %v536 = vsel %vm448, %v532, 0.0
    %537 = vadd.xlane.f32.xlu0 %v536
    %v538 = vpop.xlane.xlu0 %537
    %v539 = vrcp.pop %v535
    %v540 = vrcp.pop %v538
    %v541 = vmul.f32 %v530, %v539
    %v542 = vmul.f32 %v532, %v540
    %v543 = vpack.c.bf16 %v542, %v541
    %544 = vrot.lane.b32.xlu0 %v419, 56
    %v545 = vpop.permute.xlu0 %544
    %v548 = vsel %vm448, %v543, 0
    %550 = vmatpush.bf16.msra.mxu0 0
    %551 = vmatpush.bf16.msra.mxu0 0
    %552 = vmatpush.bf16.msra.mxu0 0
    %553 = vmatpush.bf16.msra.mxu0 0
    %554 = vmatpush.bf16.msra.mxu0 0
    %555 = vmatpush.bf16.msra.mxu0 0
    %556 = vmatpush.bf16.msra.mxu0 0
    %557 = vmatpush.bf16.msra.mxu0 %v545
    %558 = vmatmul.bf16.gmra.mxu0 %v548
    %v559 = vpop.f32.mrf.mxu0
    %v560 = vadd.f32 0.0, %v559
    %v561 = vpop.f32.mrf.mxu0
    %v562 = vadd.f32 0.0, %v561
    %563 = vdwg.mxu0
    %v564 = vpack.c.bf16 %v562, %v560
    %v566 = vsel %vm423, %v564, 0
    %vm568 = vcmask 1043456
    %v570 = vsel %vm568, %v380, 0
    %572 = vmatpush.bf16.msra.mxu0 0
    %573 = vmatpush.bf16.msra.mxu0 0
    %574 = vmatpush.bf16.msra.mxu0 0
    %575 = vmatpush.bf16.msra.mxu0 0
    %576 = vmatpush.bf16.msra.mxu0 0
    %577 = vmatpush.bf16.msra.mxu0 0
    %578 = vmatpush.bf16.msra.mxu0 0
    %579 = vmatpush.bf16.msra.mxu0 %v570
    %580 = vmatmul.bf16.gmra.mxu0 %v566
    %v581 = vpop.f32.mrf.mxu0
    %v582 = vadd.f32 0.0, %v581
    %v583 = vpop.f32.mrf.mxu0
    %v584 = vadd.f32 0.0, %v583
    %585 = vdwg.mxu0
    %v587 = vsel %vm423, %v492, 0
    %v590 = vsel %vm568, %v379, 0
    %592 = vmatpush.bf16.msra.mxu0 0
    %593 = vmatpush.bf16.msra.mxu0 0
    %594 = vmatpush.bf16.msra.mxu0 0
    %595 = vmatpush.bf16.msra.mxu0 0
    %596 = vmatpush.bf16.msra.mxu0 0
    %597 = vmatpush.bf16.msra.mxu0 0
    %598 = vmatpush.bf16.msra.mxu0 0
    %599 = vmatpush.bf16.msra.mxu0 %v590
    %600 = vmatmul.bf16.gmra.mxu0 %v587
    %v601 = vpop.f32.mrf.mxu0
    %v602 = vadd.f32 %v582, %v601
    %v603 = vpop.f32.mrf.mxu0
    %v604 = vadd.f32 %v584, %v603
    %605 = vdwg.mxu0
    %606 = vrot.lane.b32.xlu0 %v419, 112
    %v607 = vpop.permute.xlu0 %606
    %608 = vrot.lane.b32.xlu0 %v419, 80
    %v609 = vpop.permute.xlu0 %608
    %v611 = vsel %vm423, %v607, 0
    %v614 = vsel %vm423, %v609, 0
    %616 = vmatpush.bf16.xpose.msra.mxu0 0
    %617 = vmatpush.bf16.xpose.msra.mxu0 0
    %618 = vmatpush.bf16.xpose.msra.mxu0 0
    %619 = vmatpush.bf16.xpose.msra.mxu0 0
    %620 = vmatpush.bf16.xpose.msra.mxu0 0
    %621 = vmatpush.bf16.xpose.msra.mxu0 0
    %622 = vmatpush.bf16.xpose.msra.mxu0 0
    %623 = vmatpush.bf16.xpose.msra.mxu0 %v614
    %624 = vmatmul.bf16.gmra.mxu0 %v611
    %v625 = vpop.f32.mrf.mxu0
    %v626 = vadd.f32 0.0, %v625
    %v627 = vpop.f32.mrf.mxu0
    %v628 = vadd.f32 0.0, %v627
    %629 = vdwg.mxu0
    %v630 = vmul.f32 %v626, 0.35355338
    %v631 = vmul.f32 %v628, 0.35355338
    %v632 = vadd.f32 %v630, %v270
    %v633 = vadd.f32 %v631, %v271
    %v634 = vsel %vm448, %v632, -inf
    %635 = vmax.xlane.f32.xlu0 %v634
    %v636 = vpop.xlane.xlu0 %635
    %v637 = vsel %vm448, %v633, -inf
    %638 = vmax.xlane.f32.xlu0 %v637
    %v639 = vpop.xlane.xlu0 %638
    %v640 = vsub.f32 %v632, %v636
    %v641 = vsub.f32 %v633, %v639
    %v642 = vmul.f32 %v640, 1.442695
    %v643 = vpow.pop %v642
    %v644 = vmul.f32 %v641, 1.442695
    %v645 = vpow.pop %v644
    %v646 = vsel %vm448, %v643, 0.0
    %647 = vadd.xlane.f32.xlu0 %v646
    %v648 = vpop.xlane.xlu0 %647
    %v649 = vsel %vm448, %v645, 0.0
    %650 = vadd.xlane.f32.xlu0 %v649
    %v651 = vpop.xlane.xlu0 %650
    %v652 = vrcp.pop %v648
    %v653 = vrcp.pop %v651
    %v654 = vmul.f32 %v643, %v652
    %v655 = vmul.f32 %v645, %v653
    %v656 = vpack.c.bf16 %v655, %v654
    %657 = vrot.lane.b32.xlu0 %v419, 48
    %v658 = vpop.permute.xlu0 %657
    %v661 = vsel %vm448, %v656, 0
    %663 = vmatpush.bf16.msra.mxu0 0
    %664 = vmatpush.bf16.msra.mxu0 0
    %665 = vmatpush.bf16.msra.mxu0 0
    %666 = vmatpush.bf16.msra.mxu0 0
    %667 = vmatpush.bf16.msra.mxu0 0
    %668 = vmatpush.bf16.msra.mxu0 0
    %669 = vmatpush.bf16.msra.mxu0 0
    %670 = vmatpush.bf16.msra.mxu0 %v658
    %671 = vmatmul.bf16.gmra.mxu0 %v661
    %v672 = vpop.f32.mrf.mxu0
    %v673 = vadd.f32 0.0, %v672
    %v674 = vpop.f32.mrf.mxu0
    %v675 = vadd.f32 0.0, %v674
    %676 = vdwg.mxu0
    %v677 = vpack.c.bf16 %v675, %v673
    %v679 = vsel %vm423, %v677, 0
    %v682 = vsel %vm568, %v381, 0
    %684 = vmatpush.bf16.msra.mxu0 0
    %685 = vmatpush.bf16.msra.mxu0 0
    %686 = vmatpush.bf16.msra.mxu0 0
    %687 = vmatpush.bf16.msra.mxu0 0
    %688 = vmatpush.bf16.msra.mxu0 0
    %689 = vmatpush.bf16.msra.mxu0 0
    %690 = vmatpush.bf16.msra.mxu0 0
    %691 = vmatpush.bf16.msra.mxu0 %v682
    %692 = vmatmul.bf16.gmra.mxu0 %v679
    %v693 = vpop.f32.mrf.mxu0
    %v694 = vadd.f32 0.0, %v693
    %v695 = vpop.f32.mrf.mxu0
    %v696 = vadd.f32 0.0, %v695
    %697 = vdwg.mxu0
    %v698 = vadd.f32 %v602, %v694
    %v699 = vadd.f32 %v604, %v696
    %700 = vrot.lane.b32.xlu0 %v419, 104
    %v701 = vpop.permute.xlu0 %700
    %702 = vrot.lane.b32.xlu0 %v419, 72
    %v703 = vpop.permute.xlu0 %702
    %v705 = vsel %vm423, %v701, 0
    %v708 = vsel %vm423, %v703, 0
    %710 = vmatpush.bf16.xpose.msra.mxu0 0
    %711 = vmatpush.bf16.xpose.msra.mxu0 0
    %712 = vmatpush.bf16.xpose.msra.mxu0 0
    %713 = vmatpush.bf16.xpose.msra.mxu0 0
    %714 = vmatpush.bf16.xpose.msra.mxu0 0
    %715 = vmatpush.bf16.xpose.msra.mxu0 0
    %716 = vmatpush.bf16.xpose.msra.mxu0 0
    %717 = vmatpush.bf16.xpose.msra.mxu0 %v708
    %718 = vmatmul.bf16.gmra.mxu0 %v705
    %v719 = vpop.f32.mrf.mxu0
    %v720 = vadd.f32 0.0, %v719
    %v721 = vpop.f32.mrf.mxu0
    %v722 = vadd.f32 0.0, %v721
    %723 = vdwg.mxu0
    %v724 = vmul.f32 %v720, 0.35355338
    %v725 = vmul.f32 %v722, 0.35355338
    %v726 = vadd.f32 %v724, %v270
    %v727 = vadd.f32 %v725, %v271
    %v728 = vsel %vm448, %v726, -inf
    %729 = vmax.xlane.f32.xlu0 %v728
    %v730 = vpop.xlane.xlu0 %729
    %v731 = vsel %vm448, %v727, -inf
    %732 = vmax.xlane.f32.xlu0 %v731
    %v733 = vpop.xlane.xlu0 %732
    %v734 = vsub.f32 %v726, %v730
    %v735 = vsub.f32 %v727, %v733
    %v736 = vmul.f32 %v734, 1.442695
    %v737 = vpow.pop %v736
    %v738 = vmul.f32 %v735, 1.442695
    %v739 = vpow.pop %v738
    %v740 = vsel %vm448, %v737, 0.0
    %741 = vadd.xlane.f32.xlu0 %v740
    %v742 = vpop.xlane.xlu0 %741
    %v743 = vsel %vm448, %v739, 0.0
    %744 = vadd.xlane.f32.xlu0 %v743
    %v745 = vpop.xlane.xlu0 %744
    %v746 = vrcp.pop %v742
    %v747 = vrcp.pop %v745
    %v748 = vmul.f32 %v737, %v746
    %v749 = vmul.f32 %v739, %v747
    %v750 = vpack.c.bf16 %v749, %v748
    %751 = vrot.lane.b32.xlu0 %v419, 40
    %v752 = vpop.permute.xlu0 %751
    %v755 = vsel %vm448, %v750, 0
    %757 = vmatpush.bf16.msra.mxu0 0
    %758 = vmatpush.bf16.msra.mxu0 0
    %759 = vmatpush.bf16.msra.mxu0 0
    %760 = vmatpush.bf16.msra.mxu0 0
    %761 = vmatpush.bf16.msra.mxu0 0
    %762 = vmatpush.bf16.msra.mxu0 0
    %763 = vmatpush.bf16.msra.mxu0 0
    %764 = vmatpush.bf16.msra.mxu0 %v752
    %765 = vmatmul.bf16.gmra.mxu0 %v755
    %v766 = vpop.f32.mrf.mxu0
    %v767 = vadd.f32 0.0, %v766
    %v768 = vpop.f32.mrf.mxu0
    %v769 = vadd.f32 0.0, %v768
    %770 = vdwg.mxu0
    %v771 = vpack.c.bf16 %v769, %v767
    %v773 = vsel %vm423, %v771, 0
    %v776 = vsel %vm568, %v382, 0
    %778 = vmatpush.bf16.msra.mxu0 0
    %779 = vmatpush.bf16.msra.mxu0 0
    %780 = vmatpush.bf16.msra.mxu0 0
    %781 = vmatpush.bf16.msra.mxu0 0
    %782 = vmatpush.bf16.msra.mxu0 0
    %783 = vmatpush.bf16.msra.mxu0 0
    %784 = vmatpush.bf16.msra.mxu0 0
    %785 = vmatpush.bf16.msra.mxu0 %v776
    %786 = vmatmul.bf16.gmra.mxu0 %v773
    %v787 = vpop.f32.mrf.mxu0
    %v788 = vadd.f32 0.0, %v787
    %v789 = vpop.f32.mrf.mxu0
    %v790 = vadd.f32 0.0, %v789
    %791 = vdwg.mxu0
    %v792 = vadd.f32 %v698, %v788
    %v793 = vadd.f32 %v699, %v790
    %v794 = vadd.f32 %v372, %v792
    %v795 = vadd.f32 %v373, %v793
    %v797 = vperm.slane %v383, 0
    %v799 = vadd.f32 %v794, %v797
    %v800 = vadd.f32 %v795, %v797
    %v801 = vsel %vm281, %v799, 0.0
    %802 = vadd.xlane.f32.xlu0 %v801
    %v803 = vpop.xlane.xlu0 %802
    %v804 = vsel %vm281, %v800, 0.0
    %805 = vadd.xlane.f32.xlu0 %v804
    %v806 = vpop.xlane.xlu0 %805
    %v807 = vmul.f32 %v803, %v325
    %v808 = vmul.f32 %v806, %v325
    %v809 = vsub.f32 %v799, %v807
    %v810 = vsub.f32 %v800, %v808
    %v811 = vmul.f32 %v809, %v809
    %v812 = vmul.f32 %v810, %v810
    %v813 = vsel %vm281, %v811, 0.0
    %814 = vadd.xlane.f32.xlu0 %v813
    %v815 = vpop.xlane.xlu0 %814
    %v816 = vsel %vm281, %v812, 0.0
    %817 = vadd.xlane.f32.xlu0 %v816
    %v818 = vpop.xlane.xlu0 %817
    %v819 = vmul.f32 %v815, %v325
    %v820 = vmul.f32 %v818, %v325
    %v821 = vadd.f32 %v819, 1e-12
    %v822 = vadd.f32 %v820, 1e-12
    %v823 = vrsqrt.pop %v821
    %v824 = vmul.f32 %v823, %v821
    %v825 = vmul.f32 %v824, %v823
    %v826 = vmul.f32 0.5, %v825
    %v827 = vsub.f32 1.5, %v826
    %v828 = vmul.f32 %v823, %v827
    %vm829 = vweird.f32 %v821
    %vm830 = vweird.f32 %v823
    %vm831 = vmor %vm829, %vm830
    %v832 = vsel %vm831, %v823, %v828
    %v833 = vrsqrt.pop %v822
    %v834 = vmul.f32 %v833, %v822
    %v835 = vmul.f32 %v834, %v833
    %v836 = vmul.f32 0.5, %v835
    %v837 = vsub.f32 1.5, %v836
    %v838 = vmul.f32 %v833, %v837
    %vm839 = vweird.f32 %v822
    %vm840 = vweird.f32 %v833
    %vm841 = vmor %vm839, %vm840
    %v842 = vsel %vm841, %v833, %v838
    %v843 = vmul.f32 %v809, %v832
    %v844 = vmul.f32 %v810, %v842
    %v846 = vperm.slane %v384, 0
    %v848 = vmul.f32 %v843, %v846
    %v849 = vmul.f32 %v844, %v846
    %v851 = vperm.slane %v385, 0
    %v853 = vadd.f32 %v848, %v851
    %v854 = vadd.f32 %v849, %v851
    %v855 = vld [vmem:[%s27] sm:$0xf]
    %v856 = vld [vmem:[%s27 + $0x4] sm:$0xf]
    %v857 = vld [vmem:[%s27 + $0x8] sm:$0xf]
    %v858 = vld [vmem:[%s27 + $0xc] sm:$0xf]
    %v859 = vld [vmem:[%s29] sm:$0x1]
    %v860 = vld [vmem:[%s31] sm:$0xf]
    %v861 = vld [vmem:[%s31 + $0x4] sm:$0xf]
    %v862 = vld [vmem:[%s31 + $0x8] sm:$0xf]
    %v863 = vld [vmem:[%s31 + $0xc] sm:$0xf]
    %v864 = vld [vmem:[%s31 + $0x10] sm:$0xf]
    %v865 = vld [vmem:[%s31 + $0x14] sm:$0xf]
    %v866 = vld [vmem:[%s31 + $0x18] sm:$0xf]
    %v867 = vld [vmem:[%s31 + $0x1c] sm:$0xf]
    %v868 = vld [vmem:[%s33] sm:$0x1]
    %v869 = vld [vmem:[%s35] sm:$0x1]
    %v870 = vld [vmem:[%s37] sm:$0x1]
    %v871 = vpack.c.bf16 %v854, %v853
    %v873 = vperm.slane %v859, 0
    %v879 = vunpack.c.l.b16 %v855
    %v880 = vunpack.c.l.b16 %v856
    %v881 = vunpack.c.l.b16 %v857
    %v882 = vunpack.c.l.b16 %v858
    %v883 = vpack.c.b16 %v880, %v879
    %v884 = vpack.c.b16 %v882, %v881
    %v888 = vsel %vm281, %v871, 0
    %890 = vmatpush.bf16.msra.mxu0 0
    %891 = vmatpush.bf16.msra.mxu0 0
    %892 = vmatpush.bf16.msra.mxu0 0
    %893 = vmatpush.bf16.msra.mxu0 0
    %894 = vmatpush.bf16.msra.mxu0 0
    %895 = vmatpush.bf16.msra.mxu0 0
    %896 = vmatpush.bf16.msra.mxu0 %v884
    %897 = vmatpush.bf16.msra.mxu0 %v883
    %898 = vmatmul.bf16.gmra.mxu0 %v888
    %v899 = vpop.f32.mrf.mxu0
    %v900 = vadd.f32 %v873, %v899
    %v901 = vpop.f32.mrf.mxu0
    %v902 = vadd.f32 %v873, %v901
    %903 = vdwg.mxu0
    %v904 = vmul.f32 %v900, 0.5
    %v905 = vmul.f32 %v902, 0.5
    %v906 = vmul.f32 %v900, 0.70710677
    %v907 = vmul.f32 %v902, 0.70710677
    %v908 = vand.u32 2147483647, %v906
    %v909 = vand.u32 2147483647, %v907
    %v910 = vmul.f32 %v908, 0.3275911
    %v911 = vmul.f32 %v909, 0.3275911
    %v912 = vadd.f32 %v910, 1.0
    %v913 = vadd.f32 %v911, 1.0
    %v914 = vrcp.pop %v912
    %v915 = vmul.f32 %v912, %v914
    %v916 = vsub.f32 1.0, %v915
    %v917 = vmul.f32 %v914, %v916
    %v918 = vadd.f32 %v914, %v917
    %vm919 = vweird.f32 %v912
    %vm920 = vweird.f32 %v914
    %vm921 = vmor %vm919, %vm920
    %v922 = vsel %vm921, %v914, %v918
    %v923 = vand.u32 2147483647, %v912
    %vm924 = vcmp.eq.f32.partialorder %v923, 8.507059e+37
    %v925 = vand.u32 %v912, 2147483648
    %v926 = vor.u32 1.1754944e-38, %v925
    %v927 = vsel %vm924, %v926, %v922
    %v928 = vmul.f32 1.0, %v927
    %v929 = vrcp.pop %v913
    %v930 = vmul.f32 %v913, %v929
    %v931 = vsub.f32 1.0, %v930
    %v932 = vmul.f32 %v929, %v931
    %v933 = vadd.f32 %v929, %v932
    %vm934 = vweird.f32 %v913
    %vm935 = vweird.f32 %v929
    %vm936 = vmor %vm934, %vm935
    %v937 = vsel %vm936, %v929, %v933
    %v938 = vand.u32 2147483647, %v913
    %vm939 = vcmp.eq.f32.partialorder %v938, 8.507059e+37
    %v940 = vand.u32 %v913, 2147483648
    %v941 = vor.u32 1.1754944e-38, %v940
    %v942 = vsel %vm939, %v941, %v937
    %v943 = vmul.f32 1.0, %v942
    %v944 = vmul.f32 %v928, 1.0614054
    %v945 = vmul.f32 %v943, 1.0614054
    %v946 = vsub.f32 %v944, 1.4531521
    %v947 = vsub.f32 %v945, 1.4531521
    %v948 = vmul.f32 %v946, %v928
    %v949 = vmul.f32 %v947, %v943
    %v950 = vadd.f32 %v948, 1.4214138
    %v951 = vadd.f32 %v949, 1.4214138
    %v952 = vmul.f32 %v950, %v928
    %v953 = vmul.f32 %v951, %v943
    %v954 = vsub.f32 %v952, 0.28449672
    %v955 = vsub.f32 %v953, 0.28449672
    %v956 = vmul.f32 %v954, %v928
    %v957 = vmul.f32 %v955, %v943
    %v958 = vadd.f32 %v956, 0.2548296
    %v959 = vadd.f32 %v957, 0.2548296
    %v960 = vmul.f32 %v958, %v928
    %v961 = vmul.f32 %v959, %v943
    %v962 = vsub.f32 0.0, %v908
    %v963 = vsub.f32 0.0, %v909
    %v964 = vmul.f32 %v962, %v908
    %v965 = vmul.f32 %v963, %v909
    %v966 = vmul.f32 %v964, 1.442695
    %v967 = vpow.pop %v966
    %v968 = vmul.f32 %v965, 1.442695
    %v969 = vpow.pop %v968
    %v970 = vmul.f32 %v960, %v967
    %v971 = vmul.f32 %v961, %v969
    %v972 = vsub.f32 1.0, %v970
    %v973 = vsub.f32 1.0, %v971
    %vm974 = vcmp.ge.f32.partialorder %v906, 0.0
    %vm975 = vcmp.ge.f32.partialorder %v907, 0.0
    %v976 = vsub.f32 0.0, %v972
    %v977 = vsub.f32 0.0, %v973
    %v978 = vsel %vm974, %v972, %v976
    %v979 = vsel %vm975, %v973, %v977
    %v980 = vadd.f32 %v978, 1.0
    %v981 = vadd.f32 %v979, 1.0
    %v982 = vmul.f32 %v904, %v980
    %v983 = vmul.f32 %v905, %v981
    %v984 = vpack.c.bf16 %v983, %v982
    %v986 = vperm.slane %v868, 0
    %v996 = vunpack.c.l.b16 %v860
    %v997 = vunpack.c.l.b16 %v861
    %v998 = vunpack.c.l.b16 %v862
    %v999 = vunpack.c.l.b16 %v863
    %v1000 = vunpack.c.l.b16 %v864
    %v1001 = vunpack.c.l.b16 %v865
    %v1002 = vunpack.c.l.b16 %v866
    %v1003 = vunpack.c.l.b16 %v867
    %v1004 = vpack.c.b16 %v997, %v996
    %v1005 = vpack.c.b16 %v999, %v998
    %v1006 = vpack.c.b16 %v1001, %v1000
    %v1007 = vpack.c.b16 %v1003, %v1002
    %vm1012 = vcmask 523264
    %v1014 = vsel %vm1012, %v984, 0
    %1016 = vmatpush.bf16.msra.mxu0 0
    %1017 = vmatpush.bf16.msra.mxu0 0
    %1018 = vmatpush.bf16.msra.mxu0 0
    %1019 = vmatpush.bf16.msra.mxu0 0
    %1020 = vmatpush.bf16.msra.mxu0 %v1007
    %1021 = vmatpush.bf16.msra.mxu0 %v1006
    %1022 = vmatpush.bf16.msra.mxu0 %v1005
    %1023 = vmatpush.bf16.msra.mxu0 %v1004
    %1024 = vmatmul.bf16.gmra.mxu0 %v1014
    %v1025 = vpop.f32.mrf.mxu0
    %v1026 = vadd.f32 %v986, %v1025
    %v1027 = vpop.f32.mrf.mxu0
    %v1028 = vadd.f32 %v986, %v1027
    %1029 = vdwg.mxu0
    %v1030 = vadd.f32 %v853, %v1026
    %v1031 = vadd.f32 %v854, %v1028
    %v1032 = vsel %vm281, %v1030, 0.0
    %1033 = vadd.xlane.f32.xlu0 %v1032
    %v1034 = vpop.xlane.xlu0 %1033
    %v1035 = vsel %vm281, %v1031, 0.0
    %1036 = vadd.xlane.f32.xlu0 %v1035
    %v1037 = vpop.xlane.xlu0 %1036
    %v1038 = vmul.f32 %v1034, %v325
    %v1039 = vmul.f32 %v1037, %v325
    %v1040 = vsub.f32 %v1030, %v1038
    %v1041 = vsub.f32 %v1031, %v1039
    %v1042 = vmul.f32 %v1040, %v1040
    %v1043 = vmul.f32 %v1041, %v1041
    %v1044 = vsel %vm281, %v1042, 0.0
    %1045 = vadd.xlane.f32.xlu0 %v1044
    %v1046 = vpop.xlane.xlu0 %1045
    %v1047 = vsel %vm281, %v1043, 0.0
    %1048 = vadd.xlane.f32.xlu0 %v1047
    %v1049 = vpop.xlane.xlu0 %1048
    %v1050 = vmul.f32 %v1046, %v325
    %v1051 = vmul.f32 %v1049, %v325
    %v1052 = vadd.f32 %v1050, 1e-12
    %v1053 = vadd.f32 %v1051, 1e-12
    %v1054 = vrsqrt.pop %v1052
    %v1055 = vmul.f32 %v1054, %v1052
    %v1056 = vmul.f32 %v1055, %v1054
    %v1057 = vmul.f32 0.5, %v1056
    %v1058 = vsub.f32 1.5, %v1057
    %v1059 = vmul.f32 %v1054, %v1058
    %vm1060 = vweird.f32 %v1052
    %vm1061 = vweird.f32 %v1054
    %vm1062 = vmor %vm1060, %vm1061
    %v1063 = vsel %vm1062, %v1054, %v1059
    %v1064 = vrsqrt.pop %v1053
    %v1065 = vmul.f32 %v1064, %v1053
    %v1066 = vmul.f32 %v1065, %v1064
    %v1067 = vmul.f32 0.5, %v1066
    %v1068 = vsub.f32 1.5, %v1067
    %v1069 = vmul.f32 %v1064, %v1068
    %vm1070 = vweird.f32 %v1053
    %vm1071 = vweird.f32 %v1064
    %vm1072 = vmor %vm1070, %vm1071
    %v1073 = vsel %vm1072, %v1064, %v1069
    %v1074 = vmul.f32 %v1040, %v1063
    %v1075 = vmul.f32 %v1041, %v1073
    %v1077 = vperm.slane %v869, 0
    %v1079 = vmul.f32 %v1074, %v1077
    %v1080 = vmul.f32 %v1075, %v1077
    %v1082 = vperm.slane %v870, 0
    %v1084 = vadd.f32 %v1079, %v1082
    %v1085 = vadd.f32 %v1080, %v1082
    %s1086 = scalar_lea.vmem %s15, 16
    %v1087 = vld [vmem:[%s1086] sm:$0xf]
    %v1088 = vld [vmem:[%s1086 + $0x4] sm:$0xf]
    %v1089 = vld [vmem:[%s1086 + $0x8] sm:$0xf]
    %v1090 = vld [vmem:[%s1086 + $0xc] sm:$0xf]
    %s1091 = scalar_lea.vmem %s17, 1
    %v1092 = vld [vmem:[%s1091] sm:$0x1]
    %s1093 = scalar_lea.vmem %s19, 16
    %v1094 = vld [vmem:[%s1093] sm:$0xf]
    %v1095 = vld [vmem:[%s1093 + $0x4] sm:$0xf]
    %v1096 = vld [vmem:[%s1093 + $0x8] sm:$0xf]
    %v1097 = vld [vmem:[%s1093 + $0xc] sm:$0xf]
    %s1098 = scalar_lea.vmem %s21, 1
    %v1099 = vld [vmem:[%s1098] sm:$0x1]
    %s1100 = scalar_lea.vmem %s23, 1
    %v1101 = vld [vmem:[%s1100] sm:$0x1]
    %s1102 = scalar_lea.vmem %s25, 1
    %v1103 = vld [vmem:[%s1102] sm:$0x1]
    %v1104 = vpack.c.bf16 %v1085, %v1084
    %v1106 = vperm.slane %v1092, 0
    %v1112 = vunpack.c.l.b16 %v1087
    %v1113 = vunpack.c.l.b16 %v1088
    %v1114 = vunpack.c.l.b16 %v1089
    %v1115 = vunpack.c.l.b16 %v1090
    %v1116 = vpack.c.b16 %v1113, %v1112
    %v1117 = vpack.c.b16 %v1115, %v1114
    %v1121 = vsel %vm281, %v1104, 0
    %1123 = vmatpush.bf16.msra.mxu0 0
    %1124 = vmatpush.bf16.msra.mxu0 0
    %1125 = vmatpush.bf16.msra.mxu0 0
    %1126 = vmatpush.bf16.msra.mxu0 0
    %1127 = vmatpush.bf16.msra.mxu0 0
    %1128 = vmatpush.bf16.msra.mxu0 0
    %1129 = vmatpush.bf16.msra.mxu0 %v1117
    %1130 = vmatpush.bf16.msra.mxu0 %v1116
    %1131 = vmatmul.bf16.gmra.mxu0 %v1121
    %v1132 = vpop.f32.mrf.mxu0
    %v1133 = vadd.f32 %v1106, %v1132
    %v1134 = vpop.f32.mrf.mxu0
    %v1135 = vadd.f32 %v1106, %v1134
    %1136 = vdwg.mxu0
    %v1137 = vpack.c.bf16 %v1135, %v1133
    %1139 = vrot.lane.b32.xlu0 %v1137, 96
    %v1140 = vpop.permute.xlu0 %1139
    %v1142 = vsel %vm423, %v1137, 0
    %v1145 = vsel %vm423, %v1140, 0
    %1147 = vmatpush.bf16.xpose.msra.mxu0 0
    %1148 = vmatpush.bf16.xpose.msra.mxu0 0
    %1149 = vmatpush.bf16.xpose.msra.mxu0 0
    %1150 = vmatpush.bf16.xpose.msra.mxu0 0
    %1151 = vmatpush.bf16.xpose.msra.mxu0 0
    %1152 = vmatpush.bf16.xpose.msra.mxu0 0
    %1153 = vmatpush.bf16.xpose.msra.mxu0 0
    %1154 = vmatpush.bf16.xpose.msra.mxu0 %v1145
    %1155 = vmatmul.bf16.gmra.mxu0 %v1142
    %v1156 = vpop.f32.mrf.mxu0
    %v1157 = vadd.f32 0.0, %v1156
    %v1158 = vpop.f32.mrf.mxu0
    %v1159 = vadd.f32 0.0, %v1158
    %1160 = vdwg.mxu0
    %v1161 = vmul.f32 %v1157, 0.35355338
    %v1162 = vmul.f32 %v1159, 0.35355338
    %v1163 = vadd.f32 %v1161, %v270
    %v1164 = vadd.f32 %v1162, %v271
    %v1165 = vsel %vm448, %v1163, -inf
    %1166 = vmax.xlane.f32.xlu0 %v1165
    %v1167 = vpop.xlane.xlu0 %1166
    %v1168 = vsel %vm448, %v1164, -inf
    %1169 = vmax.xlane.f32.xlu0 %v1168
    %v1170 = vpop.xlane.xlu0 %1169
    %v1171 = vsub.f32 %v1163, %v1167
    %v1172 = vsub.f32 %v1164, %v1170
    %v1173 = vmul.f32 %v1171, 1.442695
    %v1174 = vpow.pop %v1173
    %v1175 = vmul.f32 %v1172, 1.442695
    %v1176 = vpow.pop %v1175
    %v1177 = vsel %vm448, %v1174, 0.0
    %1178 = vadd.xlane.f32.xlu0 %v1177
    %v1179 = vpop.xlane.xlu0 %1178
    %v1180 = vsel %vm448, %v1176, 0.0
    %1181 = vadd.xlane.f32.xlu0 %v1180
    %v1182 = vpop.xlane.xlu0 %1181
    %v1183 = vrcp.pop %v1179
    %v1184 = vrcp.pop %v1182
    %v1185 = vmul.f32 %v1174, %v1183
    %v1186 = vmul.f32 %v1176, %v1184
    %v1187 = vpack.c.bf16 %v1186, %v1185
    %1188 = vrot.lane.b32.xlu0 %v1137, 64
    %v1189 = vpop.permute.xlu0 %1188
    %v1192 = vsel %vm448, %v1187, 0
    %1194 = vmatpush.bf16.msra.mxu0 0
    %1195 = vmatpush.bf16.msra.mxu0 0
    %1196 = vmatpush.bf16.msra.mxu0 0
    %1197 = vmatpush.bf16.msra.mxu0 0
    %1198 = vmatpush.bf16.msra.mxu0 0
    %1199 = vmatpush.bf16.msra.mxu0 0
    %1200 = vmatpush.bf16.msra.mxu0 0
    %1201 = vmatpush.bf16.msra.mxu0 %v1189
    %1202 = vmatmul.bf16.gmra.mxu0 %v1192
    %v1203 = vpop.f32.mrf.mxu0
    %v1204 = vadd.f32 0.0, %v1203
    %v1205 = vpop.f32.mrf.mxu0
    %v1206 = vadd.f32 0.0, %v1205
    %1207 = vdwg.mxu0
    %v1208 = vpack.c.bf16 %v1206, %v1204
    %1209 = vrot.lane.b32.xlu0 %v1137, 120
    %v1210 = vpop.permute.xlu0 %1209
    %1211 = vrot.lane.b32.xlu0 %v1137, 88
    %v1212 = vpop.permute.xlu0 %1211
    %v1214 = vsel %vm423, %v1210, 0
    %v1217 = vsel %vm423, %v1212, 0
    %1219 = vmatpush.bf16.xpose.msra.mxu0 0
    %1220 = vmatpush.bf16.xpose.msra.mxu0 0
    %1221 = vmatpush.bf16.xpose.msra.mxu0 0
    %1222 = vmatpush.bf16.xpose.msra.mxu0 0
    %1223 = vmatpush.bf16.xpose.msra.mxu0 0
    %1224 = vmatpush.bf16.xpose.msra.mxu0 0
    %1225 = vmatpush.bf16.xpose.msra.mxu0 0
    %1226 = vmatpush.bf16.xpose.msra.mxu0 %v1217
    %1227 = vmatmul.bf16.gmra.mxu0 %v1214
    %v1228 = vpop.f32.mrf.mxu0
    %v1229 = vadd.f32 0.0, %v1228
    %v1230 = vpop.f32.mrf.mxu0
    %v1231 = vadd.f32 0.0, %v1230
    %1232 = vdwg.mxu0
    %v1233 = vmul.f32 %v1229, 0.35355338
    %v1234 = vmul.f32 %v1231, 0.35355338
    %v1235 = vadd.f32 %v1233, %v270
    %v1236 = vadd.f32 %v1234, %v271
    %v1237 = vsel %vm448, %v1235, -inf
    %1238 = vmax.xlane.f32.xlu0 %v1237
    %v1239 = vpop.xlane.xlu0 %1238
    %v1240 = vsel %vm448, %v1236, -inf
    %1241 = vmax.xlane.f32.xlu0 %v1240
    %v1242 = vpop.xlane.xlu0 %1241
    %v1243 = vsub.f32 %v1235, %v1239
    %v1244 = vsub.f32 %v1236, %v1242
    %v1245 = vmul.f32 %v1243, 1.442695
    %v1246 = vpow.pop %v1245
    %v1247 = vmul.f32 %v1244, 1.442695
    %v1248 = vpow.pop %v1247
    %v1249 = vsel %vm448, %v1246, 0.0
    %1250 = vadd.xlane.f32.xlu0 %v1249
    %v1251 = vpop.xlane.xlu0 %1250
    %v1252 = vsel %vm448, %v1248, 0.0
    %1253 = vadd.xlane.f32.xlu0 %v1252
    %v1254 = vpop.xlane.xlu0 %1253
    %v1255 = vrcp.pop %v1251
    %v1256 = vrcp.pop %v1254
    %v1257 = vmul.f32 %v1246, %v1255
    %v1258 = vmul.f32 %v1248, %v1256
    %v1259 = vpack.c.bf16 %v1258, %v1257
    %1260 = vrot.lane.b32.xlu0 %v1137, 56
    %v1261 = vpop.permute.xlu0 %1260
    %v1264 = vsel %vm448, %v1259, 0
    %1266 = vmatpush.bf16.msra.mxu0 0
    %1267 = vmatpush.bf16.msra.mxu0 0
    %1268 = vmatpush.bf16.msra.mxu0 0
    %1269 = vmatpush.bf16.msra.mxu0 0
    %1270 = vmatpush.bf16.msra.mxu0 0
    %1271 = vmatpush.bf16.msra.mxu0 0
    %1272 = vmatpush.bf16.msra.mxu0 0
    %1273 = vmatpush.bf16.msra.mxu0 %v1261
    %1274 = vmatmul.bf16.gmra.mxu0 %v1264
    %v1275 = vpop.f32.mrf.mxu0
    %v1276 = vadd.f32 0.0, %v1275
    %v1277 = vpop.f32.mrf.mxu0
    %v1278 = vadd.f32 0.0, %v1277
    %1279 = vdwg.mxu0
    %v1280 = vpack.c.bf16 %v1278, %v1276
    %v1282 = vsel %vm423, %v1280, 0
    %v1285 = vsel %vm568, %v1095, 0
    %1287 = vmatpush.bf16.msra.mxu0 0
    %1288 = vmatpush.bf16.msra.mxu0 0
    %1289 = vmatpush.bf16.msra.mxu0 0
    %1290 = vmatpush.bf16.msra.mxu0 0
    %1291 = vmatpush.bf16.msra.mxu0 0
    %1292 = vmatpush.bf16.msra.mxu0 0
    %1293 = vmatpush.bf16.msra.mxu0 0
    %1294 = vmatpush.bf16.msra.mxu0 %v1285
    %1295 = vmatmul.bf16.gmra.mxu0 %v1282
    %v1296 = vpop.f32.mrf.mxu0
    %v1297 = vadd.f32 0.0, %v1296
    %v1298 = vpop.f32.mrf.mxu0
    %v1299 = vadd.f32 0.0, %v1298
    %1300 = vdwg.mxu0
    %v1302 = vsel %vm423, %v1208, 0
    %v1305 = vsel %vm568, %v1094, 0
    %1307 = vmatpush.bf16.msra.mxu0 0
    %1308 = vmatpush.bf16.msra.mxu0 0
    %1309 = vmatpush.bf16.msra.mxu0 0
    %1310 = vmatpush.bf16.msra.mxu0 0
    %1311 = vmatpush.bf16.msra.mxu0 0
    %1312 = vmatpush.bf16.msra.mxu0 0
    %1313 = vmatpush.bf16.msra.mxu0 0
    %1314 = vmatpush.bf16.msra.mxu0 %v1305
    %1315 = vmatmul.bf16.gmra.mxu0 %v1302
    %v1316 = vpop.f32.mrf.mxu0
    %v1317 = vadd.f32 %v1297, %v1316
    %v1318 = vpop.f32.mrf.mxu0
    %v1319 = vadd.f32 %v1299, %v1318
    %1320 = vdwg.mxu0
    %1321 = vrot.lane.b32.xlu0 %v1137, 112
    %v1322 = vpop.permute.xlu0 %1321
    %1323 = vrot.lane.b32.xlu0 %v1137, 80
    %v1324 = vpop.permute.xlu0 %1323
    %v1326 = vsel %vm423, %v1322, 0
    %v1329 = vsel %vm423, %v1324, 0
    %1331 = vmatpush.bf16.xpose.msra.mxu0 0
    %1332 = vmatpush.bf16.xpose.msra.mxu0 0
    %1333 = vmatpush.bf16.xpose.msra.mxu0 0
    %1334 = vmatpush.bf16.xpose.msra.mxu0 0
    %1335 = vmatpush.bf16.xpose.msra.mxu0 0
    %1336 = vmatpush.bf16.xpose.msra.mxu0 0
    %1337 = vmatpush.bf16.xpose.msra.mxu0 0
    %1338 = vmatpush.bf16.xpose.msra.mxu0 %v1329
    %1339 = vmatmul.bf16.gmra.mxu0 %v1326
    %v1340 = vpop.f32.mrf.mxu0
    %v1341 = vadd.f32 0.0, %v1340
    %v1342 = vpop.f32.mrf.mxu0
    %v1343 = vadd.f32 0.0, %v1342
    %1344 = vdwg.mxu0
    %v1345 = vmul.f32 %v1341, 0.35355338
    %v1346 = vmul.f32 %v1343, 0.35355338
    %v1347 = vadd.f32 %v1345, %v270
    %v1348 = vadd.f32 %v1346, %v271
    %v1349 = vsel %vm448, %v1347, -inf
    %1350 = vmax.xlane.f32.xlu0 %v1349
    %v1351 = vpop.xlane.xlu0 %1350
    %v1352 = vsel %vm448, %v1348, -inf
    %1353 = vmax.xlane.f32.xlu0 %v1352
    %v1354 = vpop.xlane.xlu0 %1353
    %v1355 = vsub.f32 %v1347, %v1351
    %v1356 = vsub.f32 %v1348, %v1354
    %v1357 = vmul.f32 %v1355, 1.442695
    %v1358 = vpow.pop %v1357
    %v1359 = vmul.f32 %v1356, 1.442695
    %v1360 = vpow.pop %v1359
    %v1361 = vsel %vm448, %v1358, 0.0
    %1362 = vadd.xlane.f32.xlu0 %v1361
    %v1363 = vpop.xlane.xlu0 %1362
    %v1364 = vsel %vm448, %v1360, 0.0
    %1365 = vadd.xlane.f32.xlu0 %v1364
    %v1366 = vpop.xlane.xlu0 %1365
    %v1367 = vrcp.pop %v1363
    %v1368 = vrcp.pop %v1366
    %v1369 = vmul.f32 %v1358, %v1367
    %v1370 = vmul.f32 %v1360, %v1368
    %v1371 = vpack.c.bf16 %v1370, %v1369
    %1372 = vrot.lane.b32.xlu0 %v1137, 48
    %v1373 = vpop.permute.xlu0 %1372
    %v1376 = vsel %vm448, %v1371, 0
    %1378 = vmatpush.bf16.msra.mxu0 0
    %1379 = vmatpush.bf16.msra.mxu0 0
    %1380 = vmatpush.bf16.msra.mxu0 0
    %1381 = vmatpush.bf16.msra.mxu0 0
    %1382 = vmatpush.bf16.msra.mxu0 0
    %1383 = vmatpush.bf16.msra.mxu0 0
    %1384 = vmatpush.bf16.msra.mxu0 0
    %1385 = vmatpush.bf16.msra.mxu0 %v1373
    %1386 = vmatmul.bf16.gmra.mxu0 %v1376
    %v1387 = vpop.f32.mrf.mxu0
    %v1388 = vadd.f32 0.0, %v1387
    %v1389 = vpop.f32.mrf.mxu0
    %v1390 = vadd.f32 0.0, %v1389
    %1391 = vdwg.mxu0
    %v1392 = vpack.c.bf16 %v1390, %v1388
    %v1394 = vsel %vm423, %v1392, 0
    %v1397 = vsel %vm568, %v1096, 0
    %1399 = vmatpush.bf16.msra.mxu0 0
    %1400 = vmatpush.bf16.msra.mxu0 0
    %1401 = vmatpush.bf16.msra.mxu0 0
    %1402 = vmatpush.bf16.msra.mxu0 0
    %1403 = vmatpush.bf16.msra.mxu0 0
    %1404 = vmatpush.bf16.msra.mxu0 0
    %1405 = vmatpush.bf16.msra.mxu0 0
    %1406 = vmatpush.bf16.msra.mxu0 %v1397
    %1407 = vmatmul.bf16.gmra.mxu0 %v1394
    %v1408 = vpop.f32.mrf.mxu0
    %v1409 = vadd.f32 0.0, %v1408
    %v1410 = vpop.f32.mrf.mxu0
    %v1411 = vadd.f32 0.0, %v1410
    %1412 = vdwg.mxu0
    %v1413 = vadd.f32 %v1317, %v1409
    %v1414 = vadd.f32 %v1319, %v1411
    %1415 = vrot.lane.b32.xlu0 %v1137, 104
    %v1416 = vpop.permute.xlu0 %1415
    %1417 = vrot.lane.b32.xlu0 %v1137, 72
    %v1418 = vpop.permute.xlu0 %1417
    %v1420 = vsel %vm423, %v1416, 0
    %v1423 = vsel %vm423, %v1418, 0
    %1425 = vmatpush.bf16.xpose.msra.mxu0 0
    %1426 = vmatpush.bf16.xpose.msra.mxu0 0
    %1427 = vmatpush.bf16.xpose.msra.mxu0 0
    %1428 = vmatpush.bf16.xpose.msra.mxu0 0
    %1429 = vmatpush.bf16.xpose.msra.mxu0 0
    %1430 = vmatpush.bf16.xpose.msra.mxu0 0
    %1431 = vmatpush.bf16.xpose.msra.mxu0 0
    %1432 = vmatpush.bf16.xpose.msra.mxu0 %v1423
    %1433 = vmatmul.bf16.gmra.mxu0 %v1420
    %v1434 = vpop.f32.mrf.mxu0
    %v1435 = vadd.f32 0.0, %v1434
    %v1436 = vpop.f32.mrf.mxu0
    %v1437 = vadd.f32 0.0, %v1436
    %1438 = vdwg.mxu0
    %v1439 = vmul.f32 %v1435, 0.35355338
    %v1440 = vmul.f32 %v1437, 0.35355338
    %v1441 = vadd.f32 %v1439, %v270
    %v1442 = vadd.f32 %v1440, %v271
    %v1443 = vsel %vm448, %v1441, -inf
    %1444 = vmax.xlane.f32.xlu0 %v1443
    %v1445 = vpop.xlane.xlu0 %1444
    %v1446 = vsel %vm448, %v1442, -inf
    %1447 = vmax.xlane.f32.xlu0 %v1446
    %v1448 = vpop.xlane.xlu0 %1447
    %v1449 = vsub.f32 %v1441, %v1445
    %v1450 = vsub.f32 %v1442, %v1448
    %v1451 = vmul.f32 %v1449, 1.442695
    %v1452 = vpow.pop %v1451
    %v1453 = vmul.f32 %v1450, 1.442695
    %v1454 = vpow.pop %v1453
    %v1455 = vsel %vm448, %v1452, 0.0
    %1456 = vadd.xlane.f32.xlu0 %v1455
    %v1457 = vpop.xlane.xlu0 %1456
    %v1458 = vsel %vm448, %v1454, 0.0
    %1459 = vadd.xlane.f32.xlu0 %v1458
    %v1460 = vpop.xlane.xlu0 %1459
    %v1461 = vrcp.pop %v1457
    %v1462 = vrcp.pop %v1460
    %v1463 = vmul.f32 %v1452, %v1461
    %v1464 = vmul.f32 %v1454, %v1462
    %v1465 = vpack.c.bf16 %v1464, %v1463
    %1466 = vrot.lane.b32.xlu0 %v1137, 40
    %v1467 = vpop.permute.xlu0 %1466
    %v1470 = vsel %vm448, %v1465, 0
    %1472 = vmatpush.bf16.msra.mxu0 0
    %1473 = vmatpush.bf16.msra.mxu0 0
    %1474 = vmatpush.bf16.msra.mxu0 0
    %1475 = vmatpush.bf16.msra.mxu0 0
    %1476 = vmatpush.bf16.msra.mxu0 0
    %1477 = vmatpush.bf16.msra.mxu0 0
    %1478 = vmatpush.bf16.msra.mxu0 0
    %1479 = vmatpush.bf16.msra.mxu0 %v1467
    %1480 = vmatmul.bf16.gmra.mxu0 %v1470
    %v1481 = vpop.f32.mrf.mxu0
    %v1482 = vadd.f32 0.0, %v1481
    %v1483 = vpop.f32.mrf.mxu0
    %v1484 = vadd.f32 0.0, %v1483
    %1485 = vdwg.mxu0
    %v1486 = vpack.c.bf16 %v1484, %v1482
    %v1488 = vsel %vm423, %v1486, 0
    %v1491 = vsel %vm568, %v1097, 0
    %1493 = vmatpush.bf16.msra.mxu0 0
    %1494 = vmatpush.bf16.msra.mxu0 0
    %1495 = vmatpush.bf16.msra.mxu0 0
    %1496 = vmatpush.bf16.msra.mxu0 0
    %1497 = vmatpush.bf16.msra.mxu0 0
    %1498 = vmatpush.bf16.msra.mxu0 0
    %1499 = vmatpush.bf16.msra.mxu0 0
    %1500 = vmatpush.bf16.msra.mxu0 %v1491
    %1501 = vmatmul.bf16.gmra.mxu0 %v1488
    %v1502 = vpop.f32.mrf.mxu0
    %v1503 = vadd.f32 0.0, %v1502
    %v1504 = vpop.f32.mrf.mxu0
    %v1505 = vadd.f32 0.0, %v1504
    %1506 = vdwg.mxu0
    %v1507 = vadd.f32 %v1413, %v1503
    %v1508 = vadd.f32 %v1414, %v1505
    %v1509 = vadd.f32 %v1084, %v1507
    %v1510 = vadd.f32 %v1085, %v1508
    %v1512 = vperm.slane %v1099, 0
    %v1514 = vadd.f32 %v1509, %v1512
    %v1515 = vadd.f32 %v1510, %v1512
    %v1516 = vsel %vm281, %v1514, 0.0
    %1517 = vadd.xlane.f32.xlu0 %v1516
    %v1518 = vpop.xlane.xlu0 %1517
    %v1519 = vsel %vm281, %v1515, 0.0
    %1520 = vadd.xlane.f32.xlu0 %v1519
    %v1521 = vpop.xlane.xlu0 %1520
    %v1522 = vmul.f32 %v1518, %v325
    %v1523 = vmul.f32 %v1521, %v325
    %v1524 = vsub.f32 %v1514, %v1522
    %v1525 = vsub.f32 %v1515, %v1523
    %v1526 = vmul.f32 %v1524, %v1524
    %v1527 = vmul.f32 %v1525, %v1525
    %v1528 = vsel %vm281, %v1526, 0.0
    %1529 = vadd.xlane.f32.xlu0 %v1528
    %v1530 = vpop.xlane.xlu0 %1529
    %v1531 = vsel %vm281, %v1527, 0.0
    %1532 = vadd.xlane.f32.xlu0 %v1531
    %v1533 = vpop.xlane.xlu0 %1532
    %v1534 = vmul.f32 %v1530, %v325
    %v1535 = vmul.f32 %v1533, %v325
    %v1536 = vadd.f32 %v1534, 1e-12
    %v1537 = vadd.f32 %v1535, 1e-12
    %v1538 = vrsqrt.pop %v1536
    %v1539 = vmul.f32 %v1538, %v1536
    %v1540 = vmul.f32 %v1539, %v1538
    %v1541 = vmul.f32 0.5, %v1540
    %v1542 = vsub.f32 1.5, %v1541
    %v1543 = vmul.f32 %v1538, %v1542
    %vm1544 = vweird.f32 %v1536
    %vm1545 = vweird.f32 %v1538
    %vm1546 = vmor %vm1544, %vm1545
    %v1547 = vsel %vm1546, %v1538, %v1543
    %v1548 = vrsqrt.pop %v1537
    %v1549 = vmul.f32 %v1548, %v1537
    %v1550 = vmul.f32 %v1549, %v1548
    %v1551 = vmul.f32 0.5, %v1550
    %v1552 = vsub.f32 1.5, %v1551
    %v1553 = vmul.f32 %v1548, %v1552
    %vm1554 = vweird.f32 %v1537
    %vm1555 = vweird.f32 %v1548
    %vm1556 = vmor %vm1554, %vm1555
    %v1557 = vsel %vm1556, %v1548, %v1553
    %v1558 = vmul.f32 %v1524, %v1547
    %v1559 = vmul.f32 %v1525, %v1557
    %v1561 = vperm.slane %v1101, 0
    %v1563 = vmul.f32 %v1558, %v1561
    %v1564 = vmul.f32 %v1559, %v1561
    %v1566 = vperm.slane %v1103, 0
    %v1568 = vadd.f32 %v1563, %v1566
    %v1569 = vadd.f32 %v1564, %v1566
    %s1570 = scalar_lea.vmem %s27, 16
    %v1571 = vld [vmem:[%s1570] sm:$0xf]
    %v1572 = vld [vmem:[%s1570 + $0x4] sm:$0xf]
    %v1573 = vld [vmem:[%s1570 + $0x8] sm:$0xf]
    %v1574 = vld [vmem:[%s1570 + $0xc] sm:$0xf]
    %s1575 = scalar_lea.vmem %s29, 1
    %v1576 = vld [vmem:[%s1575] sm:$0x1]
    %s1577 = scalar_lea.vmem %s31, 32
    %v1578 = vld [vmem:[%s1577] sm:$0xf]
    %v1579 = vld [vmem:[%s1577 + $0x4] sm:$0xf]
    %v1580 = vld [vmem:[%s1577 + $0x8] sm:$0xf]
    %v1581 = vld [vmem:[%s1577 + $0xc] sm:$0xf]
    %v1582 = vld [vmem:[%s1577 + $0x10] sm:$0xf]
    %v1583 = vld [vmem:[%s1577 + $0x14] sm:$0xf]
    %v1584 = vld [vmem:[%s1577 + $0x18] sm:$0xf]
    %v1585 = vld [vmem:[%s1577 + $0x1c] sm:$0xf]
    %s1586 = scalar_lea.vmem %s33, 1
    %v1587 = vld [vmem:[%s1586] sm:$0x1]
    %s1588 = scalar_lea.vmem %s35, 1
    %v1589 = vld [vmem:[%s1588] sm:$0x1]
    %s1590 = scalar_lea.vmem %s37, 1
    %v1591 = vld [vmem:[%s1590] sm:$0x1]
    %v1592 = vpack.c.bf16 %v1569, %v1568
    %v1594 = vperm.slane %v1576, 0
    %v1600 = vunpack.c.l.b16 %v1571
    %v1601 = vunpack.c.l.b16 %v1572
    %v1602 = vunpack.c.l.b16 %v1573
    %v1603 = vunpack.c.l.b16 %v1574
    %v1604 = vpack.c.b16 %v1601, %v1600
    %v1605 = vpack.c.b16 %v1603, %v1602
    %v1609 = vsel %vm281, %v1592, 0
    %1611 = vmatpush.bf16.msra.mxu0 0
    %1612 = vmatpush.bf16.msra.mxu0 0
    %1613 = vmatpush.bf16.msra.mxu0 0
    %1614 = vmatpush.bf16.msra.mxu0 0
    %1615 = vmatpush.bf16.msra.mxu0 0
    %1616 = vmatpush.bf16.msra.mxu0 0
    %1617 = vmatpush.bf16.msra.mxu0 %v1605
    %1618 = vmatpush.bf16.msra.mxu0 %v1604
    %1619 = vmatmul.bf16.gmra.mxu0 %v1609
    %v1620 = vpop.f32.mrf.mxu0
    %v1621 = vadd.f32 %v1594, %v1620
    %v1622 = vpop.f32.mrf.mxu0
    %v1623 = vadd.f32 %v1594, %v1622
    %1624 = vdwg.mxu0
    %v1625 = vmul.f32 %v1621, 0.5
    %v1626 = vmul.f32 %v1623, 0.5
    %v1627 = vmul.f32 %v1621, 0.70710677
    %v1628 = vmul.f32 %v1623, 0.70710677
    %v1629 = vand.u32 2147483647, %v1627
    %v1630 = vand.u32 2147483647, %v1628
    %v1631 = vmul.f32 %v1629, 0.3275911
    %v1632 = vmul.f32 %v1630, 0.3275911
    %v1633 = vadd.f32 %v1631, 1.0
    %v1634 = vadd.f32 %v1632, 1.0
    %v1635 = vrcp.pop %v1633
    %v1636 = vmul.f32 %v1633, %v1635
    %v1637 = vsub.f32 1.0, %v1636
    %v1638 = vmul.f32 %v1635, %v1637
    %v1639 = vadd.f32 %v1635, %v1638
    %vm1640 = vweird.f32 %v1633
    %vm1641 = vweird.f32 %v1635
    %vm1642 = vmor %vm1640, %vm1641
    %v1643 = vsel %vm1642, %v1635, %v1639
    %v1644 = vand.u32 2147483647, %v1633
    %vm1645 = vcmp.eq.f32.partialorder %v1644, 8.507059e+37
    %v1646 = vand.u32 %v1633, 2147483648
    %v1647 = vor.u32 1.1754944e-38, %v1646
    %v1648 = vsel %vm1645, %v1647, %v1643
    %v1649 = vmul.f32 1.0, %v1648
    %v1650 = vrcp.pop %v1634
    %v1651 = vmul.f32 %v1634, %v1650
    %v1652 = vsub.f32 1.0, %v1651
    %v1653 = vmul.f32 %v1650, %v1652
    %v1654 = vadd.f32 %v1650, %v1653
    %vm1655 = vweird.f32 %v1634
    %vm1656 = vweird.f32 %v1650
    %vm1657 = vmor %vm1655, %vm1656
    %v1658 = vsel %vm1657, %v1650, %v1654
    %v1659 = vand.u32 2147483647, %v1634
    %vm1660 = vcmp.eq.f32.partialorder %v1659, 8.507059e+37
    %v1661 = vand.u32 %v1634, 2147483648
    %v1662 = vor.u32 1.1754944e-38, %v1661
    %v1663 = vsel %vm1660, %v1662, %v1658
    %v1664 = vmul.f32 1.0, %v1663
    %v1665 = vmul.f32 %v1649, 1.0614054
    %v1666 = vmul.f32 %v1664, 1.0614054
    %v1667 = vsub.f32 %v1665, 1.4531521
    %v1668 = vsub.f32 %v1666, 1.4531521
    %v1669 = vmul.f32 %v1667, %v1649
    %v1670 = vmul.f32 %v1668, %v1664
    %v1671 = vadd.f32 %v1669, 1.4214138
    %v1672 = vadd.f32 %v1670, 1.4214138
    %v1673 = vmul.f32 %v1671, %v1649
    %v1674 = vmul.f32 %v1672, %v1664
    %v1675 = vsub.f32 %v1673, 0.28449672
    %v1676 = vsub.f32 %v1674, 0.28449672
    %v1677 = vmul.f32 %v1675, %v1649
    %v1678 = vmul.f32 %v1676, %v1664
    %v1679 = vadd.f32 %v1677, 0.2548296
    %v1680 = vadd.f32 %v1678, 0.2548296
    %v1681 = vmul.f32 %v1679, %v1649
    %v1682 = vmul.f32 %v1680, %v1664
    %v1683 = vsub.f32 0.0, %v1629
    %v1684 = vsub.f32 0.0, %v1630
    %v1685 = vmul.f32 %v1683, %v1629
    %v1686 = vmul.f32 %v1684, %v1630
    %v1687 = vmul.f32 %v1685, 1.442695
    %v1688 = vpow.pop %v1687
    %v1689 = vmul.f32 %v1686, 1.442695
    %v1690 = vpow.pop %v1689
    %v1691 = vmul.f32 %v1681, %v1688
    %v1692 = vmul.f32 %v1682, %v1690
    %v1693 = vsub.f32 1.0, %v1691
    %v1694 = vsub.f32 1.0, %v1692
    %vm1695 = vcmp.ge.f32.partialorder %v1627, 0.0
    %vm1696 = vcmp.ge.f32.partialorder %v1628, 0.0
    %v1697 = vsub.f32 0.0, %v1693
    %v1698 = vsub.f32 0.0, %v1694
    %v1699 = vsel %vm1695, %v1693, %v1697
    %v1700 = vsel %vm1696, %v1694, %v1698
    %v1701 = vadd.f32 %v1699, 1.0
    %v1702 = vadd.f32 %v1700, 1.0
    %v1703 = vmul.f32 %v1625, %v1701
    %v1704 = vmul.f32 %v1626, %v1702
    %v1705 = vpack.c.bf16 %v1704, %v1703
    %v1707 = vperm.slane %v1587, 0
    %v1717 = vunpack.c.l.b16 %v1578
    %v1718 = vunpack.c.l.b16 %v1579
    %v1719 = vunpack.c.l.b16 %v1580
    %v1720 = vunpack.c.l.b16 %v1581
    %v1721 = vunpack.c.l.b16 %v1582
    %v1722 = vunpack.c.l.b16 %v1583
    %v1723 = vunpack.c.l.b16 %v1584
    %v1724 = vunpack.c.l.b16 %v1585
    %v1725 = vpack.c.b16 %v1718, %v1717
    %v1726 = vpack.c.b16 %v1720, %v1719
    %v1727 = vpack.c.b16 %v1722, %v1721
    %v1728 = vpack.c.b16 %v1724, %v1723
    %v1734 = vsel %vm1012, %v1705, 0
    %1736 = vmatpush.bf16.msra.mxu0 0
    %1737 = vmatpush.bf16.msra.mxu0 0
    %1738 = vmatpush.bf16.msra.mxu0 0
    %1739 = vmatpush.bf16.msra.mxu0 0
    %1740 = vmatpush.bf16.msra.mxu0 %v1728
    %1741 = vmatpush.bf16.msra.mxu0 %v1727
    %1742 = vmatpush.bf16.msra.mxu0 %v1726
    %1743 = vmatpush.bf16.msra.mxu0 %v1725
    %1744 = vmatmul.bf16.gmra.mxu0 %v1734
    %v1745 = vpop.f32.mrf.mxu0
    %v1746 = vadd.f32 %v1707, %v1745
    %v1747 = vpop.f32.mrf.mxu0
    %v1748 = vadd.f32 %v1707, %v1747
    %1749 = vdwg.mxu0
    %v1750 = vadd.f32 %v1568, %v1746
    %v1751 = vadd.f32 %v1569, %v1748
    %v1752 = vsel %vm281, %v1750, 0.0
    %1753 = vadd.xlane.f32.xlu0 %v1752
    %v1754 = vpop.xlane.xlu0 %1753
    %v1755 = vsel %vm281, %v1751, 0.0
    %1756 = vadd.xlane.f32.xlu0 %v1755
    %v1757 = vpop.xlane.xlu0 %1756
    %v1758 = vmul.f32 %v1754, %v325
    %v1759 = vmul.f32 %v1757, %v325
    %v1760 = vsub.f32 %v1750, %v1758
    %v1761 = vsub.f32 %v1751, %v1759
    %v1762 = vmul.f32 %v1760, %v1760
    %v1763 = vmul.f32 %v1761, %v1761
    %v1764 = vsel %vm281, %v1762, 0.0
    %1765 = vadd.xlane.f32.xlu0 %v1764
    %v1766 = vpop.xlane.xlu0 %1765
    %v1767 = vsel %vm281, %v1763, 0.0
    %1768 = vadd.xlane.f32.xlu0 %v1767
    %v1769 = vpop.xlane.xlu0 %1768
    %v1770 = vmul.f32 %v1766, %v325
    %v1771 = vmul.f32 %v1769, %v325
    %v1772 = vadd.f32 %v1770, 1e-12
    %v1773 = vadd.f32 %v1771, 1e-12
    %v1774 = vrsqrt.pop %v1772
    %v1775 = vmul.f32 %v1774, %v1772
    %v1776 = vmul.f32 %v1775, %v1774
    %v1777 = vmul.f32 0.5, %v1776
    %v1778 = vsub.f32 1.5, %v1777
    %v1779 = vmul.f32 %v1774, %v1778
    %vm1780 = vweird.f32 %v1772
    %vm1781 = vweird.f32 %v1774
    %vm1782 = vmor %vm1780, %vm1781
    %v1783 = vsel %vm1782, %v1774, %v1779
    %v1784 = vrsqrt.pop %v1773
    %v1785 = vmul.f32 %v1784, %v1773
    %v1786 = vmul.f32 %v1785, %v1784
    %v1787 = vmul.f32 0.5, %v1786
    %v1788 = vsub.f32 1.5, %v1787
    %v1789 = vmul.f32 %v1784, %v1788
    %vm1790 = vweird.f32 %v1773
    %vm1791 = vweird.f32 %v1784
    %vm1792 = vmor %vm1790, %vm1791
    %v1793 = vsel %vm1792, %v1784, %v1789
    %v1794 = vmul.f32 %v1760, %v1783
    %v1795 = vmul.f32 %v1761, %v1793
    %v1797 = vperm.slane %v1589, 0
    %v1799 = vmul.f32 %v1794, %v1797
    %v1800 = vmul.f32 %v1795, %v1797
    %v1802 = vperm.slane %v1591, 0
    %v1804 = vadd.f32 %v1799, %v1802
    %v1805 = vadd.f32 %v1800, %v1802
    %v1807 = vrot.slane %v1805, 7
    %vm1809 = vcmask 1040384
    %v1810 = vsel %vm1809, %v1804, %v1807
    %v1811 = vpack.c.bf16 %v1810, %v1810
    %v1812 = vld [vmem:[%s39] sm:$0xf]
    %v1813 = vld [vmem:[%s39 + $0x4] sm:$0xf]
    %v1814 = vld [vmem:[%s39 + $0x8] sm:$0xf]
    %v1815 = vld [vmem:[%s39 + $0xc] sm:$0xf]
    %v1816 = vld [vmem:[%s41] sm:$0x1]
    %v1818 = vperm.slane %v1816, 0
    %v1824 = vunpack.c.l.b16 %v1812
    %v1825 = vunpack.c.l.b16 %v1813
    %v1826 = vunpack.c.l.b16 %v1814
    %v1827 = vunpack.c.l.b16 %v1815
    %v1828 = vpack.c.b16 %v1825, %v1824
    %v1829 = vpack.c.b16 %v1827, %v1826
    %v1833 = vsel %vm281, %v1811, 0
    %1835 = vmatpush.bf16.msra.mxu0 0
    %1836 = vmatpush.bf16.msra.mxu0 0
    %1837 = vmatpush.bf16.msra.mxu0 0
    %1838 = vmatpush.bf16.msra.mxu0 0
    %1839 = vmatpush.bf16.msra.mxu0 0
    %1840 = vmatpush.bf16.msra.mxu0 0
    %1841 = vmatpush.bf16.msra.mxu0 %v1829
    %1842 = vmatpush.bf16.msra.mxu0 %v1828
    %1843 = vmatmul.bf16.gmra.mxu0 %v1833
    %v1844 = vpop.f32.mrf.mxu0
    %v1845 = vadd.f32 %v1818, %v1844
    %v1846 = vpop.f32.mrf.mxu0
    %1847 = vdwg.mxu0
    %v1848 = vadd.s32 %v237, 128
    %v1849 = vadd.s32 %v237, 256
    %v1850 = vadd.s32 %v237, 384
    %v1851 = vld [vmem:[%s45] sm:$0xff]
    %v1852 = vld [vmem:[%s45 + $0x8] sm:$0xff]
    %v1853 = vld [vmem:[%s45 + $0x10] sm:$0xff]
    %v1854 = vld [vmem:[%s45 + $0x18] sm:$0xff]
    %v1855 = vld [vmem:[%s45 + $0x20] sm:$0xff]
    %v1856 = vld [vmem:[%s45 + $0x28] sm:$0xff]
    %v1857 = vld [vmem:[%s45 + $0x30] sm:$0xff]
    %v1858 = vld [vmem:[%s45 + $0x38] sm:$0xff]
    %v1859 = vld [vmem:[%s45 + $0x40] sm:$0xff]
    %v1860 = vld [vmem:[%s45 + $0x48] sm:$0xff]
    %v1861 = vld [vmem:[%s45 + $0x50] sm:$0xff]
    %v1862 = vld [vmem:[%s45 + $0x58] sm:$0xff]
    %v1863 = vld [vmem:[%s45 + $0x60] sm:$0xff]
    %v1864 = vld [vmem:[%s45 + $0x68] sm:$0xff]
    %v1865 = vld [vmem:[%s45 + $0x70] sm:$0xff]
    %v1866 = vld [vmem:[%s45 + $0x78] sm:$0xff]
    %v1868 = vsel %vm281, %v1845, 0
    %1870 = vmatpush.msra.mxu0 0.0
    %1871 = vmatpush.msra.mxu0 0.0
    %1872 = vmatpush.msra.mxu0 0.0
    %1873 = vmatpush.msra.mxu0 0.0
    %1874 = vmatpush.msra.mxu0 0.0
    %1875 = vmatpush.msra.mxu0 0.0
    %1876 = vmatpush.msra.mxu0 0.0
    %1877 = vmatpush.msra.mxu0 0.0
    %1878 = vmatpush.msra.mxu0 0.0
    %1879 = vmatpush.msra.mxu0 0.0
    %1880 = vmatpush.msra.mxu0 0.0
    %1881 = vmatpush.msra.mxu0 0.0
    %1882 = vmatpush.msra.mxu0 %v1863
    %1883 = vmatpush.msra.mxu0 %v1859
    %1884 = vmatpush.msra.mxu0 %v1855
    %1885 = vmatpush.msra.mxu0 %v1851
    %1886 = vmatmul.f32.gmra.mxu0 %v1868
    %v1887 = vpop.f32.mrf.mxu0
    %v1888 = vadd.f32 0.0, %v1887
    %1889 = vdwg.mxu0
    %1890 = vmatpush.msra.mxu0 0.0
    %1891 = vmatpush.msra.mxu0 0.0
    %1892 = vmatpush.msra.mxu0 0.0
    %1893 = vmatpush.msra.mxu0 0.0
    %1894 = vmatpush.msra.mxu0 0.0
    %1895 = vmatpush.msra.mxu0 0.0
    %1896 = vmatpush.msra.mxu0 0.0
    %1897 = vmatpush.msra.mxu0 0.0
    %1898 = vmatpush.msra.mxu0 0.0
    %1899 = vmatpush.msra.mxu0 0.0
    %1900 = vmatpush.msra.mxu0 0.0
    %1901 = vmatpush.msra.mxu0 0.0
    %1902 = vmatpush.msra.mxu0 %v1864
    %1903 = vmatpush.msra.mxu0 %v1860
    %1904 = vmatpush.msra.mxu0 %v1856
    %1905 = vmatpush.msra.mxu0 %v1852
    %1906 = vmatmul.f32.gmra.mxu0 %v1868
    %v1907 = vpop.f32.mrf.mxu0
    %v1908 = vadd.f32 0.0, %v1907
    %1909 = vdwg.mxu0
    %1910 = vmatpush.msra.mxu0 0.0
    %1911 = vmatpush.msra.mxu0 0.0
    %1912 = vmatpush.msra.mxu0 0.0
    %1913 = vmatpush.msra.mxu0 0.0
    %1914 = vmatpush.msra.mxu0 0.0
    %1915 = vmatpush.msra.mxu0 0.0
    %1916 = vmatpush.msra.mxu0 0.0
    %1917 = vmatpush.msra.mxu0 0.0
    %1918 = vmatpush.msra.mxu0 0.0
    %1919 = vmatpush.msra.mxu0 0.0
    %1920 = vmatpush.msra.mxu0 0.0
    %1921 = vmatpush.msra.mxu0 0.0
    %1922 = vmatpush.msra.mxu0 %v1865
    %1923 = vmatpush.msra.mxu0 %v1861
    %1924 = vmatpush.msra.mxu0 %v1857
    %1925 = vmatpush.msra.mxu0 %v1853
    %1926 = vmatmul.f32.gmra.mxu0 %v1868
    %v1927 = vpop.f32.mrf.mxu0
    %v1928 = vadd.f32 0.0, %v1927
    %1929 = vdwg.mxu0
    %1930 = vmatpush.msra.mxu0 0.0
    %1931 = vmatpush.msra.mxu0 0.0
    %1932 = vmatpush.msra.mxu0 0.0
    %1933 = vmatpush.msra.mxu0 0.0
    %1934 = vmatpush.msra.mxu0 0.0
    %1935 = vmatpush.msra.mxu0 0.0
    %1936 = vmatpush.msra.mxu0 0.0
    %1937 = vmatpush.msra.mxu0 0.0
    %1938 = vmatpush.msra.mxu0 0.0
    %1939 = vmatpush.msra.mxu0 0.0
    %1940 = vmatpush.msra.mxu0 0.0
    %1941 = vmatpush.msra.mxu0 0.0
    %1942 = vmatpush.msra.mxu0 %v1866
    %1943 = vmatpush.msra.mxu0 %v1862
    %1944 = vmatpush.msra.mxu0 %v1858
    %1945 = vmatpush.msra.mxu0 %v1854
    %1946 = vmatmul.f32.gmra.mxu0 %v1868
    %v1947 = vpop.f32.mrf.mxu0
    %v1948 = vadd.f32 0.0, %v1947
    %1949 = vdwg.mxu0
    %v1950 = vld [vmem:[%s47] sm:$0xf]
    %v1951 = vmul.f32 %v1888, 2.0
    %v1952 = vmul.f32 %v1908, 2.0
    %v1953 = vmul.f32 %v1928, 2.0
    %v1954 = vmul.f32 %v1948, 2.0
    %v1956 = vperm.slane %v1950, 0
    %v1957 = vperm.slane %v1950, 1
    %v1958 = vperm.slane %v1950, 2
    %v1959 = vperm.slane %v1950, 3
    %v1964 = vsub.f32 %v1956, %v1951
    %v1965 = vsub.f32 %v1957, %v1952
    %v1966 = vsub.f32 %v1958, %v1953
    %v1967 = vsub.f32 %v1959, %v1954
    %vm1968 = vcmask 1041408
    %v1969 = vsel %vm1968, %v1964, inf
    %v1970 = vsel %vm1968, %v1965, inf
    %v1971 = vsel %vm1968, %v1966, inf
    %v1972 = vsel %vm1968, %v1967, inf
    %v1973 = vmin.f32 %v1969, %v1970
    %v1974 = vmin.f32 %v1971, %v1972
    %v1975 = vmin.f32 %v1973, %v1974
    %1976 = vmin.xlane.f32.xlu0 %v1975
    %v1977 = vpop.xlane.xlu0 %1976
    %vm1978 = vcmp.eq.f32.partialorder %v1964, %v1977
    %vm1979 = vcmp.eq.f32.partialorder %v1965, %v1977
    %vm1980 = vcmp.eq.f32.partialorder %v1966, %v1977
    %vm1981 = vcmp.eq.f32.partialorder %v1967, %v1977
    %v1982 = vsel %vm1978, %v237, 512
    %v1983 = vsel %vm1979, %v1848, 512
    %v1984 = vsel %vm1980, %v1849, 512
    %v1985 = vsel %vm1981, %v1850, 512
    %v1986 = vsel %vm1968, %v1982, 2147483647
    %v1987 = vsel %vm1968, %v1983, 2147483647
    %v1988 = vsel %vm1968, %v1984, 2147483647
    %v1989 = vsel %vm1968, %v1985, 2147483647
    %vm1990 = vcmp.lt.s32.totalorder %v1986, %v1987
    %v1991 = vsel %vm1990, %v1986, %v1987
    %vm1992 = vcmp.lt.s32.totalorder %v1988, %v1989
    %v1993 = vsel %vm1992, %v1988, %v1989
    %vm1994 = vcmp.lt.s32.totalorder %v1991, %v1993
    %v1995 = vsel %vm1994, %v1991, %v1993
    %v1996 = vand.u32 %v1995, 65535
    %v1997 = vshra.s32 %v1995, 16
    %v1998 = vcvt.s32.f32 %v1996
    %v1999 = vcvt.s32.f32 %v1997
    %2000 = vmin.xlane.f32.xlu0 %v1999
    %v2001 = vpop.xlane.xlu0 %2000
    %vm2002 = vcmp.eq.f32.partialorder %v1999, %v2001
    %v2003 = vsel %vm2002, %v1998, inf
    %2004 = vmin.xlane.f32.xlu0 %v2003
    %v2005 = vpop.xlane.xlu0 %2004
    %v2006 = vcvt.f32.s32 %v2005
    %v2007 = vcvt.f32.s32 %v2001
    %v2008 = vshll.u32 %v2007, 16
    %v2009 = vadd.s32 %v2008, %v2006
    %vm2010 = vcmp.eq.s32.totalorder %v237, %v2009
    %vm2011 = vcmp.eq.s32.totalorder %v1848, %v2009
    %vm2012 = vcmp.eq.s32.totalorder %v1849, %v2009
    %vm2013 = vcmp.eq.s32.totalorder %v1850, %v2009
    %v2014 = vsel %vm2010, 1, 0
    %v2015 = vsel %vm2011, 1, 0
    %v2016 = vsel %vm2012, 1, 0
    %v2017 = vsel %vm2013, 1, 0
    %v2018 = vcvt.s32.f32 %v2014
    %v2019 = vcvt.s32.f32 %v2015
    %v2020 = vcvt.s32.f32 %v2016
    %v2021 = vcvt.s32.f32 %v2017
    %v2022 = vld [vmem:[%s43] sm:$0xff]
    %v2023 = vld [vmem:[%s43 + $0x8] sm:$0xff]
    %v2024 = vld [vmem:[%s43 + $0x10] sm:$0xff]
    %v2025 = vld [vmem:[%s43 + $0x18] sm:$0xff]
    %v2026 = vld [vmem:[%s43 + $0x20] sm:$0xff]
    %v2027 = vld [vmem:[%s43 + $0x28] sm:$0xff]
    %v2028 = vld [vmem:[%s43 + $0x30] sm:$0xff]
    %v2029 = vld [vmem:[%s43 + $0x38] sm:$0xff]
    %v2030 = vld [vmem:[%s43 + $0x40] sm:$0xff]
    %v2031 = vld [vmem:[%s43 + $0x48] sm:$0xff]
    %v2032 = vld [vmem:[%s43 + $0x50] sm:$0xff]
    %v2033 = vld [vmem:[%s43 + $0x58] sm:$0xff]
    %v2034 = vld [vmem:[%s43 + $0x60] sm:$0xff]
    %v2035 = vld [vmem:[%s43 + $0x68] sm:$0xff]
    %v2036 = vld [vmem:[%s43 + $0x70] sm:$0xff]
    %v2037 = vld [vmem:[%s43 + $0x78] sm:$0xff]
    %v2038 = vld [vmem:[%s43 + $0x80] sm:$0xff]
    %v2039 = vld [vmem:[%s43 + $0x88] sm:$0xff]
    %v2040 = vld [vmem:[%s43 + $0x90] sm:$0xff]
    %v2041 = vld [vmem:[%s43 + $0x98] sm:$0xff]
    %v2042 = vld [vmem:[%s43 + $0xa0] sm:$0xff]
    %v2043 = vld [vmem:[%s43 + $0xa8] sm:$0xff]
    %v2044 = vld [vmem:[%s43 + $0xb0] sm:$0xff]
    %v2045 = vld [vmem:[%s43 + $0xb8] sm:$0xff]
    %v2046 = vld [vmem:[%s43 + $0xc0] sm:$0xff]
    %v2047 = vld [vmem:[%s43 + $0xc8] sm:$0xff]
    %v2048 = vld [vmem:[%s43 + $0xd0] sm:$0xff]
    %v2049 = vld [vmem:[%s43 + $0xd8] sm:$0xff]
    %v2050 = vld [vmem:[%s43 + $0xe0] sm:$0xff]
    %v2051 = vld [vmem:[%s43 + $0xe8] sm:$0xff]
    %v2052 = vld [vmem:[%s43 + $0xf0] sm:$0xff]
    %v2053 = vld [vmem:[%s43 + $0xf8] sm:$0xff]
    %v2054 = vld [vmem:[%s43 + $0x100] sm:$0xff]
    %v2055 = vld [vmem:[%s43 + $0x108] sm:$0xff]
    %v2056 = vld [vmem:[%s43 + $0x110] sm:$0xff]
    %v2057 = vld [vmem:[%s43 + $0x118] sm:$0xff]
    %v2058 = vld [vmem:[%s43 + $0x120] sm:$0xff]
    %v2059 = vld [vmem:[%s43 + $0x128] sm:$0xff]
    %v2060 = vld [vmem:[%s43 + $0x130] sm:$0xff]
    %v2061 = vld [vmem:[%s43 + $0x138] sm:$0xff]
    %v2062 = vld [vmem:[%s43 + $0x140] sm:$0xff]
    %v2063 = vld [vmem:[%s43 + $0x148] sm:$0xff]
    %v2064 = vld [vmem:[%s43 + $0x150] sm:$0xff]
    %v2065 = vld [vmem:[%s43 + $0x158] sm:$0xff]
    %v2066 = vld [vmem:[%s43 + $0x160] sm:$0xff]
    %v2067 = vld [vmem:[%s43 + $0x168] sm:$0xff]
    %v2068 = vld [vmem:[%s43 + $0x170] sm:$0xff]
    %v2069 = vld [vmem:[%s43 + $0x178] sm:$0xff]
    %v2070 = vld [vmem:[%s43 + $0x180] sm:$0xff]
    %v2071 = vld [vmem:[%s43 + $0x188] sm:$0xff]
    %v2072 = vld [vmem:[%s43 + $0x190] sm:$0xff]
    %v2073 = vld [vmem:[%s43 + $0x198] sm:$0xff]
    %v2074 = vld [vmem:[%s43 + $0x1a0] sm:$0xff]
    %v2075 = vld [vmem:[%s43 + $0x1a8] sm:$0xff]
    %v2076 = vld [vmem:[%s43 + $0x1b0] sm:$0xff]
    %v2077 = vld [vmem:[%s43 + $0x1b8] sm:$0xff]
    %v2078 = vld [vmem:[%s43 + $0x1c0] sm:$0xff]
    %v2079 = vld [vmem:[%s43 + $0x1c8] sm:$0xff]
    %v2080 = vld [vmem:[%s43 + $0x1d0] sm:$0xff]
    %v2081 = vld [vmem:[%s43 + $0x1d8] sm:$0xff]
    %v2082 = vld [vmem:[%s43 + $0x1e0] sm:$0xff]
    %v2083 = vld [vmem:[%s43 + $0x1e8] sm:$0xff]
    %v2084 = vld [vmem:[%s43 + $0x1f0] sm:$0xff]
    %v2085 = vld [vmem:[%s43 + $0x1f8] sm:$0xff]
    %2086 = vmatpush.msra.mxu0 %v2037
    %2087 = vmatpush.msra.mxu0 %v2036
    %2088 = vmatpush.msra.mxu0 %v2035
    %2089 = vmatpush.msra.mxu0 %v2034
    %2090 = vmatpush.msra.mxu0 %v2033
    %2091 = vmatpush.msra.mxu0 %v2032
    %2092 = vmatpush.msra.mxu0 %v2031
    %2093 = vmatpush.msra.mxu0 %v2030
    %2094 = vmatpush.msra.mxu0 %v2029
    %2095 = vmatpush.msra.mxu0 %v2028
    %2096 = vmatpush.msra.mxu0 %v2027
    %2097 = vmatpush.msra.mxu0 %v2026
    %2098 = vmatpush.msra.mxu0 %v2025
    %2099 = vmatpush.msra.mxu0 %v2024
    %2100 = vmatpush.msra.mxu0 %v2023
    %2101 = vmatpush.msra.mxu0 %v2022
    %2102 = vmatmul.f32.gmra.mxu0 %v2018
    %v2103 = vpop.f32.mrf.mxu0
    %v2104 = vadd.f32 0.0, %v2103
    %2105 = vdwg.mxu0
    %2106 = vmatpush.msra.mxu0 %v2053
    %2107 = vmatpush.msra.mxu0 %v2052
    %2108 = vmatpush.msra.mxu0 %v2051
    %2109 = vmatpush.msra.mxu0 %v2050
    %2110 = vmatpush.msra.mxu0 %v2049
    %2111 = vmatpush.msra.mxu0 %v2048
    %2112 = vmatpush.msra.mxu0 %v2047
    %2113 = vmatpush.msra.mxu0 %v2046
    %2114 = vmatpush.msra.mxu0 %v2045
    %2115 = vmatpush.msra.mxu0 %v2044
    %2116 = vmatpush.msra.mxu0 %v2043
    %2117 = vmatpush.msra.mxu0 %v2042
    %2118 = vmatpush.msra.mxu0 %v2041
    %2119 = vmatpush.msra.mxu0 %v2040
    %2120 = vmatpush.msra.mxu0 %v2039
    %2121 = vmatpush.msra.mxu0 %v2038
    %2122 = vmatmul.f32.gmra.mxu0 %v2019
    %v2123 = vpop.f32.mrf.mxu0
    %v2124 = vadd.f32 %v2104, %v2123
    %2125 = vdwg.mxu0
    %2126 = vmatpush.msra.mxu0 %v2069
    %2127 = vmatpush.msra.mxu0 %v2068
    %2128 = vmatpush.msra.mxu0 %v2067
    %2129 = vmatpush.msra.mxu0 %v2066
    %2130 = vmatpush.msra.mxu0 %v2065
    %2131 = vmatpush.msra.mxu0 %v2064
    %2132 = vmatpush.msra.mxu0 %v2063
    %2133 = vmatpush.msra.mxu0 %v2062
    %2134 = vmatpush.msra.mxu0 %v2061
    %2135 = vmatpush.msra.mxu0 %v2060
    %2136 = vmatpush.msra.mxu0 %v2059
    %2137 = vmatpush.msra.mxu0 %v2058
    %2138 = vmatpush.msra.mxu0 %v2057
    %2139 = vmatpush.msra.mxu0 %v2056
    %2140 = vmatpush.msra.mxu0 %v2055
    %2141 = vmatpush.msra.mxu0 %v2054
    %2142 = vmatmul.f32.gmra.mxu0 %v2020
    %v2143 = vpop.f32.mrf.mxu0
    %v2144 = vadd.f32 %v2124, %v2143
    %2145 = vdwg.mxu0
    %2146 = vmatpush.msra.mxu0 %v2085
    %2147 = vmatpush.msra.mxu0 %v2084
    %2148 = vmatpush.msra.mxu0 %v2083
    %2149 = vmatpush.msra.mxu0 %v2082
    %2150 = vmatpush.msra.mxu0 %v2081
    %2151 = vmatpush.msra.mxu0 %v2080
    %2152 = vmatpush.msra.mxu0 %v2079
    %2153 = vmatpush.msra.mxu0 %v2078
    %2154 = vmatpush.msra.mxu0 %v2077
    %2155 = vmatpush.msra.mxu0 %v2076
    %2156 = vmatpush.msra.mxu0 %v2075
    %2157 = vmatpush.msra.mxu0 %v2074
    %2158 = vmatpush.msra.mxu0 %v2073
    %2159 = vmatpush.msra.mxu0 %v2072
    %2160 = vmatpush.msra.mxu0 %v2071
    %2161 = vmatpush.msra.mxu0 %v2070
    %2162 = vmatmul.f32.gmra.mxu0 %v2021
    %v2163 = vpop.f32.mrf.mxu0
    %v2164 = vadd.f32 %v2144, %v2163
    %2165 = vdwg.mxu0
    %v2166 = vsub.f32 %v2164, %v1845
    %v2167 = vmul.f32 %v2166, %v2166
    %vm2168 = vcmask 254976
    %v2169 = vsel %vm2168, %v2167, 0.0
    %2170 = vadd.xlane.f32.xlu0 %v2169
    %v2171 = vpop.xlane.xlu0 %2170
    %v2172 = vmul.f32 %v2171, %v325
    %vm2173 = vcmp.eq.s32.totalorder %v237, 0
    %v2174 = vsel %vm2173, %v2009, 0
    %v2175 = vsel %vm2173, %v2172, 0.0
    %v2176 = vadd.f32 %v2164, 0.0
    %v2177 = vsub.f32 %v1845, %v2164
    %s2178 = scalar_lea.vmem %s45, 128
    %v2179 = vld [vmem:[%s2178] sm:$0xff]
    %v2180 = vld [vmem:[%s2178 + $0x8] sm:$0xff]
    %v2181 = vld [vmem:[%s2178 + $0x10] sm:$0xff]
    %v2182 = vld [vmem:[%s2178 + $0x18] sm:$0xff]
    %v2183 = vld [vmem:[%s2178 + $0x20] sm:$0xff]
    %v2184 = vld [vmem:[%s2178 + $0x28] sm:$0xff]
    %v2185 = vld [vmem:[%s2178 + $0x30] sm:$0xff]
    %v2186 = vld [vmem:[%s2178 + $0x38] sm:$0xff]
    %v2187 = vld [vmem:[%s2178 + $0x40] sm:$0xff]
    %v2188 = vld [vmem:[%s2178 + $0x48] sm:$0xff]
    %v2189 = vld [vmem:[%s2178 + $0x50] sm:$0xff]
    %v2190 = vld [vmem:[%s2178 + $0x58] sm:$0xff]
    %v2191 = vld [vmem:[%s2178 + $0x60] sm:$0xff]
    %v2192 = vld [vmem:[%s2178 + $0x68] sm:$0xff]
    %v2193 = vld [vmem:[%s2178 + $0x70] sm:$0xff]
    %v2194 = vld [vmem:[%s2178 + $0x78] sm:$0xff]
    %v2196 = vsel %vm281, %v2177, 0
    %2198 = vmatpush.msra.mxu0 0.0
    %2199 = vmatpush.msra.mxu0 0.0
    %2200 = vmatpush.msra.mxu0 0.0
    %2201 = vmatpush.msra.mxu0 0.0
    %2202 = vmatpush.msra.mxu0 0.0
    %2203 = vmatpush.msra.mxu0 0.0
    %2204 = vmatpush.msra.mxu0 0.0
    %2205 = vmatpush.msra.mxu0 0.0
    %2206 = vmatpush.msra.mxu0 0.0
    %2207 = vmatpush.msra.mxu0 0.0
    %2208 = vmatpush.msra.mxu0 0.0
    %2209 = vmatpush.msra.mxu0 0.0
    %2210 = vmatpush.msra.mxu0 %v2191
    %2211 = vmatpush.msra.mxu0 %v2187
    %2212 = vmatpush.msra.mxu0 %v2183
    %2213 = vmatpush.msra.mxu0 %v2179
    %2214 = vmatmul.f32.gmra.mxu0 %v2196
    %v2215 = vpop.f32.mrf.mxu0
    %v2216 = vadd.f32 0.0, %v2215
    %2217 = vdwg.mxu0
    %2218 = vmatpush.msra.mxu0 0.0
    %2219 = vmatpush.msra.mxu0 0.0
    %2220 = vmatpush.msra.mxu0 0.0
    %2221 = vmatpush.msra.mxu0 0.0
    %2222 = vmatpush.msra.mxu0 0.0
    %2223 = vmatpush.msra.mxu0 0.0
    %2224 = vmatpush.msra.mxu0 0.0
    %2225 = vmatpush.msra.mxu0 0.0
    %2226 = vmatpush.msra.mxu0 0.0
    %2227 = vmatpush.msra.mxu0 0.0
    %2228 = vmatpush.msra.mxu0 0.0
    %2229 = vmatpush.msra.mxu0 0.0
    %2230 = vmatpush.msra.mxu0 %v2192
    %2231 = vmatpush.msra.mxu0 %v2188
    %2232 = vmatpush.msra.mxu0 %v2184
    %2233 = vmatpush.msra.mxu0 %v2180
    %2234 = vmatmul.f32.gmra.mxu0 %v2196
    %v2235 = vpop.f32.mrf.mxu0
    %v2236 = vadd.f32 0.0, %v2235
    %2237 = vdwg.mxu0
    %2238 = vmatpush.msra.mxu0 0.0
    %2239 = vmatpush.msra.mxu0 0.0
    %2240 = vmatpush.msra.mxu0 0.0
    %2241 = vmatpush.msra.mxu0 0.0
    %2242 = vmatpush.msra.mxu0 0.0
    %2243 = vmatpush.msra.mxu0 0.0
    %2244 = vmatpush.msra.mxu0 0.0
    %2245 = vmatpush.msra.mxu0 0.0
    %2246 = vmatpush.msra.mxu0 0.0
    %2247 = vmatpush.msra.mxu0 0.0
    %2248 = vmatpush.msra.mxu0 0.0
    %2249 = vmatpush.msra.mxu0 0.0
    %2250 = vmatpush.msra.mxu0 %v2193
    %2251 = vmatpush.msra.mxu0 %v2189
    %2252 = vmatpush.msra.mxu0 %v2185
    %2253 = vmatpush.msra.mxu0 %v2181
    %2254 = vmatmul.f32.gmra.mxu0 %v2196
    %v2255 = vpop.f32.mrf.mxu0
    %v2256 = vadd.f32 0.0, %v2255
    %2257 = vdwg.mxu0
    %2258 = vmatpush.msra.mxu0 0.0
    %2259 = vmatpush.msra.mxu0 0.0
    %2260 = vmatpush.msra.mxu0 0.0
    %2261 = vmatpush.msra.mxu0 0.0
    %2262 = vmatpush.msra.mxu0 0.0
    %2263 = vmatpush.msra.mxu0 0.0
    %2264 = vmatpush.msra.mxu0 0.0
    %2265 = vmatpush.msra.mxu0 0.0
    %2266 = vmatpush.msra.mxu0 0.0
    %2267 = vmatpush.msra.mxu0 0.0
    %2268 = vmatpush.msra.mxu0 0.0
    %2269 = vmatpush.msra.mxu0 0.0
    %2270 = vmatpush.msra.mxu0 %v2194
    %2271 = vmatpush.msra.mxu0 %v2190
    %2272 = vmatpush.msra.mxu0 %v2186
    %2273 = vmatpush.msra.mxu0 %v2182
    %2274 = vmatmul.f32.gmra.mxu0 %v2196
    %v2275 = vpop.f32.mrf.mxu0
    %v2276 = vadd.f32 0.0, %v2275
    %2277 = vdwg.mxu0
    %s2278 = scalar_lea.vmem %s47, 4
    %v2279 = vld [vmem:[%s2278] sm:$0xf]
    %v2280 = vmul.f32 %v2216, 2.0
    %v2281 = vmul.f32 %v2236, 2.0
    %v2282 = vmul.f32 %v2256, 2.0
    %v2283 = vmul.f32 %v2276, 2.0
    %v2285 = vperm.slane %v2279, 0
    %v2286 = vperm.slane %v2279, 1
    %v2287 = vperm.slane %v2279, 2
    %v2288 = vperm.slane %v2279, 3
    %v2293 = vsub.f32 %v2285, %v2280
    %v2294 = vsub.f32 %v2286, %v2281
    %v2295 = vsub.f32 %v2287, %v2282
    %v2296 = vsub.f32 %v2288, %v2283
    %v2297 = vsel %vm1968, %v2293, inf
    %v2298 = vsel %vm1968, %v2294, inf
    %v2299 = vsel %vm1968, %v2295, inf
    %v2300 = vsel %vm1968, %v2296, inf
    %v2301 = vmin.f32 %v2297, %v2298
    %v2302 = vmin.f32 %v2299, %v2300
    %v2303 = vmin.f32 %v2301, %v2302
    %2304 = vmin.xlane.f32.xlu0 %v2303
    %v2305 = vpop.xlane.xlu0 %2304
    %vm2306 = vcmp.eq.f32.partialorder %v2293, %v2305
    %vm2307 = vcmp.eq.f32.partialorder %v2294, %v2305
    %vm2308 = vcmp.eq.f32.partialorder %v2295, %v2305
    %vm2309 = vcmp.eq.f32.partialorder %v2296, %v2305
    %v2310 = vsel %vm2306, %v237, 512
    %v2311 = vsel %vm2307, %v1848, 512
    %v2312 = vsel %vm2308, %v1849, 512
    %v2313 = vsel %vm2309, %v1850, 512
    %v2314 = vsel %vm1968, %v2310, 2147483647
    %v2315 = vsel %vm1968, %v2311, 2147483647
    %v2316 = vsel %vm1968, %v2312, 2147483647
    %v2317 = vsel %vm1968, %v2313, 2147483647
    %vm2318 = vcmp.lt.s32.totalorder %v2314, %v2315
    %v2319 = vsel %vm2318, %v2314, %v2315
    %vm2320 = vcmp.lt.s32.totalorder %v2316, %v2317
    %v2321 = vsel %vm2320, %v2316, %v2317
    %vm2322 = vcmp.lt.s32.totalorder %v2319, %v2321
    %v2323 = vsel %vm2322, %v2319, %v2321
    %v2324 = vand.u32 %v2323, 65535
    %v2325 = vshra.s32 %v2323, 16
    %v2326 = vcvt.s32.f32 %v2324
    %v2327 = vcvt.s32.f32 %v2325
    %2328 = vmin.xlane.f32.xlu0 %v2327
    %v2329 = vpop.xlane.xlu0 %2328
    %vm2330 = vcmp.eq.f32.partialorder %v2327, %v2329
    %v2331 = vsel %vm2330, %v2326, inf
    %2332 = vmin.xlane.f32.xlu0 %v2331
    %v2333 = vpop.xlane.xlu0 %2332
    %v2334 = vcvt.f32.s32 %v2333
    %v2335 = vcvt.f32.s32 %v2329
    %v2336 = vshll.u32 %v2335, 16
    %v2337 = vadd.s32 %v2336, %v2334
    %vm2338 = vcmp.eq.s32.totalorder %v237, %v2337
    %vm2339 = vcmp.eq.s32.totalorder %v1848, %v2337
    %vm2340 = vcmp.eq.s32.totalorder %v1849, %v2337
    %vm2341 = vcmp.eq.s32.totalorder %v1850, %v2337
    %v2342 = vsel %vm2338, 1, 0
    %v2343 = vsel %vm2339, 1, 0
    %v2344 = vsel %vm2340, 1, 0
    %v2345 = vsel %vm2341, 1, 0
    %v2346 = vcvt.s32.f32 %v2342
    %v2347 = vcvt.s32.f32 %v2343
    %v2348 = vcvt.s32.f32 %v2344
    %v2349 = vcvt.s32.f32 %v2345
    %s2350 = scalar_lea.vmem %s43, 512
    %v2351 = vld [vmem:[%s2350] sm:$0xff]
    %v2352 = vld [vmem:[%s2350 + $0x8] sm:$0xff]
    %v2353 = vld [vmem:[%s2350 + $0x10] sm:$0xff]
    %v2354 = vld [vmem:[%s2350 + $0x18] sm:$0xff]
    %v2355 = vld [vmem:[%s2350 + $0x20] sm:$0xff]
    %v2356 = vld [vmem:[%s2350 + $0x28] sm:$0xff]
    %v2357 = vld [vmem:[%s2350 + $0x30] sm:$0xff]
    %v2358 = vld [vmem:[%s2350 + $0x38] sm:$0xff]
    %v2359 = vld [vmem:[%s2350 + $0x40] sm:$0xff]
    %v2360 = vld [vmem:[%s2350 + $0x48] sm:$0xff]
    %v2361 = vld [vmem:[%s2350 + $0x50] sm:$0xff]
    %v2362 = vld [vmem:[%s2350 + $0x58] sm:$0xff]
    %v2363 = vld [vmem:[%s2350 + $0x60] sm:$0xff]
    %v2364 = vld [vmem:[%s2350 + $0x68] sm:$0xff]
    %v2365 = vld [vmem:[%s2350 + $0x70] sm:$0xff]
    %v2366 = vld [vmem:[%s2350 + $0x78] sm:$0xff]
    %v2367 = vld [vmem:[%s2350 + $0x80] sm:$0xff]
    %v2368 = vld [vmem:[%s2350 + $0x88] sm:$0xff]
    %v2369 = vld [vmem:[%s2350 + $0x90] sm:$0xff]
    %v2370 = vld [vmem:[%s2350 + $0x98] sm:$0xff]
    %v2371 = vld [vmem:[%s2350 + $0xa0] sm:$0xff]
    %v2372 = vld [vmem:[%s2350 + $0xa8] sm:$0xff]
    %v2373 = vld [vmem:[%s2350 + $0xb0] sm:$0xff]
    %v2374 = vld [vmem:[%s2350 + $0xb8] sm:$0xff]
    %v2375 = vld [vmem:[%s2350 + $0xc0] sm:$0xff]
    %v2376 = vld [vmem:[%s2350 + $0xc8] sm:$0xff]
    %v2377 = vld [vmem:[%s2350 + $0xd0] sm:$0xff]
    %v2378 = vld [vmem:[%s2350 + $0xd8] sm:$0xff]
    %v2379 = vld [vmem:[%s2350 + $0xe0] sm:$0xff]
    %v2380 = vld [vmem:[%s2350 + $0xe8] sm:$0xff]
    %v2381 = vld [vmem:[%s2350 + $0xf0] sm:$0xff]
    %v2382 = vld [vmem:[%s2350 + $0xf8] sm:$0xff]
    %v2383 = vld [vmem:[%s2350 + $0x100] sm:$0xff]
    %v2384 = vld [vmem:[%s2350 + $0x108] sm:$0xff]
    %v2385 = vld [vmem:[%s2350 + $0x110] sm:$0xff]
    %v2386 = vld [vmem:[%s2350 + $0x118] sm:$0xff]
    %v2387 = vld [vmem:[%s2350 + $0x120] sm:$0xff]
    %v2388 = vld [vmem:[%s2350 + $0x128] sm:$0xff]
    %v2389 = vld [vmem:[%s2350 + $0x130] sm:$0xff]
    %v2390 = vld [vmem:[%s2350 + $0x138] sm:$0xff]
    %v2391 = vld [vmem:[%s2350 + $0x140] sm:$0xff]
    %v2392 = vld [vmem:[%s2350 + $0x148] sm:$0xff]
    %v2393 = vld [vmem:[%s2350 + $0x150] sm:$0xff]
    %v2394 = vld [vmem:[%s2350 + $0x158] sm:$0xff]
    %v2395 = vld [vmem:[%s2350 + $0x160] sm:$0xff]
    %v2396 = vld [vmem:[%s2350 + $0x168] sm:$0xff]
    %v2397 = vld [vmem:[%s2350 + $0x170] sm:$0xff]
    %v2398 = vld [vmem:[%s2350 + $0x178] sm:$0xff]
    %v2399 = vld [vmem:[%s2350 + $0x180] sm:$0xff]
    %v2400 = vld [vmem:[%s2350 + $0x188] sm:$0xff]
    %v2401 = vld [vmem:[%s2350 + $0x190] sm:$0xff]
    %v2402 = vld [vmem:[%s2350 + $0x198] sm:$0xff]
    %v2403 = vld [vmem:[%s2350 + $0x1a0] sm:$0xff]
    %v2404 = vld [vmem:[%s2350 + $0x1a8] sm:$0xff]
    %v2405 = vld [vmem:[%s2350 + $0x1b0] sm:$0xff]
    %v2406 = vld [vmem:[%s2350 + $0x1b8] sm:$0xff]
    %v2407 = vld [vmem:[%s2350 + $0x1c0] sm:$0xff]
    %v2408 = vld [vmem:[%s2350 + $0x1c8] sm:$0xff]
    %v2409 = vld [vmem:[%s2350 + $0x1d0] sm:$0xff]
    %v2410 = vld [vmem:[%s2350 + $0x1d8] sm:$0xff]
    %v2411 = vld [vmem:[%s2350 + $0x1e0] sm:$0xff]
    %v2412 = vld [vmem:[%s2350 + $0x1e8] sm:$0xff]
    %v2413 = vld [vmem:[%s2350 + $0x1f0] sm:$0xff]
    %v2414 = vld [vmem:[%s2350 + $0x1f8] sm:$0xff]
    %2415 = vmatpush.msra.mxu0 %v2366
    %2416 = vmatpush.msra.mxu0 %v2365
    %2417 = vmatpush.msra.mxu0 %v2364
    %2418 = vmatpush.msra.mxu0 %v2363
    %2419 = vmatpush.msra.mxu0 %v2362
    %2420 = vmatpush.msra.mxu0 %v2361
    %2421 = vmatpush.msra.mxu0 %v2360
    %2422 = vmatpush.msra.mxu0 %v2359
    %2423 = vmatpush.msra.mxu0 %v2358
    %2424 = vmatpush.msra.mxu0 %v2357
    %2425 = vmatpush.msra.mxu0 %v2356
    %2426 = vmatpush.msra.mxu0 %v2355
    %2427 = vmatpush.msra.mxu0 %v2354
    %2428 = vmatpush.msra.mxu0 %v2353
    %2429 = vmatpush.msra.mxu0 %v2352
    %2430 = vmatpush.msra.mxu0 %v2351
    %2431 = vmatmul.f32.gmra.mxu0 %v2346
    %v2432 = vpop.f32.mrf.mxu0
    %v2433 = vadd.f32 0.0, %v2432
    %2434 = vdwg.mxu0
    %2435 = vmatpush.msra.mxu0 %v2382
    %2436 = vmatpush.msra.mxu0 %v2381
    %2437 = vmatpush.msra.mxu0 %v2380
    %2438 = vmatpush.msra.mxu0 %v2379
    %2439 = vmatpush.msra.mxu0 %v2378
    %2440 = vmatpush.msra.mxu0 %v2377
    %2441 = vmatpush.msra.mxu0 %v2376
    %2442 = vmatpush.msra.mxu0 %v2375
    %2443 = vmatpush.msra.mxu0 %v2374
    %2444 = vmatpush.msra.mxu0 %v2373
    %2445 = vmatpush.msra.mxu0 %v2372
    %2446 = vmatpush.msra.mxu0 %v2371
    %2447 = vmatpush.msra.mxu0 %v2370
    %2448 = vmatpush.msra.mxu0 %v2369
    %2449 = vmatpush.msra.mxu0 %v2368
    %2450 = vmatpush.msra.mxu0 %v2367
    %2451 = vmatmul.f32.gmra.mxu0 %v2347
    %v2452 = vpop.f32.mrf.mxu0
    %v2453 = vadd.f32 %v2433, %v2452
    %2454 = vdwg.mxu0
    %2455 = vmatpush.msra.mxu0 %v2398
    %2456 = vmatpush.msra.mxu0 %v2397
    %2457 = vmatpush.msra.mxu0 %v2396
    %2458 = vmatpush.msra.mxu0 %v2395
    %2459 = vmatpush.msra.mxu0 %v2394
    %2460 = vmatpush.msra.mxu0 %v2393
    %2461 = vmatpush.msra.mxu0 %v2392
    %2462 = vmatpush.msra.mxu0 %v2391
    %2463 = vmatpush.msra.mxu0 %v2390
    %2464 = vmatpush.msra.mxu0 %v2389
    %2465 = vmatpush.msra.mxu0 %v2388
    %2466 = vmatpush.msra.mxu0 %v2387
    %2467 = vmatpush.msra.mxu0 %v2386
    %2468 = vmatpush.msra.mxu0 %v2385
    %2469 = vmatpush.msra.mxu0 %v2384
    %2470 = vmatpush.msra.mxu0 %v2383
    %2471 = vmatmul.f32.gmra.mxu0 %v2348
    %v2472 = vpop.f32.mrf.mxu0
    %v2473 = vadd.f32 %v2453, %v2472
    %2474 = vdwg.mxu0
    %2475 = vmatpush.msra.mxu0 %v2414
    %2476 = vmatpush.msra.mxu0 %v2413
    %2477 = vmatpush.msra.mxu0 %v2412
    %2478 = vmatpush.msra.mxu0 %v2411
    %2479 = vmatpush.msra.mxu0 %v2410
    %2480 = vmatpush.msra.mxu0 %v2409
    %2481 = vmatpush.msra.mxu0 %v2408
    %2482 = vmatpush.msra.mxu0 %v2407
    %2483 = vmatpush.msra.mxu0 %v2406
    %2484 = vmatpush.msra.mxu0 %v2405
    %2485 = vmatpush.msra.mxu0 %v2404
    %2486 = vmatpush.msra.mxu0 %v2403
    %2487 = vmatpush.msra.mxu0 %v2402
    %2488 = vmatpush.msra.mxu0 %v2401
    %2489 = vmatpush.msra.mxu0 %v2400
    %2490 = vmatpush.msra.mxu0 %v2399
    %2491 = vmatmul.f32.gmra.mxu0 %v2349
    %v2492 = vpop.f32.mrf.mxu0
    %v2493 = vadd.f32 %v2473, %v2492
    %2494 = vdwg.mxu0
    %v2495 = vsub.f32 %v2493, %v2177
    %v2496 = vmul.f32 %v2495, %v2495
    %v2497 = vsel %vm2168, %v2496, 0.0
    %2498 = vadd.xlane.f32.xlu0 %v2497
    %v2499 = vpop.xlane.xlu0 %2498
    %v2500 = vmul.f32 %v2499, %v325
    %vm2501 = vcmp.eq.s32.totalorder %v237, 1
    %v2502 = vsel %vm2501, %v2337, %v2174
    %v2503 = vsel %vm2501, %v2500, %v2175
    %v2504 = vadd.f32 %v2176, %v2493
    %v2505 = vsub.f32 %v2177, %v2493
    %s2506 = scalar_lea.vmem %s45, 256
    %v2507 = vld [vmem:[%s2506] sm:$0xff]
    %v2508 = vld [vmem:[%s2506 + $0x8] sm:$0xff]
    %v2509 = vld [vmem:[%s2506 + $0x10] sm:$0xff]
    %v2510 = vld [vmem:[%s2506 + $0x18] sm:$0xff]
    %v2511 = vld [vmem:[%s2506 + $0x20] sm:$0xff]
    %v2512 = vld [vmem:[%s2506 + $0x28] sm:$0xff]
    %v2513 = vld [vmem:[%s2506 + $0x30] sm:$0xff]
    %v2514 = vld [vmem:[%s2506 + $0x38] sm:$0xff]
    %v2515 = vld [vmem:[%s2506 + $0x40] sm:$0xff]
    %v2516 = vld [vmem:[%s2506 + $0x48] sm:$0xff]
    %v2517 = vld [vmem:[%s2506 + $0x50] sm:$0xff]
    %v2518 = vld [vmem:[%s2506 + $0x58] sm:$0xff]
    %v2519 = vld [vmem:[%s2506 + $0x60] sm:$0xff]
    %v2520 = vld [vmem:[%s2506 + $0x68] sm:$0xff]
    %v2521 = vld [vmem:[%s2506 + $0x70] sm:$0xff]
    %v2522 = vld [vmem:[%s2506 + $0x78] sm:$0xff]
    %v2524 = vsel %vm281, %v2505, 0
    %2526 = vmatpush.msra.mxu0 0.0
    %2527 = vmatpush.msra.mxu0 0.0
    %2528 = vmatpush.msra.mxu0 0.0
    %2529 = vmatpush.msra.mxu0 0.0
    %2530 = vmatpush.msra.mxu0 0.0
    %2531 = vmatpush.msra.mxu0 0.0
    %2532 = vmatpush.msra.mxu0 0.0
    %2533 = vmatpush.msra.mxu0 0.0
    %2534 = vmatpush.msra.mxu0 0.0
    %2535 = vmatpush.msra.mxu0 0.0
    %2536 = vmatpush.msra.mxu0 0.0
    %2537 = vmatpush.msra.mxu0 0.0
    %2538 = vmatpush.msra.mxu0 %v2519
    %2539 = vmatpush.msra.mxu0 %v2515
    %2540 = vmatpush.msra.mxu0 %v2511
    %2541 = vmatpush.msra.mxu0 %v2507
    %2542 = vmatmul.f32.gmra.mxu0 %v2524
    %v2543 = vpop.f32.mrf.mxu0
    %v2544 = vadd.f32 0.0, %v2543
    %2545 = vdwg.mxu0
    %2546 = vmatpush.msra.mxu0 0.0
    %2547 = vmatpush.msra.mxu0 0.0
    %2548 = vmatpush.msra.mxu0 0.0
    %2549 = vmatpush.msra.mxu0 0.0
    %2550 = vmatpush.msra.mxu0 0.0
    %2551 = vmatpush.msra.mxu0 0.0
    %2552 = vmatpush.msra.mxu0 0.0
    %2553 = vmatpush.msra.mxu0 0.0
    %2554 = vmatpush.msra.mxu0 0.0
    %2555 = vmatpush.msra.mxu0 0.0
    %2556 = vmatpush.msra.mxu0 0.0
    %2557 = vmatpush.msra.mxu0 0.0
    %2558 = vmatpush.msra.mxu0 %v2520
    %2559 = vmatpush.msra.mxu0 %v2516
    %2560 = vmatpush.msra.mxu0 %v2512
    %2561 = vmatpush.msra.mxu0 %v2508
    %2562 = vmatmul.f32.gmra.mxu0 %v2524
    %v2563 = vpop.f32.mrf.mxu0
    %v2564 = vadd.f32 0.0, %v2563
    %2565 = vdwg.mxu0
    %2566 = vmatpush.msra.mxu0 0.0
    %2567 = vmatpush.msra.mxu0 0.0
    %2568 = vmatpush.msra.mxu0 0.0
    %2569 = vmatpush.msra.mxu0 0.0
    %2570 = vmatpush.msra.mxu0 0.0
    %2571 = vmatpush.msra.mxu0 0.0
    %2572 = vmatpush.msra.mxu0 0.0
    %2573 = vmatpush.msra.mxu0 0.0
    %2574 = vmatpush.msra.mxu0 0.0
    %2575 = vmatpush.msra.mxu0 0.0
    %2576 = vmatpush.msra.mxu0 0.0
    %2577 = vmatpush.msra.mxu0 0.0
    %2578 = vmatpush.msra.mxu0 %v2521
    %2579 = vmatpush.msra.mxu0 %v2517
    %2580 = vmatpush.msra.mxu0 %v2513
    %2581 = vmatpush.msra.mxu0 %v2509
    %2582 = vmatmul.f32.gmra.mxu0 %v2524
    %v2583 = vpop.f32.mrf.mxu0
    %v2584 = vadd.f32 0.0, %v2583
    %2585 = vdwg.mxu0
    %2586 = vmatpush.msra.mxu0 0.0
    %2587 = vmatpush.msra.mxu0 0.0
    %2588 = vmatpush.msra.mxu0 0.0
    %2589 = vmatpush.msra.mxu0 0.0
    %2590 = vmatpush.msra.mxu0 0.0
    %2591 = vmatpush.msra.mxu0 0.0
    %2592 = vmatpush.msra.mxu0 0.0
    %2593 = vmatpush.msra.mxu0 0.0
    %2594 = vmatpush.msra.mxu0 0.0
    %2595 = vmatpush.msra.mxu0 0.0
    %2596 = vmatpush.msra.mxu0 0.0
    %2597 = vmatpush.msra.mxu0 0.0
    %2598 = vmatpush.msra.mxu0 %v2522
    %2599 = vmatpush.msra.mxu0 %v2518
    %2600 = vmatpush.msra.mxu0 %v2514
    %2601 = vmatpush.msra.mxu0 %v2510
    %2602 = vmatmul.f32.gmra.mxu0 %v2524
    %v2603 = vpop.f32.mrf.mxu0
    %v2604 = vadd.f32 0.0, %v2603
    %2605 = vdwg.mxu0
    %s2606 = scalar_lea.vmem %s47, 8
    %v2607 = vld [vmem:[%s2606] sm:$0xf]
    %v2608 = vmul.f32 %v2544, 2.0
    %v2609 = vmul.f32 %v2564, 2.0
    %v2610 = vmul.f32 %v2584, 2.0
    %v2611 = vmul.f32 %v2604, 2.0
    %v2613 = vperm.slane %v2607, 0
    %v2614 = vperm.slane %v2607, 1
    %v2615 = vperm.slane %v2607, 2
    %v2616 = vperm.slane %v2607, 3
    %v2621 = vsub.f32 %v2613, %v2608
    %v2622 = vsub.f32 %v2614, %v2609
    %v2623 = vsub.f32 %v2615, %v2610
    %v2624 = vsub.f32 %v2616, %v2611
    %v2625 = vsel %vm1968, %v2621, inf
    %v2626 = vsel %vm1968, %v2622, inf
    %v2627 = vsel %vm1968, %v2623, inf
    %v2628 = vsel %vm1968, %v2624, inf
    %v2629 = vmin.f32 %v2625, %v2626
    %v2630 = vmin.f32 %v2627, %v2628
    %v2631 = vmin.f32 %v2629, %v2630
    %2632 = vmin.xlane.f32.xlu0 %v2631
    %v2633 = vpop.xlane.xlu0 %2632
    %vm2634 = vcmp.eq.f32.partialorder %v2621, %v2633
    %vm2635 = vcmp.eq.f32.partialorder %v2622, %v2633
    %vm2636 = vcmp.eq.f32.partialorder %v2623, %v2633
    %vm2637 = vcmp.eq.f32.partialorder %v2624, %v2633
    %v2638 = vsel %vm2634, %v237, 512
    %v2639 = vsel %vm2635, %v1848, 512
    %v2640 = vsel %vm2636, %v1849, 512
    %v2641 = vsel %vm2637, %v1850, 512
    %v2642 = vsel %vm1968, %v2638, 2147483647
    %v2643 = vsel %vm1968, %v2639, 2147483647
    %v2644 = vsel %vm1968, %v2640, 2147483647
    %v2645 = vsel %vm1968, %v2641, 2147483647
    %vm2646 = vcmp.lt.s32.totalorder %v2642, %v2643
    %v2647 = vsel %vm2646, %v2642, %v2643
    %vm2648 = vcmp.lt.s32.totalorder %v2644, %v2645
    %v2649 = vsel %vm2648, %v2644, %v2645
    %vm2650 = vcmp.lt.s32.totalorder %v2647, %v2649
    %v2651 = vsel %vm2650, %v2647, %v2649
    %v2652 = vand.u32 %v2651, 65535
    %v2653 = vshra.s32 %v2651, 16
    %v2654 = vcvt.s32.f32 %v2652
    %v2655 = vcvt.s32.f32 %v2653
    %2656 = vmin.xlane.f32.xlu0 %v2655
    %v2657 = vpop.xlane.xlu0 %2656
    %vm2658 = vcmp.eq.f32.partialorder %v2655, %v2657
    %v2659 = vsel %vm2658, %v2654, inf
    %2660 = vmin.xlane.f32.xlu0 %v2659
    %v2661 = vpop.xlane.xlu0 %2660
    %v2662 = vcvt.f32.s32 %v2661
    %v2663 = vcvt.f32.s32 %v2657
    %v2664 = vshll.u32 %v2663, 16
    %v2665 = vadd.s32 %v2664, %v2662
    %vm2666 = vcmp.eq.s32.totalorder %v237, %v2665
    %vm2667 = vcmp.eq.s32.totalorder %v1848, %v2665
    %vm2668 = vcmp.eq.s32.totalorder %v1849, %v2665
    %vm2669 = vcmp.eq.s32.totalorder %v1850, %v2665
    %v2670 = vsel %vm2666, 1, 0
    %v2671 = vsel %vm2667, 1, 0
    %v2672 = vsel %vm2668, 1, 0
    %v2673 = vsel %vm2669, 1, 0
    %v2674 = vcvt.s32.f32 %v2670
    %v2675 = vcvt.s32.f32 %v2671
    %v2676 = vcvt.s32.f32 %v2672
    %v2677 = vcvt.s32.f32 %v2673
    %s2678 = scalar_lea.vmem %s43, 1024
    %v2679 = vld [vmem:[%s2678] sm:$0xff]
    %v2680 = vld [vmem:[%s2678 + $0x8] sm:$0xff]
    %v2681 = vld [vmem:[%s2678 + $0x10] sm:$0xff]
    %v2682 = vld [vmem:[%s2678 + $0x18] sm:$0xff]
    %v2683 = vld [vmem:[%s2678 + $0x20] sm:$0xff]
    %v2684 = vld [vmem:[%s2678 + $0x28] sm:$0xff]
    %v2685 = vld [vmem:[%s2678 + $0x30] sm:$0xff]
    %v2686 = vld [vmem:[%s2678 + $0x38] sm:$0xff]
    %v2687 = vld [vmem:[%s2678 + $0x40] sm:$0xff]
    %v2688 = vld [vmem:[%s2678 + $0x48] sm:$0xff]
    %v2689 = vld [vmem:[%s2678 + $0x50] sm:$0xff]
    %v2690 = vld [vmem:[%s2678 + $0x58] sm:$0xff]
    %v2691 = vld [vmem:[%s2678 + $0x60] sm:$0xff]
    %v2692 = vld [vmem:[%s2678 + $0x68] sm:$0xff]
    %v2693 = vld [vmem:[%s2678 + $0x70] sm:$0xff]
    %v2694 = vld [vmem:[%s2678 + $0x78] sm:$0xff]
    %v2695 = vld [vmem:[%s2678 + $0x80] sm:$0xff]
    %v2696 = vld [vmem:[%s2678 + $0x88] sm:$0xff]
    %v2697 = vld [vmem:[%s2678 + $0x90] sm:$0xff]
    %v2698 = vld [vmem:[%s2678 + $0x98] sm:$0xff]
    %v2699 = vld [vmem:[%s2678 + $0xa0] sm:$0xff]
    %v2700 = vld [vmem:[%s2678 + $0xa8] sm:$0xff]
    %v2701 = vld [vmem:[%s2678 + $0xb0] sm:$0xff]
    %v2702 = vld [vmem:[%s2678 + $0xb8] sm:$0xff]
    %v2703 = vld [vmem:[%s2678 + $0xc0] sm:$0xff]
    %v2704 = vld [vmem:[%s2678 + $0xc8] sm:$0xff]
    %v2705 = vld [vmem:[%s2678 + $0xd0] sm:$0xff]
    %v2706 = vld [vmem:[%s2678 + $0xd8] sm:$0xff]
    %v2707 = vld [vmem:[%s2678 + $0xe0] sm:$0xff]
    %v2708 = vld [vmem:[%s2678 + $0xe8] sm:$0xff]
    %v2709 = vld [vmem:[%s2678 + $0xf0] sm:$0xff]
    %v2710 = vld [vmem:[%s2678 + $0xf8] sm:$0xff]
    %v2711 = vld [vmem:[%s2678 + $0x100] sm:$0xff]
    %v2712 = vld [vmem:[%s2678 + $0x108] sm:$0xff]
    %v2713 = vld [vmem:[%s2678 + $0x110] sm:$0xff]
    %v2714 = vld [vmem:[%s2678 + $0x118] sm:$0xff]
    %v2715 = vld [vmem:[%s2678 + $0x120] sm:$0xff]
    %v2716 = vld [vmem:[%s2678 + $0x128] sm:$0xff]
    %v2717 = vld [vmem:[%s2678 + $0x130] sm:$0xff]
    %v2718 = vld [vmem:[%s2678 + $0x138] sm:$0xff]
    %v2719 = vld [vmem:[%s2678 + $0x140] sm:$0xff]
    %v2720 = vld [vmem:[%s2678 + $0x148] sm:$0xff]
    %v2721 = vld [vmem:[%s2678 + $0x150] sm:$0xff]
    %v2722 = vld [vmem:[%s2678 + $0x158] sm:$0xff]
    %v2723 = vld [vmem:[%s2678 + $0x160] sm:$0xff]
    %v2724 = vld [vmem:[%s2678 + $0x168] sm:$0xff]
    %v2725 = vld [vmem:[%s2678 + $0x170] sm:$0xff]
    %v2726 = vld [vmem:[%s2678 + $0x178] sm:$0xff]
    %v2727 = vld [vmem:[%s2678 + $0x180] sm:$0xff]
    %v2728 = vld [vmem:[%s2678 + $0x188] sm:$0xff]
    %v2729 = vld [vmem:[%s2678 + $0x190] sm:$0xff]
    %v2730 = vld [vmem:[%s2678 + $0x198] sm:$0xff]
    %v2731 = vld [vmem:[%s2678 + $0x1a0] sm:$0xff]
    %v2732 = vld [vmem:[%s2678 + $0x1a8] sm:$0xff]
    %v2733 = vld [vmem:[%s2678 + $0x1b0] sm:$0xff]
    %v2734 = vld [vmem:[%s2678 + $0x1b8] sm:$0xff]
    %v2735 = vld [vmem:[%s2678 + $0x1c0] sm:$0xff]
    %v2736 = vld [vmem:[%s2678 + $0x1c8] sm:$0xff]
    %v2737 = vld [vmem:[%s2678 + $0x1d0] sm:$0xff]
    %v2738 = vld [vmem:[%s2678 + $0x1d8] sm:$0xff]
    %v2739 = vld [vmem:[%s2678 + $0x1e0] sm:$0xff]
    %v2740 = vld [vmem:[%s2678 + $0x1e8] sm:$0xff]
    %v2741 = vld [vmem:[%s2678 + $0x1f0] sm:$0xff]
    %v2742 = vld [vmem:[%s2678 + $0x1f8] sm:$0xff]
    %2743 = vmatpush.msra.mxu0 %v2694
    %2744 = vmatpush.msra.mxu0 %v2693
    %2745 = vmatpush.msra.mxu0 %v2692
    %2746 = vmatpush.msra.mxu0 %v2691
    %2747 = vmatpush.msra.mxu0 %v2690
    %2748 = vmatpush.msra.mxu0 %v2689
    %2749 = vmatpush.msra.mxu0 %v2688
    %2750 = vmatpush.msra.mxu0 %v2687
    %2751 = vmatpush.msra.mxu0 %v2686
    %2752 = vmatpush.msra.mxu0 %v2685
    %2753 = vmatpush.msra.mxu0 %v2684
    %2754 = vmatpush.msra.mxu0 %v2683
    %2755 = vmatpush.msra.mxu0 %v2682
    %2756 = vmatpush.msra.mxu0 %v2681
    %2757 = vmatpush.msra.mxu0 %v2680
    %2758 = vmatpush.msra.mxu0 %v2679
    %2759 = vmatmul.f32.gmra.mxu0 %v2674
    %v2760 = vpop.f32.mrf.mxu0
    %v2761 = vadd.f32 0.0, %v2760
    %2762 = vdwg.mxu0
    %2763 = vmatpush.msra.mxu0 %v2710
    %2764 = vmatpush.msra.mxu0 %v2709
    %2765 = vmatpush.msra.mxu0 %v2708
    %2766 = vmatpush.msra.mxu0 %v2707
    %2767 = vmatpush.msra.mxu0 %v2706
    %2768 = vmatpush.msra.mxu0 %v2705
    %2769 = vmatpush.msra.mxu0 %v2704
    %2770 = vmatpush.msra.mxu0 %v2703
    %2771 = vmatpush.msra.mxu0 %v2702
    %2772 = vmatpush.msra.mxu0 %v2701
    %2773 = vmatpush.msra.mxu0 %v2700
    %2774 = vmatpush.msra.mxu0 %v2699
    %2775 = vmatpush.msra.mxu0 %v2698
    %2776 = vmatpush.msra.mxu0 %v2697
    %2777 = vmatpush.msra.mxu0 %v2696
    %2778 = vmatpush.msra.mxu0 %v2695
    %2779 = vmatmul.f32.gmra.mxu0 %v2675
    %v2780 = vpop.f32.mrf.mxu0
    %v2781 = vadd.f32 %v2761, %v2780
    %2782 = vdwg.mxu0
    %2783 = vmatpush.msra.mxu0 %v2726
    %2784 = vmatpush.msra.mxu0 %v2725
    %2785 = vmatpush.msra.mxu0 %v2724
    %2786 = vmatpush.msra.mxu0 %v2723
    %2787 = vmatpush.msra.mxu0 %v2722
    %2788 = vmatpush.msra.mxu0 %v2721
    %2789 = vmatpush.msra.mxu0 %v2720
    %2790 = vmatpush.msra.mxu0 %v2719
    %2791 = vmatpush.msra.mxu0 %v2718
    %2792 = vmatpush.msra.mxu0 %v2717
    %2793 = vmatpush.msra.mxu0 %v2716
    %2794 = vmatpush.msra.mxu0 %v2715
    %2795 = vmatpush.msra.mxu0 %v2714
    %2796 = vmatpush.msra.mxu0 %v2713
    %2797 = vmatpush.msra.mxu0 %v2712
    %2798 = vmatpush.msra.mxu0 %v2711
    %2799 = vmatmul.f32.gmra.mxu0 %v2676
    %v2800 = vpop.f32.mrf.mxu0
    %v2801 = vadd.f32 %v2781, %v2800
    %2802 = vdwg.mxu0
    %2803 = vmatpush.msra.mxu0 %v2742
    %2804 = vmatpush.msra.mxu0 %v2741
    %2805 = vmatpush.msra.mxu0 %v2740
    %2806 = vmatpush.msra.mxu0 %v2739
    %2807 = vmatpush.msra.mxu0 %v2738
    %2808 = vmatpush.msra.mxu0 %v2737
    %2809 = vmatpush.msra.mxu0 %v2736
    %2810 = vmatpush.msra.mxu0 %v2735
    %2811 = vmatpush.msra.mxu0 %v2734
    %2812 = vmatpush.msra.mxu0 %v2733
    %2813 = vmatpush.msra.mxu0 %v2732
    %2814 = vmatpush.msra.mxu0 %v2731
    %2815 = vmatpush.msra.mxu0 %v2730
    %2816 = vmatpush.msra.mxu0 %v2729
    %2817 = vmatpush.msra.mxu0 %v2728
    %2818 = vmatpush.msra.mxu0 %v2727
    %2819 = vmatmul.f32.gmra.mxu0 %v2677
    %v2820 = vpop.f32.mrf.mxu0
    %v2821 = vadd.f32 %v2801, %v2820
    %2822 = vdwg.mxu0
    %v2823 = vsub.f32 %v2821, %v2505
    %v2824 = vmul.f32 %v2823, %v2823
    %v2825 = vsel %vm2168, %v2824, 0.0
    %2826 = vadd.xlane.f32.xlu0 %v2825
    %v2827 = vpop.xlane.xlu0 %2826
    %v2828 = vmul.f32 %v2827, %v325
    %vm2829 = vcmp.eq.s32.totalorder %v237, 2
    %v2830 = vsel %vm2829, %v2665, %v2502
    %v2831 = vsel %vm2829, %v2828, %v2503
    %v2832 = vadd.f32 %v2504, %v2821
    %v2833 = vsub.f32 %v2505, %v2821
    %s2834 = scalar_lea.vmem %s45, 384
    %v2835 = vld [vmem:[%s2834] sm:$0xff]
    %v2836 = vld [vmem:[%s2834 + $0x8] sm:$0xff]
    %v2837 = vld [vmem:[%s2834 + $0x10] sm:$0xff]
    %v2838 = vld [vmem:[%s2834 + $0x18] sm:$0xff]
    %v2839 = vld [vmem:[%s2834 + $0x20] sm:$0xff]
    %v2840 = vld [vmem:[%s2834 + $0x28] sm:$0xff]
    %v2841 = vld [vmem:[%s2834 + $0x30] sm:$0xff]
    %v2842 = vld [vmem:[%s2834 + $0x38] sm:$0xff]
    %v2843 = vld [vmem:[%s2834 + $0x40] sm:$0xff]
    %v2844 = vld [vmem:[%s2834 + $0x48] sm:$0xff]
    %v2845 = vld [vmem:[%s2834 + $0x50] sm:$0xff]
    %v2846 = vld [vmem:[%s2834 + $0x58] sm:$0xff]
    %v2847 = vld [vmem:[%s2834 + $0x60] sm:$0xff]
    %v2848 = vld [vmem:[%s2834 + $0x68] sm:$0xff]
    %v2849 = vld [vmem:[%s2834 + $0x70] sm:$0xff]
    %v2850 = vld [vmem:[%s2834 + $0x78] sm:$0xff]
    %v2852 = vsel %vm281, %v2833, 0
    %2854 = vmatpush.msra.mxu0 0.0
    %2855 = vmatpush.msra.mxu0 0.0
    %2856 = vmatpush.msra.mxu0 0.0
    %2857 = vmatpush.msra.mxu0 0.0
    %2858 = vmatpush.msra.mxu0 0.0
    %2859 = vmatpush.msra.mxu0 0.0
    %2860 = vmatpush.msra.mxu0 0.0
    %2861 = vmatpush.msra.mxu0 0.0
    %2862 = vmatpush.msra.mxu0 0.0
    %2863 = vmatpush.msra.mxu0 0.0
    %2864 = vmatpush.msra.mxu0 0.0
    %2865 = vmatpush.msra.mxu0 0.0
    %2866 = vmatpush.msra.mxu0 %v2847
    %2867 = vmatpush.msra.mxu0 %v2843
    %2868 = vmatpush.msra.mxu0 %v2839
    %2869 = vmatpush.msra.mxu0 %v2835
    %2870 = vmatmul.f32.gmra.mxu0 %v2852
    %v2871 = vpop.f32.mrf.mxu0
    %v2872 = vadd.f32 0.0, %v2871
    %2873 = vdwg.mxu0
    %2874 = vmatpush.msra.mxu0 0.0
    %2875 = vmatpush.msra.mxu0 0.0
    %2876 = vmatpush.msra.mxu0 0.0
    %2877 = vmatpush.msra.mxu0 0.0
    %2878 = vmatpush.msra.mxu0 0.0
    %2879 = vmatpush.msra.mxu0 0.0
    %2880 = vmatpush.msra.mxu0 0.0
    %2881 = vmatpush.msra.mxu0 0.0
    %2882 = vmatpush.msra.mxu0 0.0
    %2883 = vmatpush.msra.mxu0 0.0
    %2884 = vmatpush.msra.mxu0 0.0
    %2885 = vmatpush.msra.mxu0 0.0
    %2886 = vmatpush.msra.mxu0 %v2848
    %2887 = vmatpush.msra.mxu0 %v2844
    %2888 = vmatpush.msra.mxu0 %v2840
    %2889 = vmatpush.msra.mxu0 %v2836
    %2890 = vmatmul.f32.gmra.mxu0 %v2852
    %v2891 = vpop.f32.mrf.mxu0
    %v2892 = vadd.f32 0.0, %v2891
    %2893 = vdwg.mxu0
    %2894 = vmatpush.msra.mxu0 0.0
    %2895 = vmatpush.msra.mxu0 0.0
    %2896 = vmatpush.msra.mxu0 0.0
    %2897 = vmatpush.msra.mxu0 0.0
    %2898 = vmatpush.msra.mxu0 0.0
    %2899 = vmatpush.msra.mxu0 0.0
    %2900 = vmatpush.msra.mxu0 0.0
    %2901 = vmatpush.msra.mxu0 0.0
    %2902 = vmatpush.msra.mxu0 0.0
    %2903 = vmatpush.msra.mxu0 0.0
    %2904 = vmatpush.msra.mxu0 0.0
    %2905 = vmatpush.msra.mxu0 0.0
    %2906 = vmatpush.msra.mxu0 %v2849
    %2907 = vmatpush.msra.mxu0 %v2845
    %2908 = vmatpush.msra.mxu0 %v2841
    %2909 = vmatpush.msra.mxu0 %v2837
    %2910 = vmatmul.f32.gmra.mxu0 %v2852
    %v2911 = vpop.f32.mrf.mxu0
    %v2912 = vadd.f32 0.0, %v2911
    %2913 = vdwg.mxu0
    %2914 = vmatpush.msra.mxu0 0.0
    %2915 = vmatpush.msra.mxu0 0.0
    %2916 = vmatpush.msra.mxu0 0.0
    %2917 = vmatpush.msra.mxu0 0.0
    %2918 = vmatpush.msra.mxu0 0.0
    %2919 = vmatpush.msra.mxu0 0.0
    %2920 = vmatpush.msra.mxu0 0.0
    %2921 = vmatpush.msra.mxu0 0.0
    %2922 = vmatpush.msra.mxu0 0.0
    %2923 = vmatpush.msra.mxu0 0.0
    %2924 = vmatpush.msra.mxu0 0.0
    %2925 = vmatpush.msra.mxu0 0.0
    %2926 = vmatpush.msra.mxu0 %v2850
    %2927 = vmatpush.msra.mxu0 %v2846
    %2928 = vmatpush.msra.mxu0 %v2842
    %2929 = vmatpush.msra.mxu0 %v2838
    %2930 = vmatmul.f32.gmra.mxu0 %v2852
    %v2931 = vpop.f32.mrf.mxu0
    %v2932 = vadd.f32 0.0, %v2931
    %2933 = vdwg.mxu0
    %s2934 = scalar_lea.vmem %s47, 12
    %v2935 = vld [vmem:[%s2934] sm:$0xf]
    %v2936 = vmul.f32 %v2872, 2.0
    %v2937 = vmul.f32 %v2892, 2.0
    %v2938 = vmul.f32 %v2912, 2.0
    %v2939 = vmul.f32 %v2932, 2.0
    %v2941 = vperm.slane %v2935, 0
    %v2942 = vperm.slane %v2935, 1
    %v2943 = vperm.slane %v2935, 2
    %v2944 = vperm.slane %v2935, 3
    %v2949 = vsub.f32 %v2941, %v2936
    %v2950 = vsub.f32 %v2942, %v2937
    %v2951 = vsub.f32 %v2943, %v2938
    %v2952 = vsub.f32 %v2944, %v2939
    %v2953 = vsel %vm1968, %v2949, inf
    %v2954 = vsel %vm1968, %v2950, inf
    %v2955 = vsel %vm1968, %v2951, inf
    %v2956 = vsel %vm1968, %v2952, inf
    %v2957 = vmin.f32 %v2953, %v2954
    %v2958 = vmin.f32 %v2955, %v2956
    %v2959 = vmin.f32 %v2957, %v2958
    %2960 = vmin.xlane.f32.xlu0 %v2959
    %v2961 = vpop.xlane.xlu0 %2960
    %vm2962 = vcmp.eq.f32.partialorder %v2949, %v2961
    %vm2963 = vcmp.eq.f32.partialorder %v2950, %v2961
    %vm2964 = vcmp.eq.f32.partialorder %v2951, %v2961
    %vm2965 = vcmp.eq.f32.partialorder %v2952, %v2961
    %v2966 = vsel %vm2962, %v237, 512
    %v2967 = vsel %vm2963, %v1848, 512
    %v2968 = vsel %vm2964, %v1849, 512
    %v2969 = vsel %vm2965, %v1850, 512
    %v2970 = vsel %vm1968, %v2966, 2147483647
    %v2971 = vsel %vm1968, %v2967, 2147483647
    %v2972 = vsel %vm1968, %v2968, 2147483647
    %v2973 = vsel %vm1968, %v2969, 2147483647
    %vm2974 = vcmp.lt.s32.totalorder %v2970, %v2971
    %v2975 = vsel %vm2974, %v2970, %v2971
    %vm2976 = vcmp.lt.s32.totalorder %v2972, %v2973
    %v2977 = vsel %vm2976, %v2972, %v2973
    %vm2978 = vcmp.lt.s32.totalorder %v2975, %v2977
    %v2979 = vsel %vm2978, %v2975, %v2977
    %v2980 = vand.u32 %v2979, 65535
    %v2981 = vshra.s32 %v2979, 16
    %v2982 = vcvt.s32.f32 %v2980
    %v2983 = vcvt.s32.f32 %v2981
    %2984 = vmin.xlane.f32.xlu0 %v2983
    %v2985 = vpop.xlane.xlu0 %2984
    %vm2986 = vcmp.eq.f32.partialorder %v2983, %v2985
    %v2987 = vsel %vm2986, %v2982, inf
    %2988 = vmin.xlane.f32.xlu0 %v2987
    %v2989 = vpop.xlane.xlu0 %2988
    %v2990 = vcvt.f32.s32 %v2989
    %v2991 = vcvt.f32.s32 %v2985
    %v2992 = vshll.u32 %v2991, 16
    %v2993 = vadd.s32 %v2992, %v2990
    %vm2994 = vcmp.eq.s32.totalorder %v237, %v2993
    %vm2995 = vcmp.eq.s32.totalorder %v1848, %v2993
    %vm2996 = vcmp.eq.s32.totalorder %v1849, %v2993
    %vm2997 = vcmp.eq.s32.totalorder %v1850, %v2993
    %v2998 = vsel %vm2994, 1, 0
    %v2999 = vsel %vm2995, 1, 0
    %v3000 = vsel %vm2996, 1, 0
    %v3001 = vsel %vm2997, 1, 0
    %v3002 = vcvt.s32.f32 %v2998
    %v3003 = vcvt.s32.f32 %v2999
    %v3004 = vcvt.s32.f32 %v3000
    %v3005 = vcvt.s32.f32 %v3001
    %s3006 = scalar_lea.vmem %s43, 1536
    %v3007 = vld [vmem:[%s3006] sm:$0xff]
    %v3008 = vld [vmem:[%s3006 + $0x8] sm:$0xff]
    %v3009 = vld [vmem:[%s3006 + $0x10] sm:$0xff]
    %v3010 = vld [vmem:[%s3006 + $0x18] sm:$0xff]
    %v3011 = vld [vmem:[%s3006 + $0x20] sm:$0xff]
    %v3012 = vld [vmem:[%s3006 + $0x28] sm:$0xff]
    %v3013 = vld [vmem:[%s3006 + $0x30] sm:$0xff]
    %v3014 = vld [vmem:[%s3006 + $0x38] sm:$0xff]
    %v3015 = vld [vmem:[%s3006 + $0x40] sm:$0xff]
    %v3016 = vld [vmem:[%s3006 + $0x48] sm:$0xff]
    %v3017 = vld [vmem:[%s3006 + $0x50] sm:$0xff]
    %v3018 = vld [vmem:[%s3006 + $0x58] sm:$0xff]
    %v3019 = vld [vmem:[%s3006 + $0x60] sm:$0xff]
    %v3020 = vld [vmem:[%s3006 + $0x68] sm:$0xff]
    %v3021 = vld [vmem:[%s3006 + $0x70] sm:$0xff]
    %v3022 = vld [vmem:[%s3006 + $0x78] sm:$0xff]
    %v3023 = vld [vmem:[%s3006 + $0x80] sm:$0xff]
    %v3024 = vld [vmem:[%s3006 + $0x88] sm:$0xff]
    %v3025 = vld [vmem:[%s3006 + $0x90] sm:$0xff]
    %v3026 = vld [vmem:[%s3006 + $0x98] sm:$0xff]
    %v3027 = vld [vmem:[%s3006 + $0xa0] sm:$0xff]
    %v3028 = vld [vmem:[%s3006 + $0xa8] sm:$0xff]
    %v3029 = vld [vmem:[%s3006 + $0xb0] sm:$0xff]
    %v3030 = vld [vmem:[%s3006 + $0xb8] sm:$0xff]
    %v3031 = vld [vmem:[%s3006 + $0xc0] sm:$0xff]
    %v3032 = vld [vmem:[%s3006 + $0xc8] sm:$0xff]
    %v3033 = vld [vmem:[%s3006 + $0xd0] sm:$0xff]
    %v3034 = vld [vmem:[%s3006 + $0xd8] sm:$0xff]
    %v3035 = vld [vmem:[%s3006 + $0xe0] sm:$0xff]
    %v3036 = vld [vmem:[%s3006 + $0xe8] sm:$0xff]
    %v3037 = vld [vmem:[%s3006 + $0xf0] sm:$0xff]
    %v3038 = vld [vmem:[%s3006 + $0xf8] sm:$0xff]
    %v3039 = vld [vmem:[%s3006 + $0x100] sm:$0xff]
    %v3040 = vld [vmem:[%s3006 + $0x108] sm:$0xff]
    %v3041 = vld [vmem:[%s3006 + $0x110] sm:$0xff]
    %v3042 = vld [vmem:[%s3006 + $0x118] sm:$0xff]
    %v3043 = vld [vmem:[%s3006 + $0x120] sm:$0xff]
    %v3044 = vld [vmem:[%s3006 + $0x128] sm:$0xff]
    %v3045 = vld [vmem:[%s3006 + $0x130] sm:$0xff]
    %v3046 = vld [vmem:[%s3006 + $0x138] sm:$0xff]
    %v3047 = vld [vmem:[%s3006 + $0x140] sm:$0xff]
    %v3048 = vld [vmem:[%s3006 + $0x148] sm:$0xff]
    %v3049 = vld [vmem:[%s3006 + $0x150] sm:$0xff]
    %v3050 = vld [vmem:[%s3006 + $0x158] sm:$0xff]
    %v3051 = vld [vmem:[%s3006 + $0x160] sm:$0xff]
    %v3052 = vld [vmem:[%s3006 + $0x168] sm:$0xff]
    %v3053 = vld [vmem:[%s3006 + $0x170] sm:$0xff]
    %v3054 = vld [vmem:[%s3006 + $0x178] sm:$0xff]
    %v3055 = vld [vmem:[%s3006 + $0x180] sm:$0xff]
    %v3056 = vld [vmem:[%s3006 + $0x188] sm:$0xff]
    %v3057 = vld [vmem:[%s3006 + $0x190] sm:$0xff]
    %v3058 = vld [vmem:[%s3006 + $0x198] sm:$0xff]
    %v3059 = vld [vmem:[%s3006 + $0x1a0] sm:$0xff]
    %v3060 = vld [vmem:[%s3006 + $0x1a8] sm:$0xff]
    %v3061 = vld [vmem:[%s3006 + $0x1b0] sm:$0xff]
    %v3062 = vld [vmem:[%s3006 + $0x1b8] sm:$0xff]
    %v3063 = vld [vmem:[%s3006 + $0x1c0] sm:$0xff]
    %v3064 = vld [vmem:[%s3006 + $0x1c8] sm:$0xff]
    %v3065 = vld [vmem:[%s3006 + $0x1d0] sm:$0xff]
    %v3066 = vld [vmem:[%s3006 + $0x1d8] sm:$0xff]
    %v3067 = vld [vmem:[%s3006 + $0x1e0] sm:$0xff]
    %v3068 = vld [vmem:[%s3006 + $0x1e8] sm:$0xff]
    %v3069 = vld [vmem:[%s3006 + $0x1f0] sm:$0xff]
    %v3070 = vld [vmem:[%s3006 + $0x1f8] sm:$0xff]
    %3071 = vmatpush.msra.mxu0 %v3022
    %3072 = vmatpush.msra.mxu0 %v3021
    %3073 = vmatpush.msra.mxu0 %v3020
    %3074 = vmatpush.msra.mxu0 %v3019
    %3075 = vmatpush.msra.mxu0 %v3018
    %3076 = vmatpush.msra.mxu0 %v3017
    %3077 = vmatpush.msra.mxu0 %v3016
    %3078 = vmatpush.msra.mxu0 %v3015
    %3079 = vmatpush.msra.mxu0 %v3014
    %3080 = vmatpush.msra.mxu0 %v3013
    %3081 = vmatpush.msra.mxu0 %v3012
    %3082 = vmatpush.msra.mxu0 %v3011
    %3083 = vmatpush.msra.mxu0 %v3010
    %3084 = vmatpush.msra.mxu0 %v3009
    %3085 = vmatpush.msra.mxu0 %v3008
    %3086 = vmatpush.msra.mxu0 %v3007
    %3087 = vmatmul.f32.gmra.mxu0 %v3002
    %v3088 = vpop.f32.mrf.mxu0
    %v3089 = vadd.f32 0.0, %v3088
    %3090 = vdwg.mxu0
    %3091 = vmatpush.msra.mxu0 %v3038
    %3092 = vmatpush.msra.mxu0 %v3037
    %3093 = vmatpush.msra.mxu0 %v3036
    %3094 = vmatpush.msra.mxu0 %v3035
    %3095 = vmatpush.msra.mxu0 %v3034
    %3096 = vmatpush.msra.mxu0 %v3033
    %3097 = vmatpush.msra.mxu0 %v3032
    %3098 = vmatpush.msra.mxu0 %v3031
    %3099 = vmatpush.msra.mxu0 %v3030
    %3100 = vmatpush.msra.mxu0 %v3029
    %3101 = vmatpush.msra.mxu0 %v3028
    %3102 = vmatpush.msra.mxu0 %v3027
    %3103 = vmatpush.msra.mxu0 %v3026
    %3104 = vmatpush.msra.mxu0 %v3025
    %3105 = vmatpush.msra.mxu0 %v3024
    %3106 = vmatpush.msra.mxu0 %v3023
    %3107 = vmatmul.f32.gmra.mxu0 %v3003
    %v3108 = vpop.f32.mrf.mxu0
    %v3109 = vadd.f32 %v3089, %v3108
    %3110 = vdwg.mxu0
    %3111 = vmatpush.msra.mxu0 %v3054
    %3112 = vmatpush.msra.mxu0 %v3053
    %3113 = vmatpush.msra.mxu0 %v3052
    %3114 = vmatpush.msra.mxu0 %v3051
    %3115 = vmatpush.msra.mxu0 %v3050
    %3116 = vmatpush.msra.mxu0 %v3049
    %3117 = vmatpush.msra.mxu0 %v3048
    %3118 = vmatpush.msra.mxu0 %v3047
    %3119 = vmatpush.msra.mxu0 %v3046
    %3120 = vmatpush.msra.mxu0 %v3045
    %3121 = vmatpush.msra.mxu0 %v3044
    %3122 = vmatpush.msra.mxu0 %v3043
    %3123 = vmatpush.msra.mxu0 %v3042
    %3124 = vmatpush.msra.mxu0 %v3041
    %3125 = vmatpush.msra.mxu0 %v3040
    %3126 = vmatpush.msra.mxu0 %v3039
    %3127 = vmatmul.f32.gmra.mxu0 %v3004
    %v3128 = vpop.f32.mrf.mxu0
    %v3129 = vadd.f32 %v3109, %v3128
    %3130 = vdwg.mxu0
    %3131 = vmatpush.msra.mxu0 %v3070
    %3132 = vmatpush.msra.mxu0 %v3069
    %3133 = vmatpush.msra.mxu0 %v3068
    %3134 = vmatpush.msra.mxu0 %v3067
    %3135 = vmatpush.msra.mxu0 %v3066
    %3136 = vmatpush.msra.mxu0 %v3065
    %3137 = vmatpush.msra.mxu0 %v3064
    %3138 = vmatpush.msra.mxu0 %v3063
    %3139 = vmatpush.msra.mxu0 %v3062
    %3140 = vmatpush.msra.mxu0 %v3061
    %3141 = vmatpush.msra.mxu0 %v3060
    %3142 = vmatpush.msra.mxu0 %v3059
    %3143 = vmatpush.msra.mxu0 %v3058
    %3144 = vmatpush.msra.mxu0 %v3057
    %3145 = vmatpush.msra.mxu0 %v3056
    %3146 = vmatpush.msra.mxu0 %v3055
    %3147 = vmatmul.f32.gmra.mxu0 %v3005
    %v3148 = vpop.f32.mrf.mxu0
    %v3149 = vadd.f32 %v3129, %v3148
    %3150 = vdwg.mxu0
    %v3151 = vsub.f32 %v3149, %v2833
    %v3152 = vmul.f32 %v3151, %v3151
    %v3153 = vsel %vm2168, %v3152, 0.0
    %3154 = vadd.xlane.f32.xlu0 %v3153
    %v3155 = vpop.xlane.xlu0 %3154
    %v3156 = vmul.f32 %v3155, %v325
    %vm3157 = vcmp.eq.s32.totalorder %v237, 3
    %v3158 = vsel %vm3157, %v2993, %v2830
    %v3159 = vsel %vm3157, %v3156, %v2831
    %v3160 = vadd.f32 %v2832, %v3149
    %v3161 = vsub.f32 %v2833, %v3149
    %s3162 = scalar_lea.vmem %s45, 512
    %v3163 = vld [vmem:[%s3162] sm:$0xff]
    %v3164 = vld [vmem:[%s3162 + $0x8] sm:$0xff]
    %v3165 = vld [vmem:[%s3162 + $0x10] sm:$0xff]
    %v3166 = vld [vmem:[%s3162 + $0x18] sm:$0xff]
    %v3167 = vld [vmem:[%s3162 + $0x20] sm:$0xff]
    %v3168 = vld [vmem:[%s3162 + $0x28] sm:$0xff]
    %v3169 = vld [vmem:[%s3162 + $0x30] sm:$0xff]
    %v3170 = vld [vmem:[%s3162 + $0x38] sm:$0xff]
    %v3171 = vld [vmem:[%s3162 + $0x40] sm:$0xff]
    %v3172 = vld [vmem:[%s3162 + $0x48] sm:$0xff]
    %v3173 = vld [vmem:[%s3162 + $0x50] sm:$0xff]
    %v3174 = vld [vmem:[%s3162 + $0x58] sm:$0xff]
    %v3175 = vld [vmem:[%s3162 + $0x60] sm:$0xff]
    %v3176 = vld [vmem:[%s3162 + $0x68] sm:$0xff]
    %v3177 = vld [vmem:[%s3162 + $0x70] sm:$0xff]
    %v3178 = vld [vmem:[%s3162 + $0x78] sm:$0xff]
    %v3180 = vsel %vm281, %v3161, 0
    %3182 = vmatpush.msra.mxu0 0.0
    %3183 = vmatpush.msra.mxu0 0.0
    %3184 = vmatpush.msra.mxu0 0.0
    %3185 = vmatpush.msra.mxu0 0.0
    %3186 = vmatpush.msra.mxu0 0.0
    %3187 = vmatpush.msra.mxu0 0.0
    %3188 = vmatpush.msra.mxu0 0.0
    %3189 = vmatpush.msra.mxu0 0.0
    %3190 = vmatpush.msra.mxu0 0.0
    %3191 = vmatpush.msra.mxu0 0.0
    %3192 = vmatpush.msra.mxu0 0.0
    %3193 = vmatpush.msra.mxu0 0.0
    %3194 = vmatpush.msra.mxu0 %v3175
    %3195 = vmatpush.msra.mxu0 %v3171
    %3196 = vmatpush.msra.mxu0 %v3167
    %3197 = vmatpush.msra.mxu0 %v3163
    %3198 = vmatmul.f32.gmra.mxu0 %v3180
    %v3199 = vpop.f32.mrf.mxu0
    %v3200 = vadd.f32 0.0, %v3199
    %3201 = vdwg.mxu0
    %3202 = vmatpush.msra.mxu0 0.0
    %3203 = vmatpush.msra.mxu0 0.0
    %3204 = vmatpush.msra.mxu0 0.0
    %3205 = vmatpush.msra.mxu0 0.0
    %3206 = vmatpush.msra.mxu0 0.0
    %3207 = vmatpush.msra.mxu0 0.0
    %3208 = vmatpush.msra.mxu0 0.0
    %3209 = vmatpush.msra.mxu0 0.0
    %3210 = vmatpush.msra.mxu0 0.0
    %3211 = vmatpush.msra.mxu0 0.0
    %3212 = vmatpush.msra.mxu0 0.0
    %3213 = vmatpush.msra.mxu0 0.0
    %3214 = vmatpush.msra.mxu0 %v3176
    %3215 = vmatpush.msra.mxu0 %v3172
    %3216 = vmatpush.msra.mxu0 %v3168
    %3217 = vmatpush.msra.mxu0 %v3164
    %3218 = vmatmul.f32.gmra.mxu0 %v3180
    %v3219 = vpop.f32.mrf.mxu0
    %v3220 = vadd.f32 0.0, %v3219
    %3221 = vdwg.mxu0
    %3222 = vmatpush.msra.mxu0 0.0
    %3223 = vmatpush.msra.mxu0 0.0
    %3224 = vmatpush.msra.mxu0 0.0
    %3225 = vmatpush.msra.mxu0 0.0
    %3226 = vmatpush.msra.mxu0 0.0
    %3227 = vmatpush.msra.mxu0 0.0
    %3228 = vmatpush.msra.mxu0 0.0
    %3229 = vmatpush.msra.mxu0 0.0
    %3230 = vmatpush.msra.mxu0 0.0
    %3231 = vmatpush.msra.mxu0 0.0
    %3232 = vmatpush.msra.mxu0 0.0
    %3233 = vmatpush.msra.mxu0 0.0
    %3234 = vmatpush.msra.mxu0 %v3177
    %3235 = vmatpush.msra.mxu0 %v3173
    %3236 = vmatpush.msra.mxu0 %v3169
    %3237 = vmatpush.msra.mxu0 %v3165
    %3238 = vmatmul.f32.gmra.mxu0 %v3180
    %v3239 = vpop.f32.mrf.mxu0
    %v3240 = vadd.f32 0.0, %v3239
    %3241 = vdwg.mxu0
    %3242 = vmatpush.msra.mxu0 0.0
    %3243 = vmatpush.msra.mxu0 0.0
    %3244 = vmatpush.msra.mxu0 0.0
    %3245 = vmatpush.msra.mxu0 0.0
    %3246 = vmatpush.msra.mxu0 0.0
    %3247 = vmatpush.msra.mxu0 0.0
    %3248 = vmatpush.msra.mxu0 0.0
    %3249 = vmatpush.msra.mxu0 0.0
    %3250 = vmatpush.msra.mxu0 0.0
    %3251 = vmatpush.msra.mxu0 0.0
    %3252 = vmatpush.msra.mxu0 0.0
    %3253 = vmatpush.msra.mxu0 0.0
    %3254 = vmatpush.msra.mxu0 %v3178
    %3255 = vmatpush.msra.mxu0 %v3174
    %3256 = vmatpush.msra.mxu0 %v3170
    %3257 = vmatpush.msra.mxu0 %v3166
    %3258 = vmatmul.f32.gmra.mxu0 %v3180
    %v3259 = vpop.f32.mrf.mxu0
    %v3260 = vadd.f32 0.0, %v3259
    %3261 = vdwg.mxu0
    %s3262 = scalar_lea.vmem %s47, 16
    %v3263 = vld [vmem:[%s3262] sm:$0xf]
    %v3264 = vmul.f32 %v3200, 2.0
    %v3265 = vmul.f32 %v3220, 2.0
    %v3266 = vmul.f32 %v3240, 2.0
    %v3267 = vmul.f32 %v3260, 2.0
    %v3269 = vperm.slane %v3263, 0
    %v3270 = vperm.slane %v3263, 1
    %v3271 = vperm.slane %v3263, 2
    %v3272 = vperm.slane %v3263, 3
    %v3277 = vsub.f32 %v3269, %v3264
    %v3278 = vsub.f32 %v3270, %v3265
    %v3279 = vsub.f32 %v3271, %v3266
    %v3280 = vsub.f32 %v3272, %v3267
    %v3281 = vsel %vm1968, %v3277, inf
    %v3282 = vsel %vm1968, %v3278, inf
    %v3283 = vsel %vm1968, %v3279, inf
    %v3284 = vsel %vm1968, %v3280, inf
    %v3285 = vmin.f32 %v3281, %v3282
    %v3286 = vmin.f32 %v3283, %v3284
    %v3287 = vmin.f32 %v3285, %v3286
    %3288 = vmin.xlane.f32.xlu0 %v3287
    %v3289 = vpop.xlane.xlu0 %3288
    %vm3290 = vcmp.eq.f32.partialorder %v3277, %v3289
    %vm3291 = vcmp.eq.f32.partialorder %v3278, %v3289
    %vm3292 = vcmp.eq.f32.partialorder %v3279, %v3289
    %vm3293 = vcmp.eq.f32.partialorder %v3280, %v3289
    %v3294 = vsel %vm3290, %v237, 512
    %v3295 = vsel %vm3291, %v1848, 512
    %v3296 = vsel %vm3292, %v1849, 512
    %v3297 = vsel %vm3293, %v1850, 512
    %v3298 = vsel %vm1968, %v3294, 2147483647
    %v3299 = vsel %vm1968, %v3295, 2147483647
    %v3300 = vsel %vm1968, %v3296, 2147483647
    %v3301 = vsel %vm1968, %v3297, 2147483647
    %vm3302 = vcmp.lt.s32.totalorder %v3298, %v3299
    %v3303 = vsel %vm3302, %v3298, %v3299
    %vm3304 = vcmp.lt.s32.totalorder %v3300, %v3301
    %v3305 = vsel %vm3304, %v3300, %v3301
    %vm3306 = vcmp.lt.s32.totalorder %v3303, %v3305
    %v3307 = vsel %vm3306, %v3303, %v3305
    %v3308 = vand.u32 %v3307, 65535
    %v3309 = vshra.s32 %v3307, 16
    %v3310 = vcvt.s32.f32 %v3308
    %v3311 = vcvt.s32.f32 %v3309
    %3312 = vmin.xlane.f32.xlu0 %v3311
    %v3313 = vpop.xlane.xlu0 %3312
    %vm3314 = vcmp.eq.f32.partialorder %v3311, %v3313
    %v3315 = vsel %vm3314, %v3310, inf
    %3316 = vmin.xlane.f32.xlu0 %v3315
    %v3317 = vpop.xlane.xlu0 %3316
    %v3318 = vcvt.f32.s32 %v3317
    %v3319 = vcvt.f32.s32 %v3313
    %v3320 = vshll.u32 %v3319, 16
    %v3321 = vadd.s32 %v3320, %v3318
    %vm3322 = vcmp.eq.s32.totalorder %v237, %v3321
    %vm3323 = vcmp.eq.s32.totalorder %v1848, %v3321
    %vm3324 = vcmp.eq.s32.totalorder %v1849, %v3321
    %vm3325 = vcmp.eq.s32.totalorder %v1850, %v3321
    %v3326 = vsel %vm3322, 1, 0
    %v3327 = vsel %vm3323, 1, 0
    %v3328 = vsel %vm3324, 1, 0
    %v3329 = vsel %vm3325, 1, 0
    %v3330 = vcvt.s32.f32 %v3326
    %v3331 = vcvt.s32.f32 %v3327
    %v3332 = vcvt.s32.f32 %v3328
    %v3333 = vcvt.s32.f32 %v3329
    %s3334 = scalar_lea.vmem %s43, 2048
    %v3335 = vld [vmem:[%s3334] sm:$0xff]
    %v3336 = vld [vmem:[%s3334 + $0x8] sm:$0xff]
    %v3337 = vld [vmem:[%s3334 + $0x10] sm:$0xff]
    %v3338 = vld [vmem:[%s3334 + $0x18] sm:$0xff]
    %v3339 = vld [vmem:[%s3334 + $0x20] sm:$0xff]
    %v3340 = vld [vmem:[%s3334 + $0x28] sm:$0xff]
    %v3341 = vld [vmem:[%s3334 + $0x30] sm:$0xff]
    %v3342 = vld [vmem:[%s3334 + $0x38] sm:$0xff]
    %v3343 = vld [vmem:[%s3334 + $0x40] sm:$0xff]
    %v3344 = vld [vmem:[%s3334 + $0x48] sm:$0xff]
    %v3345 = vld [vmem:[%s3334 + $0x50] sm:$0xff]
    %v3346 = vld [vmem:[%s3334 + $0x58] sm:$0xff]
    %v3347 = vld [vmem:[%s3334 + $0x60] sm:$0xff]
    %v3348 = vld [vmem:[%s3334 + $0x68] sm:$0xff]
    %v3349 = vld [vmem:[%s3334 + $0x70] sm:$0xff]
    %v3350 = vld [vmem:[%s3334 + $0x78] sm:$0xff]
    %v3351 = vld [vmem:[%s3334 + $0x80] sm:$0xff]
    %v3352 = vld [vmem:[%s3334 + $0x88] sm:$0xff]
    %v3353 = vld [vmem:[%s3334 + $0x90] sm:$0xff]
    %v3354 = vld [vmem:[%s3334 + $0x98] sm:$0xff]
    %v3355 = vld [vmem:[%s3334 + $0xa0] sm:$0xff]
    %v3356 = vld [vmem:[%s3334 + $0xa8] sm:$0xff]
    %v3357 = vld [vmem:[%s3334 + $0xb0] sm:$0xff]
    %v3358 = vld [vmem:[%s3334 + $0xb8] sm:$0xff]
    %v3359 = vld [vmem:[%s3334 + $0xc0] sm:$0xff]
    %v3360 = vld [vmem:[%s3334 + $0xc8] sm:$0xff]
    %v3361 = vld [vmem:[%s3334 + $0xd0] sm:$0xff]
    %v3362 = vld [vmem:[%s3334 + $0xd8] sm:$0xff]
    %v3363 = vld [vmem:[%s3334 + $0xe0] sm:$0xff]
    %v3364 = vld [vmem:[%s3334 + $0xe8] sm:$0xff]
    %v3365 = vld [vmem:[%s3334 + $0xf0] sm:$0xff]
    %v3366 = vld [vmem:[%s3334 + $0xf8] sm:$0xff]
    %v3367 = vld [vmem:[%s3334 + $0x100] sm:$0xff]
    %v3368 = vld [vmem:[%s3334 + $0x108] sm:$0xff]
    %v3369 = vld [vmem:[%s3334 + $0x110] sm:$0xff]
    %v3370 = vld [vmem:[%s3334 + $0x118] sm:$0xff]
    %v3371 = vld [vmem:[%s3334 + $0x120] sm:$0xff]
    %v3372 = vld [vmem:[%s3334 + $0x128] sm:$0xff]
    %v3373 = vld [vmem:[%s3334 + $0x130] sm:$0xff]
    %v3374 = vld [vmem:[%s3334 + $0x138] sm:$0xff]
    %v3375 = vld [vmem:[%s3334 + $0x140] sm:$0xff]
    %v3376 = vld [vmem:[%s3334 + $0x148] sm:$0xff]
    %v3377 = vld [vmem:[%s3334 + $0x150] sm:$0xff]
    %v3378 = vld [vmem:[%s3334 + $0x158] sm:$0xff]
    %v3379 = vld [vmem:[%s3334 + $0x160] sm:$0xff]
    %v3380 = vld [vmem:[%s3334 + $0x168] sm:$0xff]
    %v3381 = vld [vmem:[%s3334 + $0x170] sm:$0xff]
    %v3382 = vld [vmem:[%s3334 + $0x178] sm:$0xff]
    %v3383 = vld [vmem:[%s3334 + $0x180] sm:$0xff]
    %v3384 = vld [vmem:[%s3334 + $0x188] sm:$0xff]
    %v3385 = vld [vmem:[%s3334 + $0x190] sm:$0xff]
    %v3386 = vld [vmem:[%s3334 + $0x198] sm:$0xff]
    %v3387 = vld [vmem:[%s3334 + $0x1a0] sm:$0xff]
    %v3388 = vld [vmem:[%s3334 + $0x1a8] sm:$0xff]
    %v3389 = vld [vmem:[%s3334 + $0x1b0] sm:$0xff]
    %v3390 = vld [vmem:[%s3334 + $0x1b8] sm:$0xff]
    %v3391 = vld [vmem:[%s3334 + $0x1c0] sm:$0xff]
    %v3392 = vld [vmem:[%s3334 + $0x1c8] sm:$0xff]
    %v3393 = vld [vmem:[%s3334 + $0x1d0] sm:$0xff]
    %v3394 = vld [vmem:[%s3334 + $0x1d8] sm:$0xff]
    %v3395 = vld [vmem:[%s3334 + $0x1e0] sm:$0xff]
    %v3396 = vld [vmem:[%s3334 + $0x1e8] sm:$0xff]
    %v3397 = vld [vmem:[%s3334 + $0x1f0] sm:$0xff]
    %v3398 = vld [vmem:[%s3334 + $0x1f8] sm:$0xff]
    %3399 = vmatpush.msra.mxu0 %v3350
    %3400 = vmatpush.msra.mxu0 %v3349
    %3401 = vmatpush.msra.mxu0 %v3348
    %3402 = vmatpush.msra.mxu0 %v3347
    %3403 = vmatpush.msra.mxu0 %v3346
    %3404 = vmatpush.msra.mxu0 %v3345
    %3405 = vmatpush.msra.mxu0 %v3344
    %3406 = vmatpush.msra.mxu0 %v3343
    %3407 = vmatpush.msra.mxu0 %v3342
    %3408 = vmatpush.msra.mxu0 %v3341
    %3409 = vmatpush.msra.mxu0 %v3340
    %3410 = vmatpush.msra.mxu0 %v3339
    %3411 = vmatpush.msra.mxu0 %v3338
    %3412 = vmatpush.msra.mxu0 %v3337
    %3413 = vmatpush.msra.mxu0 %v3336
    %3414 = vmatpush.msra.mxu0 %v3335
    %3415 = vmatmul.f32.gmra.mxu0 %v3330
    %v3416 = vpop.f32.mrf.mxu0
    %v3417 = vadd.f32 0.0, %v3416
    %3418 = vdwg.mxu0
    %3419 = vmatpush.msra.mxu0 %v3366
    %3420 = vmatpush.msra.mxu0 %v3365
    %3421 = vmatpush.msra.mxu0 %v3364
    %3422 = vmatpush.msra.mxu0 %v3363
    %3423 = vmatpush.msra.mxu0 %v3362
    %3424 = vmatpush.msra.mxu0 %v3361
    %3425 = vmatpush.msra.mxu0 %v3360
    %3426 = vmatpush.msra.mxu0 %v3359
    %3427 = vmatpush.msra.mxu0 %v3358
    %3428 = vmatpush.msra.mxu0 %v3357
    %3429 = vmatpush.msra.mxu0 %v3356
    %3430 = vmatpush.msra.mxu0 %v3355
    %3431 = vmatpush.msra.mxu0 %v3354
    %3432 = vmatpush.msra.mxu0 %v3353
    %3433 = vmatpush.msra.mxu0 %v3352
    %3434 = vmatpush.msra.mxu0 %v3351
    %3435 = vmatmul.f32.gmra.mxu0 %v3331
    %v3436 = vpop.f32.mrf.mxu0
    %v3437 = vadd.f32 %v3417, %v3436
    %3438 = vdwg.mxu0
    %3439 = vmatpush.msra.mxu0 %v3382
    %3440 = vmatpush.msra.mxu0 %v3381
    %3441 = vmatpush.msra.mxu0 %v3380
    %3442 = vmatpush.msra.mxu0 %v3379
    %3443 = vmatpush.msra.mxu0 %v3378
    %3444 = vmatpush.msra.mxu0 %v3377
    %3445 = vmatpush.msra.mxu0 %v3376
    %3446 = vmatpush.msra.mxu0 %v3375
    %3447 = vmatpush.msra.mxu0 %v3374
    %3448 = vmatpush.msra.mxu0 %v3373
    %3449 = vmatpush.msra.mxu0 %v3372
    %3450 = vmatpush.msra.mxu0 %v3371
    %3451 = vmatpush.msra.mxu0 %v3370
    %3452 = vmatpush.msra.mxu0 %v3369
    %3453 = vmatpush.msra.mxu0 %v3368
    %3454 = vmatpush.msra.mxu0 %v3367
    %3455 = vmatmul.f32.gmra.mxu0 %v3332
    %v3456 = vpop.f32.mrf.mxu0
    %v3457 = vadd.f32 %v3437, %v3456
    %3458 = vdwg.mxu0
    %3459 = vmatpush.msra.mxu0 %v3398
    %3460 = vmatpush.msra.mxu0 %v3397
    %3461 = vmatpush.msra.mxu0 %v3396
    %3462 = vmatpush.msra.mxu0 %v3395
    %3463 = vmatpush.msra.mxu0 %v3394
    %3464 = vmatpush.msra.mxu0 %v3393
    %3465 = vmatpush.msra.mxu0 %v3392
    %3466 = vmatpush.msra.mxu0 %v3391
    %3467 = vmatpush.msra.mxu0 %v3390
    %3468 = vmatpush.msra.mxu0 %v3389
    %3469 = vmatpush.msra.mxu0 %v3388
    %3470 = vmatpush.msra.mxu0 %v3387
    %3471 = vmatpush.msra.mxu0 %v3386
    %3472 = vmatpush.msra.mxu0 %v3385
    %3473 = vmatpush.msra.mxu0 %v3384
    %3474 = vmatpush.msra.mxu0 %v3383
    %3475 = vmatmul.f32.gmra.mxu0 %v3333
    %v3476 = vpop.f32.mrf.mxu0
    %v3477 = vadd.f32 %v3457, %v3476
    %3478 = vdwg.mxu0
    %v3479 = vsub.f32 %v3477, %v3161
    %v3480 = vmul.f32 %v3479, %v3479
    %v3481 = vsel %vm2168, %v3480, 0.0
    %3482 = vadd.xlane.f32.xlu0 %v3481
    %v3483 = vpop.xlane.xlu0 %3482
    %v3484 = vmul.f32 %v3483, %v325
    %vm3485 = vcmp.eq.s32.totalorder %v237, 4
    %v3486 = vsel %vm3485, %v3321, %v3158
    %v3487 = vsel %vm3485, %v3484, %v3159
    %v3488 = vadd.f32 %v3160, %v3477
    %v3489 = vsub.f32 %v3161, %v3477
    %s3490 = scalar_lea.vmem %s45, 640
    %v3491 = vld [vmem:[%s3490] sm:$0xff]
    %v3492 = vld [vmem:[%s3490 + $0x8] sm:$0xff]
    %v3493 = vld [vmem:[%s3490 + $0x10] sm:$0xff]
    %v3494 = vld [vmem:[%s3490 + $0x18] sm:$0xff]
    %v3495 = vld [vmem:[%s3490 + $0x20] sm:$0xff]
    %v3496 = vld [vmem:[%s3490 + $0x28] sm:$0xff]
    %v3497 = vld [vmem:[%s3490 + $0x30] sm:$0xff]
    %v3498 = vld [vmem:[%s3490 + $0x38] sm:$0xff]
    %v3499 = vld [vmem:[%s3490 + $0x40] sm:$0xff]
    %v3500 = vld [vmem:[%s3490 + $0x48] sm:$0xff]
    %v3501 = vld [vmem:[%s3490 + $0x50] sm:$0xff]
    %v3502 = vld [vmem:[%s3490 + $0x58] sm:$0xff]
    %v3503 = vld [vmem:[%s3490 + $0x60] sm:$0xff]
    %v3504 = vld [vmem:[%s3490 + $0x68] sm:$0xff]
    %v3505 = vld [vmem:[%s3490 + $0x70] sm:$0xff]
    %v3506 = vld [vmem:[%s3490 + $0x78] sm:$0xff]
    %v3508 = vsel %vm281, %v3489, 0
    %3510 = vmatpush.msra.mxu0 0.0
    %3511 = vmatpush.msra.mxu0 0.0
    %3512 = vmatpush.msra.mxu0 0.0
    %3513 = vmatpush.msra.mxu0 0.0
    %3514 = vmatpush.msra.mxu0 0.0
    %3515 = vmatpush.msra.mxu0 0.0
    %3516 = vmatpush.msra.mxu0 0.0
    %3517 = vmatpush.msra.mxu0 0.0
    %3518 = vmatpush.msra.mxu0 0.0
    %3519 = vmatpush.msra.mxu0 0.0
    %3520 = vmatpush.msra.mxu0 0.0
    %3521 = vmatpush.msra.mxu0 0.0
    %3522 = vmatpush.msra.mxu0 %v3503
    %3523 = vmatpush.msra.mxu0 %v3499
    %3524 = vmatpush.msra.mxu0 %v3495
    %3525 = vmatpush.msra.mxu0 %v3491
    %3526 = vmatmul.f32.gmra.mxu0 %v3508
    %v3527 = vpop.f32.mrf.mxu0
    %v3528 = vadd.f32 0.0, %v3527
    %3529 = vdwg.mxu0
    %3530 = vmatpush.msra.mxu0 0.0
    %3531 = vmatpush.msra.mxu0 0.0
    %3532 = vmatpush.msra.mxu0 0.0
    %3533 = vmatpush.msra.mxu0 0.0
    %3534 = vmatpush.msra.mxu0 0.0
    %3535 = vmatpush.msra.mxu0 0.0
    %3536 = vmatpush.msra.mxu0 0.0
    %3537 = vmatpush.msra.mxu0 0.0
    %3538 = vmatpush.msra.mxu0 0.0
    %3539 = vmatpush.msra.mxu0 0.0
    %3540 = vmatpush.msra.mxu0 0.0
    %3541 = vmatpush.msra.mxu0 0.0
    %3542 = vmatpush.msra.mxu0 %v3504
    %3543 = vmatpush.msra.mxu0 %v3500
    %3544 = vmatpush.msra.mxu0 %v3496
    %3545 = vmatpush.msra.mxu0 %v3492
    %3546 = vmatmul.f32.gmra.mxu0 %v3508
    %v3547 = vpop.f32.mrf.mxu0
    %v3548 = vadd.f32 0.0, %v3547
    %3549 = vdwg.mxu0
    %3550 = vmatpush.msra.mxu0 0.0
    %3551 = vmatpush.msra.mxu0 0.0
    %3552 = vmatpush.msra.mxu0 0.0
    %3553 = vmatpush.msra.mxu0 0.0
    %3554 = vmatpush.msra.mxu0 0.0
    %3555 = vmatpush.msra.mxu0 0.0
    %3556 = vmatpush.msra.mxu0 0.0
    %3557 = vmatpush.msra.mxu0 0.0
    %3558 = vmatpush.msra.mxu0 0.0
    %3559 = vmatpush.msra.mxu0 0.0
    %3560 = vmatpush.msra.mxu0 0.0
    %3561 = vmatpush.msra.mxu0 0.0
    %3562 = vmatpush.msra.mxu0 %v3505
    %3563 = vmatpush.msra.mxu0 %v3501
    %3564 = vmatpush.msra.mxu0 %v3497
    %3565 = vmatpush.msra.mxu0 %v3493
    %3566 = vmatmul.f32.gmra.mxu0 %v3508
    %v3567 = vpop.f32.mrf.mxu0
    %v3568 = vadd.f32 0.0, %v3567
    %3569 = vdwg.mxu0
    %3570 = vmatpush.msra.mxu0 0.0
    %3571 = vmatpush.msra.mxu0 0.0
    %3572 = vmatpush.msra.mxu0 0.0
    %3573 = vmatpush.msra.mxu0 0.0
    %3574 = vmatpush.msra.mxu0 0.0
    %3575 = vmatpush.msra.mxu0 0.0
    %3576 = vmatpush.msra.mxu0 0.0
    %3577 = vmatpush.msra.mxu0 0.0
    %3578 = vmatpush.msra.mxu0 0.0
    %3579 = vmatpush.msra.mxu0 0.0
    %3580 = vmatpush.msra.mxu0 0.0
    %3581 = vmatpush.msra.mxu0 0.0
    %3582 = vmatpush.msra.mxu0 %v3506
    %3583 = vmatpush.msra.mxu0 %v3502
    %3584 = vmatpush.msra.mxu0 %v3498
    %3585 = vmatpush.msra.mxu0 %v3494
    %3586 = vmatmul.f32.gmra.mxu0 %v3508
    %v3587 = vpop.f32.mrf.mxu0
    %v3588 = vadd.f32 0.0, %v3587
    %3589 = vdwg.mxu0
    %s3590 = scalar_lea.vmem %s47, 20
    %v3591 = vld [vmem:[%s3590] sm:$0xf]
    %v3592 = vmul.f32 %v3528, 2.0
    %v3593 = vmul.f32 %v3548, 2.0
    %v3594 = vmul.f32 %v3568, 2.0
    %v3595 = vmul.f32 %v3588, 2.0
    %v3597 = vperm.slane %v3591, 0
    %v3598 = vperm.slane %v3591, 1
    %v3599 = vperm.slane %v3591, 2
    %v3600 = vperm.slane %v3591, 3
    %v3605 = vsub.f32 %v3597, %v3592
    %v3606 = vsub.f32 %v3598, %v3593
    %v3607 = vsub.f32 %v3599, %v3594
    %v3608 = vsub.f32 %v3600, %v3595
    %v3609 = vsel %vm1968, %v3605, inf
    %v3610 = vsel %vm1968, %v3606, inf
    %v3611 = vsel %vm1968, %v3607, inf
    %v3612 = vsel %vm1968, %v3608, inf
    %v3613 = vmin.f32 %v3609, %v3610
    %v3614 = vmin.f32 %v3611, %v3612
    %v3615 = vmin.f32 %v3613, %v3614
    %3616 = vmin.xlane.f32.xlu0 %v3615
    %v3617 = vpop.xlane.xlu0 %3616
    %vm3618 = vcmp.eq.f32.partialorder %v3605, %v3617
    %vm3619 = vcmp.eq.f32.partialorder %v3606, %v3617
    %vm3620 = vcmp.eq.f32.partialorder %v3607, %v3617
    %vm3621 = vcmp.eq.f32.partialorder %v3608, %v3617
    %v3622 = vsel %vm3618, %v237, 512
    %v3623 = vsel %vm3619, %v1848, 512
    %v3624 = vsel %vm3620, %v1849, 512
    %v3625 = vsel %vm3621, %v1850, 512
    %v3626 = vsel %vm1968, %v3622, 2147483647
    %v3627 = vsel %vm1968, %v3623, 2147483647
    %v3628 = vsel %vm1968, %v3624, 2147483647
    %v3629 = vsel %vm1968, %v3625, 2147483647
    %vm3630 = vcmp.lt.s32.totalorder %v3626, %v3627
    %v3631 = vsel %vm3630, %v3626, %v3627
    %vm3632 = vcmp.lt.s32.totalorder %v3628, %v3629
    %v3633 = vsel %vm3632, %v3628, %v3629
    %vm3634 = vcmp.lt.s32.totalorder %v3631, %v3633
    %v3635 = vsel %vm3634, %v3631, %v3633
    %v3636 = vand.u32 %v3635, 65535
    %v3637 = vshra.s32 %v3635, 16
    %v3638 = vcvt.s32.f32 %v3636
    %v3639 = vcvt.s32.f32 %v3637
    %3640 = vmin.xlane.f32.xlu0 %v3639
    %v3641 = vpop.xlane.xlu0 %3640
    %vm3642 = vcmp.eq.f32.partialorder %v3639, %v3641
    %v3643 = vsel %vm3642, %v3638, inf
    %3644 = vmin.xlane.f32.xlu0 %v3643
    %v3645 = vpop.xlane.xlu0 %3644
    %v3646 = vcvt.f32.s32 %v3645
    %v3647 = vcvt.f32.s32 %v3641
    %v3648 = vshll.u32 %v3647, 16
    %v3649 = vadd.s32 %v3648, %v3646
    %vm3650 = vcmp.eq.s32.totalorder %v237, %v3649
    %vm3651 = vcmp.eq.s32.totalorder %v1848, %v3649
    %vm3652 = vcmp.eq.s32.totalorder %v1849, %v3649
    %vm3653 = vcmp.eq.s32.totalorder %v1850, %v3649
    %v3654 = vsel %vm3650, 1, 0
    %v3655 = vsel %vm3651, 1, 0
    %v3656 = vsel %vm3652, 1, 0
    %v3657 = vsel %vm3653, 1, 0
    %v3658 = vcvt.s32.f32 %v3654
    %v3659 = vcvt.s32.f32 %v3655
    %v3660 = vcvt.s32.f32 %v3656
    %v3661 = vcvt.s32.f32 %v3657
    %s3662 = scalar_lea.vmem %s43, 2560
    %v3663 = vld [vmem:[%s3662] sm:$0xff]
    %v3664 = vld [vmem:[%s3662 + $0x8] sm:$0xff]
    %v3665 = vld [vmem:[%s3662 + $0x10] sm:$0xff]
    %v3666 = vld [vmem:[%s3662 + $0x18] sm:$0xff]
    %v3667 = vld [vmem:[%s3662 + $0x20] sm:$0xff]
    %v3668 = vld [vmem:[%s3662 + $0x28] sm:$0xff]
    %v3669 = vld [vmem:[%s3662 + $0x30] sm:$0xff]
    %v3670 = vld [vmem:[%s3662 + $0x38] sm:$0xff]
    %v3671 = vld [vmem:[%s3662 + $0x40] sm:$0xff]
    %v3672 = vld [vmem:[%s3662 + $0x48] sm:$0xff]
    %v3673 = vld [vmem:[%s3662 + $0x50] sm:$0xff]
    %v3674 = vld [vmem:[%s3662 + $0x58] sm:$0xff]
    %v3675 = vld [vmem:[%s3662 + $0x60] sm:$0xff]
    %v3676 = vld [vmem:[%s3662 + $0x68] sm:$0xff]
    %v3677 = vld [vmem:[%s3662 + $0x70] sm:$0xff]
    %v3678 = vld [vmem:[%s3662 + $0x78] sm:$0xff]
    %v3679 = vld [vmem:[%s3662 + $0x80] sm:$0xff]
    %v3680 = vld [vmem:[%s3662 + $0x88] sm:$0xff]
    %v3681 = vld [vmem:[%s3662 + $0x90] sm:$0xff]
    %v3682 = vld [vmem:[%s3662 + $0x98] sm:$0xff]
    %v3683 = vld [vmem:[%s3662 + $0xa0] sm:$0xff]
    %v3684 = vld [vmem:[%s3662 + $0xa8] sm:$0xff]
    %v3685 = vld [vmem:[%s3662 + $0xb0] sm:$0xff]
    %v3686 = vld [vmem:[%s3662 + $0xb8] sm:$0xff]
    %v3687 = vld [vmem:[%s3662 + $0xc0] sm:$0xff]
    %v3688 = vld [vmem:[%s3662 + $0xc8] sm:$0xff]
    %v3689 = vld [vmem:[%s3662 + $0xd0] sm:$0xff]
    %v3690 = vld [vmem:[%s3662 + $0xd8] sm:$0xff]
    %v3691 = vld [vmem:[%s3662 + $0xe0] sm:$0xff]
    %v3692 = vld [vmem:[%s3662 + $0xe8] sm:$0xff]
    %v3693 = vld [vmem:[%s3662 + $0xf0] sm:$0xff]
    %v3694 = vld [vmem:[%s3662 + $0xf8] sm:$0xff]
    %v3695 = vld [vmem:[%s3662 + $0x100] sm:$0xff]
    %v3696 = vld [vmem:[%s3662 + $0x108] sm:$0xff]
    %v3697 = vld [vmem:[%s3662 + $0x110] sm:$0xff]
    %v3698 = vld [vmem:[%s3662 + $0x118] sm:$0xff]
    %v3699 = vld [vmem:[%s3662 + $0x120] sm:$0xff]
    %v3700 = vld [vmem:[%s3662 + $0x128] sm:$0xff]
    %v3701 = vld [vmem:[%s3662 + $0x130] sm:$0xff]
    %v3702 = vld [vmem:[%s3662 + $0x138] sm:$0xff]
    %v3703 = vld [vmem:[%s3662 + $0x140] sm:$0xff]
    %v3704 = vld [vmem:[%s3662 + $0x148] sm:$0xff]
    %v3705 = vld [vmem:[%s3662 + $0x150] sm:$0xff]
    %v3706 = vld [vmem:[%s3662 + $0x158] sm:$0xff]
    %v3707 = vld [vmem:[%s3662 + $0x160] sm:$0xff]
    %v3708 = vld [vmem:[%s3662 + $0x168] sm:$0xff]
    %v3709 = vld [vmem:[%s3662 + $0x170] sm:$0xff]
    %v3710 = vld [vmem:[%s3662 + $0x178] sm:$0xff]
    %v3711 = vld [vmem:[%s3662 + $0x180] sm:$0xff]
    %v3712 = vld [vmem:[%s3662 + $0x188] sm:$0xff]
    %v3713 = vld [vmem:[%s3662 + $0x190] sm:$0xff]
    %v3714 = vld [vmem:[%s3662 + $0x198] sm:$0xff]
    %v3715 = vld [vmem:[%s3662 + $0x1a0] sm:$0xff]
    %v3716 = vld [vmem:[%s3662 + $0x1a8] sm:$0xff]
    %v3717 = vld [vmem:[%s3662 + $0x1b0] sm:$0xff]
    %v3718 = vld [vmem:[%s3662 + $0x1b8] sm:$0xff]
    %v3719 = vld [vmem:[%s3662 + $0x1c0] sm:$0xff]
    %v3720 = vld [vmem:[%s3662 + $0x1c8] sm:$0xff]
    %v3721 = vld [vmem:[%s3662 + $0x1d0] sm:$0xff]
    %v3722 = vld [vmem:[%s3662 + $0x1d8] sm:$0xff]
    %v3723 = vld [vmem:[%s3662 + $0x1e0] sm:$0xff]
    %v3724 = vld [vmem:[%s3662 + $0x1e8] sm:$0xff]
    %v3725 = vld [vmem:[%s3662 + $0x1f0] sm:$0xff]
    %v3726 = vld [vmem:[%s3662 + $0x1f8] sm:$0xff]
    %3727 = vmatpush.msra.mxu0 %v3678
    %3728 = vmatpush.msra.mxu0 %v3677
    %3729 = vmatpush.msra.mxu0 %v3676
    %3730 = vmatpush.msra.mxu0 %v3675
    %3731 = vmatpush.msra.mxu0 %v3674
    %3732 = vmatpush.msra.mxu0 %v3673
    %3733 = vmatpush.msra.mxu0 %v3672
    %3734 = vmatpush.msra.mxu0 %v3671
    %3735 = vmatpush.msra.mxu0 %v3670
    %3736 = vmatpush.msra.mxu0 %v3669
    %3737 = vmatpush.msra.mxu0 %v3668
    %3738 = vmatpush.msra.mxu0 %v3667
    %3739 = vmatpush.msra.mxu0 %v3666
    %3740 = vmatpush.msra.mxu0 %v3665
    %3741 = vmatpush.msra.mxu0 %v3664
    %3742 = vmatpush.msra.mxu0 %v3663
    %3743 = vmatmul.f32.gmra.mxu0 %v3658
    %v3744 = vpop.f32.mrf.mxu0
    %v3745 = vadd.f32 0.0, %v3744
    %3746 = vdwg.mxu0
    %3747 = vmatpush.msra.mxu0 %v3694
    %3748 = vmatpush.msra.mxu0 %v3693
    %3749 = vmatpush.msra.mxu0 %v3692
    %3750 = vmatpush.msra.mxu0 %v3691
    %3751 = vmatpush.msra.mxu0 %v3690
    %3752 = vmatpush.msra.mxu0 %v3689
    %3753 = vmatpush.msra.mxu0 %v3688
    %3754 = vmatpush.msra.mxu0 %v3687
    %3755 = vmatpush.msra.mxu0 %v3686
    %3756 = vmatpush.msra.mxu0 %v3685
    %3757 = vmatpush.msra.mxu0 %v3684
    %3758 = vmatpush.msra.mxu0 %v3683
    %3759 = vmatpush.msra.mxu0 %v3682
    %3760 = vmatpush.msra.mxu0 %v3681
    %3761 = vmatpush.msra.mxu0 %v3680
    %3762 = vmatpush.msra.mxu0 %v3679
    %3763 = vmatmul.f32.gmra.mxu0 %v3659
    %v3764 = vpop.f32.mrf.mxu0
    %v3765 = vadd.f32 %v3745, %v3764
    %3766 = vdwg.mxu0
    %3767 = vmatpush.msra.mxu0 %v3710
    %3768 = vmatpush.msra.mxu0 %v3709
    %3769 = vmatpush.msra.mxu0 %v3708
    %3770 = vmatpush.msra.mxu0 %v3707
    %3771 = vmatpush.msra.mxu0 %v3706
    %3772 = vmatpush.msra.mxu0 %v3705
    %3773 = vmatpush.msra.mxu0 %v3704
    %3774 = vmatpush.msra.mxu0 %v3703
    %3775 = vmatpush.msra.mxu0 %v3702
    %3776 = vmatpush.msra.mxu0 %v3701
    %3777 = vmatpush.msra.mxu0 %v3700
    %3778 = vmatpush.msra.mxu0 %v3699
    %3779 = vmatpush.msra.mxu0 %v3698
    %3780 = vmatpush.msra.mxu0 %v3697
    %3781 = vmatpush.msra.mxu0 %v3696
    %3782 = vmatpush.msra.mxu0 %v3695
    %3783 = vmatmul.f32.gmra.mxu0 %v3660
    %v3784 = vpop.f32.mrf.mxu0
    %v3785 = vadd.f32 %v3765, %v3784
    %3786 = vdwg.mxu0
    %3787 = vmatpush.msra.mxu0 %v3726
    %3788 = vmatpush.msra.mxu0 %v3725
    %3789 = vmatpush.msra.mxu0 %v3724
    %3790 = vmatpush.msra.mxu0 %v3723
    %3791 = vmatpush.msra.mxu0 %v3722
    %3792 = vmatpush.msra.mxu0 %v3721
    %3793 = vmatpush.msra.mxu0 %v3720
    %3794 = vmatpush.msra.mxu0 %v3719
    %3795 = vmatpush.msra.mxu0 %v3718
    %3796 = vmatpush.msra.mxu0 %v3717
    %3797 = vmatpush.msra.mxu0 %v3716
    %3798 = vmatpush.msra.mxu0 %v3715
    %3799 = vmatpush.msra.mxu0 %v3714
    %3800 = vmatpush.msra.mxu0 %v3713
    %3801 = vmatpush.msra.mxu0 %v3712
    %3802 = vmatpush.msra.mxu0 %v3711
    %3803 = vmatmul.f32.gmra.mxu0 %v3661
    %v3804 = vpop.f32.mrf.mxu0
    %v3805 = vadd.f32 %v3785, %v3804
    %3806 = vdwg.mxu0
    %v3807 = vsub.f32 %v3805, %v3489
    %v3808 = vmul.f32 %v3807, %v3807
    %v3809 = vsel %vm2168, %v3808, 0.0
    %3810 = vadd.xlane.f32.xlu0 %v3809
    %v3811 = vpop.xlane.xlu0 %3810
    %v3812 = vmul.f32 %v3811, %v325
    %vm3813 = vcmp.eq.s32.totalorder %v237, 5
    %v3814 = vsel %vm3813, %v3649, %v3486
    %v3815 = vsel %vm3813, %v3812, %v3487
    %v3816 = vadd.f32 %v3488, %v3805
    %v3817 = vsub.f32 %v3489, %v3805
    %s3818 = scalar_lea.vmem %s45, 768
    %v3819 = vld [vmem:[%s3818] sm:$0xff]
    %v3820 = vld [vmem:[%s3818 + $0x8] sm:$0xff]
    %v3821 = vld [vmem:[%s3818 + $0x10] sm:$0xff]
    %v3822 = vld [vmem:[%s3818 + $0x18] sm:$0xff]
    %v3823 = vld [vmem:[%s3818 + $0x20] sm:$0xff]
    %v3824 = vld [vmem:[%s3818 + $0x28] sm:$0xff]
    %v3825 = vld [vmem:[%s3818 + $0x30] sm:$0xff]
    %v3826 = vld [vmem:[%s3818 + $0x38] sm:$0xff]
    %v3827 = vld [vmem:[%s3818 + $0x40] sm:$0xff]
    %v3828 = vld [vmem:[%s3818 + $0x48] sm:$0xff]
    %v3829 = vld [vmem:[%s3818 + $0x50] sm:$0xff]
    %v3830 = vld [vmem:[%s3818 + $0x58] sm:$0xff]
    %v3831 = vld [vmem:[%s3818 + $0x60] sm:$0xff]
    %v3832 = vld [vmem:[%s3818 + $0x68] sm:$0xff]
    %v3833 = vld [vmem:[%s3818 + $0x70] sm:$0xff]
    %v3834 = vld [vmem:[%s3818 + $0x78] sm:$0xff]
    %v3836 = vsel %vm281, %v3817, 0
    %3838 = vmatpush.msra.mxu0 0.0
    %3839 = vmatpush.msra.mxu0 0.0
    %3840 = vmatpush.msra.mxu0 0.0
    %3841 = vmatpush.msra.mxu0 0.0
    %3842 = vmatpush.msra.mxu0 0.0
    %3843 = vmatpush.msra.mxu0 0.0
    %3844 = vmatpush.msra.mxu0 0.0
    %3845 = vmatpush.msra.mxu0 0.0
    %3846 = vmatpush.msra.mxu0 0.0
    %3847 = vmatpush.msra.mxu0 0.0
    %3848 = vmatpush.msra.mxu0 0.0
    %3849 = vmatpush.msra.mxu0 0.0
    %3850 = vmatpush.msra.mxu0 %v3831
    %3851 = vmatpush.msra.mxu0 %v3827
    %3852 = vmatpush.msra.mxu0 %v3823
    %3853 = vmatpush.msra.mxu0 %v3819
    %3854 = vmatmul.f32.gmra.mxu0 %v3836
    %v3855 = vpop.f32.mrf.mxu0
    %v3856 = vadd.f32 0.0, %v3855
    %3857 = vdwg.mxu0
    %3858 = vmatpush.msra.mxu0 0.0
    %3859 = vmatpush.msra.mxu0 0.0
    %3860 = vmatpush.msra.mxu0 0.0
    %3861 = vmatpush.msra.mxu0 0.0
    %3862 = vmatpush.msra.mxu0 0.0
    %3863 = vmatpush.msra.mxu0 0.0
    %3864 = vmatpush.msra.mxu0 0.0
    %3865 = vmatpush.msra.mxu0 0.0
    %3866 = vmatpush.msra.mxu0 0.0
    %3867 = vmatpush.msra.mxu0 0.0
    %3868 = vmatpush.msra.mxu0 0.0
    %3869 = vmatpush.msra.mxu0 0.0
    %3870 = vmatpush.msra.mxu0 %v3832
    %3871 = vmatpush.msra.mxu0 %v3828
    %3872 = vmatpush.msra.mxu0 %v3824
    %3873 = vmatpush.msra.mxu0 %v3820
    %3874 = vmatmul.f32.gmra.mxu0 %v3836
    %v3875 = vpop.f32.mrf.mxu0
    %v3876 = vadd.f32 0.0, %v3875
    %3877 = vdwg.mxu0
    %3878 = vmatpush.msra.mxu0 0.0
    %3879 = vmatpush.msra.mxu0 0.0
    %3880 = vmatpush.msra.mxu0 0.0
    %3881 = vmatpush.msra.mxu0 0.0
    %3882 = vmatpush.msra.mxu0 0.0
    %3883 = vmatpush.msra.mxu0 0.0
    %3884 = vmatpush.msra.mxu0 0.0
    %3885 = vmatpush.msra.mxu0 0.0
    %3886 = vmatpush.msra.mxu0 0.0
    %3887 = vmatpush.msra.mxu0 0.0
    %3888 = vmatpush.msra.mxu0 0.0
    %3889 = vmatpush.msra.mxu0 0.0
    %3890 = vmatpush.msra.mxu0 %v3833
    %3891 = vmatpush.msra.mxu0 %v3829
    %3892 = vmatpush.msra.mxu0 %v3825
    %3893 = vmatpush.msra.mxu0 %v3821
    %3894 = vmatmul.f32.gmra.mxu0 %v3836
    %v3895 = vpop.f32.mrf.mxu0
    %v3896 = vadd.f32 0.0, %v3895
    %3897 = vdwg.mxu0
    %3898 = vmatpush.msra.mxu0 0.0
    %3899 = vmatpush.msra.mxu0 0.0
    %3900 = vmatpush.msra.mxu0 0.0
    %3901 = vmatpush.msra.mxu0 0.0
    %3902 = vmatpush.msra.mxu0 0.0
    %3903 = vmatpush.msra.mxu0 0.0
    %3904 = vmatpush.msra.mxu0 0.0
    %3905 = vmatpush.msra.mxu0 0.0
    %3906 = vmatpush.msra.mxu0 0.0
    %3907 = vmatpush.msra.mxu0 0.0
    %3908 = vmatpush.msra.mxu0 0.0
    %3909 = vmatpush.msra.mxu0 0.0
    %3910 = vmatpush.msra.mxu0 %v3834
    %3911 = vmatpush.msra.mxu0 %v3830
    %3912 = vmatpush.msra.mxu0 %v3826
    %3913 = vmatpush.msra.mxu0 %v3822
    %3914 = vmatmul.f32.gmra.mxu0 %v3836
    %v3915 = vpop.f32.mrf.mxu0
    %v3916 = vadd.f32 0.0, %v3915
    %3917 = vdwg.mxu0
    %s3918 = scalar_lea.vmem %s47, 24
    %v3919 = vld [vmem:[%s3918] sm:$0xf]
    %v3920 = vmul.f32 %v3856, 2.0
    %v3921 = vmul.f32 %v3876, 2.0
    %v3922 = vmul.f32 %v3896, 2.0
    %v3923 = vmul.f32 %v3916, 2.0
    %v3925 = vperm.slane %v3919, 0
    %v3926 = vperm.slane %v3919, 1
    %v3927 = vperm.slane %v3919, 2
    %v3928 = vperm.slane %v3919, 3
    %v3933 = vsub.f32 %v3925, %v3920
    %v3934 = vsub.f32 %v3926, %v3921
    %v3935 = vsub.f32 %v3927, %v3922
    %v3936 = vsub.f32 %v3928, %v3923
    %v3937 = vsel %vm1968, %v3933, inf
    %v3938 = vsel %vm1968, %v3934, inf
    %v3939 = vsel %vm1968, %v3935, inf
    %v3940 = vsel %vm1968, %v3936, inf
    %v3941 = vmin.f32 %v3937, %v3938
    %v3942 = vmin.f32 %v3939, %v3940
    %v3943 = vmin.f32 %v3941, %v3942
    %3944 = vmin.xlane.f32.xlu0 %v3943
    %v3945 = vpop.xlane.xlu0 %3944
    %vm3946 = vcmp.eq.f32.partialorder %v3933, %v3945
    %vm3947 = vcmp.eq.f32.partialorder %v3934, %v3945
    %vm3948 = vcmp.eq.f32.partialorder %v3935, %v3945
    %vm3949 = vcmp.eq.f32.partialorder %v3936, %v3945
    %v3950 = vsel %vm3946, %v237, 512
    %v3951 = vsel %vm3947, %v1848, 512
    %v3952 = vsel %vm3948, %v1849, 512
    %v3953 = vsel %vm3949, %v1850, 512
    %v3954 = vsel %vm1968, %v3950, 2147483647
    %v3955 = vsel %vm1968, %v3951, 2147483647
    %v3956 = vsel %vm1968, %v3952, 2147483647
    %v3957 = vsel %vm1968, %v3953, 2147483647
    %vm3958 = vcmp.lt.s32.totalorder %v3954, %v3955
    %v3959 = vsel %vm3958, %v3954, %v3955
    %vm3960 = vcmp.lt.s32.totalorder %v3956, %v3957
    %v3961 = vsel %vm3960, %v3956, %v3957
    %vm3962 = vcmp.lt.s32.totalorder %v3959, %v3961
    %v3963 = vsel %vm3962, %v3959, %v3961
    %v3964 = vand.u32 %v3963, 65535
    %v3965 = vshra.s32 %v3963, 16
    %v3966 = vcvt.s32.f32 %v3964
    %v3967 = vcvt.s32.f32 %v3965
    %3968 = vmin.xlane.f32.xlu0 %v3967
    %v3969 = vpop.xlane.xlu0 %3968
    %vm3970 = vcmp.eq.f32.partialorder %v3967, %v3969
    %v3971 = vsel %vm3970, %v3966, inf
    %3972 = vmin.xlane.f32.xlu0 %v3971
    %v3973 = vpop.xlane.xlu0 %3972
    %v3974 = vcvt.f32.s32 %v3973
    %v3975 = vcvt.f32.s32 %v3969
    %v3976 = vshll.u32 %v3975, 16
    %v3977 = vadd.s32 %v3976, %v3974
    %vm3978 = vcmp.eq.s32.totalorder %v237, %v3977
    %vm3979 = vcmp.eq.s32.totalorder %v1848, %v3977
    %vm3980 = vcmp.eq.s32.totalorder %v1849, %v3977
    %vm3981 = vcmp.eq.s32.totalorder %v1850, %v3977
    %v3982 = vsel %vm3978, 1, 0
    %v3983 = vsel %vm3979, 1, 0
    %v3984 = vsel %vm3980, 1, 0
    %v3985 = vsel %vm3981, 1, 0
    %v3986 = vcvt.s32.f32 %v3982
    %v3987 = vcvt.s32.f32 %v3983
    %v3988 = vcvt.s32.f32 %v3984
    %v3989 = vcvt.s32.f32 %v3985
    %s3990 = scalar_lea.vmem %s43, 3072
    %v3991 = vld [vmem:[%s3990] sm:$0xff]
    %v3992 = vld [vmem:[%s3990 + $0x8] sm:$0xff]
    %v3993 = vld [vmem:[%s3990 + $0x10] sm:$0xff]
    %v3994 = vld [vmem:[%s3990 + $0x18] sm:$0xff]
    %v3995 = vld [vmem:[%s3990 + $0x20] sm:$0xff]
    %v3996 = vld [vmem:[%s3990 + $0x28] sm:$0xff]
    %v3997 = vld [vmem:[%s3990 + $0x30] sm:$0xff]
    %v3998 = vld [vmem:[%s3990 + $0x38] sm:$0xff]
    %v3999 = vld [vmem:[%s3990 + $0x40] sm:$0xff]
    %v4000 = vld [vmem:[%s3990 + $0x48] sm:$0xff]
    %v4001 = vld [vmem:[%s3990 + $0x50] sm:$0xff]
    %v4002 = vld [vmem:[%s3990 + $0x58] sm:$0xff]
    %v4003 = vld [vmem:[%s3990 + $0x60] sm:$0xff]
    %v4004 = vld [vmem:[%s3990 + $0x68] sm:$0xff]
    %v4005 = vld [vmem:[%s3990 + $0x70] sm:$0xff]
    %v4006 = vld [vmem:[%s3990 + $0x78] sm:$0xff]
    %v4007 = vld [vmem:[%s3990 + $0x80] sm:$0xff]
    %v4008 = vld [vmem:[%s3990 + $0x88] sm:$0xff]
    %v4009 = vld [vmem:[%s3990 + $0x90] sm:$0xff]
    %v4010 = vld [vmem:[%s3990 + $0x98] sm:$0xff]
    %v4011 = vld [vmem:[%s3990 + $0xa0] sm:$0xff]
    %v4012 = vld [vmem:[%s3990 + $0xa8] sm:$0xff]
    %v4013 = vld [vmem:[%s3990 + $0xb0] sm:$0xff]
    %v4014 = vld [vmem:[%s3990 + $0xb8] sm:$0xff]
    %v4015 = vld [vmem:[%s3990 + $0xc0] sm:$0xff]
    %v4016 = vld [vmem:[%s3990 + $0xc8] sm:$0xff]
    %v4017 = vld [vmem:[%s3990 + $0xd0] sm:$0xff]
    %v4018 = vld [vmem:[%s3990 + $0xd8] sm:$0xff]
    %v4019 = vld [vmem:[%s3990 + $0xe0] sm:$0xff]
    %v4020 = vld [vmem:[%s3990 + $0xe8] sm:$0xff]
    %v4021 = vld [vmem:[%s3990 + $0xf0] sm:$0xff]
    %v4022 = vld [vmem:[%s3990 + $0xf8] sm:$0xff]
    %v4023 = vld [vmem:[%s3990 + $0x100] sm:$0xff]
    %v4024 = vld [vmem:[%s3990 + $0x108] sm:$0xff]
    %v4025 = vld [vmem:[%s3990 + $0x110] sm:$0xff]
    %v4026 = vld [vmem:[%s3990 + $0x118] sm:$0xff]
    %v4027 = vld [vmem:[%s3990 + $0x120] sm:$0xff]
    %v4028 = vld [vmem:[%s3990 + $0x128] sm:$0xff]
    %v4029 = vld [vmem:[%s3990 + $0x130] sm:$0xff]
    %v4030 = vld [vmem:[%s3990 + $0x138] sm:$0xff]
    %v4031 = vld [vmem:[%s3990 + $0x140] sm:$0xff]
    %v4032 = vld [vmem:[%s3990 + $0x148] sm:$0xff]
    %v4033 = vld [vmem:[%s3990 + $0x150] sm:$0xff]
    %v4034 = vld [vmem:[%s3990 + $0x158] sm:$0xff]
    %v4035 = vld [vmem:[%s3990 + $0x160] sm:$0xff]
    %v4036 = vld [vmem:[%s3990 + $0x168] sm:$0xff]
    %v4037 = vld [vmem:[%s3990 + $0x170] sm:$0xff]
    %v4038 = vld [vmem:[%s3990 + $0x178] sm:$0xff]
    %v4039 = vld [vmem:[%s3990 + $0x180] sm:$0xff]
    %v4040 = vld [vmem:[%s3990 + $0x188] sm:$0xff]
    %v4041 = vld [vmem:[%s3990 + $0x190] sm:$0xff]
    %v4042 = vld [vmem:[%s3990 + $0x198] sm:$0xff]
    %v4043 = vld [vmem:[%s3990 + $0x1a0] sm:$0xff]
    %v4044 = vld [vmem:[%s3990 + $0x1a8] sm:$0xff]
    %v4045 = vld [vmem:[%s3990 + $0x1b0] sm:$0xff]
    %v4046 = vld [vmem:[%s3990 + $0x1b8] sm:$0xff]
    %v4047 = vld [vmem:[%s3990 + $0x1c0] sm:$0xff]
    %v4048 = vld [vmem:[%s3990 + $0x1c8] sm:$0xff]
    %v4049 = vld [vmem:[%s3990 + $0x1d0] sm:$0xff]
    %v4050 = vld [vmem:[%s3990 + $0x1d8] sm:$0xff]
    %v4051 = vld [vmem:[%s3990 + $0x1e0] sm:$0xff]
    %v4052 = vld [vmem:[%s3990 + $0x1e8] sm:$0xff]
    %v4053 = vld [vmem:[%s3990 + $0x1f0] sm:$0xff]
    %v4054 = vld [vmem:[%s3990 + $0x1f8] sm:$0xff]
    %4055 = vmatpush.msra.mxu0 %v4006
    %4056 = vmatpush.msra.mxu0 %v4005
    %4057 = vmatpush.msra.mxu0 %v4004
    %4058 = vmatpush.msra.mxu0 %v4003
    %4059 = vmatpush.msra.mxu0 %v4002
    %4060 = vmatpush.msra.mxu0 %v4001
    %4061 = vmatpush.msra.mxu0 %v4000
    %4062 = vmatpush.msra.mxu0 %v3999
    %4063 = vmatpush.msra.mxu0 %v3998
    %4064 = vmatpush.msra.mxu0 %v3997
    %4065 = vmatpush.msra.mxu0 %v3996
    %4066 = vmatpush.msra.mxu0 %v3995
    %4067 = vmatpush.msra.mxu0 %v3994
    %4068 = vmatpush.msra.mxu0 %v3993
    %4069 = vmatpush.msra.mxu0 %v3992
    %4070 = vmatpush.msra.mxu0 %v3991
    %4071 = vmatmul.f32.gmra.mxu0 %v3986
    %v4072 = vpop.f32.mrf.mxu0
    %v4073 = vadd.f32 0.0, %v4072
    %4074 = vdwg.mxu0
    %4075 = vmatpush.msra.mxu0 %v4022
    %4076 = vmatpush.msra.mxu0 %v4021
    %4077 = vmatpush.msra.mxu0 %v4020
    %4078 = vmatpush.msra.mxu0 %v4019
    %4079 = vmatpush.msra.mxu0 %v4018
    %4080 = vmatpush.msra.mxu0 %v4017
    %4081 = vmatpush.msra.mxu0 %v4016
    %4082 = vmatpush.msra.mxu0 %v4015
    %4083 = vmatpush.msra.mxu0 %v4014
    %4084 = vmatpush.msra.mxu0 %v4013
    %4085 = vmatpush.msra.mxu0 %v4012
    %4086 = vmatpush.msra.mxu0 %v4011
    %4087 = vmatpush.msra.mxu0 %v4010
    %4088 = vmatpush.msra.mxu0 %v4009
    %4089 = vmatpush.msra.mxu0 %v4008
    %4090 = vmatpush.msra.mxu0 %v4007
    %4091 = vmatmul.f32.gmra.mxu0 %v3987
    %v4092 = vpop.f32.mrf.mxu0
    %v4093 = vadd.f32 %v4073, %v4092
    %4094 = vdwg.mxu0
    %4095 = vmatpush.msra.mxu0 %v4038
    %4096 = vmatpush.msra.mxu0 %v4037
    %4097 = vmatpush.msra.mxu0 %v4036
    %4098 = vmatpush.msra.mxu0 %v4035
    %4099 = vmatpush.msra.mxu0 %v4034
    %4100 = vmatpush.msra.mxu0 %v4033
    %4101 = vmatpush.msra.mxu0 %v4032
    %4102 = vmatpush.msra.mxu0 %v4031
    %4103 = vmatpush.msra.mxu0 %v4030
    %4104 = vmatpush.msra.mxu0 %v4029
    %4105 = vmatpush.msra.mxu0 %v4028
    %4106 = vmatpush.msra.mxu0 %v4027
    %4107 = vmatpush.msra.mxu0 %v4026
    %4108 = vmatpush.msra.mxu0 %v4025
    %4109 = vmatpush.msra.mxu0 %v4024
    %4110 = vmatpush.msra.mxu0 %v4023
    %4111 = vmatmul.f32.gmra.mxu0 %v3988
    %v4112 = vpop.f32.mrf.mxu0
    %v4113 = vadd.f32 %v4093, %v4112
    %4114 = vdwg.mxu0
    %4115 = vmatpush.msra.mxu0 %v4054
    %4116 = vmatpush.msra.mxu0 %v4053
    %4117 = vmatpush.msra.mxu0 %v4052
    %4118 = vmatpush.msra.mxu0 %v4051
    %4119 = vmatpush.msra.mxu0 %v4050
    %4120 = vmatpush.msra.mxu0 %v4049
    %4121 = vmatpush.msra.mxu0 %v4048
    %4122 = vmatpush.msra.mxu0 %v4047
    %4123 = vmatpush.msra.mxu0 %v4046
    %4124 = vmatpush.msra.mxu0 %v4045
    %4125 = vmatpush.msra.mxu0 %v4044
    %4126 = vmatpush.msra.mxu0 %v4043
    %4127 = vmatpush.msra.mxu0 %v4042
    %4128 = vmatpush.msra.mxu0 %v4041
    %4129 = vmatpush.msra.mxu0 %v4040
    %4130 = vmatpush.msra.mxu0 %v4039
    %4131 = vmatmul.f32.gmra.mxu0 %v3989
    %v4132 = vpop.f32.mrf.mxu0
    %v4133 = vadd.f32 %v4113, %v4132
    %4134 = vdwg.mxu0
    %v4135 = vsub.f32 %v4133, %v3817
    %v4136 = vmul.f32 %v4135, %v4135
    %v4137 = vsel %vm2168, %v4136, 0.0
    %4138 = vadd.xlane.f32.xlu0 %v4137
    %v4139 = vpop.xlane.xlu0 %4138
    %v4140 = vmul.f32 %v4139, %v325
    %vm4141 = vcmp.eq.s32.totalorder %v237, 6
    %v4142 = vsel %vm4141, %v3977, %v3814
    %v4143 = vsel %vm4141, %v4140, %v3815
    %v4144 = vadd.f32 %v3816, %v4133
    %v4145 = vsub.f32 %v3817, %v4133
    %s4146 = scalar_lea.vmem %s45, 896
    %v4147 = vld [vmem:[%s4146] sm:$0xff]
    %v4148 = vld [vmem:[%s4146 + $0x8] sm:$0xff]
    %v4149 = vld [vmem:[%s4146 + $0x10] sm:$0xff]
    %v4150 = vld [vmem:[%s4146 + $0x18] sm:$0xff]
    %v4151 = vld [vmem:[%s4146 + $0x20] sm:$0xff]
    %v4152 = vld [vmem:[%s4146 + $0x28] sm:$0xff]
    %v4153 = vld [vmem:[%s4146 + $0x30] sm:$0xff]
    %v4154 = vld [vmem:[%s4146 + $0x38] sm:$0xff]
    %v4155 = vld [vmem:[%s4146 + $0x40] sm:$0xff]
    %v4156 = vld [vmem:[%s4146 + $0x48] sm:$0xff]
    %v4157 = vld [vmem:[%s4146 + $0x50] sm:$0xff]
    %v4158 = vld [vmem:[%s4146 + $0x58] sm:$0xff]
    %v4159 = vld [vmem:[%s4146 + $0x60] sm:$0xff]
    %v4160 = vld [vmem:[%s4146 + $0x68] sm:$0xff]
    %v4161 = vld [vmem:[%s4146 + $0x70] sm:$0xff]
    %v4162 = vld [vmem:[%s4146 + $0x78] sm:$0xff]
    %v4164 = vsel %vm281, %v4145, 0
    %4166 = vmatpush.msra.mxu0 0.0
    %4167 = vmatpush.msra.mxu0 0.0
    %4168 = vmatpush.msra.mxu0 0.0
    %4169 = vmatpush.msra.mxu0 0.0
    %4170 = vmatpush.msra.mxu0 0.0
    %4171 = vmatpush.msra.mxu0 0.0
    %4172 = vmatpush.msra.mxu0 0.0
    %4173 = vmatpush.msra.mxu0 0.0
    %4174 = vmatpush.msra.mxu0 0.0
    %4175 = vmatpush.msra.mxu0 0.0
    %4176 = vmatpush.msra.mxu0 0.0
    %4177 = vmatpush.msra.mxu0 0.0
    %4178 = vmatpush.msra.mxu0 %v4159
    %4179 = vmatpush.msra.mxu0 %v4155
    %4180 = vmatpush.msra.mxu0 %v4151
    %4181 = vmatpush.msra.mxu0 %v4147
    %4182 = vmatmul.f32.gmra.mxu0 %v4164
    %v4183 = vpop.f32.mrf.mxu0
    %v4184 = vadd.f32 0.0, %v4183
    %4185 = vdwg.mxu0
    %4186 = vmatpush.msra.mxu0 0.0
    %4187 = vmatpush.msra.mxu0 0.0
    %4188 = vmatpush.msra.mxu0 0.0
    %4189 = vmatpush.msra.mxu0 0.0
    %4190 = vmatpush.msra.mxu0 0.0
    %4191 = vmatpush.msra.mxu0 0.0
    %4192 = vmatpush.msra.mxu0 0.0
    %4193 = vmatpush.msra.mxu0 0.0
    %4194 = vmatpush.msra.mxu0 0.0
    %4195 = vmatpush.msra.mxu0 0.0
    %4196 = vmatpush.msra.mxu0 0.0
    %4197 = vmatpush.msra.mxu0 0.0
    %4198 = vmatpush.msra.mxu0 %v4160
    %4199 = vmatpush.msra.mxu0 %v4156
    %4200 = vmatpush.msra.mxu0 %v4152
    %4201 = vmatpush.msra.mxu0 %v4148
    %4202 = vmatmul.f32.gmra.mxu0 %v4164
    %v4203 = vpop.f32.mrf.mxu0
    %v4204 = vadd.f32 0.0, %v4203
    %4205 = vdwg.mxu0
    %4206 = vmatpush.msra.mxu0 0.0
    %4207 = vmatpush.msra.mxu0 0.0
    %4208 = vmatpush.msra.mxu0 0.0
    %4209 = vmatpush.msra.mxu0 0.0
    %4210 = vmatpush.msra.mxu0 0.0
    %4211 = vmatpush.msra.mxu0 0.0
    %4212 = vmatpush.msra.mxu0 0.0
    %4213 = vmatpush.msra.mxu0 0.0
    %4214 = vmatpush.msra.mxu0 0.0
    %4215 = vmatpush.msra.mxu0 0.0
    %4216 = vmatpush.msra.mxu0 0.0
    %4217 = vmatpush.msra.mxu0 0.0
    %4218 = vmatpush.msra.mxu0 %v4161
    %4219 = vmatpush.msra.mxu0 %v4157
    %4220 = vmatpush.msra.mxu0 %v4153
    %4221 = vmatpush.msra.mxu0 %v4149
    %4222 = vmatmul.f32.gmra.mxu0 %v4164
    %v4223 = vpop.f32.mrf.mxu0
    %v4224 = vadd.f32 0.0, %v4223
    %4225 = vdwg.mxu0
    %4226 = vmatpush.msra.mxu0 0.0
    %4227 = vmatpush.msra.mxu0 0.0
    %4228 = vmatpush.msra.mxu0 0.0
    %4229 = vmatpush.msra.mxu0 0.0
    %4230 = vmatpush.msra.mxu0 0.0
    %4231 = vmatpush.msra.mxu0 0.0
    %4232 = vmatpush.msra.mxu0 0.0
    %4233 = vmatpush.msra.mxu0 0.0
    %4234 = vmatpush.msra.mxu0 0.0
    %4235 = vmatpush.msra.mxu0 0.0
    %4236 = vmatpush.msra.mxu0 0.0
    %4237 = vmatpush.msra.mxu0 0.0
    %4238 = vmatpush.msra.mxu0 %v4162
    %4239 = vmatpush.msra.mxu0 %v4158
    %4240 = vmatpush.msra.mxu0 %v4154
    %4241 = vmatpush.msra.mxu0 %v4150
    %4242 = vmatmul.f32.gmra.mxu0 %v4164
    %v4243 = vpop.f32.mrf.mxu0
    %v4244 = vadd.f32 0.0, %v4243
    %4245 = vdwg.mxu0
    %s4246 = scalar_lea.vmem %s47, 28
    %v4247 = vld [vmem:[%s4246] sm:$0xf]
    %v4248 = vmul.f32 %v4184, 2.0
    %v4249 = vmul.f32 %v4204, 2.0
    %v4250 = vmul.f32 %v4224, 2.0
    %v4251 = vmul.f32 %v4244, 2.0
    %v4253 = vperm.slane %v4247, 0
    %v4254 = vperm.slane %v4247, 1
    %v4255 = vperm.slane %v4247, 2
    %v4256 = vperm.slane %v4247, 3
    %v4261 = vsub.f32 %v4253, %v4248
    %v4262 = vsub.f32 %v4254, %v4249
    %v4263 = vsub.f32 %v4255, %v4250
    %v4264 = vsub.f32 %v4256, %v4251
    %v4265 = vsel %vm1968, %v4261, inf
    %v4266 = vsel %vm1968, %v4262, inf
    %v4267 = vsel %vm1968, %v4263, inf
    %v4268 = vsel %vm1968, %v4264, inf
    %v4269 = vmin.f32 %v4265, %v4266
    %v4270 = vmin.f32 %v4267, %v4268
    %v4271 = vmin.f32 %v4269, %v4270
    %4272 = vmin.xlane.f32.xlu0 %v4271
    %v4273 = vpop.xlane.xlu0 %4272
    %vm4274 = vcmp.eq.f32.partialorder %v4261, %v4273
    %vm4275 = vcmp.eq.f32.partialorder %v4262, %v4273
    %vm4276 = vcmp.eq.f32.partialorder %v4263, %v4273
    %vm4277 = vcmp.eq.f32.partialorder %v4264, %v4273
    %v4278 = vsel %vm4274, %v237, 512
    %v4279 = vsel %vm4275, %v1848, 512
    %v4280 = vsel %vm4276, %v1849, 512
    %v4281 = vsel %vm4277, %v1850, 512
    %v4282 = vsel %vm1968, %v4278, 2147483647
    %v4283 = vsel %vm1968, %v4279, 2147483647
    %v4284 = vsel %vm1968, %v4280, 2147483647
    %v4285 = vsel %vm1968, %v4281, 2147483647
    %vm4286 = vcmp.lt.s32.totalorder %v4282, %v4283
    %v4287 = vsel %vm4286, %v4282, %v4283
    %vm4288 = vcmp.lt.s32.totalorder %v4284, %v4285
    %v4289 = vsel %vm4288, %v4284, %v4285
    %vm4290 = vcmp.lt.s32.totalorder %v4287, %v4289
    %v4291 = vsel %vm4290, %v4287, %v4289
    %v4292 = vand.u32 %v4291, 65535
    %v4293 = vshra.s32 %v4291, 16
    %v4294 = vcvt.s32.f32 %v4292
    %v4295 = vcvt.s32.f32 %v4293
    %4296 = vmin.xlane.f32.xlu0 %v4295
    %v4297 = vpop.xlane.xlu0 %4296
    %vm4298 = vcmp.eq.f32.partialorder %v4295, %v4297
    %v4299 = vsel %vm4298, %v4294, inf
    %4300 = vmin.xlane.f32.xlu0 %v4299
    %v4301 = vpop.xlane.xlu0 %4300
    %v4302 = vcvt.f32.s32 %v4301
    %v4303 = vcvt.f32.s32 %v4297
    %v4304 = vshll.u32 %v4303, 16
    %v4305 = vadd.s32 %v4304, %v4302
    %vm4306 = vcmp.eq.s32.totalorder %v237, %v4305
    %vm4307 = vcmp.eq.s32.totalorder %v1848, %v4305
    %vm4308 = vcmp.eq.s32.totalorder %v1849, %v4305
    %vm4309 = vcmp.eq.s32.totalorder %v1850, %v4305
    %v4310 = vsel %vm4306, 1, 0
    %v4311 = vsel %vm4307, 1, 0
    %v4312 = vsel %vm4308, 1, 0
    %v4313 = vsel %vm4309, 1, 0
    %v4314 = vcvt.s32.f32 %v4310
    %v4315 = vcvt.s32.f32 %v4311
    %v4316 = vcvt.s32.f32 %v4312
    %v4317 = vcvt.s32.f32 %v4313
    %s4318 = scalar_lea.vmem %s43, 3584
    %v4319 = vld [vmem:[%s4318] sm:$0xff]
    %v4320 = vld [vmem:[%s4318 + $0x8] sm:$0xff]
    %v4321 = vld [vmem:[%s4318 + $0x10] sm:$0xff]
    %v4322 = vld [vmem:[%s4318 + $0x18] sm:$0xff]
    %v4323 = vld [vmem:[%s4318 + $0x20] sm:$0xff]
    %v4324 = vld [vmem:[%s4318 + $0x28] sm:$0xff]
    %v4325 = vld [vmem:[%s4318 + $0x30] sm:$0xff]
    %v4326 = vld [vmem:[%s4318 + $0x38] sm:$0xff]
    %v4327 = vld [vmem:[%s4318 + $0x40] sm:$0xff]
    %v4328 = vld [vmem:[%s4318 + $0x48] sm:$0xff]
    %v4329 = vld [vmem:[%s4318 + $0x50] sm:$0xff]
    %v4330 = vld [vmem:[%s4318 + $0x58] sm:$0xff]
    %v4331 = vld [vmem:[%s4318 + $0x60] sm:$0xff]
    %v4332 = vld [vmem:[%s4318 + $0x68] sm:$0xff]
    %v4333 = vld [vmem:[%s4318 + $0x70] sm:$0xff]
    %v4334 = vld [vmem:[%s4318 + $0x78] sm:$0xff]
    %v4335 = vld [vmem:[%s4318 + $0x80] sm:$0xff]
    %v4336 = vld [vmem:[%s4318 + $0x88] sm:$0xff]
    %v4337 = vld [vmem:[%s4318 + $0x90] sm:$0xff]
    %v4338 = vld [vmem:[%s4318 + $0x98] sm:$0xff]
    %v4339 = vld [vmem:[%s4318 + $0xa0] sm:$0xff]
    %v4340 = vld [vmem:[%s4318 + $0xa8] sm:$0xff]
    %v4341 = vld [vmem:[%s4318 + $0xb0] sm:$0xff]
    %v4342 = vld [vmem:[%s4318 + $0xb8] sm:$0xff]
    %v4343 = vld [vmem:[%s4318 + $0xc0] sm:$0xff]
    %v4344 = vld [vmem:[%s4318 + $0xc8] sm:$0xff]
    %v4345 = vld [vmem:[%s4318 + $0xd0] sm:$0xff]
    %v4346 = vld [vmem:[%s4318 + $0xd8] sm:$0xff]
    %v4347 = vld [vmem:[%s4318 + $0xe0] sm:$0xff]
    %v4348 = vld [vmem:[%s4318 + $0xe8] sm:$0xff]
    %v4349 = vld [vmem:[%s4318 + $0xf0] sm:$0xff]
    %v4350 = vld [vmem:[%s4318 + $0xf8] sm:$0xff]
    %v4351 = vld [vmem:[%s4318 + $0x100] sm:$0xff]
    %v4352 = vld [vmem:[%s4318 + $0x108] sm:$0xff]
    %v4353 = vld [vmem:[%s4318 + $0x110] sm:$0xff]
    %v4354 = vld [vmem:[%s4318 + $0x118] sm:$0xff]
    %v4355 = vld [vmem:[%s4318 + $0x120] sm:$0xff]
    %v4356 = vld [vmem:[%s4318 + $0x128] sm:$0xff]
    %v4357 = vld [vmem:[%s4318 + $0x130] sm:$0xff]
    %v4358 = vld [vmem:[%s4318 + $0x138] sm:$0xff]
    %v4359 = vld [vmem:[%s4318 + $0x140] sm:$0xff]
    %v4360 = vld [vmem:[%s4318 + $0x148] sm:$0xff]
    %v4361 = vld [vmem:[%s4318 + $0x150] sm:$0xff]
    %v4362 = vld [vmem:[%s4318 + $0x158] sm:$0xff]
    %v4363 = vld [vmem:[%s4318 + $0x160] sm:$0xff]
    %v4364 = vld [vmem:[%s4318 + $0x168] sm:$0xff]
    %v4365 = vld [vmem:[%s4318 + $0x170] sm:$0xff]
    %v4366 = vld [vmem:[%s4318 + $0x178] sm:$0xff]
    %v4367 = vld [vmem:[%s4318 + $0x180] sm:$0xff]
    %v4368 = vld [vmem:[%s4318 + $0x188] sm:$0xff]
    %v4369 = vld [vmem:[%s4318 + $0x190] sm:$0xff]
    %v4370 = vld [vmem:[%s4318 + $0x198] sm:$0xff]
    %v4371 = vld [vmem:[%s4318 + $0x1a0] sm:$0xff]
    %v4372 = vld [vmem:[%s4318 + $0x1a8] sm:$0xff]
    %v4373 = vld [vmem:[%s4318 + $0x1b0] sm:$0xff]
    %v4374 = vld [vmem:[%s4318 + $0x1b8] sm:$0xff]
    %v4375 = vld [vmem:[%s4318 + $0x1c0] sm:$0xff]
    %v4376 = vld [vmem:[%s4318 + $0x1c8] sm:$0xff]
    %v4377 = vld [vmem:[%s4318 + $0x1d0] sm:$0xff]
    %v4378 = vld [vmem:[%s4318 + $0x1d8] sm:$0xff]
    %v4379 = vld [vmem:[%s4318 + $0x1e0] sm:$0xff]
    %v4380 = vld [vmem:[%s4318 + $0x1e8] sm:$0xff]
    %v4381 = vld [vmem:[%s4318 + $0x1f0] sm:$0xff]
    %v4382 = vld [vmem:[%s4318 + $0x1f8] sm:$0xff]
    %4383 = vmatpush.msra.mxu0 %v4334
    %4384 = vmatpush.msra.mxu0 %v4333
    %4385 = vmatpush.msra.mxu0 %v4332
    %4386 = vmatpush.msra.mxu0 %v4331
    %4387 = vmatpush.msra.mxu0 %v4330
    %4388 = vmatpush.msra.mxu0 %v4329
    %4389 = vmatpush.msra.mxu0 %v4328
    %4390 = vmatpush.msra.mxu0 %v4327
    %4391 = vmatpush.msra.mxu0 %v4326
    %4392 = vmatpush.msra.mxu0 %v4325
    %4393 = vmatpush.msra.mxu0 %v4324
    %4394 = vmatpush.msra.mxu0 %v4323
    %4395 = vmatpush.msra.mxu0 %v4322
    %4396 = vmatpush.msra.mxu0 %v4321
    %4397 = vmatpush.msra.mxu0 %v4320
    %4398 = vmatpush.msra.mxu0 %v4319
    %4399 = vmatmul.f32.gmra.mxu0 %v4314
    %v4400 = vpop.f32.mrf.mxu0
    %v4401 = vadd.f32 0.0, %v4400
    %4402 = vdwg.mxu0
    %4403 = vmatpush.msra.mxu0 %v4350
    %4404 = vmatpush.msra.mxu0 %v4349
    %4405 = vmatpush.msra.mxu0 %v4348
    %4406 = vmatpush.msra.mxu0 %v4347
    %4407 = vmatpush.msra.mxu0 %v4346
    %4408 = vmatpush.msra.mxu0 %v4345
    %4409 = vmatpush.msra.mxu0 %v4344
    %4410 = vmatpush.msra.mxu0 %v4343
    %4411 = vmatpush.msra.mxu0 %v4342
    %4412 = vmatpush.msra.mxu0 %v4341
    %4413 = vmatpush.msra.mxu0 %v4340
    %4414 = vmatpush.msra.mxu0 %v4339
    %4415 = vmatpush.msra.mxu0 %v4338
    %4416 = vmatpush.msra.mxu0 %v4337
    %4417 = vmatpush.msra.mxu0 %v4336
    %4418 = vmatpush.msra.mxu0 %v4335
    %4419 = vmatmul.f32.gmra.mxu0 %v4315
    %v4420 = vpop.f32.mrf.mxu0
    %v4421 = vadd.f32 %v4401, %v4420
    %4422 = vdwg.mxu0
    %4423 = vmatpush.msra.mxu0 %v4366
    %4424 = vmatpush.msra.mxu0 %v4365
    %4425 = vmatpush.msra.mxu0 %v4364
    %4426 = vmatpush.msra.mxu0 %v4363
    %4427 = vmatpush.msra.mxu0 %v4362
    %4428 = vmatpush.msra.mxu0 %v4361
    %4429 = vmatpush.msra.mxu0 %v4360
    %4430 = vmatpush.msra.mxu0 %v4359
    %4431 = vmatpush.msra.mxu0 %v4358
    %4432 = vmatpush.msra.mxu0 %v4357
    %4433 = vmatpush.msra.mxu0 %v4356
    %4434 = vmatpush.msra.mxu0 %v4355
    %4435 = vmatpush.msra.mxu0 %v4354
    %4436 = vmatpush.msra.mxu0 %v4353
    %4437 = vmatpush.msra.mxu0 %v4352
    %4438 = vmatpush.msra.mxu0 %v4351
    %4439 = vmatmul.f32.gmra.mxu0 %v4316
    %v4440 = vpop.f32.mrf.mxu0
    %v4441 = vadd.f32 %v4421, %v4440
    %4442 = vdwg.mxu0
    %4443 = vmatpush.msra.mxu0 %v4382
    %4444 = vmatpush.msra.mxu0 %v4381
    %4445 = vmatpush.msra.mxu0 %v4380
    %4446 = vmatpush.msra.mxu0 %v4379
    %4447 = vmatpush.msra.mxu0 %v4378
    %4448 = vmatpush.msra.mxu0 %v4377
    %4449 = vmatpush.msra.mxu0 %v4376
    %4450 = vmatpush.msra.mxu0 %v4375
    %4451 = vmatpush.msra.mxu0 %v4374
    %4452 = vmatpush.msra.mxu0 %v4373
    %4453 = vmatpush.msra.mxu0 %v4372
    %4454 = vmatpush.msra.mxu0 %v4371
    %4455 = vmatpush.msra.mxu0 %v4370
    %4456 = vmatpush.msra.mxu0 %v4369
    %4457 = vmatpush.msra.mxu0 %v4368
    %4458 = vmatpush.msra.mxu0 %v4367
    %4459 = vmatmul.f32.gmra.mxu0 %v4317
    %v4460 = vpop.f32.mrf.mxu0
    %v4461 = vadd.f32 %v4441, %v4460
    %4462 = vdwg.mxu0
    %v4463 = vsub.f32 %v4461, %v4145
    %v4464 = vmul.f32 %v4463, %v4463
    %v4465 = vsel %vm2168, %v4464, 0.0
    %4466 = vadd.xlane.f32.xlu0 %v4465
    %v4467 = vpop.xlane.xlu0 %4466
    %v4468 = vmul.f32 %v4467, %v325
    %vm4469 = vcmp.eq.s32.totalorder %v237, 7
    %v4470 = vsel %vm4469, %v4305, %v4142
    %v4471 = vsel %vm4469, %v4468, %v4143
    %v4472 = vadd.f32 %v4144, %v4461
    %vm4473 = vcmask 58368
    %4474 = vst.msk [vmem:[#allocation8] sm:$0x3] %vm4473, %v4470
    %v4475 = vld [vmem:[%s49] sm:$0xff]
    %v4476 = vld [vmem:[%s49 + $0x8] sm:$0xff]
    %v4477 = vld [vmem:[%s49 + $0x10] sm:$0xff]
    %v4478 = vld [vmem:[%s49 + $0x18] sm:$0xff]
    %v4479 = vld [vmem:[%s51] sm:$0xff]
    %4480 = vmatpush.msra.mxu0 0.0
    %4481 = vmatpush.msra.mxu0 0.0
    %4482 = vmatpush.msra.mxu0 0.0
    %4483 = vmatpush.msra.mxu0 0.0
    %4484 = vmatpush.msra.mxu0 0.0
    %4485 = vmatpush.msra.mxu0 0.0
    %4486 = vmatpush.msra.mxu0 0.0
    %4487 = vmatpush.msra.mxu0 0.0
    %4488 = vmatpush.msra.mxu0 0.0
    %4489 = vmatpush.msra.mxu0 0.0
    %4490 = vmatpush.msra.mxu0 0.0
    %4491 = vmatpush.msra.mxu0 0.0
    %4492 = vmatpush.msra.mxu0 %v4478
    %4493 = vmatpush.msra.mxu0 %v4477
    %4494 = vmatpush.msra.mxu0 %v4476
    %4495 = vmatpush.msra.mxu0 %v4475
    %4496 = vmatmul.f32.gmra.mxu0 %v283
    %v4497 = vpop.f32.mrf.mxu0
    %v4498 = vadd.f32 %v4479, %v4497
    %4499 = vmatmul.f32.gmra.mxu0 %v286
    %v4500 = vpop.f32.mrf.mxu0
    %v4501 = vadd.f32 %v4479, %v4500
    %4502 = vdwg.mxu0
    %v4503 = vld [vmem:[%s53] sm:$0x1]
    %v4504 = vld [vmem:[#allocation2] sm:$0x1]
    %v4505 = vsel %vm281, %v4498, 0.0
    %4506 = vadd.xlane.f32.xlu0 %v4505
    %v4507 = vpop.xlane.xlu0 %4506
    %v4508 = vsel %vm281, %v4501, 0.0
    %4509 = vadd.xlane.f32.xlu0 %v4508
    %v4510 = vpop.xlane.xlu0 %4509
    %v4511 = vmul.f32 %v4507, %v325
    %v4512 = vmul.f32 %v4510, %v325
    %v4513 = vsub.f32 %v4498, %v4511
    %v4514 = vsub.f32 %v4501, %v4512
    %v4515 = vmul.f32 %v4513, %v4513
    %v4516 = vmul.f32 %v4514, %v4514
    %v4517 = vsel %vm281, %v4515, 0.0
    %4518 = vadd.xlane.f32.xlu0 %v4517
    %v4519 = vpop.xlane.xlu0 %4518
    %v4520 = vsel %vm281, %v4516, 0.0
    %4521 = vadd.xlane.f32.xlu0 %v4520
    %v4522 = vpop.xlane.xlu0 %4521
    %v4523 = vmul.f32 %v4519, %v325
    %v4524 = vmul.f32 %v4522, %v325
    %v4525 = vadd.f32 %v4523, 1e-12
    %v4526 = vadd.f32 %v4524, 1e-12
    %v4527 = vrsqrt.pop %v4525
    %v4528 = vmul.f32 %v4527, %v4525
    %v4529 = vmul.f32 %v4528, %v4527
    %v4530 = vmul.f32 0.5, %v4529
    %v4531 = vsub.f32 1.5, %v4530
    %v4532 = vmul.f32 %v4527, %v4531
    %vm4533 = vweird.f32 %v4525
    %vm4534 = vweird.f32 %v4527
    %vm4535 = vmor %vm4533, %vm4534
    %v4536 = vsel %vm4535, %v4527, %v4532
    %v4537 = vrsqrt.pop %v4526
    %v4538 = vmul.f32 %v4537, %v4526
    %v4539 = vmul.f32 %v4538, %v4537
    %v4540 = vmul.f32 0.5, %v4539
    %v4541 = vsub.f32 1.5, %v4540
    %v4542 = vmul.f32 %v4537, %v4541
    %vm4543 = vweird.f32 %v4526
    %vm4544 = vweird.f32 %v4537
    %vm4545 = vmor %vm4543, %vm4544
    %v4546 = vsel %vm4545, %v4537, %v4542
    %v4547 = vmul.f32 %v4513, %v4536
    %v4548 = vmul.f32 %v4514, %v4546
    %v4550 = vperm.slane %v4503, 0
    %v4552 = vmul.f32 %v4547, %v4550
    %v4553 = vmul.f32 %v4548, %v4550
    %v4555 = vperm.slane %v4504, 0
    %v4557 = vadd.f32 %v4552, %v4555
    %v4558 = vadd.f32 %v4553, %v4555
    %v4559 = vld [vmem:[%s57] sm:$0xf]
    %v4560 = vld [vmem:[%s57 + $0x4] sm:$0xf]
    %v4561 = vld [vmem:[%s57 + $0x8] sm:$0xf]
    %v4562 = vld [vmem:[%s57 + $0xc] sm:$0xf]
    %v4563 = vld [vmem:[%s59] sm:$0x1]
    %v4564 = vld [vmem:[%s61] sm:$0xf]
    %v4565 = vld [vmem:[%s61 + $0x4] sm:$0xf]
    %v4566 = vld [vmem:[%s61 + $0x8] sm:$0xf]
    %v4567 = vld [vmem:[%s61 + $0xc] sm:$0xf]
    %v4568 = vld [vmem:[%s63] sm:$0x1]
    %v4569 = vld [vmem:[%s65] sm:$0x1]
    %v4570 = vld [vmem:[%s67] sm:$0x1]
    %v4571 = vpack.c.bf16 %v4558, %v4557
    %v4573 = vperm.slane %v4563, 0
    %v4579 = vunpack.c.l.b16 %v4559
    %v4580 = vunpack.c.l.b16 %v4560
    %v4581 = vunpack.c.l.b16 %v4561
    %v4582 = vunpack.c.l.b16 %v4562
    %v4583 = vpack.c.b16 %v4580, %v4579
    %v4584 = vpack.c.b16 %v4582, %v4581
    %v4588 = vsel %vm281, %v4571, 0
    %4590 = vmatpush.bf16.msra.mxu0 0
    %4591 = vmatpush.bf16.msra.mxu0 0
    %4592 = vmatpush.bf16.msra.mxu0 0
    %4593 = vmatpush.bf16.msra.mxu0 0
    %4594 = vmatpush.bf16.msra.mxu0 0
    %4595 = vmatpush.bf16.msra.mxu0 0
    %4596 = vmatpush.bf16.msra.mxu0 %v4584
    %4597 = vmatpush.bf16.msra.mxu0 %v4583
    %4598 = vmatmul.bf16.gmra.mxu0 %v4588
    %v4599 = vpop.f32.mrf.mxu0
    %v4600 = vadd.f32 %v4573, %v4599
    %v4601 = vpop.f32.mrf.mxu0
    %v4602 = vadd.f32 %v4573, %v4601
    %4603 = vdwg.mxu0
    %v4604 = vpack.c.bf16 %v4602, %v4600
    %4606 = vrot.lane.b32.xlu0 %v4604, 96
    %v4607 = vpop.permute.xlu0 %4606
    %v4609 = vsel %vm423, %v4604, 0
    %v4612 = vsel %vm423, %v4607, 0
    %4614 = vmatpush.bf16.xpose.msra.mxu0 0
    %4615 = vmatpush.bf16.xpose.msra.mxu0 0
    %4616 = vmatpush.bf16.xpose.msra.mxu0 0
    %4617 = vmatpush.bf16.xpose.msra.mxu0 0
    %4618 = vmatpush.bf16.xpose.msra.mxu0 0
    %4619 = vmatpush.bf16.xpose.msra.mxu0 0
    %4620 = vmatpush.bf16.xpose.msra.mxu0 0
    %4621 = vmatpush.bf16.xpose.msra.mxu0 %v4612
    %4622 = vmatmul.bf16.gmra.mxu0 %v4609
    %v4623 = vpop.f32.mrf.mxu0
    %v4624 = vadd.f32 0.0, %v4623
    %v4625 = vpop.f32.mrf.mxu0
    %v4626 = vadd.f32 0.0, %v4625
    %4627 = vdwg.mxu0
    %v4628 = vmul.f32 %v4624, 0.35355338
    %v4629 = vmul.f32 %v4626, 0.35355338
    %v4630 = vadd.f32 %v4628, %v274
    %v4631 = vadd.f32 %v4629, %v275
    %v4632 = vsel %vm448, %v4630, -inf
    %4633 = vmax.xlane.f32.xlu0 %v4632
    %v4634 = vpop.xlane.xlu0 %4633
    %v4635 = vsel %vm448, %v4631, -inf
    %4636 = vmax.xlane.f32.xlu0 %v4635
    %v4637 = vpop.xlane.xlu0 %4636
    %v4638 = vsub.f32 %v4630, %v4634
    %v4639 = vsub.f32 %v4631, %v4637
    %v4640 = vmul.f32 %v4638, 1.442695
    %v4641 = vpow.pop %v4640
    %v4642 = vmul.f32 %v4639, 1.442695
    %v4643 = vpow.pop %v4642
    %v4644 = vsel %vm448, %v4641, 0.0
    %4645 = vadd.xlane.f32.xlu0 %v4644
    %v4646 = vpop.xlane.xlu0 %4645
    %v4647 = vsel %vm448, %v4643, 0.0
    %4648 = vadd.xlane.f32.xlu0 %v4647
    %v4649 = vpop.xlane.xlu0 %4648
    %v4650 = vrcp.pop %v4646
    %v4651 = vrcp.pop %v4649
    %v4652 = vmul.f32 %v4641, %v4650
    %v4653 = vmul.f32 %v4643, %v4651
    %v4654 = vpack.c.bf16 %v4653, %v4652
    %4655 = vrot.lane.b32.xlu0 %v4604, 64
    %v4656 = vpop.permute.xlu0 %4655
    %v4659 = vsel %vm448, %v4654, 0
    %4661 = vmatpush.bf16.msra.mxu0 0
    %4662 = vmatpush.bf16.msra.mxu0 0
    %4663 = vmatpush.bf16.msra.mxu0 0
    %4664 = vmatpush.bf16.msra.mxu0 0
    %4665 = vmatpush.bf16.msra.mxu0 0
    %4666 = vmatpush.bf16.msra.mxu0 0
    %4667 = vmatpush.bf16.msra.mxu0 0
    %4668 = vmatpush.bf16.msra.mxu0 %v4656
    %4669 = vmatmul.bf16.gmra.mxu0 %v4659
    %v4670 = vpop.f32.mrf.mxu0
    %v4671 = vadd.f32 0.0, %v4670
    %v4672 = vpop.f32.mrf.mxu0
    %v4673 = vadd.f32 0.0, %v4672
    %4674 = vdwg.mxu0
    %v4675 = vpack.c.bf16 %v4673, %v4671
    %4676 = vrot.lane.b32.xlu0 %v4604, 120
    %v4677 = vpop.permute.xlu0 %4676
    %4678 = vrot.lane.b32.xlu0 %v4604, 88
    %v4679 = vpop.permute.xlu0 %4678
    %v4681 = vsel %vm423, %v4677, 0
    %v4684 = vsel %vm423, %v4679, 0
    %4686 = vmatpush.bf16.xpose.msra.mxu0 0
    %4687 = vmatpush.bf16.xpose.msra.mxu0 0
    %4688 = vmatpush.bf16.xpose.msra.mxu0 0
    %4689 = vmatpush.bf16.xpose.msra.mxu0 0
    %4690 = vmatpush.bf16.xpose.msra.mxu0 0
    %4691 = vmatpush.bf16.xpose.msra.mxu0 0
    %4692 = vmatpush.bf16.xpose.msra.mxu0 0
    %4693 = vmatpush.bf16.xpose.msra.mxu0 %v4684
    %4694 = vmatmul.bf16.gmra.mxu0 %v4681
    %v4695 = vpop.f32.mrf.mxu0
    %v4696 = vadd.f32 0.0, %v4695
    %v4697 = vpop.f32.mrf.mxu0
    %v4698 = vadd.f32 0.0, %v4697
    %4699 = vdwg.mxu0
    %v4700 = vmul.f32 %v4696, 0.35355338
    %v4701 = vmul.f32 %v4698, 0.35355338
    %v4702 = vadd.f32 %v4700, %v274
    %v4703 = vadd.f32 %v4701, %v275
    %v4704 = vsel %vm448, %v4702, -inf
    %4705 = vmax.xlane.f32.xlu0 %v4704
    %v4706 = vpop.xlane.xlu0 %4705
    %v4707 = vsel %vm448, %v4703, -inf
    %4708 = vmax.xlane.f32.xlu0 %v4707
    %v4709 = vpop.xlane.xlu0 %4708
    %v4710 = vsub.f32 %v4702, %v4706
    %v4711 = vsub.f32 %v4703, %v4709
    %v4712 = vmul.f32 %v4710, 1.442695
    %v4713 = vpow.pop %v4712
    %v4714 = vmul.f32 %v4711, 1.442695
    %v4715 = vpow.pop %v4714
    %v4716 = vsel %vm448, %v4713, 0.0
    %4717 = vadd.xlane.f32.xlu0 %v4716
    %v4718 = vpop.xlane.xlu0 %4717
    %v4719 = vsel %vm448, %v4715, 0.0
    %4720 = vadd.xlane.f32.xlu0 %v4719
    %v4721 = vpop.xlane.xlu0 %4720
    %v4722 = vrcp.pop %v4718
    %v4723 = vrcp.pop %v4721
    %v4724 = vmul.f32 %v4713, %v4722
    %v4725 = vmul.f32 %v4715, %v4723
    %v4726 = vpack.c.bf16 %v4725, %v4724
    %4727 = vrot.lane.b32.xlu0 %v4604, 56
    %v4728 = vpop.permute.xlu0 %4727
    %v4731 = vsel %vm448, %v4726, 0
    %4733 = vmatpush.bf16.msra.mxu0 0
    %4734 = vmatpush.bf16.msra.mxu0 0
    %4735 = vmatpush.bf16.msra.mxu0 0
    %4736 = vmatpush.bf16.msra.mxu0 0
    %4737 = vmatpush.bf16.msra.mxu0 0
    %4738 = vmatpush.bf16.msra.mxu0 0
    %4739 = vmatpush.bf16.msra.mxu0 0
    %4740 = vmatpush.bf16.msra.mxu0 %v4728
    %4741 = vmatmul.bf16.gmra.mxu0 %v4731
    %v4742 = vpop.f32.mrf.mxu0
    %v4743 = vadd.f32 0.0, %v4742
    %v4744 = vpop.f32.mrf.mxu0
    %v4745 = vadd.f32 0.0, %v4744
    %4746 = vdwg.mxu0
    %v4747 = vpack.c.bf16 %v4745, %v4743
    %v4749 = vsel %vm423, %v4747, 0
    %v4752 = vsel %vm568, %v4565, 0
    %4754 = vmatpush.bf16.msra.mxu0 0
    %4755 = vmatpush.bf16.msra.mxu0 0
    %4756 = vmatpush.bf16.msra.mxu0 0
    %4757 = vmatpush.bf16.msra.mxu0 0
    %4758 = vmatpush.bf16.msra.mxu0 0
    %4759 = vmatpush.bf16.msra.mxu0 0
    %4760 = vmatpush.bf16.msra.mxu0 0
    %4761 = vmatpush.bf16.msra.mxu0 %v4752
    %4762 = vmatmul.bf16.gmra.mxu0 %v4749
    %v4763 = vpop.f32.mrf.mxu0
    %v4764 = vadd.f32 0.0, %v4763
    %v4765 = vpop.f32.mrf.mxu0
    %v4766 = vadd.f32 0.0, %v4765
    %4767 = vdwg.mxu0
    %v4769 = vsel %vm423, %v4675, 0
    %v4772 = vsel %vm568, %v4564, 0
    %4774 = vmatpush.bf16.msra.mxu0 0
    %4775 = vmatpush.bf16.msra.mxu0 0
    %4776 = vmatpush.bf16.msra.mxu0 0
    %4777 = vmatpush.bf16.msra.mxu0 0
    %4778 = vmatpush.bf16.msra.mxu0 0
    %4779 = vmatpush.bf16.msra.mxu0 0
    %4780 = vmatpush.bf16.msra.mxu0 0
    %4781 = vmatpush.bf16.msra.mxu0 %v4772
    %4782 = vmatmul.bf16.gmra.mxu0 %v4769
    %v4783 = vpop.f32.mrf.mxu0
    %v4784 = vadd.f32 %v4764, %v4783
    %v4785 = vpop.f32.mrf.mxu0
    %v4786 = vadd.f32 %v4766, %v4785
    %4787 = vdwg.mxu0
    %4788 = vrot.lane.b32.xlu0 %v4604, 112
    %v4789 = vpop.permute.xlu0 %4788
    %4790 = vrot.lane.b32.xlu0 %v4604, 80
    %v4791 = vpop.permute.xlu0 %4790
    %v4793 = vsel %vm423, %v4789, 0
    %v4796 = vsel %vm423, %v4791, 0
    %4798 = vmatpush.bf16.xpose.msra.mxu0 0
    %4799 = vmatpush.bf16.xpose.msra.mxu0 0
    %4800 = vmatpush.bf16.xpose.msra.mxu0 0
    %4801 = vmatpush.bf16.xpose.msra.mxu0 0
    %4802 = vmatpush.bf16.xpose.msra.mxu0 0
    %4803 = vmatpush.bf16.xpose.msra.mxu0 0
    %4804 = vmatpush.bf16.xpose.msra.mxu0 0
    %4805 = vmatpush.bf16.xpose.msra.mxu0 %v4796
    %4806 = vmatmul.bf16.gmra.mxu0 %v4793
    %v4807 = vpop.f32.mrf.mxu0
    %v4808 = vadd.f32 0.0, %v4807
    %v4809 = vpop.f32.mrf.mxu0
    %v4810 = vadd.f32 0.0, %v4809
    %4811 = vdwg.mxu0
    %v4812 = vmul.f32 %v4808, 0.35355338
    %v4813 = vmul.f32 %v4810, 0.35355338
    %v4814 = vadd.f32 %v4812, %v274
    %v4815 = vadd.f32 %v4813, %v275
    %v4816 = vsel %vm448, %v4814, -inf
    %4817 = vmax.xlane.f32.xlu0 %v4816
    %v4818 = vpop.xlane.xlu0 %4817
    %v4819 = vsel %vm448, %v4815, -inf
    %4820 = vmax.xlane.f32.xlu0 %v4819
    %v4821 = vpop.xlane.xlu0 %4820
    %v4822 = vsub.f32 %v4814, %v4818
    %v4823 = vsub.f32 %v4815, %v4821
    %v4824 = vmul.f32 %v4822, 1.442695
    %v4825 = vpow.pop %v4824
    %v4826 = vmul.f32 %v4823, 1.442695
    %v4827 = vpow.pop %v4826
    %v4828 = vsel %vm448, %v4825, 0.0
    %4829 = vadd.xlane.f32.xlu0 %v4828
    %v4830 = vpop.xlane.xlu0 %4829
    %v4831 = vsel %vm448, %v4827, 0.0
    %4832 = vadd.xlane.f32.xlu0 %v4831
    %v4833 = vpop.xlane.xlu0 %4832
    %v4834 = vrcp.pop %v4830
    %v4835 = vrcp.pop %v4833
    %v4836 = vmul.f32 %v4825, %v4834
    %v4837 = vmul.f32 %v4827, %v4835
    %v4838 = vpack.c.bf16 %v4837, %v4836
    %4839 = vrot.lane.b32.xlu0 %v4604, 48
    %v4840 = vpop.permute.xlu0 %4839
    %v4843 = vsel %vm448, %v4838, 0
    %4845 = vmatpush.bf16.msra.mxu0 0
    %4846 = vmatpush.bf16.msra.mxu0 0
    %4847 = vmatpush.bf16.msra.mxu0 0
    %4848 = vmatpush.bf16.msra.mxu0 0
    %4849 = vmatpush.bf16.msra.mxu0 0
    %4850 = vmatpush.bf16.msra.mxu0 0
    %4851 = vmatpush.bf16.msra.mxu0 0
    %4852 = vmatpush.bf16.msra.mxu0 %v4840
    %4853 = vmatmul.bf16.gmra.mxu0 %v4843
    %v4854 = vpop.f32.mrf.mxu0
    %v4855 = vadd.f32 0.0, %v4854
    %v4856 = vpop.f32.mrf.mxu0
    %v4857 = vadd.f32 0.0, %v4856
    %4858 = vdwg.mxu0
    %v4859 = vpack.c.bf16 %v4857, %v4855
    %v4861 = vsel %vm423, %v4859, 0
    %v4864 = vsel %vm568, %v4566, 0
    %4866 = vmatpush.bf16.msra.mxu0 0
    %4867 = vmatpush.bf16.msra.mxu0 0
    %4868 = vmatpush.bf16.msra.mxu0 0
    %4869 = vmatpush.bf16.msra.mxu0 0
    %4870 = vmatpush.bf16.msra.mxu0 0
    %4871 = vmatpush.bf16.msra.mxu0 0
    %4872 = vmatpush.bf16.msra.mxu0 0
    %4873 = vmatpush.bf16.msra.mxu0 %v4864
    %4874 = vmatmul.bf16.gmra.mxu0 %v4861
    %v4875 = vpop.f32.mrf.mxu0
    %v4876 = vadd.f32 0.0, %v4875
    %v4877 = vpop.f32.mrf.mxu0
    %v4878 = vadd.f32 0.0, %v4877
    %4879 = vdwg.mxu0
    %v4880 = vadd.f32 %v4784, %v4876
    %v4881 = vadd.f32 %v4786, %v4878
    %4882 = vrot.lane.b32.xlu0 %v4604, 104
    %v4883 = vpop.permute.xlu0 %4882
    %4884 = vrot.lane.b32.xlu0 %v4604, 72
    %v4885 = vpop.permute.xlu0 %4884
    %v4887 = vsel %vm423, %v4883, 0
    %v4890 = vsel %vm423, %v4885, 0
    %4892 = vmatpush.bf16.xpose.msra.mxu0 0
    %4893 = vmatpush.bf16.xpose.msra.mxu0 0
    %4894 = vmatpush.bf16.xpose.msra.mxu0 0
    %4895 = vmatpush.bf16.xpose.msra.mxu0 0
    %4896 = vmatpush.bf16.xpose.msra.mxu0 0
    %4897 = vmatpush.bf16.xpose.msra.mxu0 0
    %4898 = vmatpush.bf16.xpose.msra.mxu0 0
    %4899 = vmatpush.bf16.xpose.msra.mxu0 %v4890
    %4900 = vmatmul.bf16.gmra.mxu0 %v4887
    %v4901 = vpop.f32.mrf.mxu0
    %v4902 = vadd.f32 0.0, %v4901
    %v4903 = vpop.f32.mrf.mxu0
    %v4904 = vadd.f32 0.0, %v4903
    %4905 = vdwg.mxu0
    %v4906 = vmul.f32 %v4902, 0.35355338
    %v4907 = vmul.f32 %v4904, 0.35355338
    %v4908 = vadd.f32 %v4906, %v274
    %v4909 = vadd.f32 %v4907, %v275
    %v4910 = vsel %vm448, %v4908, -inf
    %4911 = vmax.xlane.f32.xlu0 %v4910
    %v4912 = vpop.xlane.xlu0 %4911
    %v4913 = vsel %vm448, %v4909, -inf
    %4914 = vmax.xlane.f32.xlu0 %v4913
    %v4915 = vpop.xlane.xlu0 %4914
    %v4916 = vsub.f32 %v4908, %v4912
    %v4917 = vsub.f32 %v4909, %v4915
    %v4918 = vmul.f32 %v4916, 1.442695
    %v4919 = vpow.pop %v4918
    %v4920 = vmul.f32 %v4917, 1.442695
    %v4921 = vpow.pop %v4920
    %v4922 = vsel %vm448, %v4919, 0.0
    %4923 = vadd.xlane.f32.xlu0 %v4922
    %v4924 = vpop.xlane.xlu0 %4923
    %v4925 = vsel %vm448, %v4921, 0.0
    %4926 = vadd.xlane.f32.xlu0 %v4925
    %v4927 = vpop.xlane.xlu0 %4926
    %v4928 = vrcp.pop %v4924
    %v4929 = vrcp.pop %v4927
    %v4930 = vmul.f32 %v4919, %v4928
    %v4931 = vmul.f32 %v4921, %v4929
    %v4932 = vpack.c.bf16 %v4931, %v4930
    %4933 = vrot.lane.b32.xlu0 %v4604, 40
    %v4934 = vpop.permute.xlu0 %4933
    %v4937 = vsel %vm448, %v4932, 0
    %4939 = vmatpush.bf16.msra.mxu0 0
    %4940 = vmatpush.bf16.msra.mxu0 0
    %4941 = vmatpush.bf16.msra.mxu0 0
    %4942 = vmatpush.bf16.msra.mxu0 0
    %4943 = vmatpush.bf16.msra.mxu0 0
    %4944 = vmatpush.bf16.msra.mxu0 0
    %4945 = vmatpush.bf16.msra.mxu0 0
    %4946 = vmatpush.bf16.msra.mxu0 %v4934
    %4947 = vmatmul.bf16.gmra.mxu0 %v4937
    %v4948 = vpop.f32.mrf.mxu0
    %v4949 = vadd.f32 0.0, %v4948
    %v4950 = vpop.f32.mrf.mxu0
    %v4951 = vadd.f32 0.0, %v4950
    %4952 = vdwg.mxu0
    %v4953 = vpack.c.bf16 %v4951, %v4949
    %v4955 = vsel %vm423, %v4953, 0
    %v4958 = vsel %vm568, %v4567, 0
    %4960 = vmatpush.bf16.msra.mxu0 0
    %4961 = vmatpush.bf16.msra.mxu0 0
    %4962 = vmatpush.bf16.msra.mxu0 0
    %4963 = vmatpush.bf16.msra.mxu0 0
    %4964 = vmatpush.bf16.msra.mxu0 0
    %4965 = vmatpush.bf16.msra.mxu0 0
    %4966 = vmatpush.bf16.msra.mxu0 0
    %4967 = vmatpush.bf16.msra.mxu0 %v4958
    %4968 = vmatmul.bf16.gmra.mxu0 %v4955
    %v4969 = vpop.f32.mrf.mxu0
    %v4970 = vadd.f32 0.0, %v4969
    %v4971 = vpop.f32.mrf.mxu0
    %v4972 = vadd.f32 0.0, %v4971
    %4973 = vdwg.mxu0
    %v4974 = vadd.f32 %v4880, %v4970
    %v4975 = vadd.f32 %v4881, %v4972
    %v4976 = vadd.f32 %v4557, %v4974
    %v4977 = vadd.f32 %v4558, %v4975
    %v4979 = vperm.slane %v4568, 0
    %v4981 = vadd.f32 %v4976, %v4979
    %v4982 = vadd.f32 %v4977, %v4979
    %v4983 = vsel %vm281, %v4981, 0.0
    %4984 = vadd.xlane.f32.xlu0 %v4983
    %v4985 = vpop.xlane.xlu0 %4984
    %v4986 = vsel %vm281, %v4982, 0.0
    %4987 = vadd.xlane.f32.xlu0 %v4986
    %v4988 = vpop.xlane.xlu0 %4987
    %v4989 = vmul.f32 %v4985, %v325
    %v4990 = vmul.f32 %v4988, %v325
    %v4991 = vsub.f32 %v4981, %v4989
    %v4992 = vsub.f32 %v4982, %v4990
    %v4993 = vmul.f32 %v4991, %v4991
    %v4994 = vmul.f32 %v4992, %v4992
    %v4995 = vsel %vm281, %v4993, 0.0
    %4996 = vadd.xlane.f32.xlu0 %v4995
    %v4997 = vpop.xlane.xlu0 %4996
    %v4998 = vsel %vm281, %v4994, 0.0
    %4999 = vadd.xlane.f32.xlu0 %v4998
    %v5000 = vpop.xlane.xlu0 %4999
    %v5001 = vmul.f32 %v4997, %v325
    %v5002 = vmul.f32 %v5000, %v325
    %v5003 = vadd.f32 %v5001, 1e-12
    %v5004 = vadd.f32 %v5002, 1e-12
    %v5005 = vrsqrt.pop %v5003
    %v5006 = vmul.f32 %v5005, %v5003
    %v5007 = vmul.f32 %v5006, %v5005
    %v5008 = vmul.f32 0.5, %v5007
    %v5009 = vsub.f32 1.5, %v5008
    %v5010 = vmul.f32 %v5005, %v5009
    %vm5011 = vweird.f32 %v5003
    %vm5012 = vweird.f32 %v5005
    %vm5013 = vmor %vm5011, %vm5012
    %v5014 = vsel %vm5013, %v5005, %v5010
    %v5015 = vrsqrt.pop %v5004
    %v5016 = vmul.f32 %v5015, %v5004
    %v5017 = vmul.f32 %v5016, %v5015
    %v5018 = vmul.f32 0.5, %v5017
    %v5019 = vsub.f32 1.5, %v5018
    %v5020 = vmul.f32 %v5015, %v5019
    %vm5021 = vweird.f32 %v5004
    %vm5022 = vweird.f32 %v5015
    %vm5023 = vmor %vm5021, %vm5022
    %v5024 = vsel %vm5023, %v5015, %v5020
    %v5025 = vmul.f32 %v4991, %v5014
    %v5026 = vmul.f32 %v4992, %v5024
    %v5028 = vperm.slane %v4569, 0
    %v5030 = vmul.f32 %v5025, %v5028
    %v5031 = vmul.f32 %v5026, %v5028
    %v5033 = vperm.slane %v4570, 0
    %v5035 = vadd.f32 %v5030, %v5033
    %v5036 = vadd.f32 %v5031, %v5033
    %v5037 = vpack.c.bf16 %v4472, %v4472
    %v5038 = vld [vmem:[%s69] sm:$0xf]
    %v5039 = vld [vmem:[%s69 + $0x4] sm:$0xf]
    %v5040 = vld [vmem:[%s69 + $0x8] sm:$0xf]
    %v5041 = vld [vmem:[%s69 + $0xc] sm:$0xf]
    %v5042 = vld [vmem:[%s71] sm:$0x1]
    %v5044 = vperm.slane %v5042, 0
    %v5050 = vunpack.c.l.b16 %v5038
    %v5051 = vunpack.c.l.b16 %v5039
    %v5052 = vunpack.c.l.b16 %v5040
    %v5053 = vunpack.c.l.b16 %v5041
    %v5054 = vpack.c.b16 %v5051, %v5050
    %v5055 = vpack.c.b16 %v5053, %v5052
    %v5059 = vsel %vm281, %v5037, 0
    %5061 = vmatpush.bf16.msra.mxu0 0
    %5062 = vmatpush.bf16.msra.mxu0 0
    %5063 = vmatpush.bf16.msra.mxu0 0
    %5064 = vmatpush.bf16.msra.mxu0 0
    %5065 = vmatpush.bf16.msra.mxu0 0
    %5066 = vmatpush.bf16.msra.mxu0 0
    %5067 = vmatpush.bf16.msra.mxu0 %v5055
    %5068 = vmatpush.bf16.msra.mxu0 %v5054
    %5069 = vmatmul.bf16.gmra.mxu0 %v5059
    %v5070 = vpop.f32.mrf.mxu0
    %v5071 = vadd.f32 %v5044, %v5070
    %v5072 = vpop.f32.mrf.mxu0
    %5073 = vdwg.mxu0
    %v5074 = vpack.c.bf16 %v5071, %v5071
    %v5075 = vld [vmem:[%s73] sm:$0xf]
    %v5076 = vld [vmem:[%s73 + $0x4] sm:$0xf]
    %v5077 = vld [vmem:[%s73 + $0x8] sm:$0xf]
    %v5078 = vld [vmem:[%s73 + $0xc] sm:$0xf]
    %v5079 = vld [vmem:[%s75] sm:$0x1]
    %v5081 = vperm.slane %v5079, 0
    %v5087 = vunpack.c.l.b16 %v5075
    %v5088 = vunpack.c.l.b16 %v5076
    %v5089 = vunpack.c.l.b16 %v5077
    %v5090 = vunpack.c.l.b16 %v5078
    %v5091 = vpack.c.b16 %v5088, %v5087
    %v5092 = vpack.c.b16 %v5090, %v5089
    %v5096 = vsel %vm281, %v5074, 0
    %5098 = vmatpush.bf16.msra.mxu0 0
    %5099 = vmatpush.bf16.msra.mxu0 0
    %5100 = vmatpush.bf16.msra.mxu0 0
    %5101 = vmatpush.bf16.msra.mxu0 0
    %5102 = vmatpush.bf16.msra.mxu0 0
    %5103 = vmatpush.bf16.msra.mxu0 0
    %5104 = vmatpush.bf16.msra.mxu0 %v5092
    %5105 = vmatpush.bf16.msra.mxu0 %v5091
    %5106 = vmatmul.bf16.gmra.mxu0 %v5096
    %v5107 = vpop.f32.mrf.mxu0
    %v5108 = vadd.f32 %v5081, %v5107
    %v5109 = vpop.f32.mrf.mxu0
    %5110 = vdwg.mxu0
    %v5111 = vperm.slane %v5108, 0
    %v5112 = vperm.slane %v5108, 1
    %v5113 = vadd.f32 %v5035, %v5111
    %v5114 = vadd.f32 %v5036, %v5112
    %v5115 = vld [vmem:[%s77] sm:$0x1]
    %v5116 = vld [vmem:[%s79] sm:$0x1]
    %v5117 = vsel %vm281, %v5113, 0.0
    %5118 = vadd.xlane.f32.xlu0 %v5117
    %v5119 = vpop.xlane.xlu0 %5118
    %v5120 = vsel %vm281, %v5114, 0.0
    %5121 = vadd.xlane.f32.xlu0 %v5120
    %v5122 = vpop.xlane.xlu0 %5121
    %v5123 = vmul.f32 %v5119, %v325
    %v5124 = vmul.f32 %v5122, %v325
    %v5125 = vsub.f32 %v5113, %v5123
    %v5126 = vsub.f32 %v5114, %v5124
    %v5127 = vmul.f32 %v5125, %v5125
    %v5128 = vmul.f32 %v5126, %v5126
    %v5129 = vsel %vm281, %v5127, 0.0
    %5130 = vadd.xlane.f32.xlu0 %v5129
    %v5131 = vpop.xlane.xlu0 %5130
    %v5132 = vsel %vm281, %v5128, 0.0
    %5133 = vadd.xlane.f32.xlu0 %v5132
    %v5134 = vpop.xlane.xlu0 %5133
    %v5135 = vmul.f32 %v5131, %v325
    %v5136 = vmul.f32 %v5134, %v325
    %v5137 = vadd.f32 %v5135, 1e-12
    %v5138 = vadd.f32 %v5136, 1e-12
    %v5139 = vrsqrt.pop %v5137
    %v5140 = vmul.f32 %v5139, %v5137
    %v5141 = vmul.f32 %v5140, %v5139
    %v5142 = vmul.f32 0.5, %v5141
    %v5143 = vsub.f32 1.5, %v5142
    %v5144 = vmul.f32 %v5139, %v5143
    %vm5145 = vweird.f32 %v5137
    %vm5146 = vweird.f32 %v5139
    %vm5147 = vmor %vm5145, %vm5146
    %v5148 = vsel %vm5147, %v5139, %v5144
    %v5149 = vrsqrt.pop %v5138
    %v5150 = vmul.f32 %v5149, %v5138
    %v5151 = vmul.f32 %v5150, %v5149
    %v5152 = vmul.f32 0.5, %v5151
    %v5153 = vsub.f32 1.5, %v5152
    %v5154 = vmul.f32 %v5149, %v5153
    %vm5155 = vweird.f32 %v5138
    %vm5156 = vweird.f32 %v5149
    %vm5157 = vmor %vm5155, %vm5156
    %v5158 = vsel %vm5157, %v5149, %v5154
    %v5159 = vmul.f32 %v5125, %v5148
    %v5160 = vmul.f32 %v5126, %v5158
    %v5162 = vperm.slane %v5115, 0
    %v5164 = vmul.f32 %v5159, %v5162
    %v5165 = vmul.f32 %v5160, %v5162
    %v5167 = vperm.slane %v5116, 0
    %v5169 = vadd.f32 %v5164, %v5167
    %v5170 = vadd.f32 %v5165, %v5167
    %v5171 = vld [vmem:[%s81] sm:$0xf]
    %v5172 = vld [vmem:[%s81 + $0x4] sm:$0xf]
    %v5173 = vld [vmem:[%s81 + $0x8] sm:$0xf]
    %v5174 = vld [vmem:[%s81 + $0xc] sm:$0xf]
    %v5175 = vld [vmem:[%s83] sm:$0x1]
    %v5176 = vld [vmem:[%s85] sm:$0xf]
    %v5177 = vld [vmem:[%s85 + $0x4] sm:$0xf]
    %v5178 = vld [vmem:[%s85 + $0x8] sm:$0xf]
    %v5179 = vld [vmem:[%s85 + $0xc] sm:$0xf]
    %v5180 = vld [vmem:[%s85 + $0x10] sm:$0xf]
    %v5181 = vld [vmem:[%s85 + $0x14] sm:$0xf]
    %v5182 = vld [vmem:[%s85 + $0x18] sm:$0xf]
    %v5183 = vld [vmem:[%s85 + $0x1c] sm:$0xf]
    %v5184 = vld [vmem:[%s87] sm:$0x1]
    %v5185 = vld [vmem:[%s89] sm:$0x1]
    %v5186 = vld [vmem:[%s91] sm:$0x1]
    %v5187 = vpack.c.bf16 %v5170, %v5169
    %v5189 = vperm.slane %v5175, 0
    %v5195 = vunpack.c.l.b16 %v5171
    %v5196 = vunpack.c.l.b16 %v5172
    %v5197 = vunpack.c.l.b16 %v5173
    %v5198 = vunpack.c.l.b16 %v5174
    %v5199 = vpack.c.b16 %v5196, %v5195
    %v5200 = vpack.c.b16 %v5198, %v5197
    %v5204 = vsel %vm281, %v5187, 0
    %5206 = vmatpush.bf16.msra.mxu0 0
    %5207 = vmatpush.bf16.msra.mxu0 0
    %5208 = vmatpush.bf16.msra.mxu0 0
    %5209 = vmatpush.bf16.msra.mxu0 0
    %5210 = vmatpush.bf16.msra.mxu0 0
    %5211 = vmatpush.bf16.msra.mxu0 0
    %5212 = vmatpush.bf16.msra.mxu0 %v5200
    %5213 = vmatpush.bf16.msra.mxu0 %v5199
    %5214 = vmatmul.bf16.gmra.mxu0 %v5204
    %v5215 = vpop.f32.mrf.mxu0
    %v5216 = vadd.f32 %v5189, %v5215
    %v5217 = vpop.f32.mrf.mxu0
    %v5218 = vadd.f32 %v5189, %v5217
    %5219 = vdwg.mxu0
    %v5220 = vmul.f32 %v5216, 0.5
    %v5221 = vmul.f32 %v5218, 0.5
    %v5222 = vmul.f32 %v5216, 0.70710677
    %v5223 = vmul.f32 %v5218, 0.70710677
    %v5224 = vand.u32 2147483647, %v5222
    %v5225 = vand.u32 2147483647, %v5223
    %v5226 = vmul.f32 %v5224, 0.3275911
    %v5227 = vmul.f32 %v5225, 0.3275911
    %v5228 = vadd.f32 %v5226, 1.0
    %v5229 = vadd.f32 %v5227, 1.0
    %v5230 = vrcp.pop %v5228
    %v5231 = vmul.f32 %v5228, %v5230
    %v5232 = vsub.f32 1.0, %v5231
    %v5233 = vmul.f32 %v5230, %v5232
    %v5234 = vadd.f32 %v5230, %v5233
    %vm5235 = vweird.f32 %v5228
    %vm5236 = vweird.f32 %v5230
    %vm5237 = vmor %vm5235, %vm5236
    %v5238 = vsel %vm5237, %v5230, %v5234
    %v5239 = vand.u32 2147483647, %v5228
    %vm5240 = vcmp.eq.f32.partialorder %v5239, 8.507059e+37
    %v5241 = vand.u32 %v5228, 2147483648
    %v5242 = vor.u32 1.1754944e-38, %v5241
    %v5243 = vsel %vm5240, %v5242, %v5238
    %v5244 = vmul.f32 1.0, %v5243
    %v5245 = vrcp.pop %v5229
    %v5246 = vmul.f32 %v5229, %v5245
    %v5247 = vsub.f32 1.0, %v5246
    %v5248 = vmul.f32 %v5245, %v5247
    %v5249 = vadd.f32 %v5245, %v5248
    %vm5250 = vweird.f32 %v5229
    %vm5251 = vweird.f32 %v5245
    %vm5252 = vmor %vm5250, %vm5251
    %v5253 = vsel %vm5252, %v5245, %v5249
    %v5254 = vand.u32 2147483647, %v5229
    %vm5255 = vcmp.eq.f32.partialorder %v5254, 8.507059e+37
    %v5256 = vand.u32 %v5229, 2147483648
    %v5257 = vor.u32 1.1754944e-38, %v5256
    %v5258 = vsel %vm5255, %v5257, %v5253
    %v5259 = vmul.f32 1.0, %v5258
    %v5260 = vmul.f32 %v5244, 1.0614054
    %v5261 = vmul.f32 %v5259, 1.0614054
    %v5262 = vsub.f32 %v5260, 1.4531521
    %v5263 = vsub.f32 %v5261, 1.4531521
    %v5264 = vmul.f32 %v5262, %v5244
    %v5265 = vmul.f32 %v5263, %v5259
    %v5266 = vadd.f32 %v5264, 1.4214138
    %v5267 = vadd.f32 %v5265, 1.4214138
    %v5268 = vmul.f32 %v5266, %v5244
    %v5269 = vmul.f32 %v5267, %v5259
    %v5270 = vsub.f32 %v5268, 0.28449672
    %v5271 = vsub.f32 %v5269, 0.28449672
    %v5272 = vmul.f32 %v5270, %v5244
    %v5273 = vmul.f32 %v5271, %v5259
    %v5274 = vadd.f32 %v5272, 0.2548296
    %v5275 = vadd.f32 %v5273, 0.2548296
    %v5276 = vmul.f32 %v5274, %v5244
    %v5277 = vmul.f32 %v5275, %v5259
    %v5278 = vsub.f32 0.0, %v5224
    %v5279 = vsub.f32 0.0, %v5225
    %v5280 = vmul.f32 %v5278, %v5224
    %v5281 = vmul.f32 %v5279, %v5225
    %v5282 = vmul.f32 %v5280, 1.442695
    %v5283 = vpow.pop %v5282
    %v5284 = vmul.f32 %v5281, 1.442695
    %v5285 = vpow.pop %v5284
    %v5286 = vmul.f32 %v5276, %v5283
    %v5287 = vmul.f32 %v5277, %v5285
    %v5288 = vsub.f32 1.0, %v5286
    %v5289 = vsub.f32 1.0, %v5287
    %vm5290 = vcmp.ge.f32.partialorder %v5222, 0.0
    %vm5291 = vcmp.ge.f32.partialorder %v5223, 0.0
    %v5292 = vsub.f32 0.0, %v5288
    %v5293 = vsub.f32 0.0, %v5289
    %v5294 = vsel %vm5290, %v5288, %v5292
    %v5295 = vsel %vm5291, %v5289, %v5293
    %v5296 = vadd.f32 %v5294, 1.0
    %v5297 = vadd.f32 %v5295, 1.0
    %v5298 = vmul.f32 %v5220, %v5296
    %v5299 = vmul.f32 %v5221, %v5297
    %v5300 = vpack.c.bf16 %v5299, %v5298
    %v5302 = vperm.slane %v5184, 0
    %v5312 = vunpack.c.l.b16 %v5176
    %v5313 = vunpack.c.l.b16 %v5177
    %v5314 = vunpack.c.l.b16 %v5178
    %v5315 = vunpack.c.l.b16 %v5179
    %v5316 = vunpack.c.l.b16 %v5180
    %v5317 = vunpack.c.l.b16 %v5181
    %v5318 = vunpack.c.l.b16 %v5182
    %v5319 = vunpack.c.l.b16 %v5183
    %v5320 = vpack.c.b16 %v5313, %v5312
    %v5321 = vpack.c.b16 %v5315, %v5314
    %v5322 = vpack.c.b16 %v5317, %v5316
    %v5323 = vpack.c.b16 %v5319, %v5318
    %v5329 = vsel %vm1012, %v5300, 0
    %5331 = vmatpush.bf16.msra.mxu0 0
    %5332 = vmatpush.bf16.msra.mxu0 0
    %5333 = vmatpush.bf16.msra.mxu0 0
    %5334 = vmatpush.bf16.msra.mxu0 0
    %5335 = vmatpush.bf16.msra.mxu0 %v5323
    %5336 = vmatpush.bf16.msra.mxu0 %v5322
    %5337 = vmatpush.bf16.msra.mxu0 %v5321
    %5338 = vmatpush.bf16.msra.mxu0 %v5320
    %5339 = vmatmul.bf16.gmra.mxu0 %v5329
    %v5340 = vpop.f32.mrf.mxu0
    %v5341 = vadd.f32 %v5302, %v5340
    %v5342 = vpop.f32.mrf.mxu0
    %v5343 = vadd.f32 %v5302, %v5342
    %5344 = vdwg.mxu0
    %v5345 = vadd.f32 %v5169, %v5341
    %v5346 = vadd.f32 %v5170, %v5343
    %v5347 = vsel %vm281, %v5345, 0.0
    %5348 = vadd.xlane.f32.xlu0 %v5347
    %v5349 = vpop.xlane.xlu0 %5348
    %v5350 = vsel %vm281, %v5346, 0.0
    %5351 = vadd.xlane.f32.xlu0 %v5350
    %v5352 = vpop.xlane.xlu0 %5351
    %v5353 = vmul.f32 %v5349, %v325
    %v5354 = vmul.f32 %v5352, %v325
    %v5355 = vsub.f32 %v5345, %v5353
    %v5356 = vsub.f32 %v5346, %v5354
    %v5357 = vmul.f32 %v5355, %v5355
    %v5358 = vmul.f32 %v5356, %v5356
    %v5359 = vsel %vm281, %v5357, 0.0
    %5360 = vadd.xlane.f32.xlu0 %v5359
    %v5361 = vpop.xlane.xlu0 %5360
    %v5362 = vsel %vm281, %v5358, 0.0
    %5363 = vadd.xlane.f32.xlu0 %v5362
    %v5364 = vpop.xlane.xlu0 %5363
    %v5365 = vmul.f32 %v5361, %v325
    %v5366 = vmul.f32 %v5364, %v325
    %v5367 = vadd.f32 %v5365, 1e-12
    %v5368 = vadd.f32 %v5366, 1e-12
    %v5369 = vrsqrt.pop %v5367
    %v5370 = vmul.f32 %v5369, %v5367
    %v5371 = vmul.f32 %v5370, %v5369
    %v5372 = vmul.f32 0.5, %v5371
    %v5373 = vsub.f32 1.5, %v5372
    %v5374 = vmul.f32 %v5369, %v5373
    %vm5375 = vweird.f32 %v5367
    %vm5376 = vweird.f32 %v5369
    %vm5377 = vmor %vm5375, %vm5376
    %v5378 = vsel %vm5377, %v5369, %v5374
    %v5379 = vrsqrt.pop %v5368
    %v5380 = vmul.f32 %v5379, %v5368
    %v5381 = vmul.f32 %v5380, %v5379
    %v5382 = vmul.f32 0.5, %v5381
    %v5383 = vsub.f32 1.5, %v5382
    %v5384 = vmul.f32 %v5379, %v5383
    %vm5385 = vweird.f32 %v5368
    %vm5386 = vweird.f32 %v5379
    %vm5387 = vmor %vm5385, %vm5386
    %v5388 = vsel %vm5387, %v5379, %v5384
    %v5389 = vmul.f32 %v5355, %v5378
    %v5390 = vmul.f32 %v5356, %v5388
    %v5392 = vperm.slane %v5185, 0
    %v5394 = vmul.f32 %v5389, %v5392
    %v5395 = vmul.f32 %v5390, %v5392
    %v5397 = vperm.slane %v5186, 0
    %v5399 = vadd.f32 %v5394, %v5397
    %v5400 = vadd.f32 %v5395, %v5397
    %s5401 = scalar_lea.vmem %s57, 16
    %v5402 = vld [vmem:[%s5401] sm:$0xf]
    %v5403 = vld [vmem:[%s5401 + $0x4] sm:$0xf]
    %v5404 = vld [vmem:[%s5401 + $0x8] sm:$0xf]
    %v5405 = vld [vmem:[%s5401 + $0xc] sm:$0xf]
    %s5406 = scalar_lea.vmem %s59, 1
    %v5407 = vld [vmem:[%s5406] sm:$0x1]
    %s5408 = scalar_lea.vmem %s61, 16
    %v5409 = vld [vmem:[%s5408] sm:$0xf]
    %v5410 = vld [vmem:[%s5408 + $0x4] sm:$0xf]
    %v5411 = vld [vmem:[%s5408 + $0x8] sm:$0xf]
    %v5412 = vld [vmem:[%s5408 + $0xc] sm:$0xf]
    %s5413 = scalar_lea.vmem %s63, 1
    %v5414 = vld [vmem:[%s5413] sm:$0x1]
    %s5415 = scalar_lea.vmem %s65, 1
    %v5416 = vld [vmem:[%s5415] sm:$0x1]
    %s5417 = scalar_lea.vmem %s67, 1
    %v5418 = vld [vmem:[%s5417] sm:$0x1]
    %v5419 = vpack.c.bf16 %v5400, %v5399
    %v5421 = vperm.slane %v5407, 0
    %v5427 = vunpack.c.l.b16 %v5402
    %v5428 = vunpack.c.l.b16 %v5403
    %v5429 = vunpack.c.l.b16 %v5404
    %v5430 = vunpack.c.l.b16 %v5405
    %v5431 = vpack.c.b16 %v5428, %v5427
    %v5432 = vpack.c.b16 %v5430, %v5429
    %v5436 = vsel %vm281, %v5419, 0
    %5438 = vmatpush.bf16.msra.mxu0 0
    %5439 = vmatpush.bf16.msra.mxu0 0
    %5440 = vmatpush.bf16.msra.mxu0 0
    %5441 = vmatpush.bf16.msra.mxu0 0
    %5442 = vmatpush.bf16.msra.mxu0 0
    %5443 = vmatpush.bf16.msra.mxu0 0
    %5444 = vmatpush.bf16.msra.mxu0 %v5432
    %5445 = vmatpush.bf16.msra.mxu0 %v5431
    %5446 = vmatmul.bf16.gmra.mxu0 %v5436
    %v5447 = vpop.f32.mrf.mxu0
    %v5448 = vadd.f32 %v5421, %v5447
    %v5449 = vpop.f32.mrf.mxu0
    %v5450 = vadd.f32 %v5421, %v5449
    %5451 = vdwg.mxu0
    %v5452 = vpack.c.bf16 %v5450, %v5448
    %5454 = vrot.lane.b32.xlu0 %v5452, 96
    %v5455 = vpop.permute.xlu0 %5454
    %v5457 = vsel %vm423, %v5452, 0
    %v5460 = vsel %vm423, %v5455, 0
    %5462 = vmatpush.bf16.xpose.msra.mxu0 0
    %5463 = vmatpush.bf16.xpose.msra.mxu0 0
    %5464 = vmatpush.bf16.xpose.msra.mxu0 0
    %5465 = vmatpush.bf16.xpose.msra.mxu0 0
    %5466 = vmatpush.bf16.xpose.msra.mxu0 0
    %5467 = vmatpush.bf16.xpose.msra.mxu0 0
    %5468 = vmatpush.bf16.xpose.msra.mxu0 0
    %5469 = vmatpush.bf16.xpose.msra.mxu0 %v5460
    %5470 = vmatmul.bf16.gmra.mxu0 %v5457
    %v5471 = vpop.f32.mrf.mxu0
    %v5472 = vadd.f32 0.0, %v5471
    %v5473 = vpop.f32.mrf.mxu0
    %v5474 = vadd.f32 0.0, %v5473
    %5475 = vdwg.mxu0
    %v5476 = vmul.f32 %v5472, 0.35355338
    %v5477 = vmul.f32 %v5474, 0.35355338
    %v5478 = vadd.f32 %v5476, %v274
    %v5479 = vadd.f32 %v5477, %v275
    %v5480 = vsel %vm448, %v5478, -inf
    %5481 = vmax.xlane.f32.xlu0 %v5480
    %v5482 = vpop.xlane.xlu0 %5481
    %v5483 = vsel %vm448, %v5479, -inf
    %5484 = vmax.xlane.f32.xlu0 %v5483
    %v5485 = vpop.xlane.xlu0 %5484
    %v5486 = vsub.f32 %v5478, %v5482
    %v5487 = vsub.f32 %v5479, %v5485
    %v5488 = vmul.f32 %v5486, 1.442695
    %v5489 = vpow.pop %v5488
    %v5490 = vmul.f32 %v5487, 1.442695
    %v5491 = vpow.pop %v5490
    %v5492 = vsel %vm448, %v5489, 0.0
    %5493 = vadd.xlane.f32.xlu0 %v5492
    %v5494 = vpop.xlane.xlu0 %5493
    %v5495 = vsel %vm448, %v5491, 0.0
    %5496 = vadd.xlane.f32.xlu0 %v5495
    %v5497 = vpop.xlane.xlu0 %5496
    %v5498 = vrcp.pop %v5494
    %v5499 = vrcp.pop %v5497
    %v5500 = vmul.f32 %v5489, %v5498
    %v5501 = vmul.f32 %v5491, %v5499
    %v5502 = vpack.c.bf16 %v5501, %v5500
    %5503 = vrot.lane.b32.xlu0 %v5452, 64
    %v5504 = vpop.permute.xlu0 %5503
    %v5507 = vsel %vm448, %v5502, 0
    %5509 = vmatpush.bf16.msra.mxu0 0
    %5510 = vmatpush.bf16.msra.mxu0 0
    %5511 = vmatpush.bf16.msra.mxu0 0
    %5512 = vmatpush.bf16.msra.mxu0 0
    %5513 = vmatpush.bf16.msra.mxu0 0
    %5514 = vmatpush.bf16.msra.mxu0 0
    %5515 = vmatpush.bf16.msra.mxu0 0
    %5516 = vmatpush.bf16.msra.mxu0 %v5504
    %5517 = vmatmul.bf16.gmra.mxu0 %v5507
    %v5518 = vpop.f32.mrf.mxu0
    %v5519 = vadd.f32 0.0, %v5518
    %v5520 = vpop.f32.mrf.mxu0
    %v5521 = vadd.f32 0.0, %v5520
    %5522 = vdwg.mxu0
    %v5523 = vpack.c.bf16 %v5521, %v5519
    %5524 = vrot.lane.b32.xlu0 %v5452, 120
    %v5525 = vpop.permute.xlu0 %5524
    %5526 = vrot.lane.b32.xlu0 %v5452, 88
    %v5527 = vpop.permute.xlu0 %5526
    %v5529 = vsel %vm423, %v5525, 0
    %v5532 = vsel %vm423, %v5527, 0
    %5534 = vmatpush.bf16.xpose.msra.mxu0 0
    %5535 = vmatpush.bf16.xpose.msra.mxu0 0
    %5536 = vmatpush.bf16.xpose.msra.mxu0 0
    %5537 = vmatpush.bf16.xpose.msra.mxu0 0
    %5538 = vmatpush.bf16.xpose.msra.mxu0 0
    %5539 = vmatpush.bf16.xpose.msra.mxu0 0
    %5540 = vmatpush.bf16.xpose.msra.mxu0 0
    %5541 = vmatpush.bf16.xpose.msra.mxu0 %v5532
    %5542 = vmatmul.bf16.gmra.mxu0 %v5529
    %v5543 = vpop.f32.mrf.mxu0
    %v5544 = vadd.f32 0.0, %v5543
    %v5545 = vpop.f32.mrf.mxu0
    %v5546 = vadd.f32 0.0, %v5545
    %5547 = vdwg.mxu0
    %v5548 = vmul.f32 %v5544, 0.35355338
    %v5549 = vmul.f32 %v5546, 0.35355338
    %v5550 = vadd.f32 %v5548, %v274
    %v5551 = vadd.f32 %v5549, %v275
    %v5552 = vsel %vm448, %v5550, -inf
    %5553 = vmax.xlane.f32.xlu0 %v5552
    %v5554 = vpop.xlane.xlu0 %5553
    %v5555 = vsel %vm448, %v5551, -inf
    %5556 = vmax.xlane.f32.xlu0 %v5555
    %v5557 = vpop.xlane.xlu0 %5556
    %v5558 = vsub.f32 %v5550, %v5554
    %v5559 = vsub.f32 %v5551, %v5557
    %v5560 = vmul.f32 %v5558, 1.442695
    %v5561 = vpow.pop %v5560
    %v5562 = vmul.f32 %v5559, 1.442695
    %v5563 = vpow.pop %v5562
    %v5564 = vsel %vm448, %v5561, 0.0
    %5565 = vadd.xlane.f32.xlu0 %v5564
    %v5566 = vpop.xlane.xlu0 %5565
    %v5567 = vsel %vm448, %v5563, 0.0
    %5568 = vadd.xlane.f32.xlu0 %v5567
    %v5569 = vpop.xlane.xlu0 %5568
    %v5570 = vrcp.pop %v5566
    %v5571 = vrcp.pop %v5569
    %v5572 = vmul.f32 %v5561, %v5570
    %v5573 = vmul.f32 %v5563, %v5571
    %v5574 = vpack.c.bf16 %v5573, %v5572
    %5575 = vrot.lane.b32.xlu0 %v5452, 56
    %v5576 = vpop.permute.xlu0 %5575
    %v5579 = vsel %vm448, %v5574, 0
    %5581 = vmatpush.bf16.msra.mxu0 0
    %5582 = vmatpush.bf16.msra.mxu0 0
    %5583 = vmatpush.bf16.msra.mxu0 0
    %5584 = vmatpush.bf16.msra.mxu0 0
    %5585 = vmatpush.bf16.msra.mxu0 0
    %5586 = vmatpush.bf16.msra.mxu0 0
    %5587 = vmatpush.bf16.msra.mxu0 0
    %5588 = vmatpush.bf16.msra.mxu0 %v5576
    %5589 = vmatmul.bf16.gmra.mxu0 %v5579
    %v5590 = vpop.f32.mrf.mxu0
    %v5591 = vadd.f32 0.0, %v5590
    %v5592 = vpop.f32.mrf.mxu0
    %v5593 = vadd.f32 0.0, %v5592
    %5594 = vdwg.mxu0
    %v5595 = vpack.c.bf16 %v5593, %v5591
    %v5597 = vsel %vm423, %v5595, 0
    %v5600 = vsel %vm568, %v5410, 0
    %5602 = vmatpush.bf16.msra.mxu0 0
    %5603 = vmatpush.bf16.msra.mxu0 0
    %5604 = vmatpush.bf16.msra.mxu0 0
    %5605 = vmatpush.bf16.msra.mxu0 0
    %5606 = vmatpush.bf16.msra.mxu0 0
    %5607 = vmatpush.bf16.msra.mxu0 0
    %5608 = vmatpush.bf16.msra.mxu0 0
    %5609 = vmatpush.bf16.msra.mxu0 %v5600
    %5610 = vmatmul.bf16.gmra.mxu0 %v5597
    %v5611 = vpop.f32.mrf.mxu0
    %v5612 = vadd.f32 0.0, %v5611
    %v5613 = vpop.f32.mrf.mxu0
    %v5614 = vadd.f32 0.0, %v5613
    %5615 = vdwg.mxu0
    %v5617 = vsel %vm423, %v5523, 0
    %v5620 = vsel %vm568, %v5409, 0
    %5622 = vmatpush.bf16.msra.mxu0 0
    %5623 = vmatpush.bf16.msra.mxu0 0
    %5624 = vmatpush.bf16.msra.mxu0 0
    %5625 = vmatpush.bf16.msra.mxu0 0
    %5626 = vmatpush.bf16.msra.mxu0 0
    %5627 = vmatpush.bf16.msra.mxu0 0
    %5628 = vmatpush.bf16.msra.mxu0 0
    %5629 = vmatpush.bf16.msra.mxu0 %v5620
    %5630 = vmatmul.bf16.gmra.mxu0 %v5617
    %v5631 = vpop.f32.mrf.mxu0
    %v5632 = vadd.f32 %v5612, %v5631
    %v5633 = vpop.f32.mrf.mxu0
    %v5634 = vadd.f32 %v5614, %v5633
    %5635 = vdwg.mxu0
    %5636 = vrot.lane.b32.xlu0 %v5452, 112
    %v5637 = vpop.permute.xlu0 %5636
    %5638 = vrot.lane.b32.xlu0 %v5452, 80
    %v5639 = vpop.permute.xlu0 %5638
    %v5641 = vsel %vm423, %v5637, 0
    %v5644 = vsel %vm423, %v5639, 0
    %5646 = vmatpush.bf16.xpose.msra.mxu0 0
    %5647 = vmatpush.bf16.xpose.msra.mxu0 0
    %5648 = vmatpush.bf16.xpose.msra.mxu0 0
    %5649 = vmatpush.bf16.xpose.msra.mxu0 0
    %5650 = vmatpush.bf16.xpose.msra.mxu0 0
    %5651 = vmatpush.bf16.xpose.msra.mxu0 0
    %5652 = vmatpush.bf16.xpose.msra.mxu0 0
    %5653 = vmatpush.bf16.xpose.msra.mxu0 %v5644
    %5654 = vmatmul.bf16.gmra.mxu0 %v5641
    %v5655 = vpop.f32.mrf.mxu0
    %v5656 = vadd.f32 0.0, %v5655
    %v5657 = vpop.f32.mrf.mxu0
    %v5658 = vadd.f32 0.0, %v5657
    %5659 = vdwg.mxu0
    %v5660 = vmul.f32 %v5656, 0.35355338
    %v5661 = vmul.f32 %v5658, 0.35355338
    %v5662 = vadd.f32 %v5660, %v274
    %v5663 = vadd.f32 %v5661, %v275
    %v5664 = vsel %vm448, %v5662, -inf
    %5665 = vmax.xlane.f32.xlu0 %v5664
    %v5666 = vpop.xlane.xlu0 %5665
    %v5667 = vsel %vm448, %v5663, -inf
    %5668 = vmax.xlane.f32.xlu0 %v5667
    %v5669 = vpop.xlane.xlu0 %5668
    %v5670 = vsub.f32 %v5662, %v5666
    %v5671 = vsub.f32 %v5663, %v5669
    %v5672 = vmul.f32 %v5670, 1.442695
    %v5673 = vpow.pop %v5672
    %v5674 = vmul.f32 %v5671, 1.442695
    %v5675 = vpow.pop %v5674
    %v5676 = vsel %vm448, %v5673, 0.0
    %5677 = vadd.xlane.f32.xlu0 %v5676
    %v5678 = vpop.xlane.xlu0 %5677
    %v5679 = vsel %vm448, %v5675, 0.0
    %5680 = vadd.xlane.f32.xlu0 %v5679
    %v5681 = vpop.xlane.xlu0 %5680
    %v5682 = vrcp.pop %v5678
    %v5683 = vrcp.pop %v5681
    %v5684 = vmul.f32 %v5673, %v5682
    %v5685 = vmul.f32 %v5675, %v5683
    %v5686 = vpack.c.bf16 %v5685, %v5684
    %5687 = vrot.lane.b32.xlu0 %v5452, 48
    %v5688 = vpop.permute.xlu0 %5687
    %v5691 = vsel %vm448, %v5686, 0
    %5693 = vmatpush.bf16.msra.mxu0 0
    %5694 = vmatpush.bf16.msra.mxu0 0
    %5695 = vmatpush.bf16.msra.mxu0 0
    %5696 = vmatpush.bf16.msra.mxu0 0
    %5697 = vmatpush.bf16.msra.mxu0 0
    %5698 = vmatpush.bf16.msra.mxu0 0
    %5699 = vmatpush.bf16.msra.mxu0 0
    %5700 = vmatpush.bf16.msra.mxu0 %v5688
    %5701 = vmatmul.bf16.gmra.mxu0 %v5691
    %v5702 = vpop.f32.mrf.mxu0
    %v5703 = vadd.f32 0.0, %v5702
    %v5704 = vpop.f32.mrf.mxu0
    %v5705 = vadd.f32 0.0, %v5704
    %5706 = vdwg.mxu0
    %v5707 = vpack.c.bf16 %v5705, %v5703
    %v5709 = vsel %vm423, %v5707, 0
    %v5712 = vsel %vm568, %v5411, 0
    %5714 = vmatpush.bf16.msra.mxu0 0
    %5715 = vmatpush.bf16.msra.mxu0 0
    %5716 = vmatpush.bf16.msra.mxu0 0
    %5717 = vmatpush.bf16.msra.mxu0 0
    %5718 = vmatpush.bf16.msra.mxu0 0
    %5719 = vmatpush.bf16.msra.mxu0 0
    %5720 = vmatpush.bf16.msra.mxu0 0
    %5721 = vmatpush.bf16.msra.mxu0 %v5712
    %5722 = vmatmul.bf16.gmra.mxu0 %v5709
    %v5723 = vpop.f32.mrf.mxu0
    %v5724 = vadd.f32 0.0, %v5723
    %v5725 = vpop.f32.mrf.mxu0
    %v5726 = vadd.f32 0.0, %v5725
    %5727 = vdwg.mxu0
    %v5728 = vadd.f32 %v5632, %v5724
    %v5729 = vadd.f32 %v5634, %v5726
    %5730 = vrot.lane.b32.xlu0 %v5452, 104
    %v5731 = vpop.permute.xlu0 %5730
    %5732 = vrot.lane.b32.xlu0 %v5452, 72
    %v5733 = vpop.permute.xlu0 %5732
    %v5735 = vsel %vm423, %v5731, 0
    %v5738 = vsel %vm423, %v5733, 0
    %5740 = vmatpush.bf16.xpose.msra.mxu0 0
    %5741 = vmatpush.bf16.xpose.msra.mxu0 0
    %5742 = vmatpush.bf16.xpose.msra.mxu0 0
    %5743 = vmatpush.bf16.xpose.msra.mxu0 0
    %5744 = vmatpush.bf16.xpose.msra.mxu0 0
    %5745 = vmatpush.bf16.xpose.msra.mxu0 0
    %5746 = vmatpush.bf16.xpose.msra.mxu0 0
    %5747 = vmatpush.bf16.xpose.msra.mxu0 %v5738
    %5748 = vmatmul.bf16.gmra.mxu0 %v5735
    %v5749 = vpop.f32.mrf.mxu0
    %v5750 = vadd.f32 0.0, %v5749
    %v5751 = vpop.f32.mrf.mxu0
    %v5752 = vadd.f32 0.0, %v5751
    %5753 = vdwg.mxu0
    %v5754 = vmul.f32 %v5750, 0.35355338
    %v5755 = vmul.f32 %v5752, 0.35355338
    %v5756 = vadd.f32 %v5754, %v274
    %v5757 = vadd.f32 %v5755, %v275
    %v5758 = vsel %vm448, %v5756, -inf
    %5759 = vmax.xlane.f32.xlu0 %v5758
    %v5760 = vpop.xlane.xlu0 %5759
    %v5761 = vsel %vm448, %v5757, -inf
    %5762 = vmax.xlane.f32.xlu0 %v5761
    %v5763 = vpop.xlane.xlu0 %5762
    %v5764 = vsub.f32 %v5756, %v5760
    %v5765 = vsub.f32 %v5757, %v5763
    %v5766 = vmul.f32 %v5764, 1.442695
    %v5767 = vpow.pop %v5766
    %v5768 = vmul.f32 %v5765, 1.442695
    %v5769 = vpow.pop %v5768
    %v5770 = vsel %vm448, %v5767, 0.0
    %5771 = vadd.xlane.f32.xlu0 %v5770
    %v5772 = vpop.xlane.xlu0 %5771
    %v5773 = vsel %vm448, %v5769, 0.0
    %5774 = vadd.xlane.f32.xlu0 %v5773
    %v5775 = vpop.xlane.xlu0 %5774
    %v5776 = vrcp.pop %v5772
    %v5777 = vrcp.pop %v5775
    %v5778 = vmul.f32 %v5767, %v5776
    %v5779 = vmul.f32 %v5769, %v5777
    %v5780 = vpack.c.bf16 %v5779, %v5778
    %5781 = vrot.lane.b32.xlu0 %v5452, 40
    %v5782 = vpop.permute.xlu0 %5781
    %v5785 = vsel %vm448, %v5780, 0
    %5787 = vmatpush.bf16.msra.mxu0 0
    %5788 = vmatpush.bf16.msra.mxu0 0
    %5789 = vmatpush.bf16.msra.mxu0 0
    %5790 = vmatpush.bf16.msra.mxu0 0
    %5791 = vmatpush.bf16.msra.mxu0 0
    %5792 = vmatpush.bf16.msra.mxu0 0
    %5793 = vmatpush.bf16.msra.mxu0 0
    %5794 = vmatpush.bf16.msra.mxu0 %v5782
    %5795 = vmatmul.bf16.gmra.mxu0 %v5785
    %v5796 = vpop.f32.mrf.mxu0
    %v5797 = vadd.f32 0.0, %v5796
    %v5798 = vpop.f32.mrf.mxu0
    %v5799 = vadd.f32 0.0, %v5798
    %5800 = vdwg.mxu0
    %v5801 = vpack.c.bf16 %v5799, %v5797
    %v5803 = vsel %vm423, %v5801, 0
    %v5806 = vsel %vm568, %v5412, 0
    %5808 = vmatpush.bf16.msra.mxu0 0
    %5809 = vmatpush.bf16.msra.mxu0 0
    %5810 = vmatpush.bf16.msra.mxu0 0
    %5811 = vmatpush.bf16.msra.mxu0 0
    %5812 = vmatpush.bf16.msra.mxu0 0
    %5813 = vmatpush.bf16.msra.mxu0 0
    %5814 = vmatpush.bf16.msra.mxu0 0
    %5815 = vmatpush.bf16.msra.mxu0 %v5806
    %5816 = vmatmul.bf16.gmra.mxu0 %v5803
    %v5817 = vpop.f32.mrf.mxu0
    %v5818 = vadd.f32 0.0, %v5817
    %v5819 = vpop.f32.mrf.mxu0
    %v5820 = vadd.f32 0.0, %v5819
    %5821 = vdwg.mxu0
    %v5822 = vadd.f32 %v5728, %v5818
    %v5823 = vadd.f32 %v5729, %v5820
    %v5824 = vadd.f32 %v5399, %v5822
    %v5825 = vadd.f32 %v5400, %v5823
    %v5827 = vperm.slane %v5414, 0
    %v5829 = vadd.f32 %v5824, %v5827
    %v5830 = vadd.f32 %v5825, %v5827
    %v5831 = vsel %vm281, %v5829, 0.0
    %5832 = vadd.xlane.f32.xlu0 %v5831
    %v5833 = vpop.xlane.xlu0 %5832
    %v5834 = vsel %vm281, %v5830, 0.0
    %5835 = vadd.xlane.f32.xlu0 %v5834
    %v5836 = vpop.xlane.xlu0 %5835
    %v5837 = vmul.f32 %v5833, %v325
    %v5838 = vmul.f32 %v5836, %v325
    %v5839 = vsub.f32 %v5829, %v5837
    %v5840 = vsub.f32 %v5830, %v5838
    %v5841 = vmul.f32 %v5839, %v5839
    %v5842 = vmul.f32 %v5840, %v5840
    %v5843 = vsel %vm281, %v5841, 0.0
    %5844 = vadd.xlane.f32.xlu0 %v5843
    %v5845 = vpop.xlane.xlu0 %5844
    %v5846 = vsel %vm281, %v5842, 0.0
    %5847 = vadd.xlane.f32.xlu0 %v5846
    %v5848 = vpop.xlane.xlu0 %5847
    %v5849 = vmul.f32 %v5845, %v325
    %v5850 = vmul.f32 %v5848, %v325
    %v5851 = vadd.f32 %v5849, 1e-12
    %v5852 = vadd.f32 %v5850, 1e-12
    %v5853 = vrsqrt.pop %v5851
    %v5854 = vmul.f32 %v5853, %v5851
    %v5855 = vmul.f32 %v5854, %v5853
    %v5856 = vmul.f32 0.5, %v5855
    %v5857 = vsub.f32 1.5, %v5856
    %v5858 = vmul.f32 %v5853, %v5857
    %vm5859 = vweird.f32 %v5851
    %vm5860 = vweird.f32 %v5853
    %vm5861 = vmor %vm5859, %vm5860
    %v5862 = vsel %vm5861, %v5853, %v5858
    %v5863 = vrsqrt.pop %v5852
    %v5864 = vmul.f32 %v5863, %v5852
    %v5865 = vmul.f32 %v5864, %v5863
    %v5866 = vmul.f32 0.5, %v5865
    %v5867 = vsub.f32 1.5, %v5866
    %v5868 = vmul.f32 %v5863, %v5867
    %vm5869 = vweird.f32 %v5852
    %vm5870 = vweird.f32 %v5863
    %vm5871 = vmor %vm5869, %vm5870
    %v5872 = vsel %vm5871, %v5863, %v5868
    %v5873 = vmul.f32 %v5839, %v5862
    %v5874 = vmul.f32 %v5840, %v5872
    %v5876 = vperm.slane %v5416, 0
    %v5878 = vmul.f32 %v5873, %v5876
    %v5879 = vmul.f32 %v5874, %v5876
    %v5881 = vperm.slane %v5418, 0
    %v5883 = vadd.f32 %v5878, %v5881
    %v5884 = vadd.f32 %v5879, %v5881
    %s5885 = scalar_lea.vmem %s69, 16
    %v5886 = vld [vmem:[%s5885] sm:$0xf]
    %v5887 = vld [vmem:[%s5885 + $0x4] sm:$0xf]
    %v5888 = vld [vmem:[%s5885 + $0x8] sm:$0xf]
    %v5889 = vld [vmem:[%s5885 + $0xc] sm:$0xf]
    %s5890 = scalar_lea.vmem %s71, 1
    %v5891 = vld [vmem:[%s5890] sm:$0x1]
    %v5893 = vperm.slane %v5891, 0
    %v5899 = vunpack.c.l.b16 %v5886
    %v5900 = vunpack.c.l.b16 %v5887
    %v5901 = vunpack.c.l.b16 %v5888
    %v5902 = vunpack.c.l.b16 %v5889
    %v5903 = vpack.c.b16 %v5900, %v5899
    %v5904 = vpack.c.b16 %v5902, %v5901
    %5907 = vmatpush.bf16.msra.mxu0 0
    %5908 = vmatpush.bf16.msra.mxu0 0
    %5909 = vmatpush.bf16.msra.mxu0 0
    %5910 = vmatpush.bf16.msra.mxu0 0
    %5911 = vmatpush.bf16.msra.mxu0 0
    %5912 = vmatpush.bf16.msra.mxu0 0
    %5913 = vmatpush.bf16.msra.mxu0 %v5904
    %5914 = vmatpush.bf16.msra.mxu0 %v5903
    %5915 = vmatmul.bf16.gmra.mxu0 %v5059
    %v5916 = vpop.f32.mrf.mxu0
    %v5917 = vadd.f32 %v5893, %v5916
    %v5918 = vpop.f32.mrf.mxu0
    %5919 = vdwg.mxu0
    %v5920 = vpack.c.bf16 %v5917, %v5917
    %s5921 = scalar_lea.vmem %s73, 16
    %v5922 = vld [vmem:[%s5921] sm:$0xf]
    %v5923 = vld [vmem:[%s5921 + $0x4] sm:$0xf]
    %v5924 = vld [vmem:[%s5921 + $0x8] sm:$0xf]
    %v5925 = vld [vmem:[%s5921 + $0xc] sm:$0xf]
    %s5926 = scalar_lea.vmem %s75, 1
    %v5927 = vld [vmem:[%s5926] sm:$0x1]
    %v5929 = vperm.slane %v5927, 0
    %v5935 = vunpack.c.l.b16 %v5922
    %v5936 = vunpack.c.l.b16 %v5923
    %v5937 = vunpack.c.l.b16 %v5924
    %v5938 = vunpack.c.l.b16 %v5925
    %v5939 = vpack.c.b16 %v5936, %v5935
    %v5940 = vpack.c.b16 %v5938, %v5937
    %v5944 = vsel %vm281, %v5920, 0
    %5946 = vmatpush.bf16.msra.mxu0 0
    %5947 = vmatpush.bf16.msra.mxu0 0
    %5948 = vmatpush.bf16.msra.mxu0 0
    %5949 = vmatpush.bf16.msra.mxu0 0
    %5950 = vmatpush.bf16.msra.mxu0 0
    %5951 = vmatpush.bf16.msra.mxu0 0
    %5952 = vmatpush.bf16.msra.mxu0 %v5940
    %5953 = vmatpush.bf16.msra.mxu0 %v5939
    %5954 = vmatmul.bf16.gmra.mxu0 %v5944
    %v5955 = vpop.f32.mrf.mxu0
    %v5956 = vadd.f32 %v5929, %v5955
    %v5957 = vpop.f32.mrf.mxu0
    %5958 = vdwg.mxu0
    %v5959 = vperm.slane %v5956, 0
    %v5960 = vperm.slane %v5956, 1
    %v5961 = vadd.f32 %v5883, %v5959
    %v5962 = vadd.f32 %v5884, %v5960
    %s5963 = scalar_lea.vmem %s77, 1
    %v5964 = vld [vmem:[%s5963] sm:$0x1]
    %s5965 = scalar_lea.vmem %s79, 1
    %v5966 = vld [vmem:[%s5965] sm:$0x1]
    %v5967 = vsel %vm281, %v5961, 0.0
    %5968 = vadd.xlane.f32.xlu0 %v5967
    %v5969 = vpop.xlane.xlu0 %5968
    %v5970 = vsel %vm281, %v5962, 0.0
    %5971 = vadd.xlane.f32.xlu0 %v5970
    %v5972 = vpop.xlane.xlu0 %5971
    %v5973 = vmul.f32 %v5969, %v325
    %v5974 = vmul.f32 %v5972, %v325
    %v5975 = vsub.f32 %v5961, %v5973
    %v5976 = vsub.f32 %v5962, %v5974
    %v5977 = vmul.f32 %v5975, %v5975
    %v5978 = vmul.f32 %v5976, %v5976
    %v5979 = vsel %vm281, %v5977, 0.0
    %5980 = vadd.xlane.f32.xlu0 %v5979
    %v5981 = vpop.xlane.xlu0 %5980
    %v5982 = vsel %vm281, %v5978, 0.0
    %5983 = vadd.xlane.f32.xlu0 %v5982
    %v5984 = vpop.xlane.xlu0 %5983
    %v5985 = vmul.f32 %v5981, %v325
    %v5986 = vmul.f32 %v5984, %v325
    %v5987 = vadd.f32 %v5985, 1e-12
    %v5988 = vadd.f32 %v5986, 1e-12
    %v5989 = vrsqrt.pop %v5987
    %v5990 = vmul.f32 %v5989, %v5987
    %v5991 = vmul.f32 %v5990, %v5989
    %v5992 = vmul.f32 0.5, %v5991
    %v5993 = vsub.f32 1.5, %v5992
    %v5994 = vmul.f32 %v5989, %v5993
    %vm5995 = vweird.f32 %v5987
    %vm5996 = vweird.f32 %v5989
    %vm5997 = vmor %vm5995, %vm5996
    %v5998 = vsel %vm5997, %v5989, %v5994
    %v5999 = vrsqrt.pop %v5988
    %v6000 = vmul.f32 %v5999, %v5988
    %v6001 = vmul.f32 %v6000, %v5999
    %v6002 = vmul.f32 0.5, %v6001
    %v6003 = vsub.f32 1.5, %v6002
    %v6004 = vmul.f32 %v5999, %v6003
    %vm6005 = vweird.f32 %v5988
    %vm6006 = vweird.f32 %v5999
    %vm6007 = vmor %vm6005, %vm6006
    %v6008 = vsel %vm6007, %v5999, %v6004
    %v6009 = vmul.f32 %v5975, %v5998
    %v6010 = vmul.f32 %v5976, %v6008
    %v6012 = vperm.slane %v5964, 0
    %v6014 = vmul.f32 %v6009, %v6012
    %v6015 = vmul.f32 %v6010, %v6012
    %v6017 = vperm.slane %v5966, 0
    %v6019 = vadd.f32 %v6014, %v6017
    %v6020 = vadd.f32 %v6015, %v6017
    %s6021 = scalar_lea.vmem %s81, 16
    %v6022 = vld [vmem:[%s6021] sm:$0xf]
    %v6023 = vld [vmem:[%s6021 + $0x4] sm:$0xf]
    %v6024 = vld [vmem:[%s6021 + $0x8] sm:$0xf]
    %v6025 = vld [vmem:[%s6021 + $0xc] sm:$0xf]
    %s6026 = scalar_lea.vmem %s83, 1
    %v6027 = vld [vmem:[%s6026] sm:$0x1]
    %s6028 = scalar_lea.vmem %s85, 32
    %v6029 = vld [vmem:[%s6028] sm:$0xf]
    %v6030 = vld [vmem:[%s6028 + $0x4] sm:$0xf]
    %v6031 = vld [vmem:[%s6028 + $0x8] sm:$0xf]
    %v6032 = vld [vmem:[%s6028 + $0xc] sm:$0xf]
    %v6033 = vld [vmem:[%s6028 + $0x10] sm:$0xf]
    %v6034 = vld [vmem:[%s6028 + $0x14] sm:$0xf]
    %v6035 = vld [vmem:[%s6028 + $0x18] sm:$0xf]
    %v6036 = vld [vmem:[%s6028 + $0x1c] sm:$0xf]
    %s6037 = scalar_lea.vmem %s87, 1
    %v6038 = vld [vmem:[%s6037] sm:$0x1]
    %s6039 = scalar_lea.vmem %s89, 1
    %v6040 = vld [vmem:[%s6039] sm:$0x1]
    %s6041 = scalar_lea.vmem %s91, 1
    %v6042 = vld [vmem:[%s6041] sm:$0x1]
    %v6043 = vpack.c.bf16 %v6020, %v6019
    %v6045 = vperm.slane %v6027, 0
    %v6051 = vunpack.c.l.b16 %v6022
    %v6052 = vunpack.c.l.b16 %v6023
    %v6053 = vunpack.c.l.b16 %v6024
    %v6054 = vunpack.c.l.b16 %v6025
    %v6055 = vpack.c.b16 %v6052, %v6051
    %v6056 = vpack.c.b16 %v6054, %v6053
    %v6060 = vsel %vm281, %v6043, 0
    %6062 = vmatpush.bf16.msra.mxu0 0
    %6063 = vmatpush.bf16.msra.mxu0 0
    %6064 = vmatpush.bf16.msra.mxu0 0
    %6065 = vmatpush.bf16.msra.mxu0 0
    %6066 = vmatpush.bf16.msra.mxu0 0
    %6067 = vmatpush.bf16.msra.mxu0 0
    %6068 = vmatpush.bf16.msra.mxu0 %v6056
    %6069 = vmatpush.bf16.msra.mxu0 %v6055
    %6070 = vmatmul.bf16.gmra.mxu0 %v6060
    %v6071 = vpop.f32.mrf.mxu0
    %v6072 = vadd.f32 %v6045, %v6071
    %v6073 = vpop.f32.mrf.mxu0
    %v6074 = vadd.f32 %v6045, %v6073
    %6075 = vdwg.mxu0
    %v6076 = vmul.f32 %v6072, 0.5
    %v6077 = vmul.f32 %v6074, 0.5
    %v6078 = vmul.f32 %v6072, 0.70710677
    %v6079 = vmul.f32 %v6074, 0.70710677
    %v6080 = vand.u32 2147483647, %v6078
    %v6081 = vand.u32 2147483647, %v6079
    %v6082 = vmul.f32 %v6080, 0.3275911
    %v6083 = vmul.f32 %v6081, 0.3275911
    %v6084 = vadd.f32 %v6082, 1.0
    %v6085 = vadd.f32 %v6083, 1.0
    %v6086 = vrcp.pop %v6084
    %v6087 = vmul.f32 %v6084, %v6086
    %v6088 = vsub.f32 1.0, %v6087
    %v6089 = vmul.f32 %v6086, %v6088
    %v6090 = vadd.f32 %v6086, %v6089
    %vm6091 = vweird.f32 %v6084
    %vm6092 = vweird.f32 %v6086
    %vm6093 = vmor %vm6091, %vm6092
    %v6094 = vsel %vm6093, %v6086, %v6090
    %v6095 = vand.u32 2147483647, %v6084
    %vm6096 = vcmp.eq.f32.partialorder %v6095, 8.507059e+37
    %v6097 = vand.u32 %v6084, 2147483648
    %v6098 = vor.u32 1.1754944e-38, %v6097
    %v6099 = vsel %vm6096, %v6098, %v6094
    %v6100 = vmul.f32 1.0, %v6099
    %v6101 = vrcp.pop %v6085
    %v6102 = vmul.f32 %v6085, %v6101
    %v6103 = vsub.f32 1.0, %v6102
    %v6104 = vmul.f32 %v6101, %v6103
    %v6105 = vadd.f32 %v6101, %v6104
    %vm6106 = vweird.f32 %v6085
    %vm6107 = vweird.f32 %v6101
    %vm6108 = vmor %vm6106, %vm6107
    %v6109 = vsel %vm6108, %v6101, %v6105
    %v6110 = vand.u32 2147483647, %v6085
    %vm6111 = vcmp.eq.f32.partialorder %v6110, 8.507059e+37
    %v6112 = vand.u32 %v6085, 2147483648
    %v6113 = vor.u32 1.1754944e-38, %v6112
    %v6114 = vsel %vm6111, %v6113, %v6109
    %v6115 = vmul.f32 1.0, %v6114
    %v6116 = vmul.f32 %v6100, 1.0614054
    %v6117 = vmul.f32 %v6115, 1.0614054
    %v6118 = vsub.f32 %v6116, 1.4531521
    %v6119 = vsub.f32 %v6117, 1.4531521
    %v6120 = vmul.f32 %v6118, %v6100
    %v6121 = vmul.f32 %v6119, %v6115
    %v6122 = vadd.f32 %v6120, 1.4214138
    %v6123 = vadd.f32 %v6121, 1.4214138
    %v6124 = vmul.f32 %v6122, %v6100
    %v6125 = vmul.f32 %v6123, %v6115
    %v6126 = vsub.f32 %v6124, 0.28449672
    %v6127 = vsub.f32 %v6125, 0.28449672
    %v6128 = vmul.f32 %v6126, %v6100
    %v6129 = vmul.f32 %v6127, %v6115
    %v6130 = vadd.f32 %v6128, 0.2548296
    %v6131 = vadd.f32 %v6129, 0.2548296
    %v6132 = vmul.f32 %v6130, %v6100
    %v6133 = vmul.f32 %v6131, %v6115
    %v6134 = vsub.f32 0.0, %v6080
    %v6135 = vsub.f32 0.0, %v6081
    %v6136 = vmul.f32 %v6134, %v6080
    %v6137 = vmul.f32 %v6135, %v6081
    %v6138 = vmul.f32 %v6136, 1.442695
    %v6139 = vpow.pop %v6138
    %v6140 = vmul.f32 %v6137, 1.442695
    %v6141 = vpow.pop %v6140
    %v6142 = vmul.f32 %v6132, %v6139
    %v6143 = vmul.f32 %v6133, %v6141
    %v6144 = vsub.f32 1.0, %v6142
    %v6145 = vsub.f32 1.0, %v6143
    %vm6146 = vcmp.ge.f32.partialorder %v6078, 0.0
    %vm6147 = vcmp.ge.f32.partialorder %v6079, 0.0
    %v6148 = vsub.f32 0.0, %v6144
    %v6149 = vsub.f32 0.0, %v6145
    %v6150 = vsel %vm6146, %v6144, %v6148
    %v6151 = vsel %vm6147, %v6145, %v6149
    %v6152 = vadd.f32 %v6150, 1.0
    %v6153 = vadd.f32 %v6151, 1.0
    %v6154 = vmul.f32 %v6076, %v6152
    %v6155 = vmul.f32 %v6077, %v6153
    %v6156 = vpack.c.bf16 %v6155, %v6154
    %v6158 = vperm.slane %v6038, 0
    %v6168 = vunpack.c.l.b16 %v6029
    %v6169 = vunpack.c.l.b16 %v6030
    %v6170 = vunpack.c.l.b16 %v6031
    %v6171 = vunpack.c.l.b16 %v6032
    %v6172 = vunpack.c.l.b16 %v6033
    %v6173 = vunpack.c.l.b16 %v6034
    %v6174 = vunpack.c.l.b16 %v6035
    %v6175 = vunpack.c.l.b16 %v6036
    %v6176 = vpack.c.b16 %v6169, %v6168
    %v6177 = vpack.c.b16 %v6171, %v6170
    %v6178 = vpack.c.b16 %v6173, %v6172
    %v6179 = vpack.c.b16 %v6175, %v6174
    %v6185 = vsel %vm1012, %v6156, 0
    %6187 = vmatpush.bf16.msra.mxu0 0
    %6188 = vmatpush.bf16.msra.mxu0 0
    %6189 = vmatpush.bf16.msra.mxu0 0
    %6190 = vmatpush.bf16.msra.mxu0 0
    %6191 = vmatpush.bf16.msra.mxu0 %v6179
    %6192 = vmatpush.bf16.msra.mxu0 %v6178
    %6193 = vmatpush.bf16.msra.mxu0 %v6177
    %6194 = vmatpush.bf16.msra.mxu0 %v6176
    %6195 = vmatmul.bf16.gmra.mxu0 %v6185
    %v6196 = vpop.f32.mrf.mxu0
    %v6197 = vadd.f32 %v6158, %v6196
    %v6198 = vpop.f32.mrf.mxu0
    %v6199 = vadd.f32 %v6158, %v6198
    %6200 = vdwg.mxu0
    %v6201 = vadd.f32 %v6019, %v6197
    %v6202 = vadd.f32 %v6020, %v6199
    %v6203 = vsel %vm281, %v6201, 0.0
    %6204 = vadd.xlane.f32.xlu0 %v6203
    %v6205 = vpop.xlane.xlu0 %6204
    %v6206 = vsel %vm281, %v6202, 0.0
    %6207 = vadd.xlane.f32.xlu0 %v6206
    %v6208 = vpop.xlane.xlu0 %6207
    %v6209 = vmul.f32 %v6205, %v325
    %v6210 = vmul.f32 %v6208, %v325
    %v6211 = vsub.f32 %v6201, %v6209
    %v6212 = vsub.f32 %v6202, %v6210
    %v6213 = vmul.f32 %v6211, %v6211
    %v6214 = vmul.f32 %v6212, %v6212
    %v6215 = vsel %vm281, %v6213, 0.0
    %6216 = vadd.xlane.f32.xlu0 %v6215
    %v6217 = vpop.xlane.xlu0 %6216
    %v6218 = vsel %vm281, %v6214, 0.0
    %6219 = vadd.xlane.f32.xlu0 %v6218
    %v6220 = vpop.xlane.xlu0 %6219
    %v6221 = vmul.f32 %v6217, %v325
    %v6222 = vmul.f32 %v6220, %v325
    %v6223 = vadd.f32 %v6221, 1e-12
    %v6224 = vadd.f32 %v6222, 1e-12
    %v6225 = vrsqrt.pop %v6223
    %v6226 = vmul.f32 %v6225, %v6223
    %v6227 = vmul.f32 %v6226, %v6225
    %v6228 = vmul.f32 0.5, %v6227
    %v6229 = vsub.f32 1.5, %v6228
    %v6230 = vmul.f32 %v6225, %v6229
    %vm6231 = vweird.f32 %v6223
    %vm6232 = vweird.f32 %v6225
    %vm6233 = vmor %vm6231, %vm6232
    %v6234 = vsel %vm6233, %v6225, %v6230
    %v6235 = vrsqrt.pop %v6224
    %v6236 = vmul.f32 %v6235, %v6224
    %v6237 = vmul.f32 %v6236, %v6235
    %v6238 = vmul.f32 0.5, %v6237
    %v6239 = vsub.f32 1.5, %v6238
    %v6240 = vmul.f32 %v6235, %v6239
    %vm6241 = vweird.f32 %v6224
    %vm6242 = vweird.f32 %v6235
    %vm6243 = vmor %vm6241, %vm6242
    %v6244 = vsel %vm6243, %v6235, %v6240
    %v6245 = vmul.f32 %v6211, %v6234
    %v6246 = vmul.f32 %v6212, %v6244
    %v6248 = vperm.slane %v6040, 0
    %v6250 = vmul.f32 %v6245, %v6248
    %v6251 = vmul.f32 %v6246, %v6248
    %v6253 = vperm.slane %v6042, 0
    %v6255 = vadd.f32 %v6250, %v6253
    %v6256 = vadd.f32 %v6251, %v6253
    %v6257 = vpack.c.bf16 %v6256, %v6255
    %v6258 = vld [vmem:[%s93] sm:$0xf]
    %v6259 = vld [vmem:[%s93 + $0x4] sm:$0xf]
    %v6260 = vld [vmem:[%s93 + $0x8] sm:$0xf]
    %v6261 = vld [vmem:[%s93 + $0xc] sm:$0xf]
    %v6262 = vld [vmem:[#allocation5] sm:$0x1]
    %v6264 = vperm.slane %v6262, 0
    %v6270 = vunpack.c.l.b16 %v6258
    %v6271 = vunpack.c.l.b16 %v6259
    %v6272 = vunpack.c.l.b16 %v6260
    %v6273 = vunpack.c.l.b16 %v6261
    %v6274 = vpack.c.b16 %v6271, %v6270
    %v6275 = vpack.c.b16 %v6273, %v6272
    %v6279 = vsel %vm281, %v6257, 0
    %6281 = vmatpush.bf16.msra.mxu0 0
    %6282 = vmatpush.bf16.msra.mxu0 0
    %6283 = vmatpush.bf16.msra.mxu0 0
    %6284 = vmatpush.bf16.msra.mxu0 0
    %6285 = vmatpush.bf16.msra.mxu0 0
    %6286 = vmatpush.bf16.msra.mxu0 0
    %6287 = vmatpush.bf16.msra.mxu0 %v6275
    %6288 = vmatpush.bf16.msra.mxu0 %v6274
    %6289 = vmatmul.bf16.gmra.mxu0 %v6279
    %v6290 = vpop.f32.mrf.mxu0
    %v6291 = vadd.f32 %v6264, %v6290
    %v6292 = vpop.f32.mrf.mxu0
    %v6293 = vadd.f32 %v6264, %v6292
    %6294 = vdwg.mxu0
    %6295 = vst.msk [vmem:[#allocation7] sm:$0xff] %vm281, %v6291
    %6296 = vst.msk [vmem:[#allocation7 + $0x8] sm:$0xff] %vm281, %v6293
    %v6297 = vsel %vm281, %v6291, -inf
    %6298 = vmax.xlane.f32.xlu0 %v6297
    %v6299 = vpop.xlane.xlu0 %6298
    %v6300 = vsel %vm281, %v6293, -inf
    %6301 = vmax.xlane.f32.xlu0 %v6300
    %v6302 = vpop.xlane.xlu0 %6301
    %v6303 = vsub.f32 %v6291, %v6299
    %v6304 = vsub.f32 %v6293, %v6302
    %v6305 = vmul.f32 %v6303, 1.442695
    %v6306 = vpow.pop %v6305
    %v6307 = vmul.f32 %v6304, 1.442695
    %v6308 = vpow.pop %v6307
    %v6309 = vsel %vm281, %v6306, 0.0
    %6310 = vadd.xlane.f32.xlu0 %v6309
    %v6311 = vpop.xlane.xlu0 %6310
    %v6312 = vsel %vm281, %v6308, 0.0
    %6313 = vadd.xlane.f32.xlu0 %v6312
    %v6314 = vpop.xlane.xlu0 %6313
    %v6315 = vlog2.pop %v6311
    %v6316 = vmul.f32 %v6315, 0.6931472
    %v6317 = vlog2.pop %v6314
    %v6318 = vmul.f32 %v6317, 0.6931472
    %v6319 = vadd.f32 %v6316, %v6299
    %v6320 = vadd.f32 %v6318, %v6302
    %v6321 = vld [vmem:[%s3] sm:$0xff]
    %v6322 = vld [vmem:[%s3 + $0x8] sm:$0xff]
    %vm6323 = vcmask 1046528
    %v6324 = vrot.slane %v6321, 1
    %v6325 = vrot.slane %v6322, 1
    %v6326 = vsel %vm6323, %v6324, %v6325
    %v6327 = vsel %vm6323, %v6325, %v6324
    %6328 = vset.pattern.permute.xlu0 0
    %6329 = vperm.xlu0 %6328, %v6326
    %v6330 = vpop.permute.xlu0 %6329
    %6331 = vset.pattern.permute.xlu0 0
    %6332 = vperm.xlu0 %6331, %v6327
    %v6333 = vpop.permute.xlu0 %6332
    %vm6334 = vcmp.eq.s32.totalorder %v237, %v6330
    %vm6335 = vcmp.eq.s32.totalorder %v237, %v6333
    %v6336 = vsel %vm6334, %v6291, 0.0
    %v6337 = vsel %vm6335, %v6293, 0.0
    %v6338 = vsel %vm281, %v6336, 0.0
    %6339 = vadd.xlane.f32.xlu0 %v6338
    %v6340 = vpop.xlane.xlu0 %6339
    %v6341 = vsel %vm281, %v6337, 0.0
    %6342 = vadd.xlane.f32.xlu0 %v6341
    %v6343 = vpop.xlane.xlu0 %6342
    %vm6344 = vcmp.ne.s32.totalorder %v259, 7
    %vm6345 = vcmp.ne.s32.totalorder %v260, 7
    %v6346 = vsel %vm6344, 1, 0
    %v6347 = vsel %vm6345, 1, 0
    %v6348 = vcvt.s32.f32 %v6346
    %v6349 = vcvt.s32.f32 %v6347
    %v6350 = vsub.f32 %v6319, %v6340
    %v6351 = vsub.f32 %v6320, %v6343
    %v6352 = vmul.f32 %v6350, %v6348
    %v6353 = vmul.f32 %v6351, %v6349
    %v6354 = vadd.f32 %v6352, %v6353
    %v6355 = vrot.slane %v6354, 4
    %v6356 = vadd.f32 %v6354, %v6355
    %v6357 = vrot.slane %v6356, 2
    %v6358 = vadd.f32 %v6356, %v6357
    %v6359 = vrot.slane %v6358, 1
    %v6360 = vadd.f32 %v6358, %v6359
    %v6361 = vsel %vm4473, %v4471, 0.0
    %6362 = vadd.xlane.f32.xlu0 %v6361
    %v6363 = vpop.xlane.xlu0 %6362
    %v6364 = vsel %vm1968, %v6363, 0.0
    %v6365 = vrot.slane %v6364, 4
    %v6366 = vadd.f32 %v6364, %v6365
    %v6367 = vrot.slane %v6366, 2
    %v6368 = vadd.f32 %v6366, %v6367
    %v6369 = vrot.slane %v6368, 1
    %v6370 = vadd.f32 %v6368, %v6369
    %v6371 = vmul.f32 %v6360, 0.071428575
    %v6372 = vmul.f32 %v6370, 0.00625
    %v6373 = vadd.f32 %v6371, %v6372
    %vm6374 = vcmask 0
    %6375 = vst.msk [vmem:[#allocation10] sm:$0x1] %vm6374, %v6373
    // Predicated region
    $region202: #{vq_forward.1} parent=1 // pred_check
      _
    $region203: #{vq_forward.1} parent=1 // pred_check_branch
      %6377 = sbr.rel (0) target = $region205
    $region204: #{vq_forward.1} parent=1 // pred_region
      %6379 = vsyncadd [#allocation4], 0
      %s6380 = sshll.u32 [#allocation7], 4
      %s6381 = int_to_ptr.vmem [resolvable:$true] %s6380
      %s6382 = sshll.u32 %s97, 4
      %s6383 = int_to_ptr.hbm [resolvable:$true] %s6382
      %6388 = dma.vmem_to_hbm [thread:$0]  %s6381, 256, %s6383, [#allocation4], 128, 128, 8
    $region205: #{vq_forward.1} parent=1 // pred_fallthru
      _
    // Predicated region
    $region206: #{vq_forward.1} parent=1 // pred_check
      _
    $region207: #{vq_forward.1} parent=1 // pred_check_branch
      %6390 = sbr.rel (0) target = $region209
    $region208: #{vq_forward.1} parent=1 // pred_region
      %6392 = vsyncadd [#allocation9], 0
      %s6394 = sshll.u32 [#allocation8], 4
      %s6395 = int_to_ptr.vmem [resolvable:$true] %s6394
      %s6396 = sshll.u32 %s99, 4
      %s6397 = int_to_ptr.hbm [resolvable:$true] %s6396
      %6399 = dma.vmem_to_hbm [thread:$0]  %s6395, 32, %s6397, [#allocation9]
    $region209: #{vq_forward.1} parent=1 // pred_fallthru
      _
    // Predicated region
    $region210: #{vq_forward.1} parent=1 // pred_check
      _
    $region211: #{vq_forward.1} parent=1 // pred_check_branch
      %6401 = sbr.rel (0) target = $region213
    $region212: #{vq_forward.1} parent=1 // pred_region
      %6403 = vsyncadd [#allocation9], 0
      %s6405 = sshll.u32 [#allocation10], 4
      %s6406 = int_to_ptr.vmem [resolvable:$true] %s6405
      %s6407 = sshll.u32 %s101, 4
      %s6408 = int_to_ptr.hbm [resolvable:$true] %s6407
      %6410 = dma.vmem_to_hbm [thread:$0]  %s6406, 16, %s6408, [#allocation9]
    $region213: #{vq_forward.1} parent=1 // pred_fallthru
      _
    // Predicated region
    $region214: #{vq_forward.1} parent=1 // pred_check
      _
    $region215: #{vq_forward.1} parent=1 // pred_check_branch
      %6412 = sbr.rel (0) target = $region217
    $region216: #{vq_forward.1} parent=1 // pred_region
      %6414 = dma.done [#allocation4], 256
    $region217: #{vq_forward.1} parent=1 // pred_fallthru
      _
    // Predicated region
    $region218: #{vq_forward.1} parent=1 // pred_check
      _
    $region219: #{vq_forward.1} parent=1 // pred_check_branch
      %6416 = sbr.rel (0) target = $region221
    $region220: #{vq_forward.1} parent=1 // pred_region
      %6418 = dma.done [#allocation9], 32
    $region221: #{vq_forward.1} parent=1 // pred_fallthru
      _
    // Predicated region
    $region222: #{vq_forward.1} parent=1 // pred_check
      _
    $region223: #{vq_forward.1} parent=1 // pred_check_branch
      %6420 = sbr.rel (0) target = $region225
    $region224: #{vq_forward.1} parent=1 // pred_region
      %6422 = dma.done [#allocation9], 16
    $region225: #{vq_forward.1} parent=1 // pred_fallthru
      _
    %6423 = vsyncpa [#allocation3], 1
    %6424 = vsyncpa [#allocation6], 1
    %6425 = vsyncpa [#allocation4], 1
    %6426 = vsyncpa [#allocation9], 1

</llo_original>
